<compile_context>
chip_gen: v6e
topology: v6e:2x2x1
jax: 0.10.0
libtpu: 0.0.40
codegen_flags: <defaults>
</compile_context>

<pallas_src>
import functools

import jax
import jax.numpy as jnp
from jax.experimental import pallas as pl
from jax.experimental.pallas import tpu as pltpu


# ---------------------------------------------------------------------------
# Kernel
# ---------------------------------------------------------------------------

def _dense_conv3x3_kernel(*refs, TH, W, src_channels, C_out, act, alpha):
    """3x3 'same' conv over the channel-concatenation of several sources.

    refs layout:
      [center_0, top_0, bot_0, ..., center_{n-1}, top_{n-1}, bot_{n-1},
       w_slab, bias, out, pad_scratch]

    w_slab: (3, C_total, 3*C_out) — per-dy weight with the 3 dx taps concatenated
    along the output dim, so each dy is a single wide MXU matmul over all sources.
    """
    n_src = len(src_channels)
    C_total = sum(src_channels)
    src_refs = refs[:3 * n_src]
    w_ref = refs[3 * n_src]
    b_ref = refs[3 * n_src + 1]
    o_ref = refs[3 * n_src + 2]
    xp = refs[3 * n_src + 3]                    # (TH+2, W+2, C_total) VMEM scratch

    i = pl.program_id(1)
    last = pl.num_programs(1) - 1

    # 'same' padding: zero the left/right border columns (scratch is uninitialised
    # and grid steps may be sharded across cores, so do it every step — it's tiny).
    zcol = jnp.zeros((TH + 2, 1, C_total), xp.dtype)
    xp[:, 0:1, :] = zcol
    xp[:, W + 1:W + 2, :] = zcol

    # Scatter every source into its channel slab of the shared padded strip.
    # Halo rows come from the 1-row blocks (zeroed at the image top/bottom).
    off = 0
    for s in range(n_src):
        C_s = src_channels[s]
        c_ref, t_ref, btm_ref = src_refs[3 * s:3 * s + 3]
        zrow = jnp.zeros((1, W, C_s), xp.dtype)
        xp[1:TH + 1, 1:W + 1, off:off + C_s] = c_ref[0]
        xp[0:1, 1:W + 1, off:off + C_s] = jnp.where(i > 0, t_ref[0], zrow)
        xp[TH + 1:TH + 2, 1:W + 1, off:off + C_s] = jnp.where(i < last, btm_ref[0], zrow)
        off += C_s

    # 3x3 conv = 3 MXU matmuls (one per dy) with K = C_total and the dx taps
    # concatenated along N; the three dx-shifted slices are added on the VPU.
    acc = jnp.zeros((TH, W, C_out), jnp.float32)
    for dy in range(3):
        rows = xp[dy:dy + TH, :, :]                               # (TH, W+2, C_total)
        y = jnp.dot(rows.reshape(TH * (W + 2), C_total), w_ref[dy],
                    preferred_element_type=jnp.float32)
        y = y.reshape(TH, W + 2, 3 * C_out)
        acc = (acc
               + y[:, 0:W, 0:C_out]                               # dx = 0
               + y[:, 1:W + 1, C_out:2 * C_out]                   # dx = 1
               + y[:, 2:W + 2, 2 * C_out:3 * C_out])              # dx = 2

    acc = acc + b_ref[0][None, None, :]
    if act:
        acc = jnp.where(acc > 0, acc, alpha * acc)                # LeakyReLU(0.2)
    o_ref[0] = acc.astype(o_ref.dtype)


# ---------------------------------------------------------------------------
# Tiling helpers
# ---------------------------------------------------------------------------

def _vmem_footprint_bytes(TH, W, src_channels, C_out, act_bytes=2):
    C_total = sum(src_channels)
    total = 0
    for C_s in src_channels:
        total += 2 * (TH + 2) * W * C_s * act_bytes     # double-buffered strip + halo rows
    total += (TH + 2) * (W + 2) * C_total * act_bytes   # shared padded scratch
    total += 2 * 3 * C_total * 3 * C_out * act_bytes    # weight slab (double-buffered)
    total += 2 * TH * W * C_out * act_bytes             # double-buffered output strip
    total += TH * (W + 2) * 3 * C_out * 4               # per-dy matmul result (f32)
    total += TH * W * C_out * 4                         # f32 accumulator
    return total


def _choose_tile_h(H, W, src_channels, C_out, budget_bytes=4 * 1024 * 1024):
    """Largest divisor of H whose per-step VMEM footprint fits the budget."""
    best = 1
    for th in range(1, H + 1):
        if H % th == 0 and _vmem_footprint_bytes(th, W, src_channels, C_out) <= budget_bytes:
            best = th
    return best


# ---------------------------------------------------------------------------
# Wrapper: one ConVBlock (3x3, stride 1, pad 1, optional LeakyReLU(0.2))
# ---------------------------------------------------------------------------

def dense_conv3x3(sources, w_hwio, bias, *, act, compute_dtype=jnp.bfloat16,
                  out_dtype=None, tile_h=None):
    """Conv over concat(sources, channel axis) without materialising the concat.

    sources : list of NHWC arrays sharing (N, H, W) with different channel counts.
    w_hwio  : (3, 3, sum(C_s), C_out) weights.   bias: (C_out,).
    """
    N, H, W, _ = sources[0].shape
    C_out = int(w_hwio.shape[-1])
    src_channels = tuple(int(s.shape[-1]) for s in sources)
    C_total = sum(src_channels)
    assert C_total == w_hwio.shape[2]
    if out_dtype is None:
        out_dtype = compute_dtype

    TH = tile_h if tile_h is not None else _choose_tile_h(H, W, src_channels, C_out)
    assert H % TH == 0, "tile_h must divide H"
    n_strips = H // TH

    srcs = [s.astype(compute_dtype) for s in sources]
    w = w_hwio.astype(compute_dtype)
    bias_f32 = bias.astype(jnp.float32).reshape(1, C_out)

    # (3, 3, C_total, C_out) -> (3[dy], C_total, 3*C_out) with the dx taps
    # concatenated along the output dim: one wide MXU matmul per dy.
    w_slab = jnp.concatenate([w[:, 0], w[:, 1], w[:, 2]], axis=-1)

    in_specs, args = [], []
    for src, C_s in zip(srcs, src_channels):
        in_specs.append(pl.BlockSpec((1, TH, W, C_s),
                                     lambda n, i: (n, i, 0, 0)))
        # 1-row halo above / below the strip, clamped at the image border
        # (the kernel substitutes zeros on the first / last strip).
        in_specs.append(pl.BlockSpec((1, 1, W, C_s),
                                     lambda n, i: (n, jnp.maximum(i * TH - 1, 0), 0, 0)))
        in_specs.append(pl.BlockSpec((1, 1, W, C_s),
                                     lambda n, i: (n, jnp.minimum((i + 1) * TH, H - 1), 0, 0)))
        args += [src, src, src]
    # Constant index_maps -> weights / bias stay VMEM-resident across grid steps.
    in_specs.append(pl.BlockSpec((3, C_total, 3 * C_out), lambda n, i: (0, 0, 0)))
    args.append(w_slab)
    in_specs.append(pl.BlockSpec((1, C_out), lambda n, i: (0, 0)))
    args.append(bias_f32)

    scratch_shapes = [pltpu.VMEM((TH + 2, W + 2, C_total), compute_dtype)]

    footprint = _vmem_footprint_bytes(TH, W, src_channels, C_out)
    vmem_limit = int(min(64 * 1024 * 1024, max(32 * 1024 * 1024, 4 * footprint)))

    kernel = functools.partial(
        _dense_conv3x3_kernel, TH=TH, W=W, src_channels=src_channels,
        C_out=C_out, act=act, alpha=0.2)

    return pl.pallas_call(
        kernel,
        out_shape=jax.ShapeDtypeStruct((N, H, W, C_out), out_dtype),
        grid=(N, n_strips),
        in_specs=in_specs,
        out_specs=pl.BlockSpec((1, TH, W, C_out), lambda n, i: (n, i, 0, 0)),
        scratch_shapes=scratch_shapes,
        compiler_params=pltpu.CompilerParams(
            dimension_semantics=("parallel", "parallel"),
            vmem_limit_bytes=vmem_limit),
    )(*args)


# ---------------------------------------------------------------------------
# DenseBlock forward
# ---------------------------------------------------------------------------

def init_dense_block_params(key, in_c, out_c):
    """Deterministic parameters for the 5 ConVBlocks (HWIO weights)."""
    params = []
    for i in range(5):
        cin_i = in_c + i * out_c
        key, kw, kb = jax.random.split(key, 3)
        w = jax.random.normal(kw, (3, 3, cin_i, out_c), jnp.float32) / jnp.sqrt(9.0 * cin_i)
        b = 0.01 * jax.random.normal(kb, (out_c,), jnp.float32)
        params.append((w, b))
    return params


def dense_block_forward(x_nchw, params, beta=0.2, *, compute_dtype=jnp.bfloat16,
                        tile_h=None):
    """DenseBlock.forward: dense connectivity of 5 conv blocks + beta residual."""
    # Entry/exit transposes and the final residual add are plain-JAX glue.
    x = jnp.transpose(x_nchw, (0, 2, 3, 1)).astype(compute_dtype)   # NCHW -> NHWC
    feats = [x]
    out = None
    for i, (w, b) in enumerate(params):
        out = dense_conv3x3(feats, w, b, act=(i <= 3),
                            compute_dtype=compute_dtype, tile_h=tile_h)
        feats.append(out)                       # dense connectivity, no HBM concat
    y = x.astype(jnp.float32) + beta * out.astype(jnp.float32)
    return jnp.transpose(y, (0, 3, 1, 2)).astype(x_nchw.dtype)      # NHWC -> NCHW


# ---------------------------------------------------------------------------
# Pure-JAX reference (same bf16 activation storage / f32 accumulation)
# ---------------------------------------------------------------------------

def _reference_forward(x_nchw, params, beta=0.2, compute_dtype=jnp.bfloat16):
    x = jnp.transpose(x_nchw, (0, 2, 3, 1)).astype(compute_dtype)
    input_x = x
    out = None
    for i, (w, b) in enumerate(params):
        y = jax.lax.conv_general_dilated(
            input_x.astype(compute_dtype), w.astype(compute_dtype),
            window_strides=(1, 1), padding="SAME",
            dimension_numbers=("NHWC", "HWIO", "NHWC"),
            preferred_element_type=jnp.float32)
        y = y + b[None, None, None, :].astype(jnp.float32)
        if i <= 3:
            y = jnp.where(y > 0, y, 0.2 * y)
        out = y.astype(compute_dtype)
        input_x = jnp.concatenate([input_x, out], axis=-1)
    yf = x.astype(jnp.float32) + beta * out.astype(jnp.float32)
    return jnp.transpose(yf, (0, 3, 1, 2)).astype(x_nchw.dtype)


if __name__ == "__main__":
    # DenseBlock's residual (x + beta * conv5(...)) requires in_c == out_c.
    batch, ch, H, W = 2, 32, 16, 16
    beta = 0.2

    x = jax.random.normal(jax.random.PRNGKey(0), (batch, ch, H, W), jnp.float32)
    params = init_dense_block_params(jax.random.PRNGKey(42), ch, ch)

    # tile_h=8 -> 2 H-strips per image, so the halo-row path is exercised too.
    y = jax.block_until_ready(dense_block_forward(x, params, beta, tile_h=8))
    y_ref = jax.block_until_ready(_reference_forward(x, params, beta))

    assert y.shape == (batch, ch, H, W)
    max_err = float(jnp.max(jnp.abs(y - y_ref)))
    assert max_err < 2e-2, f"mismatch vs reference: max abs err = {max_err}"
    print("KERNEL_OK")
</pallas_src>

<mosaic_0001>
module attributes {stable_mosaic.version = 11 : i64} {
  func.func @_dense_conv3x3_kernel(%arg0: i32, %arg1: i32, %arg2: memref<1x8x16x32xbf16, #tpu.memory_space<vmem>>, %arg3: memref<1x1x16x32xbf16, #tpu.memory_space<vmem>>, %arg4: memref<1x1x16x32xbf16, #tpu.memory_space<vmem>>, %arg5: memref<3x32x96xbf16, #tpu.memory_space<vmem>>, %arg6: memref<1x32xf32, #tpu.memory_space<vmem>>, %arg7: memref<1x8x16x32xbf16, #tpu.memory_space<vmem>>, %arg8: memref<10x18x32xbf16, #tpu.memory_space<vmem>>) attributes {dimension_semantics = [#tpu.dimension_semantics<parallel>, #tpu.dimension_semantics<parallel>], iteration_bounds = array<i64: 2, 2>, scalar_prefetch = 0 : i64, scratch_operands = 1 : i64, tpu.core_type = #tpu.core_type<tc>, window_params = [{transform_indices = @transform_0, window_bounds = array<i64: 1, 8, 16, 32>}, {transform_indices = @transform_1, window_bounds = array<i64: 1, 1, 16, 32>}, {transform_indices = @transform_2, window_bounds = array<i64: 1, 1, 16, 32>}, {pipeline_mode = #tpu.pipeline_mode<synchronous>, transform_indices = @transform_3, window_bounds = array<i64: 3, 32, 96>}, {pipeline_mode = #tpu.pipeline_mode<synchronous>, transform_indices = @transform_4, window_bounds = array<i64: 1, 32>}, {transform_indices = @transform_5, window_bounds = array<i64: 1, 8, 16, 32>}]} {
    %cst = arith.constant 0.000000e+00 : bf16
    %0 = vector.broadcast %cst : bf16 to vector<10x1x32xbf16>
    %c0 = arith.constant 0 : index
    %c0_0 = arith.constant 0 : index
    %c0_1 = arith.constant 0 : index
    %1 = vector.load %arg8[%c0, %c0_0, %c0_1] : memref<10x18x32xbf16, #tpu.memory_space<vmem>>, vector<10x1x32xbf16>
    tpu.vector_store %arg8[%c0, %c0_0, %c0_1], %0 {strides = array<i32>} : memref<10x18x32xbf16, #tpu.memory_space<vmem>>, vector<10x1x32xbf16>,
    %c0_2 = arith.constant 0 : index
    %c17 = arith.constant 17 : index
    %c0_3 = arith.constant 0 : index
    %2 = vector.load %arg8[%c0_2, %c17, %c0_3] : memref<10x18x32xbf16, #tpu.memory_space<vmem>>, vector<10x1x32xbf16>
    tpu.vector_store %arg8[%c0_2, %c17, %c0_3], %0 {strides = array<i32>} : memref<10x18x32xbf16, #tpu.memory_space<vmem>>, vector<10x1x32xbf16>,
    %cst_4 = arith.constant 0.000000e+00 : bf16
    %3 = vector.broadcast %cst_4 : bf16 to vector<1x16x32xbf16>
    %c0_5 = arith.constant 0 : index
    %c0_6 = arith.constant 0 : index
    %c0_7 = arith.constant 0 : index
    %c0_8 = arith.constant 0 : index
    %4 = vector.load %arg2[%c0_5, %c0_6, %c0_7, %c0_8] : memref<1x8x16x32xbf16, #tpu.memory_space<vmem>>, vector<1x8x16x32xbf16>
    %5 = vector.shape_cast %4 : vector<1x8x16x32xbf16> to vector<8x16x32xbf16>
    %c1 = arith.constant 1 : index
    %c1_9 = arith.constant 1 : index
    %c0_10 = arith.constant 0 : index
    %6 = vector.load %arg8[%c1, %c1_9, %c0_10] : memref<10x18x32xbf16, #tpu.memory_space<vmem>>, vector<8x16x32xbf16>
    tpu.vector_store %arg8[%c1, %c1_9, %c0_10], %5 {strides = array<i32>} : memref<10x18x32xbf16, #tpu.memory_space<vmem>>, vector<8x16x32xbf16>,
    %c0_i32 = arith.constant 0 : i32
    %7 = arith.cmpi sgt, %arg1, %c0_i32 : i32
    %c0_11 = arith.constant 0 : index
    %c0_12 = arith.constant 0 : index
    %c0_13 = arith.constant 0 : index
    %c0_14 = arith.constant 0 : index
    %8 = vector.load %arg3[%c0_11, %c0_12, %c0_13, %c0_14] : memref<1x1x16x32xbf16, #tpu.memory_space<vmem>>, vector<1x1x16x32xbf16>
    %9 = vector.shape_cast %8 : vector<1x1x16x32xbf16> to vector<1x16x32xbf16>
    %10 = arith.select %7, %9, %3 : vector<1x16x32xbf16>
    %c0_15 = arith.constant 0 : index
    %c1_16 = arith.constant 1 : index
    %c0_17 = arith.constant 0 : index
    %11 = vector.load %arg8[%c0_15, %c1_16, %c0_17] : memref<10x18x32xbf16, #tpu.memory_space<vmem>>, vector<1x16x32xbf16>
    tpu.vector_store %arg8[%c0_15, %c1_16, %c0_17], %10 {strides = array<i32>} : memref<10x18x32xbf16, #tpu.memory_space<vmem>>, vector<1x16x32xbf16>,
    %c1_i32 = arith.constant 1 : i32
    %12 = arith.cmpi slt, %arg1, %c1_i32 : i32
    %c0_18 = arith.constant 0 : index
    %c0_19 = arith.constant 0 : index
    %c0_20 = arith.constant 0 : index
    %c0_21 = arith.constant 0 : index
    %13 = vector.load %arg4[%c0_18, %c0_19, %c0_20, %c0_21] : memref<1x1x16x32xbf16, #tpu.memory_space<vmem>>, vector<1x1x16x32xbf16>
    %14 = vector.shape_cast %13 : vector<1x1x16x32xbf16> to vector<1x16x32xbf16>
    %15 = arith.select %12, %14, %3 : vector<1x16x32xbf16>
    %c9 = arith.constant 9 : index
    %c1_22 = arith.constant 1 : index
    %c0_23 = arith.constant 0 : index
    %16 = vector.load %arg8[%c9, %c1_22, %c0_23] : memref<10x18x32xbf16, #tpu.memory_space<vmem>>, vector<1x16x32xbf16>
    tpu.vector_store %arg8[%c9, %c1_22, %c0_23], %15 {strides = array<i32>} : memref<10x18x32xbf16, #tpu.memory_space<vmem>>, vector<1x16x32xbf16>,
    %cst_24 = arith.constant 0.000000e+00 : f32
    %17 = vector.broadcast %cst_24 : f32 to vector<8x16x32xf32>
    %c0_25 = arith.constant 0 : index
    %c0_26 = arith.constant 0 : index
    %c0_27 = arith.constant 0 : index
    %18 = vector.load %arg8[%c0_25, %c0_26, %c0_27] : memref<10x18x32xbf16, #tpu.memory_space<vmem>>, vector<8x18x32xbf16>
    %19 = vector.shape_cast %18 : vector<8x18x32xbf16> to vector<144x32xbf16>
    %c0_28 = arith.constant 0 : index
    %c0_29 = arith.constant 0 : index
    %c0_30 = arith.constant 0 : index
    %20 = vector.load %arg5[%c0_28, %c0_29, %c0_30] : memref<3x32x96xbf16, #tpu.memory_space<vmem>>, vector<1x32x96xbf16>
    %21 = vector.shape_cast %20 : vector<1x32x96xbf16> to vector<32x96xbf16>
    %cst_31 = arith.constant dense<0.000000e+00> : vector<144x96xf32>
    %22 = tpu.matmul %19, %21, %cst_31 {dimension_numbers = #tpu.dot_dimension_numbers<[1], [0], [0], [1], [0, 0, 1, 1], [], []>} : vector<144x32xbf16>, vector<32x96xbf16>, vector<144x96xf32> -> vector<144x96xf32>
    %23 = vector.shape_cast %22 : vector<144x96xf32> to vector<8x18x96xf32>
    %24 = vector.extract_strided_slice %23 {offsets = [0, 0, 0], sizes = [8, 16, 32], strides = [1, 1, 1]} : vector<8x18x96xf32> to vector<8x16x32xf32>
    %25 = arith.addf %17, %24 : vector<8x16x32xf32>
    %26 = vector.extract_strided_slice %23 {offsets = [0, 1, 32], sizes = [8, 16, 32], strides = [1, 1, 1]} : vector<8x18x96xf32> to vector<8x16x32xf32>
    %27 = arith.addf %25, %26 : vector<8x16x32xf32>
    %28 = vector.extract_strided_slice %23 {offsets = [0, 2, 64], sizes = [8, 16, 32], strides = [1, 1, 1]} : vector<8x18x96xf32> to vector<8x16x32xf32>
    %29 = arith.addf %27, %28 : vector<8x16x32xf32>
    %c1_32 = arith.constant 1 : index
    %c0_33 = arith.constant 0 : index
    %c0_34 = arith.constant 0 : index
    %30 = vector.load %arg8[%c1_32, %c0_33, %c0_34] : memref<10x18x32xbf16, #tpu.memory_space<vmem>>, vector<8x18x32xbf16>
    %31 = vector.shape_cast %30 : vector<8x18x32xbf16> to vector<144x32xbf16>
    %c1_35 = arith.constant 1 : index
    %c0_36 = arith.constant 0 : index
    %c0_37 = arith.constant 0 : index
    %32 = vector.load %arg5[%c1_35, %c0_36, %c0_37] : memref<3x32x96xbf16, #tpu.memory_space<vmem>>, vector<1x32x96xbf16>
    %33 = vector.shape_cast %32 : vector<1x32x96xbf16> to vector<32x96xbf16>
    %cst_38 = arith.constant dense<0.000000e+00> : vector<144x96xf32>
    %34 = tpu.matmul %31, %33, %cst_38 {dimension_numbers = #tpu.dot_dimension_numbers<[1], [0], [0], [1], [0, 0, 1, 1], [], []>} : vector<144x32xbf16>, vector<32x96xbf16>, vector<144x96xf32> -> vector<144x96xf32>
    %35 = vector.shape_cast %34 : vector<144x96xf32> to vector<8x18x96xf32>
    %36 = vector.extract_strided_slice %35 {offsets = [0, 0, 0], sizes = [8, 16, 32], strides = [1, 1, 1]} : vector<8x18x96xf32> to vector<8x16x32xf32>
    %37 = arith.addf %29, %36 : vector<8x16x32xf32>
    %38 = vector.extract_strided_slice %35 {offsets = [0, 1, 32], sizes = [8, 16, 32], strides = [1, 1, 1]} : vector<8x18x96xf32> to vector<8x16x32xf32>
    %39 = arith.addf %37, %38 : vector<8x16x32xf32>
    %40 = vector.extract_strided_slice %35 {offsets = [0, 2, 64], sizes = [8, 16, 32], strides = [1, 1, 1]} : vector<8x18x96xf32> to vector<8x16x32xf32>
    %41 = arith.addf %39, %40 : vector<8x16x32xf32>
    %c2 = arith.constant 2 : index
    %c0_39 = arith.constant 0 : index
    %c0_40 = arith.constant 0 : index
    %42 = vector.load %arg8[%c2, %c0_39, %c0_40] : memref<10x18x32xbf16, #tpu.memory_space<vmem>>, vector<8x18x32xbf16>
    %43 = vector.shape_cast %42 : vector<8x18x32xbf16> to vector<144x32xbf16>
    %c2_41 = arith.constant 2 : index
    %c0_42 = arith.constant 0 : index
    %c0_43 = arith.constant 0 : index
    %44 = vector.load %arg5[%c2_41, %c0_42, %c0_43] : memref<3x32x96xbf16, #tpu.memory_space<vmem>>, vector<1x32x96xbf16>
    %45 = vector.shape_cast %44 : vector<1x32x96xbf16> to vector<32x96xbf16>
    %cst_44 = arith.constant dense<0.000000e+00> : vector<144x96xf32>
    %46 = tpu.matmul %43, %45, %cst_44 {dimension_numbers = #tpu.dot_dimension_numbers<[1], [0], [0], [1], [0, 0, 1, 1], [], []>} : vector<144x32xbf16>, vector<32x96xbf16>, vector<144x96xf32> -> vector<144x96xf32>
    %47 = vector.shape_cast %46 : vector<144x96xf32> to vector<8x18x96xf32>
    %48 = vector.extract_strided_slice %47 {offsets = [0, 0, 0], sizes = [8, 16, 32], strides = [1, 1, 1]} : vector<8x18x96xf32> to vector<8x16x32xf32>
    %49 = arith.addf %41, %48 : vector<8x16x32xf32>
    %50 = vector.extract_strided_slice %47 {offsets = [0, 1, 32], sizes = [8, 16, 32], strides = [1, 1, 1]} : vector<8x18x96xf32> to vector<8x16x32xf32>
    %51 = arith.addf %49, %50 : vector<8x16x32xf32>
    %52 = vector.extract_strided_slice %47 {offsets = [0, 2, 64], sizes = [8, 16, 32], strides = [1, 1, 1]} : vector<8x18x96xf32> to vector<8x16x32xf32>
    %53 = arith.addf %51, %52 : vector<8x16x32xf32>
    %c0_45 = arith.constant 0 : index
    %c0_46 = arith.constant 0 : index
    %54 = vector.load %arg6[%c0_45, %c0_46] : memref<1x32xf32, #tpu.memory_space<vmem>>, vector<1x32xf32>
    %55 = vector.shape_cast %54 : vector<1x32xf32> to vector<32xf32>
    %56 = vector.shape_cast %55 : vector<32xf32> to vector<1x1x32xf32>
    %57 = vector.broadcast %56 : vector<1x1x32xf32> to vector<8x16x32xf32>
    %58 = arith.addf %53, %57 : vector<8x16x32xf32>
    %cst_47 = arith.constant 0.000000e+00 : f32
    %59 = vector.broadcast %cst_47 : f32 to vector<8x16x32xf32>
    %60 = arith.cmpf ogt, %58, %59 : vector<8x16x32xf32>
    %cst_48 = arith.constant 2.000000e-01 : f32
    %61 = vector.broadcast %cst_48 : f32 to vector<8x16x32xf32>
    %62 = arith.mulf %61, %58 : vector<8x16x32xf32>
    %63 = arith.select %60, %58, %62 : vector<8x16x32xi1>, vector<8x16x32xf32>
    %64 = arith.truncf %63 : vector<8x16x32xf32> to vector<8x16x32xbf16>
    %c0_49 = arith.constant 0 : index
    %c0_50 = arith.constant 0 : index
    %c0_51 = arith.constant 0 : index
    %c0_52 = arith.constant 0 : index
    %65 = vector.load %arg7[%c0_49, %c0_50, %c0_51, %c0_52] : memref<1x8x16x32xbf16, #tpu.memory_space<vmem>>, vector<1x8x16x32xbf16>
    %66 = vector.shape_cast %65 : vector<1x8x16x32xbf16> to vector<8x16x32xbf16>
    %67 = vector.shape_cast %64 : vector<8x16x32xbf16> to vector<1x8x16x32xbf16>
    tpu.vector_store %arg7[%c0_49, %c0_50, %c0_51, %c0_52], %67 {strides = array<i32>} : memref<1x8x16x32xbf16, #tpu.memory_space<vmem>>, vector<1x8x16x32xbf16>,
    return
  }
  func.func @transform_0(%arg0: i32, %arg1: i32) -> (i32, i32, i32, i32) {
    %c0_i32 = arith.constant 0 : i32
    %c0_i32_0 = arith.constant 0 : i32
    %c0_i32_1 = arith.constant 0 : i32
    return %arg0, %arg1, %c0_i32, %c0_i32_0 : i32, i32, i32, i32
  }
  func.func @transform_1(%arg0: i32, %arg1: i32) -> (i32, i32, i32, i32) {
    %c8_i32 = arith.constant 8 : i32
    %0 = arith.muli %arg1, %c8_i32 : i32
    %c1_i32 = arith.constant 1 : i32
    %1 = arith.subi %0, %c1_i32 : i32
    %c0_i32 = arith.constant 0 : i32
    %2 = arith.maxsi %1, %c0_i32 : i32
    %c0_i32_0 = arith.constant 0 : i32
    %c0_i32_1 = arith.constant 0 : i32
    %c0_i32_2 = arith.constant 0 : i32
    return %arg0, %2, %c0_i32_0, %c0_i32_1 : i32, i32, i32, i32
  }
  func.func @transform_2(%arg0: i32, %arg1: i32) -> (i32, i32, i32, i32) {
    %c1_i32 = arith.constant 1 : i32
    %0 = arith.addi %arg1, %c1_i32 : i32
    %c8_i32 = arith.constant 8 : i32
    %1 = arith.muli %0, %c8_i32 : i32
    %c15_i32 = arith.constant 15 : i32
    %2 = arith.minsi %1, %c15_i32 : i32
    %c0_i32 = arith.constant 0 : i32
    %c0_i32_0 = arith.constant 0 : i32
    %c0_i32_1 = arith.constant 0 : i32
    return %arg0, %2, %c0_i32, %c0_i32_0 : i32, i32, i32, i32
  }
  func.func @transform_3(%arg0: i32, %arg1: i32) -> (i32, i32, i32) {
    %c0_i32 = arith.constant 0 : i32
    %c0_i32_0 = arith.constant 0 : i32
    %c0_i32_1 = arith.constant 0 : i32
    %c0_i32_2 = arith.constant 0 : i32
    return %c0_i32, %c0_i32_0, %c0_i32_1 : i32, i32, i32
  }
  func.func @transform_4(%arg0: i32, %arg1: i32) -> (i32, i32) {
    %c0_i32 = arith.constant 0 : i32
    %c0_i32_0 = arith.constant 0 : i32
    %c0_i32_1 = arith.constant 0 : i32
    return %c0_i32, %c0_i32_0 : i32, i32
  }
  func.func @transform_5(%arg0: i32, %arg1: i32) -> (i32, i32, i32, i32) {
    %c0_i32 = arith.constant 0 : i32
    %c0_i32_0 = arith.constant 0 : i32
    %c0_i32_1 = arith.constant 0 : i32
    return %arg0, %arg1, %c0_i32, %c0_i32_0 : i32, i32, i32, i32
  }
}

</mosaic_0001>

<llo_original>
// kernel: tpu_custom_call.1
$region0: #{tpu_custom_call.1}
  #allocation0 [shape = 'u32[]', space=smem, size = 0x4, offset = 0x4, fixed_abs, tag = 'smem constant byte address 0x4 - core index']
  #allocation1 [shape = 'u32[144,128]{1,0:T(1,128)}', space=vmem, size = 0x12000, scoped, tag = 'internal scratch']
  #allocation2 [shape = 'bf16[10,18,32]{2,1,0:T(8,128)(2,1)}', space=vmem, size = 0xf000, scoped, tag = 'scratch operand']
  %s0 = inlined_call_operand.hbm [shape: bf16[2,16,16,32], index: 0, kind: input, shape index: {}]
  %s1 = inlined_call_operand.hbm [shape: bf16[2,16,16,32], index: 1, kind: input, shape index: {}]
  %s2 = inlined_call_operand.hbm [shape: bf16[2,16,16,32], index: 2, kind: input, shape index: {}]
  %s3 = inlined_call_operand.hbm [shape: bf16[3,32,96], index: 3, kind: input, shape index: {}]
  %s4 = inlined_call_operand.vmem [shape: f32[1,32], index: 4, kind: input, shape index: {}]
  %s5 = inlined_call_operand.hbm [shape: bf16[2,16,16,32], index: 5, kind: output, shape index: {}]
  %s6 = sld [smem:[#allocation0]]
  $region69: #{tpu_custom_call.1} parent=0
    _
  %s8 = ssub.s32 1, %s6
  %s9 = scalar_select 0, %s8, %s6
  $region1: #{tpu_custom_call.1} parent=0
    #allocation3 [shape = 'u8[65536]{0}', space=vmem, size = 0x10000, scoped, tag = 'input window, operand 0']
    #allocation4 [shape = 's32[2]{0}', space=sflag, size = 0x8, scoped, tag = 'scoped memory for tpu_custom_call.1']
    #allocation5 [shape = 's32[2]{0}', space=sflag, size = 0x8, scoped, tag = 'scoped memory for tpu_custom_call.1']
    #allocation6 [shape = 'u8[8192]{0}', space=vmem, size = 0x2000, scoped, tag = 'input window, operand 1']
    #allocation7 [shape = 's32[2]{0}', space=sflag, size = 0x8, scoped, tag = 'scoped memory for tpu_custom_call.1']
    #allocation8 [shape = 'u8[8192]{0}', space=vmem, size = 0x2000, scoped, tag = 'input window, operand 2']
    #allocation9 [shape = 'u8[24576]{0}', space=vmem, size = 0x6000, scoped, tag = 'input window, operand 3, single buffered']
    #allocation10 [shape = 's32[1]{0}', space=sflag, size = 0x4, scoped, tag = 'scoped memory for tpu_custom_call.1']
    #allocation11 [shape = 'u8[65536]{0}', space=vmem, size = 0x10000, scoped, tag = 'output window, operand 0']
    %10 = vsyncpa [#allocation4], 0
    %s11 = scalar_lea.sflag [#allocation4], 1
    %12 = vsyncpa %s11, 0
    %13 = vsyncpa [#allocation7], 0
    %s14 = scalar_lea.sflag [#allocation7], 1
    %15 = vsyncpa %s14, 0
    %16 = vsyncpa [#allocation10], 0
    %17 = vsyncpa [#allocation5], 0
    %s18 = scalar_lea.sflag [#allocation5], 1
    %19 = vsyncpa %s18, 0
    loop: start=0, step=1, limit=6
    $region2: #{tpu_custom_call.1} parent=1 // loop_pre_header
      _
    $region3: #{tpu_custom_call.1} parent=1 // loop_header
      %s21 = sphi 0, %s25
      %p22 = scmp.ge.s32.totalorder %s21, 6
      %s28 = sphi 0, %s40
      %s29 = sphi 0, %s36
      %s30 = sphi 0, %s28
      %s31 = sphi 0, %s29
      %s32 = sphi 0, %s30
      %s33 = sphi 0, %s31
      %s45 = sphi 0, %s47
      %s48 = sphi 0, %s45
      %s49 = sphi 0, %s48
      %s65 = sphi 0, %s49
      %s81 = sphi 0, %s83
      %s84 = sphi 0, %s81
      %s85 = sphi 0, %s84
      %s101 = sphi 0, %s85
      %s117 = sphi 0, %s119
      %s120 = sphi 0, %s117
      %s121 = sphi 0, %s120
      %s137 = sphi 0, %s121
      %s141 = sphi 0, %s141
      %s143 = sphi 0, %s141
      %s144 = sphi 0, %s143
      %s158 = sphi 0, %s144
      %s162 = sphi 0, %s162
      %s164 = sphi 0, %s162
      %s165 = sphi 0, %s164
      %s179 = sphi 0, %s165
      %s187 = sphi 0, %s189
      %s190 = sphi 0, %s187
      %s191 = sphi 0, %s190
      %s207 = sphi 0, %s191
    $region4: #{tpu_custom_call.1} parent=1 // loop_header_branch
      %24 = sbr.rel (%p22) target = $region8
    $region5: #{tpu_custom_call.1} parent=1 // loop_body
      %s26 = ssub.s32 %s21, 1
      %s27 = ssub.s32 %s21, 2
      %s34 = sadd.s32 1, %s29
      %p35 = scmp.ge.s32.totalorder %s34, 2
      %s36 = scalar_select %p35, 0, %s34
      %s37 = sadd.s32 1, %s28
      %s38 = scalar_select %p35, %s37, %s28
      %p39 = scmp.ge.s32.totalorder %s38, 2
      %s40 = scalar_select %p39, 0, %s38
      %s41 = ssub.s32 %s28, %s40
      %s42 = ssub.s32 %s29, %s36
      %s43 = sor.u32 %s41, %s42
      %p44 = scmp.eq.s32.totalorder %s43, 0
      %s46 = sadd.s32 %s45, 1
      %s47 = scalar_select %p44, %s45, %s46
      %p50 = pneg %p44
      %p51 = scmp.eq.s32.totalorder %s21, 3
      %p52 = por %p50, %p51
      %p53 = scmp.ne.s32.totalorder %s45, %s48
      %p54 = scmp.eq.s32.totalorder %s21, 0
      %p55 = por %p53, %p54
      %p56 = scmp.ne.s32.totalorder %s45, %s48
      %p57 = scmp.eq.s32.totalorder %s26, 3
      %p58 = por %p56, %p57
      %p59 = scmp.ne.s32.totalorder %s48, %s49
      %p60 = scmp.eq.s32.totalorder %s26, 0
      %p61 = por %p59, %p60
      %p62 = scmp.ne.s32.totalorder %s48, %s49
      %p63 = scmp.eq.s32.totalorder %s27, 3
      %p64 = por %p62, %p63
      %p66 = scmp.ne.s32.totalorder %s49, %s65
      %p67 = scmp.eq.s32.totalorder %s27, 0
      %p68 = por %p66, %p67
      %s69 = smul.u32 %s29, 8
      %s70 = ssub.s32 %s69, 1
      %p71 = scmp.gt.s32.totalorder %s70, 0
      %s72 = scalar_select %p71, %s70, 0
      %s73 = smul.u32 %s36, 8
      %s74 = ssub.s32 %s73, 1
      %p75 = scmp.gt.s32.totalorder %s74, 0
      %s76 = scalar_select %p75, %s74, 0
      %s77 = ssub.s32 %s28, %s40
      %s78 = ssub.s32 %s72, %s76
      %s79 = sor.u32 %s77, %s78
      %p80 = scmp.eq.s32.totalorder %s79, 0
      %s82 = sadd.s32 %s81, 1
      %s83 = scalar_select %p80, %s81, %s82
      %p86 = pneg %p80
      %p87 = scmp.eq.s32.totalorder %s21, 3
      %p88 = por %p86, %p87
      %p89 = scmp.ne.s32.totalorder %s81, %s84
      %p90 = scmp.eq.s32.totalorder %s21, 0
      %p91 = por %p89, %p90
      %p92 = scmp.ne.s32.totalorder %s81, %s84
      %p93 = scmp.eq.s32.totalorder %s26, 3
      %p94 = por %p92, %p93
      %p95 = scmp.ne.s32.totalorder %s84, %s85
      %p96 = scmp.eq.s32.totalorder %s26, 0
      %p97 = por %p95, %p96
      %p98 = scmp.ne.s32.totalorder %s84, %s85
      %p99 = scmp.eq.s32.totalorder %s27, 3
      %p100 = por %p98, %p99
      %p102 = scmp.ne.s32.totalorder %s85, %s101
      %p103 = scmp.eq.s32.totalorder %s27, 0
      %p104 = por %p102, %p103
      %s105 = sadd.s32 %s29, 1
      %s106 = smul.u32 %s105, 8
      %p107 = scmp.lt.s32.totalorder %s106, 15
      %s108 = scalar_select %p107, %s106, 15
      %s109 = sadd.s32 %s36, 1
      %s110 = smul.u32 %s109, 8
      %p111 = scmp.lt.s32.totalorder %s110, 15
      %s112 = scalar_select %p111, %s110, 15
      %s113 = ssub.s32 %s28, %s40
      %s114 = ssub.s32 %s108, %s112
      %s115 = sor.u32 %s113, %s114
      %p116 = scmp.eq.s32.totalorder %s115, 0
      %s118 = sadd.s32 %s117, 1
      %s119 = scalar_select %p116, %s117, %s118
      %p122 = pneg %p116
      %p123 = scmp.eq.s32.totalorder %s21, 3
      %p124 = por %p122, %p123
      %p125 = scmp.ne.s32.totalorder %s117, %s120
      %p126 = scmp.eq.s32.totalorder %s21, 0
      %p127 = por %p125, %p126
      %p128 = scmp.ne.s32.totalorder %s117, %s120
      %p129 = scmp.eq.s32.totalorder %s26, 3
      %p130 = por %p128, %p129
      %p131 = scmp.ne.s32.totalorder %s120, %s121
      %p132 = scmp.eq.s32.totalorder %s26, 0
      %p133 = por %p131, %p132
      %p134 = scmp.ne.s32.totalorder %s120, %s121
      %p135 = scmp.eq.s32.totalorder %s27, 3
      %p136 = por %p134, %p135
      %p138 = scmp.ne.s32.totalorder %s121, %s137
      %p139 = scmp.eq.s32.totalorder %s27, 0
      %p140 = por %p138, %p139
      %s142 = sadd.s32 %s141, 1
      %p145 = scmp.eq.s32.totalorder %s21, 3
      %p146 = scmp.ne.s32.totalorder %s141, %s143
      %p147 = scmp.eq.s32.totalorder %s21, 0
      %p148 = por %p146, %p147
      %p149 = scmp.ne.s32.totalorder %s141, %s143
      %p150 = scmp.eq.s32.totalorder %s26, 3
      %p151 = por %p149, %p150
      %p152 = scmp.ne.s32.totalorder %s143, %s144
      %p153 = scmp.eq.s32.totalorder %s26, 0
      %p154 = por %p152, %p153
      %p155 = scmp.ne.s32.totalorder %s143, %s144
      %p156 = scmp.eq.s32.totalorder %s27, 3
      %p157 = por %p155, %p156
      %p159 = scmp.ne.s32.totalorder %s144, %s158
      %p160 = scmp.eq.s32.totalorder %s27, 0
      %p161 = por %p159, %p160
      %s163 = sadd.s32 %s162, 1
      %p166 = scmp.eq.s32.totalorder %s21, 3
      %p167 = scmp.ne.s32.totalorder %s162, %s164
      %p168 = scmp.eq.s32.totalorder %s21, 0
      %p169 = por %p167, %p168
      %p170 = scmp.ne.s32.totalorder %s162, %s164
      %p171 = scmp.eq.s32.totalorder %s26, 3
      %p172 = por %p170, %p171
      %p173 = scmp.ne.s32.totalorder %s164, %s165
      %p174 = scmp.eq.s32.totalorder %s26, 0
      %p175 = por %p173, %p174
      %p176 = scmp.ne.s32.totalorder %s164, %s165
      %p177 = scmp.eq.s32.totalorder %s27, 3
      %p178 = por %p176, %p177
      %p180 = scmp.ne.s32.totalorder %s165, %s179
      %p181 = scmp.eq.s32.totalorder %s27, 0
      %p182 = por %p180, %p181
      %s183 = ssub.s32 %s28, %s40
      %s184 = ssub.s32 %s29, %s36
      %s185 = sor.u32 %s183, %s184
      %p186 = scmp.eq.s32.totalorder %s185, 0
      %s188 = sadd.s32 %s187, 1
      %s189 = scalar_select %p186, %s187, %s188
      %p192 = pneg %p186
      %p193 = scmp.eq.s32.totalorder %s21, 3
      %p194 = por %p192, %p193
      %p195 = scmp.ne.s32.totalorder %s187, %s190
      %p196 = scmp.eq.s32.totalorder %s21, 0
      %p197 = por %p195, %p196
      %p198 = scmp.ne.s32.totalorder %s187, %s190
      %p199 = scmp.eq.s32.totalorder %s26, 3
      %p200 = por %p198, %p199
      %p201 = scmp.ne.s32.totalorder %s190, %s191
      %p202 = scmp.eq.s32.totalorder %s26, 0
      %p203 = por %p201, %p202
      %p204 = scmp.ne.s32.totalorder %s190, %s191
      %p205 = scmp.eq.s32.totalorder %s27, 3
      %p206 = por %p204, %p205
      %p208 = scmp.ne.s32.totalorder %s191, %s207
      %p209 = scmp.eq.s32.totalorder %s27, 0
      %p210 = por %p208, %p209
      %p211 = scmp.le.s32.totalorder 1, %s21
      %p212 = scmp.lt.s32.totalorder %s21, 5
      %p213 = pnand %p211, %p212
      %p214 = pneg %p213
      // Predicated region
      $region9: #{tpu_custom_call.1} parent=5 // pred_check
        _
      $region10: #{tpu_custom_call.1} parent=5 // pred_check_branch
        %216 = sbr.rel (%p213) target = $region12
      $region11: #{tpu_custom_call.1} parent=5 // pred_region
        %s217 = ssub.s32 %s21, 1
        // Predicated region
        $region13: #{tpu_custom_call.1} parent=11 // pred_check
          %p218 = pneg %p154
        $region14: #{tpu_custom_call.1} parent=11 // pred_check_branch
          %220 = sbr.rel (%p218) target = $region16
        $region15: #{tpu_custom_call.1} parent=11 // pred_region
          %s222 = ssub.s32 768, 768
          %223 = vsyncadd [#allocation10], %s222
          %s224 = sshll.u32 [#allocation9], 4
          %s225 = int_to_ptr.vmem [resolvable:$true] %s224
          %230 = dma.hbm_to_vmem [thread:$0]  %s3, 768, %s225, [#allocation10], 64, 64, 4
        $region16: #{tpu_custom_call.1} parent=11 // pred_fallthru
          _
        // Predicated region
        $region17: #{tpu_custom_call.1} parent=11 // pred_check
          %p231 = pneg %p175
        $region18: #{tpu_custom_call.1} parent=11 // pred_check_branch
          %233 = sbr.rel (%p231) target = $region20
        $region19: #{tpu_custom_call.1} parent=11 // pred_region
          _
        $region20: #{tpu_custom_call.1} parent=11 // pred_fallthru
          _
      $region12: #{tpu_custom_call.1} parent=5 // pred_fallthru
        _
      %p234 = scmp.lt.s32.totalorder %s21, 4
      // Predicated region
      $region21: #{tpu_custom_call.1} parent=5 // pred_check
        %p235 = pneg %p234
      $region22: #{tpu_custom_call.1} parent=5 // pred_check_branch
        %237 = sbr.rel (%p235) target = $region24
      $region23: #{tpu_custom_call.1} parent=5 // pred_region
        // Predicated region
        $region25: #{tpu_custom_call.1} parent=23 // pred_check
          %p238 = pneg %p55
        $region26: #{tpu_custom_call.1} parent=23 // pred_check_branch
          %240 = sbr.rel (%p238) target = $region28
        $region27: #{tpu_custom_call.1} parent=23 // pred_region
          %s241 = sand.u32 %s45, 1
          %s242 = scalar_lea.sflag [#allocation4], %s241
          %s243 = sand.u32 %s45, 1
          %s244 = smul.addr %s243, 64
          %s245 = scalar_lea.vmem [#allocation3], %s244
          %s246 = smul.u32 8, %s29
          %s248 = ssub.s32 1024, 1024
          %249 = vsyncadd %s242, %s248
          %s250 = smul.addr %s246, 2
          %s251 = smul.addr %s28, 32
          %s252 = sadd.s32 %s250, %s251
          %s253 = smul.addr %s252, 64
          %s254 = scalar_lea.hbm %s0, %s253
          %s255 = sshll.u32 %s245, 4
          %s256 = int_to_ptr.vmem [resolvable:$true] %s255
          %261 = dma.hbm_to_vmem [thread:$0]  %s254, 1024, %s256, %s242, 64, 64, 4
        $region28: #{tpu_custom_call.1} parent=23 // pred_fallthru
          _
        // Predicated region
        $region29: #{tpu_custom_call.1} parent=23 // pred_check
          %p262 = pneg %p91
        $region30: #{tpu_custom_call.1} parent=23 // pred_check_branch
          %264 = sbr.rel (%p262) target = $region32
        $region31: #{tpu_custom_call.1} parent=23 // pred_region
          %s265 = sand.u32 %s21, 1
          %s266 = scalar_lea.sflag [#allocation7], %s265
          %s267 = sand.u32 %s81, 1
          %s268 = smul.addr %s267, 8
          %s269 = scalar_lea.vmem [#allocation6], %s268
          %s270 = smul.u32 %s29, 8
          %s271 = ssub.s32 %s270, 1
          %p272 = scmp.gt.s32.totalorder %s271, 0
          %s273 = scalar_select %p272, %s271, 0
          %s275 = ssub.s32 128, 128
          %276 = vsyncadd %s266, %s275
          %s277 = smul.addr %s273, 2
          %s278 = smul.addr %s28, 32
          %s279 = sadd.s32 %s277, %s278
          %s280 = smul.addr %s279, 64
          %s281 = scalar_lea.hbm %s1, %s280
          %s282 = sshll.u32 %s269, 4
          %s283 = int_to_ptr.vmem [resolvable:$true] %s282
          %288 = dma.hbm_to_vmem [thread:$0]  %s281, 128, %s283, %s266, 64, 64, 4
        $region32: #{tpu_custom_call.1} parent=23 // pred_fallthru
          _
        // Predicated region
        $region33: #{tpu_custom_call.1} parent=23 // pred_check
          %p289 = pneg %p127
        $region34: #{tpu_custom_call.1} parent=23 // pred_check_branch
          %291 = sbr.rel (%p289) target = $region36
        $region35: #{tpu_custom_call.1} parent=23 // pred_region
          %s292 = sand.u32 %s21, 1
          %s293 = scalar_lea.sflag [#allocation7], %s292
          %s294 = sand.u32 %s117, 1
          %s295 = smul.addr %s294, 8
          %s296 = scalar_lea.vmem [#allocation8], %s295
          %s297 = sadd.s32 %s29, 1
          %s298 = smul.u32 %s297, 8
          %p299 = scmp.lt.s32.totalorder %s298, 15
          %s300 = scalar_select %p299, %s298, 15
          %s302 = ssub.s32 128, 128
          %303 = vsyncadd %s293, %s302
          %s304 = smul.addr %s300, 2
          %s305 = smul.addr %s28, 32
          %s306 = sadd.s32 %s304, %s305
          %s307 = smul.addr %s306, 64
          %s308 = scalar_lea.hbm %s2, %s307
          %s309 = sshll.u32 %s296, 4
          %s310 = int_to_ptr.vmem [resolvable:$true] %s309
          %315 = dma.hbm_to_vmem [thread:$0]  %s308, 128, %s310, %s293, 64, 64, 4
        $region36: #{tpu_custom_call.1} parent=23 // pred_fallthru
          _
      $region24: #{tpu_custom_call.1} parent=5 // pred_fallthru
        _
      %p316 = scmp.le.s32.totalorder 1, %s21
      %p317 = scmp.lt.s32.totalorder %s21, 5
      %p318 = pnand %p316, %p317
      %p319 = pneg %p318
      // Predicated region
      $region37: #{tpu_custom_call.1} parent=5 // pred_check
        _
      $region38: #{tpu_custom_call.1} parent=5 // pred_check_branch
        %321 = sbr.rel (%p318) target = $region40
      $region39: #{tpu_custom_call.1} parent=5 // pred_region
        %s322 = ssub.s32 %s21, 1
        %s323 = sand.u32 %s48, 1
        %s324 = scalar_lea.sflag [#allocation4], %s323
        %s325 = sand.u32 %s48, 1
        %s326 = smul.addr %s325, 64
        %s327 = scalar_lea.vmem [#allocation3], %s326
        // Predicated region
        $region41: #{tpu_custom_call.1} parent=39 // pred_check
          %p328 = pneg %p61
        $region42: #{tpu_custom_call.1} parent=39 // pred_check_branch
          %330 = sbr.rel (%p328) target = $region44
        $region43: #{tpu_custom_call.1} parent=39 // pred_region
          %331 = dma.done %s324, 1024
        $region44: #{tpu_custom_call.1} parent=39 // pred_fallthru
          _
        %s332 = sand.u32 %s26, 1
        %s333 = scalar_lea.sflag [#allocation7], %s332
        %s334 = sand.u32 %s84, 1
        %s335 = smul.addr %s334, 8
        %s336 = scalar_lea.vmem [#allocation6], %s335
        // Predicated region
        $region45: #{tpu_custom_call.1} parent=39 // pred_check
          %p337 = pneg %p97
        $region46: #{tpu_custom_call.1} parent=39 // pred_check_branch
          %339 = sbr.rel (%p337) target = $region48
        $region47: #{tpu_custom_call.1} parent=39 // pred_region
          %340 = dma.done %s333, 128
        $region48: #{tpu_custom_call.1} parent=39 // pred_fallthru
          _
        %s341 = sand.u32 %s26, 1
        %s342 = scalar_lea.sflag [#allocation7], %s341
        %s343 = sand.u32 %s120, 1
        %s344 = smul.addr %s343, 8
        %s345 = scalar_lea.vmem [#allocation8], %s344
        // Predicated region
        $region49: #{tpu_custom_call.1} parent=39 // pred_check
          %p346 = pneg %p133
        $region50: #{tpu_custom_call.1} parent=39 // pred_check_branch
          %348 = sbr.rel (%p346) target = $region52
        $region51: #{tpu_custom_call.1} parent=39 // pred_region
          %349 = dma.done %s342, 128
        $region52: #{tpu_custom_call.1} parent=39 // pred_fallthru
          _
        // Predicated region
        $region53: #{tpu_custom_call.1} parent=39 // pred_check
          %p350 = pneg %p154
        $region54: #{tpu_custom_call.1} parent=39 // pred_check_branch
          %352 = sbr.rel (%p350) target = $region56
        $region55: #{tpu_custom_call.1} parent=39 // pred_region
          %353 = dma.done [#allocation10], 768
        $region56: #{tpu_custom_call.1} parent=39 // pred_fallthru
          _
        %s354 = sand.u32 %s48, 1
        %s355 = scalar_lea.sflag [#allocation4], %s354
        %s356 = sand.u32 %s48, 1
        %s357 = smul.addr %s356, 64
        %s358 = scalar_lea.vmem [#allocation3], %s357
        %p359 = pneg %p61
        %p360 = pneg %p58
        %s361 = sand.u32 %s26, 1
        %s362 = scalar_lea.sflag [#allocation7], %s361
        %s363 = sand.u32 %s84, 1
        %s364 = smul.addr %s363, 8
        %s365 = scalar_lea.vmem [#allocation6], %s364
        %p366 = pneg %p97
        %p367 = pneg %p94
        %s368 = sand.u32 %s26, 1
        %s369 = scalar_lea.sflag [#allocation7], %s368
        %s370 = sand.u32 %s120, 1
        %s371 = smul.addr %s370, 8
        %s372 = scalar_lea.vmem [#allocation8], %s371
        %p373 = pneg %p133
        %p374 = pneg %p130
        %p375 = pneg %p154
        %p376 = pneg %p151
        %p377 = pneg %p175
        %p378 = pneg %p172
        %p379 = pneg %p203
        %p380 = pneg %p200
        %s381 = sand.u32 %s190, 1
        %s382 = scalar_lea.sflag [#allocation5], %s381
        %s383 = sand.u32 %s190, 1
        %s384 = smul.addr %s383, 64
        %s385 = scalar_lea.vmem [#allocation11], %s384
        %s386 = smul.u32 8, %s31
        %s387 = smul.u32 %s31, 8
        %s388 = ssub.s32 %s387, 1
        %p389 = scmp.gt.s32.totalorder %s388, 0
        %s390 = scalar_select %p389, %s388, 0
        %s391 = sadd.s32 %s31, 1
        %s392 = smul.u32 %s391, 8
        %p393 = scmp.lt.s32.totalorder %s392, 15
        %s394 = scalar_select %p393, %s392, 15
        %s395 = smul.u32 8, %s31
        %vm397 = vcmask 253952
        %vm398 = vsmask.f32 256
        %vm399 = vmand %vm397, %vm398
        %v400 = vld [vmem:[#allocation2] sm:$0x1]
        %v401 = vsel %vm399, 0, %v400
        %402 = vst [vmem:[#allocation2] sm:$0x1] %v401
        %v403 = vld [vmem:[#allocation2 + $0xc] sm:$0x1]
        %v404 = vsel %vm399, 0, %v403
        %405 = vst [vmem:[#allocation2 + $0xc] sm:$0x1] %v404
        %v406 = vld [vmem:[#allocation2 + $0x18] sm:$0x1]
        %v407 = vsel %vm399, 0, %v406
        %408 = vst [vmem:[#allocation2 + $0x18] sm:$0x1] %v407
        %v409 = vld [vmem:[#allocation2 + $0x24] sm:$0x1]
        %v410 = vsel %vm399, 0, %v409
        %411 = vst [vmem:[#allocation2 + $0x24] sm:$0x1] %v410
        %v412 = vld [vmem:[#allocation2 + $0x30] sm:$0x1]
        %v413 = vsel %vm399, 0, %v412
        %414 = vst [vmem:[#allocation2 + $0x30] sm:$0x1] %v413
        %v415 = vld [vmem:[#allocation2 + $0x3c] sm:$0x1]
        %v416 = vsel %vm399, 0, %v415
        %417 = vst [vmem:[#allocation2 + $0x3c] sm:$0x1] %v416
        %v418 = vld [vmem:[#allocation2 + $0x48] sm:$0x1]
        %v419 = vsel %vm399, 0, %v418
        %420 = vst [vmem:[#allocation2 + $0x48] sm:$0x1] %v419
        %v421 = vld [vmem:[#allocation2 + $0x54] sm:$0x1]
        %v422 = vsel %vm399, 0, %v421
        %423 = vst [vmem:[#allocation2 + $0x54] sm:$0x1] %v422
        %v424 = vld [vmem:[#allocation2 + $0x60] sm:$0x1]
        %v425 = vsel %vm399, 0, %v424
        %426 = vst [vmem:[#allocation2 + $0x60] sm:$0x1] %v425
        %v427 = vld [vmem:[#allocation2 + $0x6c] sm:$0x1]
        %v428 = vsel %vm399, 0, %v427
        %429 = vst [vmem:[#allocation2 + $0x6c] sm:$0x1] %v428
        %vm430 = vsmask.f32 7938
        %vm431 = vmand %vm397, %vm430
        %v432 = vld [vmem:[#allocation2 + $0x8] sm:$0x1]
        %v433 = vsel %vm431, 0, %v432
        %434 = vst [vmem:[#allocation2 + $0x8] sm:$0x1] %v433
        %v435 = vld [vmem:[#allocation2 + $0x14] sm:$0x1]
        %v436 = vsel %vm431, 0, %v435
        %437 = vst [vmem:[#allocation2 + $0x14] sm:$0x1] %v436
        %v438 = vld [vmem:[#allocation2 + $0x20] sm:$0x1]
        %v439 = vsel %vm431, 0, %v438
        %440 = vst [vmem:[#allocation2 + $0x20] sm:$0x1] %v439
        %v441 = vld [vmem:[#allocation2 + $0x2c] sm:$0x1]
        %v442 = vsel %vm431, 0, %v441
        %443 = vst [vmem:[#allocation2 + $0x2c] sm:$0x1] %v442
        %v444 = vld [vmem:[#allocation2 + $0x38] sm:$0x1]
        %v445 = vsel %vm431, 0, %v444
        %446 = vst [vmem:[#allocation2 + $0x38] sm:$0x1] %v445
        %v447 = vld [vmem:[#allocation2 + $0x44] sm:$0x1]
        %v448 = vsel %vm431, 0, %v447
        %449 = vst [vmem:[#allocation2 + $0x44] sm:$0x1] %v448
        %v450 = vld [vmem:[#allocation2 + $0x50] sm:$0x1]
        %v451 = vsel %vm431, 0, %v450
        %452 = vst [vmem:[#allocation2 + $0x50] sm:$0x1] %v451
        %v453 = vld [vmem:[#allocation2 + $0x5c] sm:$0x1]
        %v454 = vsel %vm431, 0, %v453
        %455 = vst [vmem:[#allocation2 + $0x5c] sm:$0x1] %v454
        %v456 = vld [vmem:[#allocation2 + $0x68] sm:$0x1]
        %v457 = vsel %vm431, 0, %v456
        %458 = vst [vmem:[#allocation2 + $0x68] sm:$0x1] %v457
        %v459 = vld [vmem:[#allocation2 + $0x74] sm:$0x1]
        %v460 = vsel %vm431, 0, %v459
        %461 = vst [vmem:[#allocation2 + $0x74] sm:$0x1] %v460
        %v462 = vld [vmem:[%s327] sm:$0xf]
        %v463 = vld [vmem:[%s327 + $0x4] sm:$0xf]
        %v464 = vld [vmem:[%s327 + $0x8] sm:$0xf]
        %v465 = vld [vmem:[%s327 + $0xc] sm:$0xf]
        %v466 = vld [vmem:[%s327 + $0x10] sm:$0xf]
        %v467 = vld [vmem:[%s327 + $0x14] sm:$0xf]
        %v468 = vld [vmem:[%s327 + $0x18] sm:$0xf]
        %v469 = vld [vmem:[%s327 + $0x1c] sm:$0xf]
        %v470 = vld [vmem:[%s327 + $0x20] sm:$0xf]
        %v471 = vld [vmem:[%s327 + $0x24] sm:$0xf]
        %v472 = vld [vmem:[%s327 + $0x28] sm:$0xf]
        %v473 = vld [vmem:[%s327 + $0x2c] sm:$0xf]
        %v474 = vld [vmem:[%s327 + $0x30] sm:$0xf]
        %v475 = vld [vmem:[%s327 + $0x34] sm:$0xf]
        %v476 = vld [vmem:[%s327 + $0x38] sm:$0xf]
        %v477 = vld [vmem:[%s327 + $0x3c] sm:$0xf]
        %vm478 = vsmask.f32 4368
        %vm479 = vmor %vm398, %vm478
        %v481 = vshrl.u32 %v462, 16
        %v483 = vrot.slane %v481, 7
        %v484 = vshll.u32 %v462, 16
        %v486 = vor.u32 %v483, %v484
        %v487 = vrot.slane %v483, 4
        %v489 = vshrl.u32 %v463, 16
        %v491 = vrot.slane %v489, 7
        %v492 = vshll.u32 %v463, 16
        %v494 = vor.u32 %v491, %v492
        %v495 = vsel %vm479, %v487, %v494
        %v496 = vrot.slane %v491, 4
        %v498 = vshrl.u32 %v464, 16
        %v500 = vrot.slane %v498, 7
        %v501 = vshll.u32 %v464, 16
        %v503 = vor.u32 %v500, %v501
        %v504 = vrot.slane %v500, 4
        %v506 = vshrl.u32 %v465, 16
        %v508 = vrot.slane %v506, 7
        %v509 = vshll.u32 %v465, 16
        %v511 = vor.u32 %v508, %v509
        %v512 = vsel %vm479, %v504, %v511
        %v513 = vrot.slane %v508, 4
        %v515 = vshrl.u32 %v466, 16
        %v517 = vrot.slane %v515, 7
        %v518 = vshll.u32 %v466, 16
        %v520 = vor.u32 %v517, %v518
        %v521 = vrot.slane %v517, 4
        %v523 = vshrl.u32 %v467, 16
        %v525 = vrot.slane %v523, 7
        %v526 = vshll.u32 %v467, 16
        %v528 = vor.u32 %v525, %v526
        %v529 = vsel %vm479, %v521, %v528
        %v530 = vrot.slane %v525, 4
        %v532 = vshrl.u32 %v468, 16
        %v534 = vrot.slane %v532, 7
        %v535 = vshll.u32 %v468, 16
        %v537 = vor.u32 %v534, %v535
        %v538 = vrot.slane %v534, 4
        %v540 = vshrl.u32 %v469, 16
        %v542 = vrot.slane %v540, 7
        %v543 = vshll.u32 %v469, 16
        %v545 = vor.u32 %v542, %v543
        %v546 = vsel %vm479, %v538, %v545
        %v547 = vrot.slane %v542, 4
        %v549 = vshrl.u32 %v470, 16
        %v551 = vrot.slane %v549, 7
        %v552 = vshll.u32 %v470, 16
        %v554 = vor.u32 %v551, %v552
        %v555 = vrot.slane %v551, 4
        %v557 = vshrl.u32 %v471, 16
        %v559 = vrot.slane %v557, 7
        %v560 = vshll.u32 %v471, 16
        %v562 = vor.u32 %v559, %v560
        %v563 = vsel %vm479, %v555, %v562
        %v564 = vrot.slane %v559, 4
        %v566 = vshrl.u32 %v472, 16
        %v568 = vrot.slane %v566, 7
        %v569 = vshll.u32 %v472, 16
        %v571 = vor.u32 %v568, %v569
        %v572 = vrot.slane %v568, 4
        %v574 = vshrl.u32 %v473, 16
        %v576 = vrot.slane %v574, 7
        %v577 = vshll.u32 %v473, 16
        %v579 = vor.u32 %v576, %v577
        %v580 = vsel %vm479, %v572, %v579
        %v581 = vrot.slane %v576, 4
        %v583 = vshrl.u32 %v474, 16
        %v585 = vrot.slane %v583, 7
        %v586 = vshll.u32 %v474, 16
        %v588 = vor.u32 %v585, %v586
        %v589 = vrot.slane %v585, 4
        %v591 = vshrl.u32 %v475, 16
        %v593 = vrot.slane %v591, 7
        %v594 = vshll.u32 %v475, 16
        %v596 = vor.u32 %v593, %v594
        %v597 = vsel %vm479, %v589, %v596
        %v598 = vrot.slane %v593, 4
        %v600 = vshrl.u32 %v476, 16
        %v602 = vrot.slane %v600, 7
        %v603 = vshll.u32 %v476, 16
        %v605 = vor.u32 %v602, %v603
        %v606 = vrot.slane %v602, 4
        %v608 = vshrl.u32 %v477, 16
        %v610 = vrot.slane %v608, 7
        %v611 = vshll.u32 %v477, 16
        %v613 = vor.u32 %v610, %v611
        %v614 = vsel %vm479, %v606, %v613
        %v615 = vrot.slane %v610, 4
        %s640 = scalar_lea.vmem [#allocation2], 12
        %vm641 = vcmask 257024
        %vm642 = vmand %vm641, %vm430
        %v643 = vld [vmem:[%s640] sm:$0xf]
        %v644 = vsel %vm642, %v486, %v643
        %645 = vst [vmem:[%s640] sm:$0xf] %v644
        %vm646 = vcmask 257024
        %647 = vst.msk [vmem:[%s640 + $0x4] sm:$0xf] %vm646, %v495
        %v648 = vld [vmem:[%s640 + $0x8] sm:$0x1]
        %v649 = vsel %vm399, %v496, %v648
        %650 = vst [vmem:[%s640 + $0x8] sm:$0x1] %v649
        %v651 = vld [vmem:[%s640 + $0xc] sm:$0xf]
        %v652 = vsel %vm642, %v503, %v651
        %653 = vst [vmem:[%s640 + $0xc] sm:$0xf] %v652
        %654 = vst.msk [vmem:[%s640 + $0x10] sm:$0xf] %vm646, %v512
        %v655 = vld [vmem:[%s640 + $0x14] sm:$0x1]
        %v656 = vsel %vm399, %v513, %v655
        %657 = vst [vmem:[%s640 + $0x14] sm:$0x1] %v656
        %v658 = vld [vmem:[%s640 + $0x18] sm:$0xf]
        %v659 = vsel %vm642, %v520, %v658
        %660 = vst [vmem:[%s640 + $0x18] sm:$0xf] %v659
        %661 = vst.msk [vmem:[%s640 + $0x1c] sm:$0xf] %vm646, %v529
        %v662 = vld [vmem:[%s640 + $0x20] sm:$0x1]
        %v663 = vsel %vm399, %v530, %v662
        %664 = vst [vmem:[%s640 + $0x20] sm:$0x1] %v663
        %v665 = vld [vmem:[%s640 + $0x24] sm:$0xf]
        %v666 = vsel %vm642, %v537, %v665
        %667 = vst [vmem:[%s640 + $0x24] sm:$0xf] %v666
        %668 = vst.msk [vmem:[%s640 + $0x28] sm:$0xf] %vm646, %v546
        %v669 = vld [vmem:[%s640 + $0x2c] sm:$0x1]
        %v670 = vsel %vm399, %v547, %v669
        %671 = vst [vmem:[%s640 + $0x2c] sm:$0x1] %v670
        %v672 = vld [vmem:[%s640 + $0x30] sm:$0xf]
        %v673 = vsel %vm642, %v554, %v672
        %674 = vst [vmem:[%s640 + $0x30] sm:$0xf] %v673
        %675 = vst.msk [vmem:[%s640 + $0x34] sm:$0xf] %vm646, %v563
        %v676 = vld [vmem:[%s640 + $0x38] sm:$0x1]
        %v677 = vsel %vm399, %v564, %v676
        %678 = vst [vmem:[%s640 + $0x38] sm:$0x1] %v677
        %v679 = vld [vmem:[%s640 + $0x3c] sm:$0xf]
        %v680 = vsel %vm642, %v571, %v679
        %681 = vst [vmem:[%s640 + $0x3c] sm:$0xf] %v680
        %682 = vst.msk [vmem:[%s640 + $0x40] sm:$0xf] %vm646, %v580
        %v683 = vld [vmem:[%s640 + $0x44] sm:$0x1]
        %v684 = vsel %vm399, %v581, %v683
        %685 = vst [vmem:[%s640 + $0x44] sm:$0x1] %v684
        %v686 = vld [vmem:[%s640 + $0x48] sm:$0xf]
        %v687 = vsel %vm642, %v588, %v686
        %688 = vst [vmem:[%s640 + $0x48] sm:$0xf] %v687
        %689 = vst.msk [vmem:[%s640 + $0x4c] sm:$0xf] %vm646, %v597
        %v690 = vld [vmem:[%s640 + $0x50] sm:$0x1]
        %v691 = vsel %vm399, %v598, %v690
        %692 = vst [vmem:[%s640 + $0x50] sm:$0x1] %v691
        %v693 = vld [vmem:[%s640 + $0x54] sm:$0xf]
        %v694 = vsel %vm642, %v605, %v693
        %695 = vst [vmem:[%s640 + $0x54] sm:$0xf] %v694
        %696 = vst.msk [vmem:[%s640 + $0x58] sm:$0xf] %vm646, %v614
        %v697 = vld [vmem:[%s640 + $0x5c] sm:$0x1]
        %v698 = vsel %vm399, %v615, %v697
        %699 = vst [vmem:[%s640 + $0x5c] sm:$0x1] %v698
        %p700 = scmp.gt.s32.totalorder %s31, 0
        %v701 = vld [vmem:[%s336] sm:$0xf]
        %v702 = vld [vmem:[%s336 + $0x4] sm:$0xf]
        %s703 = scalar_select %p700, 1, 0
        %v704 = vstv %s703
        %vm705 = vcmp.eq.s32.totalorder %v704, 1
        %v706 = vsel %vm705, %v701, 0
        %v707 = vsel %vm705, %v702, 0
        %v709 = vshrl.u32 %v706, 16
        %v711 = vrot.slane %v709, 7
        %v712 = vshll.u32 %v706, 16
        %v714 = vor.u32 %v711, %v712
        %v715 = vrot.slane %v711, 4
        %v717 = vshrl.u32 %v707, 16
        %v719 = vrot.slane %v717, 7
        %v720 = vshll.u32 %v707, 16
        %v722 = vor.u32 %v719, %v720
        %v723 = vsel %vm479, %v715, %v722
        %v724 = vrot.slane %v719, 4
        %v728 = vld [vmem:[#allocation2] sm:$0xf]
        %v729 = vsel %vm642, %v714, %v728
        %730 = vst [vmem:[#allocation2] sm:$0xf] %v729
        %731 = vst.msk [vmem:[#allocation2 + $0x4] sm:$0xf] %vm646, %v723
        %v732 = vld [vmem:[#allocation2 + $0x8] sm:$0x1]
        %v733 = vsel %vm399, %v724, %v732
        %734 = vst [vmem:[#allocation2 + $0x8] sm:$0x1] %v733
        %p735 = scmp.lt.s32.totalorder %s31, 1
        %v736 = vld [vmem:[%s345] sm:$0xf]
        %v737 = vld [vmem:[%s345 + $0x4] sm:$0xf]
        %s738 = scalar_select %p735, 1, 0
        %v739 = vstv %s738
        %vm740 = vcmp.eq.s32.totalorder %v739, 1
        %v741 = vsel %vm740, %v736, 0
        %v742 = vsel %vm740, %v737, 0
        %v744 = vshrl.u32 %v741, 16
        %v746 = vrot.slane %v744, 7
        %v747 = vshll.u32 %v741, 16
        %v749 = vor.u32 %v746, %v747
        %v750 = vrot.slane %v746, 4
        %v752 = vshrl.u32 %v742, 16
        %v754 = vrot.slane %v752, 7
        %v755 = vshll.u32 %v742, 16
        %v757 = vor.u32 %v754, %v755
        %v758 = vsel %vm479, %v750, %v757
        %v759 = vrot.slane %v754, 4
        %s763 = scalar_lea.vmem [#allocation2], 108
        %v764 = vld [vmem:[%s763] sm:$0xf]
        %v765 = vsel %vm642, %v749, %v764
        %766 = vst [vmem:[%s763] sm:$0xf] %v765
        %767 = vst.msk [vmem:[%s763 + $0x4] sm:$0xf] %vm646, %v758
        %v768 = vld [vmem:[%s763 + $0x8] sm:$0x1]
        %v769 = vsel %vm399, %v759, %v768
        %770 = vst [vmem:[%s763 + $0x8] sm:$0x1] %v769
        %v771 = vld [vmem:[#allocation2] sm:$0xf]
        %v772 = vld [vmem:[#allocation2 + $0x4] sm:$0xf]
        %v773 = vld [vmem:[#allocation2 + $0x8] sm:$0x1]
        %v774 = vld [vmem:[#allocation2 + $0xc] sm:$0xf]
        %v775 = vld [vmem:[#allocation2 + $0x10] sm:$0xf]
        %v776 = vld [vmem:[#allocation2 + $0x14] sm:$0x1]
        %v777 = vld [vmem:[#allocation2 + $0x18] sm:$0xf]
        %v778 = vld [vmem:[#allocation2 + $0x1c] sm:$0xf]
        %v779 = vld [vmem:[#allocation2 + $0x20] sm:$0x1]
        %v780 = vld [vmem:[#allocation2 + $0x24] sm:$0xf]
        %v781 = vld [vmem:[#allocation2 + $0x28] sm:$0xf]
        %v782 = vld [vmem:[#allocation2 + $0x2c] sm:$0x1]
        %v783 = vld [vmem:[#allocation2 + $0x30] sm:$0xf]
        %v784 = vld [vmem:[#allocation2 + $0x34] sm:$0xf]
        %v785 = vld [vmem:[#allocation2 + $0x38] sm:$0x1]
        %v786 = vld [vmem:[#allocation2 + $0x3c] sm:$0xf]
        %v787 = vld [vmem:[#allocation2 + $0x40] sm:$0xf]
        %v788 = vld [vmem:[#allocation2 + $0x44] sm:$0x1]
        %v789 = vld [vmem:[#allocation2 + $0x48] sm:$0xf]
        %v790 = vld [vmem:[#allocation2 + $0x4c] sm:$0xf]
        %v791 = vld [vmem:[#allocation2 + $0x50] sm:$0x1]
        %v792 = vld [vmem:[#allocation2 + $0x54] sm:$0xf]
        %v793 = vld [vmem:[#allocation2 + $0x58] sm:$0xf]
        %v794 = vld [vmem:[#allocation2 + $0x5c] sm:$0x1]
        %v820 = vunpack.c.l.s4 1966171168
        %v821 = vunpack.c.0.s8 %v820
        %v822 = vlaneseq
        %v823 = vshrl.u32 %v822, 7
        %v824 = vsub.s32 %v821, %v823
        %v825 = vrot.slane %v771, %v824
        %v826 = vcombine.high %v825, %v825
        %v828 = vunpack.c.l.s4 1966171168
        %v829 = vunpack.c.0.s8 %v828
        %v830 = vlaneseq
        %v831 = vshrl.u32 %v830, 7
        %v832 = vsub.s32 %v829, %v831
        %v833 = vrot.slane %v825, %v832
        %v835 = vunpack.c.l.s4 1966171168
        %v836 = vunpack.c.0.s8 %v835
        %v837 = vlaneseq
        %v838 = vshrl.u32 %v837, 7
        %v839 = vsub.s32 %v836, %v838
        %v840 = vrot.slane %v826, %v839
        %v841 = vcombine.high %v833, %v833
        %v842 = vcombine.high %v840, %v840
        %v844 = vunpack.c.l.s4 1966171168
        %v845 = vunpack.c.0.s8 %v844
        %v846 = vlaneseq
        %v847 = vshrl.u32 %v846, 7
        %v848 = vsub.s32 %v845, %v847
        %v849 = vrot.slane %v772, %v848
        %v850 = vcombine.high %v849, %v849
        %v852 = vunpack.c.l.s4 1966171168
        %v853 = vunpack.c.0.s8 %v852
        %v854 = vlaneseq
        %v855 = vshrl.u32 %v854, 7
        %v856 = vsub.s32 %v853, %v855
        %v857 = vrot.slane %v849, %v856
        %v859 = vunpack.c.l.s4 1966171168
        %v860 = vunpack.c.0.s8 %v859
        %v861 = vlaneseq
        %v862 = vshrl.u32 %v861, 7
        %v863 = vsub.s32 %v860, %v862
        %v864 = vrot.slane %v850, %v863
        %v865 = vcombine.high %v857, %v857
        %v866 = vcombine.high %v864, %v864
        %v868 = vunpack.c.l.s4 1966171168
        %v869 = vunpack.c.0.s8 %v868
        %v870 = vlaneseq
        %v871 = vshrl.u32 %v870, 7
        %v872 = vsub.s32 %v869, %v871
        %v873 = vrot.slane %v773, %v872
        %v875 = vunpack.c.l.s4 1966171168
        %v876 = vunpack.c.0.s8 %v875
        %v877 = vlaneseq
        %v878 = vshrl.u32 %v877, 7
        %v879 = vsub.s32 %v876, %v878
        %v880 = vrot.slane %v873, %v879
        %v882 = vunpack.c.l.s4 1966171168
        %v883 = vunpack.c.0.s8 %v882
        %v884 = vlaneseq
        %v885 = vshrl.u32 %v884, 7
        %v886 = vsub.s32 %v883, %v885
        %v887 = vrot.slane %v774, %v886
        %v888 = vcombine.high %v887, %v887
        %v890 = vunpack.c.l.s4 1966171168
        %v891 = vunpack.c.0.s8 %v890
        %v892 = vlaneseq
        %v893 = vshrl.u32 %v892, 7
        %v894 = vsub.s32 %v891, %v893
        %v895 = vrot.slane %v887, %v894
        %v897 = vunpack.c.l.s4 1966171168
        %v898 = vunpack.c.0.s8 %v897
        %v899 = vlaneseq
        %v900 = vshrl.u32 %v899, 7
        %v901 = vsub.s32 %v898, %v900
        %v902 = vrot.slane %v888, %v901
        %v903 = vcombine.high %v895, %v895
        %v904 = vcombine.high %v902, %v902
        %v906 = vunpack.c.l.s4 1966171168
        %v907 = vunpack.c.0.s8 %v906
        %v908 = vlaneseq
        %v909 = vshrl.u32 %v908, 7
        %v910 = vsub.s32 %v907, %v909
        %v911 = vrot.slane %v775, %v910
        %v912 = vcombine.high %v911, %v911
        %v914 = vunpack.c.l.s4 1966171168
        %v915 = vunpack.c.0.s8 %v914
        %v916 = vlaneseq
        %v917 = vshrl.u32 %v916, 7
        %v918 = vsub.s32 %v915, %v917
        %v919 = vrot.slane %v911, %v918
        %v921 = vunpack.c.l.s4 1966171168
        %v922 = vunpack.c.0.s8 %v921
        %v923 = vlaneseq
        %v924 = vshrl.u32 %v923, 7
        %v925 = vsub.s32 %v922, %v924
        %v926 = vrot.slane %v912, %v925
        %v927 = vcombine.high %v919, %v919
        %v928 = vcombine.high %v926, %v926
        %v930 = vunpack.c.l.s4 1966171168
        %v931 = vunpack.c.0.s8 %v930
        %v932 = vlaneseq
        %v933 = vshrl.u32 %v932, 7
        %v934 = vsub.s32 %v931, %v933
        %v935 = vrot.slane %v776, %v934
        %v937 = vunpack.c.l.s4 1966171168
        %v938 = vunpack.c.0.s8 %v937
        %v939 = vlaneseq
        %v940 = vshrl.u32 %v939, 7
        %v941 = vsub.s32 %v938, %v940
        %v942 = vrot.slane %v935, %v941
        %v944 = vunpack.c.l.s4 1966171168
        %v945 = vunpack.c.0.s8 %v944
        %v946 = vlaneseq
        %v947 = vshrl.u32 %v946, 7
        %v948 = vsub.s32 %v945, %v947
        %v949 = vrot.slane %v777, %v948
        %v950 = vcombine.high %v949, %v949
        %v952 = vunpack.c.l.s4 1966171168
        %v953 = vunpack.c.0.s8 %v952
        %v954 = vlaneseq
        %v955 = vshrl.u32 %v954, 7
        %v956 = vsub.s32 %v953, %v955
        %v957 = vrot.slane %v949, %v956
        %v959 = vunpack.c.l.s4 1966171168
        %v960 = vunpack.c.0.s8 %v959
        %v961 = vlaneseq
        %v962 = vshrl.u32 %v961, 7
        %v963 = vsub.s32 %v960, %v962
        %v964 = vrot.slane %v950, %v963
        %v965 = vcombine.high %v957, %v957
        %v966 = vcombine.high %v964, %v964
        %v968 = vunpack.c.l.s4 1966171168
        %v969 = vunpack.c.0.s8 %v968
        %v970 = vlaneseq
        %v971 = vshrl.u32 %v970, 7
        %v972 = vsub.s32 %v969, %v971
        %v973 = vrot.slane %v778, %v972
        %v974 = vcombine.high %v973, %v973
        %v976 = vunpack.c.l.s4 1966171168
        %v977 = vunpack.c.0.s8 %v976
        %v978 = vlaneseq
        %v979 = vshrl.u32 %v978, 7
        %v980 = vsub.s32 %v977, %v979
        %v981 = vrot.slane %v973, %v980
        %v983 = vunpack.c.l.s4 1966171168
        %v984 = vunpack.c.0.s8 %v983
        %v985 = vlaneseq
        %v986 = vshrl.u32 %v985, 7
        %v987 = vsub.s32 %v984, %v986
        %v988 = vrot.slane %v974, %v987
        %v989 = vcombine.high %v981, %v981
        %v990 = vcombine.high %v988, %v988
        %v992 = vunpack.c.l.s4 1966171168
        %v993 = vunpack.c.0.s8 %v992
        %v994 = vlaneseq
        %v995 = vshrl.u32 %v994, 7
        %v996 = vsub.s32 %v993, %v995
        %v997 = vrot.slane %v779, %v996
        %v999 = vunpack.c.l.s4 1966171168
        %v1000 = vunpack.c.0.s8 %v999
        %v1001 = vlaneseq
        %v1002 = vshrl.u32 %v1001, 7
        %v1003 = vsub.s32 %v1000, %v1002
        %v1004 = vrot.slane %v997, %v1003
        %v1006 = vunpack.c.l.s4 1966171168
        %v1007 = vunpack.c.0.s8 %v1006
        %v1008 = vlaneseq
        %v1009 = vshrl.u32 %v1008, 7
        %v1010 = vsub.s32 %v1007, %v1009
        %v1011 = vrot.slane %v780, %v1010
        %v1012 = vcombine.high %v1011, %v1011
        %v1014 = vunpack.c.l.s4 1966171168
        %v1015 = vunpack.c.0.s8 %v1014
        %v1016 = vlaneseq
        %v1017 = vshrl.u32 %v1016, 7
        %v1018 = vsub.s32 %v1015, %v1017
        %v1019 = vrot.slane %v1011, %v1018
        %v1021 = vunpack.c.l.s4 1966171168
        %v1022 = vunpack.c.0.s8 %v1021
        %v1023 = vlaneseq
        %v1024 = vshrl.u32 %v1023, 7
        %v1025 = vsub.s32 %v1022, %v1024
        %v1026 = vrot.slane %v1012, %v1025
        %v1027 = vcombine.high %v1019, %v1019
        %v1028 = vcombine.high %v1026, %v1026
        %v1030 = vunpack.c.l.s4 1966171168
        %v1031 = vunpack.c.0.s8 %v1030
        %v1032 = vlaneseq
        %v1033 = vshrl.u32 %v1032, 7
        %v1034 = vsub.s32 %v1031, %v1033
        %v1035 = vrot.slane %v781, %v1034
        %v1036 = vcombine.high %v1035, %v1035
        %v1038 = vunpack.c.l.s4 1966171168
        %v1039 = vunpack.c.0.s8 %v1038
        %v1040 = vlaneseq
        %v1041 = vshrl.u32 %v1040, 7
        %v1042 = vsub.s32 %v1039, %v1041
        %v1043 = vrot.slane %v1035, %v1042
        %v1045 = vunpack.c.l.s4 1966171168
        %v1046 = vunpack.c.0.s8 %v1045
        %v1047 = vlaneseq
        %v1048 = vshrl.u32 %v1047, 7
        %v1049 = vsub.s32 %v1046, %v1048
        %v1050 = vrot.slane %v1036, %v1049
        %v1051 = vcombine.high %v1043, %v1043
        %v1052 = vcombine.high %v1050, %v1050
        %v1054 = vunpack.c.l.s4 1966171168
        %v1055 = vunpack.c.0.s8 %v1054
        %v1056 = vlaneseq
        %v1057 = vshrl.u32 %v1056, 7
        %v1058 = vsub.s32 %v1055, %v1057
        %v1059 = vrot.slane %v782, %v1058
        %v1061 = vunpack.c.l.s4 1966171168
        %v1062 = vunpack.c.0.s8 %v1061
        %v1063 = vlaneseq
        %v1064 = vshrl.u32 %v1063, 7
        %v1065 = vsub.s32 %v1062, %v1064
        %v1066 = vrot.slane %v1059, %v1065
        %v1068 = vunpack.c.l.s4 1966171168
        %v1069 = vunpack.c.0.s8 %v1068
        %v1070 = vlaneseq
        %v1071 = vshrl.u32 %v1070, 7
        %v1072 = vsub.s32 %v1069, %v1071
        %v1073 = vrot.slane %v783, %v1072
        %v1074 = vcombine.high %v1073, %v1073
        %v1076 = vunpack.c.l.s4 1966171168
        %v1077 = vunpack.c.0.s8 %v1076
        %v1078 = vlaneseq
        %v1079 = vshrl.u32 %v1078, 7
        %v1080 = vsub.s32 %v1077, %v1079
        %v1081 = vrot.slane %v1073, %v1080
        %v1083 = vunpack.c.l.s4 1966171168
        %v1084 = vunpack.c.0.s8 %v1083
        %v1085 = vlaneseq
        %v1086 = vshrl.u32 %v1085, 7
        %v1087 = vsub.s32 %v1084, %v1086
        %v1088 = vrot.slane %v1074, %v1087
        %v1089 = vcombine.high %v1081, %v1081
        %v1090 = vcombine.high %v1088, %v1088
        %v1092 = vunpack.c.l.s4 1966171168
        %v1093 = vunpack.c.0.s8 %v1092
        %v1094 = vlaneseq
        %v1095 = vshrl.u32 %v1094, 7
        %v1096 = vsub.s32 %v1093, %v1095
        %v1097 = vrot.slane %v784, %v1096
        %v1098 = vcombine.high %v1097, %v1097
        %v1100 = vunpack.c.l.s4 1966171168
        %v1101 = vunpack.c.0.s8 %v1100
        %v1102 = vlaneseq
        %v1103 = vshrl.u32 %v1102, 7
        %v1104 = vsub.s32 %v1101, %v1103
        %v1105 = vrot.slane %v1097, %v1104
        %v1107 = vunpack.c.l.s4 1966171168
        %v1108 = vunpack.c.0.s8 %v1107
        %v1109 = vlaneseq
        %v1110 = vshrl.u32 %v1109, 7
        %v1111 = vsub.s32 %v1108, %v1110
        %v1112 = vrot.slane %v1098, %v1111
        %v1113 = vcombine.high %v1105, %v1105
        %v1114 = vcombine.high %v1112, %v1112
        %v1116 = vunpack.c.l.s4 1966171168
        %v1117 = vunpack.c.0.s8 %v1116
        %v1118 = vlaneseq
        %v1119 = vshrl.u32 %v1118, 7
        %v1120 = vsub.s32 %v1117, %v1119
        %v1121 = vrot.slane %v785, %v1120
        %v1123 = vunpack.c.l.s4 1966171168
        %v1124 = vunpack.c.0.s8 %v1123
        %v1125 = vlaneseq
        %v1126 = vshrl.u32 %v1125, 7
        %v1127 = vsub.s32 %v1124, %v1126
        %v1128 = vrot.slane %v1121, %v1127
        %v1130 = vunpack.c.l.s4 1966171168
        %v1131 = vunpack.c.0.s8 %v1130
        %v1132 = vlaneseq
        %v1133 = vshrl.u32 %v1132, 7
        %v1134 = vsub.s32 %v1131, %v1133
        %v1135 = vrot.slane %v786, %v1134
        %v1136 = vcombine.high %v1135, %v1135
        %v1138 = vunpack.c.l.s4 1966171168
        %v1139 = vunpack.c.0.s8 %v1138
        %v1140 = vlaneseq
        %v1141 = vshrl.u32 %v1140, 7
        %v1142 = vsub.s32 %v1139, %v1141
        %v1143 = vrot.slane %v1135, %v1142
        %v1145 = vunpack.c.l.s4 1966171168
        %v1146 = vunpack.c.0.s8 %v1145
        %v1147 = vlaneseq
        %v1148 = vshrl.u32 %v1147, 7
        %v1149 = vsub.s32 %v1146, %v1148
        %v1150 = vrot.slane %v1136, %v1149
        %v1151 = vcombine.high %v1143, %v1143
        %v1152 = vcombine.high %v1150, %v1150
        %v1154 = vunpack.c.l.s4 1966171168
        %v1155 = vunpack.c.0.s8 %v1154
        %v1156 = vlaneseq
        %v1157 = vshrl.u32 %v1156, 7
        %v1158 = vsub.s32 %v1155, %v1157
        %v1159 = vrot.slane %v787, %v1158
        %v1160 = vcombine.high %v1159, %v1159
        %v1162 = vunpack.c.l.s4 1966171168
        %v1163 = vunpack.c.0.s8 %v1162
        %v1164 = vlaneseq
        %v1165 = vshrl.u32 %v1164, 7
        %v1166 = vsub.s32 %v1163, %v1165
        %v1167 = vrot.slane %v1159, %v1166
        %v1169 = vunpack.c.l.s4 1966171168
        %v1170 = vunpack.c.0.s8 %v1169
        %v1171 = vlaneseq
        %v1172 = vshrl.u32 %v1171, 7
        %v1173 = vsub.s32 %v1170, %v1172
        %v1174 = vrot.slane %v1160, %v1173
        %v1175 = vcombine.high %v1167, %v1167
        %v1176 = vcombine.high %v1174, %v1174
        %v1178 = vunpack.c.l.s4 1966171168
        %v1179 = vunpack.c.0.s8 %v1178
        %v1180 = vlaneseq
        %v1181 = vshrl.u32 %v1180, 7
        %v1182 = vsub.s32 %v1179, %v1181
        %v1183 = vrot.slane %v788, %v1182
        %v1185 = vunpack.c.l.s4 1966171168
        %v1186 = vunpack.c.0.s8 %v1185
        %v1187 = vlaneseq
        %v1188 = vshrl.u32 %v1187, 7
        %v1189 = vsub.s32 %v1186, %v1188
        %v1190 = vrot.slane %v1183, %v1189
        %v1192 = vunpack.c.l.s4 1966171168
        %v1193 = vunpack.c.0.s8 %v1192
        %v1194 = vlaneseq
        %v1195 = vshrl.u32 %v1194, 7
        %v1196 = vsub.s32 %v1193, %v1195
        %v1197 = vrot.slane %v789, %v1196
        %v1198 = vcombine.high %v1197, %v1197
        %v1200 = vunpack.c.l.s4 1966171168
        %v1201 = vunpack.c.0.s8 %v1200
        %v1202 = vlaneseq
        %v1203 = vshrl.u32 %v1202, 7
        %v1204 = vsub.s32 %v1201, %v1203
        %v1205 = vrot.slane %v1197, %v1204
        %v1207 = vunpack.c.l.s4 1966171168
        %v1208 = vunpack.c.0.s8 %v1207
        %v1209 = vlaneseq
        %v1210 = vshrl.u32 %v1209, 7
        %v1211 = vsub.s32 %v1208, %v1210
        %v1212 = vrot.slane %v1198, %v1211
        %v1213 = vcombine.high %v1205, %v1205
        %v1214 = vcombine.high %v1212, %v1212
        %v1216 = vunpack.c.l.s4 1966171168
        %v1217 = vunpack.c.0.s8 %v1216
        %v1218 = vlaneseq
        %v1219 = vshrl.u32 %v1218, 7
        %v1220 = vsub.s32 %v1217, %v1219
        %v1221 = vrot.slane %v790, %v1220
        %v1222 = vcombine.high %v1221, %v1221
        %v1224 = vunpack.c.l.s4 1966171168
        %v1225 = vunpack.c.0.s8 %v1224
        %v1226 = vlaneseq
        %v1227 = vshrl.u32 %v1226, 7
        %v1228 = vsub.s32 %v1225, %v1227
        %v1229 = vrot.slane %v1221, %v1228
        %v1231 = vunpack.c.l.s4 1966171168
        %v1232 = vunpack.c.0.s8 %v1231
        %v1233 = vlaneseq
        %v1234 = vshrl.u32 %v1233, 7
        %v1235 = vsub.s32 %v1232, %v1234
        %v1236 = vrot.slane %v1222, %v1235
        %v1237 = vcombine.high %v1229, %v1229
        %v1238 = vcombine.high %v1236, %v1236
        %v1240 = vunpack.c.l.s4 1966171168
        %v1241 = vunpack.c.0.s8 %v1240
        %v1242 = vlaneseq
        %v1243 = vshrl.u32 %v1242, 7
        %v1244 = vsub.s32 %v1241, %v1243
        %v1245 = vrot.slane %v791, %v1244
        %v1247 = vunpack.c.l.s4 1966171168
        %v1248 = vunpack.c.0.s8 %v1247
        %v1249 = vlaneseq
        %v1250 = vshrl.u32 %v1249, 7
        %v1251 = vsub.s32 %v1248, %v1250
        %v1252 = vrot.slane %v1245, %v1251
        %v1254 = vunpack.c.l.s4 1966171168
        %v1255 = vunpack.c.0.s8 %v1254
        %v1256 = vlaneseq
        %v1257 = vshrl.u32 %v1256, 7
        %v1258 = vsub.s32 %v1255, %v1257
        %v1259 = vrot.slane %v792, %v1258
        %v1260 = vcombine.high %v1259, %v1259
        %v1262 = vunpack.c.l.s4 1966171168
        %v1263 = vunpack.c.0.s8 %v1262
        %v1264 = vlaneseq
        %v1265 = vshrl.u32 %v1264, 7
        %v1266 = vsub.s32 %v1263, %v1265
        %v1267 = vrot.slane %v1259, %v1266
        %v1269 = vunpack.c.l.s4 1966171168
        %v1270 = vunpack.c.0.s8 %v1269
        %v1271 = vlaneseq
        %v1272 = vshrl.u32 %v1271, 7
        %v1273 = vsub.s32 %v1270, %v1272
        %v1274 = vrot.slane %v1260, %v1273
        %v1275 = vcombine.high %v1267, %v1267
        %v1276 = vcombine.high %v1274, %v1274
        %v1278 = vunpack.c.l.s4 1966171168
        %v1279 = vunpack.c.0.s8 %v1278
        %v1280 = vlaneseq
        %v1281 = vshrl.u32 %v1280, 7
        %v1282 = vsub.s32 %v1279, %v1281
        %v1283 = vrot.slane %v793, %v1282
        %v1284 = vcombine.high %v1283, %v1283
        %v1286 = vunpack.c.l.s4 1966171168
        %v1287 = vunpack.c.0.s8 %v1286
        %v1288 = vlaneseq
        %v1289 = vshrl.u32 %v1288, 7
        %v1290 = vsub.s32 %v1287, %v1289
        %v1291 = vrot.slane %v1283, %v1290
        %v1293 = vunpack.c.l.s4 1966171168
        %v1294 = vunpack.c.0.s8 %v1293
        %v1295 = vlaneseq
        %v1296 = vshrl.u32 %v1295, 7
        %v1297 = vsub.s32 %v1294, %v1296
        %v1298 = vrot.slane %v1284, %v1297
        %v1299 = vcombine.high %v1291, %v1291
        %v1300 = vcombine.high %v1298, %v1298
        %v1302 = vunpack.c.l.s4 1966171168
        %v1303 = vunpack.c.0.s8 %v1302
        %v1304 = vlaneseq
        %v1305 = vshrl.u32 %v1304, 7
        %v1306 = vsub.s32 %v1303, %v1305
        %v1307 = vrot.slane %v794, %v1306
        %v1309 = vunpack.c.l.s4 1966171168
        %v1310 = vunpack.c.0.s8 %v1309
        %v1311 = vlaneseq
        %v1312 = vshrl.u32 %v1311, 7
        %v1313 = vsub.s32 %v1310, %v1312
        %v1314 = vrot.slane %v1307, %v1313
        %v1315 = vld [vmem:[#allocation9] sm:$0xf]
        %v1316 = vld [vmem:[#allocation9 + $0x4] sm:$0xf]
        %v1317 = vld [vmem:[#allocation9 + $0x8] sm:$0xf]
        %v1318 = vld [vmem:[#allocation9 + $0xc] sm:$0xf]
        %v1319 = vcombine.low %v833, %v840
        %v1320 = vcombine.low %v841, %v842
        %v1321 = vcombine.low %v857, %v864
        %v1322 = vcombine.low %v865, %v866
        %v1324 = vunpack.c.l.s4 1966171168
        %v1325 = vunpack.c.0.s8 %v1324
        %v1326 = vlaneseq
        %v1327 = vshrl.u32 %v1326, 7
        %v1328 = vsub.s32 %v1325, %v1327
        %v1329 = vrot.slane %v1319, %v1328
        %v1331 = vunpack.c.l.s4 1966171168
        %v1332 = vunpack.c.0.s8 %v1331
        %v1333 = vlaneseq
        %v1334 = vshrl.u32 %v1333, 7
        %v1335 = vsub.s32 %v1332, %v1334
        %v1336 = vrot.slane %v1320, %v1335
        %v1338 = vunpack.c.l.s4 1966171168
        %v1339 = vunpack.c.0.s8 %v1338
        %v1340 = vlaneseq
        %v1341 = vshrl.u32 %v1340, 7
        %v1342 = vsub.s32 %v1339, %v1341
        %v1343 = vrot.slane %v1321, %v1342
        %v1345 = vunpack.c.l.s4 1966171168
        %v1346 = vunpack.c.0.s8 %v1345
        %v1347 = vlaneseq
        %v1348 = vshrl.u32 %v1347, 7
        %v1349 = vsub.s32 %v1346, %v1348
        %v1350 = vrot.slane %v1322, %v1349
        %v1351 = vcombine.low %v1329, %v1336
        %v1352 = vcombine.low %v1343, %v1350
        %v1354 = vunpack.c.l.s4 1966171168
        %v1355 = vunpack.c.0.s8 %v1354
        %v1356 = vlaneseq
        %v1357 = vshrl.u32 %v1356, 7
        %v1358 = vsub.s32 %v1355, %v1357
        %v1359 = vrot.slane %v1351, %v1358
        %v1361 = vunpack.c.l.s4 1966171168
        %v1362 = vunpack.c.0.s8 %v1361
        %v1363 = vlaneseq
        %v1364 = vshrl.u32 %v1363, 7
        %v1365 = vsub.s32 %v1362, %v1364
        %v1366 = vrot.slane %v1352, %v1365
        %v1367 = vcombine.low %v1359, %v1366
        %v1368 = vcombine.low %v880, %v895
        %v1369 = vcombine.low %v902, %v903
        %v1370 = vcombine.low %v904, %v919
        %v1371 = vcombine.low %v926, %v927
        %v1373 = vunpack.c.l.s4 1966171168
        %v1374 = vunpack.c.0.s8 %v1373
        %v1375 = vlaneseq
        %v1376 = vshrl.u32 %v1375, 7
        %v1377 = vsub.s32 %v1374, %v1376
        %v1378 = vrot.slane %v1368, %v1377
        %v1380 = vunpack.c.l.s4 1966171168
        %v1381 = vunpack.c.0.s8 %v1380
        %v1382 = vlaneseq
        %v1383 = vshrl.u32 %v1382, 7
        %v1384 = vsub.s32 %v1381, %v1383
        %v1385 = vrot.slane %v1369, %v1384
        %v1387 = vunpack.c.l.s4 1966171168
        %v1388 = vunpack.c.0.s8 %v1387
        %v1389 = vlaneseq
        %v1390 = vshrl.u32 %v1389, 7
        %v1391 = vsub.s32 %v1388, %v1390
        %v1392 = vrot.slane %v1370, %v1391
        %v1394 = vunpack.c.l.s4 1966171168
        %v1395 = vunpack.c.0.s8 %v1394
        %v1396 = vlaneseq
        %v1397 = vshrl.u32 %v1396, 7
        %v1398 = vsub.s32 %v1395, %v1397
        %v1399 = vrot.slane %v1371, %v1398
        %v1400 = vcombine.low %v1378, %v1385
        %v1401 = vcombine.low %v1392, %v1399
        %v1403 = vunpack.c.l.s4 1966171168
        %v1404 = vunpack.c.0.s8 %v1403
        %v1405 = vlaneseq
        %v1406 = vshrl.u32 %v1405, 7
        %v1407 = vsub.s32 %v1404, %v1406
        %v1408 = vrot.slane %v1400, %v1407
        %v1410 = vunpack.c.l.s4 1966171168
        %v1411 = vunpack.c.0.s8 %v1410
        %v1412 = vlaneseq
        %v1413 = vshrl.u32 %v1412, 7
        %v1414 = vsub.s32 %v1411, %v1413
        %v1415 = vrot.slane %v1401, %v1414
        %v1416 = vcombine.low %v1408, %v1415
        %v1417 = vcombine.low %v928, %v942
        %v1418 = vcombine.low %v957, %v964
        %v1419 = vcombine.low %v965, %v966
        %v1420 = vcombine.low %v981, %v988
        %v1422 = vunpack.c.l.s4 1966171168
        %v1423 = vunpack.c.0.s8 %v1422
        %v1424 = vlaneseq
        %v1425 = vshrl.u32 %v1424, 7
        %v1426 = vsub.s32 %v1423, %v1425
        %v1427 = vrot.slane %v1417, %v1426
        %v1429 = vunpack.c.l.s4 1966171168
        %v1430 = vunpack.c.0.s8 %v1429
        %v1431 = vlaneseq
        %v1432 = vshrl.u32 %v1431, 7
        %v1433 = vsub.s32 %v1430, %v1432
        %v1434 = vrot.slane %v1418, %v1433
        %v1436 = vunpack.c.l.s4 1966171168
        %v1437 = vunpack.c.0.s8 %v1436
        %v1438 = vlaneseq
        %v1439 = vshrl.u32 %v1438, 7
        %v1440 = vsub.s32 %v1437, %v1439
        %v1441 = vrot.slane %v1419, %v1440
        %v1443 = vunpack.c.l.s4 1966171168
        %v1444 = vunpack.c.0.s8 %v1443
        %v1445 = vlaneseq
        %v1446 = vshrl.u32 %v1445, 7
        %v1447 = vsub.s32 %v1444, %v1446
        %v1448 = vrot.slane %v1420, %v1447
        %v1449 = vcombine.low %v1427, %v1434
        %v1450 = vcombine.low %v1441, %v1448
        %v1452 = vunpack.c.l.s4 1966171168
        %v1453 = vunpack.c.0.s8 %v1452
        %v1454 = vlaneseq
        %v1455 = vshrl.u32 %v1454, 7
        %v1456 = vsub.s32 %v1453, %v1455
        %v1457 = vrot.slane %v1449, %v1456
        %v1459 = vunpack.c.l.s4 1966171168
        %v1460 = vunpack.c.0.s8 %v1459
        %v1461 = vlaneseq
        %v1462 = vshrl.u32 %v1461, 7
        %v1463 = vsub.s32 %v1460, %v1462
        %v1464 = vrot.slane %v1450, %v1463
        %v1465 = vcombine.low %v1457, %v1464
        %v1466 = vcombine.low %v989, %v990
        %v1467 = vcombine.low %v1004, %v1019
        %v1468 = vcombine.low %v1026, %v1027
        %v1469 = vcombine.low %v1028, %v1043
        %v1471 = vunpack.c.l.s4 1966171168
        %v1472 = vunpack.c.0.s8 %v1471
        %v1473 = vlaneseq
        %v1474 = vshrl.u32 %v1473, 7
        %v1475 = vsub.s32 %v1472, %v1474
        %v1476 = vrot.slane %v1466, %v1475
        %v1478 = vunpack.c.l.s4 1966171168
        %v1479 = vunpack.c.0.s8 %v1478
        %v1480 = vlaneseq
        %v1481 = vshrl.u32 %v1480, 7
        %v1482 = vsub.s32 %v1479, %v1481
        %v1483 = vrot.slane %v1467, %v1482
        %v1485 = vunpack.c.l.s4 1966171168
        %v1486 = vunpack.c.0.s8 %v1485
        %v1487 = vlaneseq
        %v1488 = vshrl.u32 %v1487, 7
        %v1489 = vsub.s32 %v1486, %v1488
        %v1490 = vrot.slane %v1468, %v1489
        %v1492 = vunpack.c.l.s4 1966171168
        %v1493 = vunpack.c.0.s8 %v1492
        %v1494 = vlaneseq
        %v1495 = vshrl.u32 %v1494, 7
        %v1496 = vsub.s32 %v1493, %v1495
        %v1497 = vrot.slane %v1469, %v1496
        %v1498 = vcombine.low %v1476, %v1483
        %v1499 = vcombine.low %v1490, %v1497
        %v1501 = vunpack.c.l.s4 1966171168
        %v1502 = vunpack.c.0.s8 %v1501
        %v1503 = vlaneseq
        %v1504 = vshrl.u32 %v1503, 7
        %v1505 = vsub.s32 %v1502, %v1504
        %v1506 = vrot.slane %v1498, %v1505
        %v1508 = vunpack.c.l.s4 1966171168
        %v1509 = vunpack.c.0.s8 %v1508
        %v1510 = vlaneseq
        %v1511 = vshrl.u32 %v1510, 7
        %v1512 = vsub.s32 %v1509, %v1511
        %v1513 = vrot.slane %v1499, %v1512
        %v1514 = vcombine.low %v1506, %v1513
        %v1515 = vcombine.low %v1050, %v1051
        %v1516 = vcombine.low %v1052, %v1066
        %v1517 = vcombine.low %v1081, %v1088
        %v1518 = vcombine.low %v1089, %v1090
        %v1520 = vunpack.c.l.s4 1966171168
        %v1521 = vunpack.c.0.s8 %v1520
        %v1522 = vlaneseq
        %v1523 = vshrl.u32 %v1522, 7
        %v1524 = vsub.s32 %v1521, %v1523
        %v1525 = vrot.slane %v1515, %v1524
        %v1527 = vunpack.c.l.s4 1966171168
        %v1528 = vunpack.c.0.s8 %v1527
        %v1529 = vlaneseq
        %v1530 = vshrl.u32 %v1529, 7
        %v1531 = vsub.s32 %v1528, %v1530
        %v1532 = vrot.slane %v1516, %v1531
        %v1534 = vunpack.c.l.s4 1966171168
        %v1535 = vunpack.c.0.s8 %v1534
        %v1536 = vlaneseq
        %v1537 = vshrl.u32 %v1536, 7
        %v1538 = vsub.s32 %v1535, %v1537
        %v1539 = vrot.slane %v1517, %v1538
        %v1541 = vunpack.c.l.s4 1966171168
        %v1542 = vunpack.c.0.s8 %v1541
        %v1543 = vlaneseq
        %v1544 = vshrl.u32 %v1543, 7
        %v1545 = vsub.s32 %v1542, %v1544
        %v1546 = vrot.slane %v1518, %v1545
        %v1547 = vcombine.low %v1525, %v1532
        %v1548 = vcombine.low %v1539, %v1546
        %v1550 = vunpack.c.l.s4 1966171168
        %v1551 = vunpack.c.0.s8 %v1550
        %v1552 = vlaneseq
        %v1553 = vshrl.u32 %v1552, 7
        %v1554 = vsub.s32 %v1551, %v1553
        %v1555 = vrot.slane %v1547, %v1554
        %v1557 = vunpack.c.l.s4 1966171168
        %v1558 = vunpack.c.0.s8 %v1557
        %v1559 = vlaneseq
        %v1560 = vshrl.u32 %v1559, 7
        %v1561 = vsub.s32 %v1558, %v1560
        %v1562 = vrot.slane %v1548, %v1561
        %v1563 = vcombine.low %v1555, %v1562
        %v1564 = vcombine.low %v1105, %v1112
        %v1565 = vcombine.low %v1113, %v1114
        %v1566 = vcombine.low %v1128, %v1143
        %v1567 = vcombine.low %v1150, %v1151
        %v1569 = vunpack.c.l.s4 1966171168
        %v1570 = vunpack.c.0.s8 %v1569
        %v1571 = vlaneseq
        %v1572 = vshrl.u32 %v1571, 7
        %v1573 = vsub.s32 %v1570, %v1572
        %v1574 = vrot.slane %v1564, %v1573
        %v1576 = vunpack.c.l.s4 1966171168
        %v1577 = vunpack.c.0.s8 %v1576
        %v1578 = vlaneseq
        %v1579 = vshrl.u32 %v1578, 7
        %v1580 = vsub.s32 %v1577, %v1579
        %v1581 = vrot.slane %v1565, %v1580
        %v1583 = vunpack.c.l.s4 1966171168
        %v1584 = vunpack.c.0.s8 %v1583
        %v1585 = vlaneseq
        %v1586 = vshrl.u32 %v1585, 7
        %v1587 = vsub.s32 %v1584, %v1586
        %v1588 = vrot.slane %v1566, %v1587
        %v1590 = vunpack.c.l.s4 1966171168
        %v1591 = vunpack.c.0.s8 %v1590
        %v1592 = vlaneseq
        %v1593 = vshrl.u32 %v1592, 7
        %v1594 = vsub.s32 %v1591, %v1593
        %v1595 = vrot.slane %v1567, %v1594
        %v1596 = vcombine.low %v1574, %v1581
        %v1597 = vcombine.low %v1588, %v1595
        %v1599 = vunpack.c.l.s4 1966171168
        %v1600 = vunpack.c.0.s8 %v1599
        %v1601 = vlaneseq
        %v1602 = vshrl.u32 %v1601, 7
        %v1603 = vsub.s32 %v1600, %v1602
        %v1604 = vrot.slane %v1596, %v1603
        %v1606 = vunpack.c.l.s4 1966171168
        %v1607 = vunpack.c.0.s8 %v1606
        %v1608 = vlaneseq
        %v1609 = vshrl.u32 %v1608, 7
        %v1610 = vsub.s32 %v1607, %v1609
        %v1611 = vrot.slane %v1597, %v1610
        %v1612 = vcombine.low %v1604, %v1611
        %v1613 = vcombine.low %v1152, %v1167
        %v1614 = vcombine.low %v1174, %v1175
        %v1615 = vcombine.low %v1176, %v1190
        %v1616 = vcombine.low %v1205, %v1212
        %v1618 = vunpack.c.l.s4 1966171168
        %v1619 = vunpack.c.0.s8 %v1618
        %v1620 = vlaneseq
        %v1621 = vshrl.u32 %v1620, 7
        %v1622 = vsub.s32 %v1619, %v1621
        %v1623 = vrot.slane %v1613, %v1622
        %v1625 = vunpack.c.l.s4 1966171168
        %v1626 = vunpack.c.0.s8 %v1625
        %v1627 = vlaneseq
        %v1628 = vshrl.u32 %v1627, 7
        %v1629 = vsub.s32 %v1626, %v1628
        %v1630 = vrot.slane %v1614, %v1629
        %v1632 = vunpack.c.l.s4 1966171168
        %v1633 = vunpack.c.0.s8 %v1632
        %v1634 = vlaneseq
        %v1635 = vshrl.u32 %v1634, 7
        %v1636 = vsub.s32 %v1633, %v1635
        %v1637 = vrot.slane %v1615, %v1636
        %v1639 = vunpack.c.l.s4 1966171168
        %v1640 = vunpack.c.0.s8 %v1639
        %v1641 = vlaneseq
        %v1642 = vshrl.u32 %v1641, 7
        %v1643 = vsub.s32 %v1640, %v1642
        %v1644 = vrot.slane %v1616, %v1643
        %v1645 = vcombine.low %v1623, %v1630
        %v1646 = vcombine.low %v1637, %v1644
        %v1648 = vunpack.c.l.s4 1966171168
        %v1649 = vunpack.c.0.s8 %v1648
        %v1650 = vlaneseq
        %v1651 = vshrl.u32 %v1650, 7
        %v1652 = vsub.s32 %v1649, %v1651
        %v1653 = vrot.slane %v1645, %v1652
        %v1655 = vunpack.c.l.s4 1966171168
        %v1656 = vunpack.c.0.s8 %v1655
        %v1657 = vlaneseq
        %v1658 = vshrl.u32 %v1657, 7
        %v1659 = vsub.s32 %v1656, %v1658
        %v1660 = vrot.slane %v1646, %v1659
        %v1661 = vcombine.low %v1653, %v1660
        %v1662 = vcombine.low %v1213, %v1214
        %v1663 = vcombine.low %v1229, %v1236
        %v1664 = vcombine.low %v1237, %v1238
        %v1665 = vcombine.low %v1252, %v1267
        %v1667 = vunpack.c.l.s4 1966171168
        %v1668 = vunpack.c.0.s8 %v1667
        %v1669 = vlaneseq
        %v1670 = vshrl.u32 %v1669, 7
        %v1671 = vsub.s32 %v1668, %v1670
        %v1672 = vrot.slane %v1662, %v1671
        %v1674 = vunpack.c.l.s4 1966171168
        %v1675 = vunpack.c.0.s8 %v1674
        %v1676 = vlaneseq
        %v1677 = vshrl.u32 %v1676, 7
        %v1678 = vsub.s32 %v1675, %v1677
        %v1679 = vrot.slane %v1663, %v1678
        %v1681 = vunpack.c.l.s4 1966171168
        %v1682 = vunpack.c.0.s8 %v1681
        %v1683 = vlaneseq
        %v1684 = vshrl.u32 %v1683, 7
        %v1685 = vsub.s32 %v1682, %v1684
        %v1686 = vrot.slane %v1664, %v1685
        %v1688 = vunpack.c.l.s4 1966171168
        %v1689 = vunpack.c.0.s8 %v1688
        %v1690 = vlaneseq
        %v1691 = vshrl.u32 %v1690, 7
        %v1692 = vsub.s32 %v1689, %v1691
        %v1693 = vrot.slane %v1665, %v1692
        %v1694 = vcombine.low %v1672, %v1679
        %v1695 = vcombine.low %v1686, %v1693
        %v1697 = vunpack.c.l.s4 1966171168
        %v1698 = vunpack.c.0.s8 %v1697
        %v1699 = vlaneseq
        %v1700 = vshrl.u32 %v1699, 7
        %v1701 = vsub.s32 %v1698, %v1700
        %v1702 = vrot.slane %v1694, %v1701
        %v1704 = vunpack.c.l.s4 1966171168
        %v1705 = vunpack.c.0.s8 %v1704
        %v1706 = vlaneseq
        %v1707 = vshrl.u32 %v1706, 7
        %v1708 = vsub.s32 %v1705, %v1707
        %v1709 = vrot.slane %v1695, %v1708
        %v1710 = vcombine.low %v1702, %v1709
        %v1711 = vcombine.low %v1274, %v1275
        %v1712 = vcombine.low %v1276, %v1291
        %v1713 = vcombine.low %v1298, %v1299
        %v1714 = vcombine.low %v1300, %v1314
        %v1716 = vunpack.c.l.s4 1966171168
        %v1717 = vunpack.c.0.s8 %v1716
        %v1718 = vlaneseq
        %v1719 = vshrl.u32 %v1718, 7
        %v1720 = vsub.s32 %v1717, %v1719
        %v1721 = vrot.slane %v1711, %v1720
        %v1723 = vunpack.c.l.s4 1966171168
        %v1724 = vunpack.c.0.s8 %v1723
        %v1725 = vlaneseq
        %v1726 = vshrl.u32 %v1725, 7
        %v1727 = vsub.s32 %v1724, %v1726
        %v1728 = vrot.slane %v1712, %v1727
        %v1730 = vunpack.c.l.s4 1966171168
        %v1731 = vunpack.c.0.s8 %v1730
        %v1732 = vlaneseq
        %v1733 = vshrl.u32 %v1732, 7
        %v1734 = vsub.s32 %v1731, %v1733
        %v1735 = vrot.slane %v1713, %v1734
        %v1737 = vunpack.c.l.s4 1966171168
        %v1738 = vunpack.c.0.s8 %v1737
        %v1739 = vlaneseq
        %v1740 = vshrl.u32 %v1739, 7
        %v1741 = vsub.s32 %v1738, %v1740
        %v1742 = vrot.slane %v1714, %v1741
        %v1743 = vcombine.low %v1721, %v1728
        %v1744 = vcombine.low %v1735, %v1742
        %v1746 = vunpack.c.l.s4 1966171168
        %v1747 = vunpack.c.0.s8 %v1746
        %v1748 = vlaneseq
        %v1749 = vshrl.u32 %v1748, 7
        %v1750 = vsub.s32 %v1747, %v1749
        %v1751 = vrot.slane %v1743, %v1750
        %v1753 = vunpack.c.l.s4 1966171168
        %v1754 = vunpack.c.0.s8 %v1753
        %v1755 = vlaneseq
        %v1756 = vshrl.u32 %v1755, 7
        %v1757 = vsub.s32 %v1754, %v1756
        %v1758 = vrot.slane %v1744, %v1757
        %v1759 = vcombine.low %v1751, %v1758
        %v1764 = vunpack.c.l.b16 %v1315
        %v1765 = vunpack.c.l.b16 %v1316
        %v1766 = vunpack.c.l.b16 %v1317
        %v1767 = vunpack.c.l.b16 %v1318
        %v1768 = vpack.c.b16 %v1765, %v1764
        %v1769 = vpack.c.b16 %v1767, %v1766
        %vm1772 = vcmask 261120
        %v1774 = vsel %vm1772, %v1367, 0
        %v1777 = vsel %vm1772, %v1416, 0
        %v1780 = vsel %vm1772, %v1465, 0
        %v1783 = vsel %vm1772, %v1514, 0
        %v1786 = vsel %vm1772, %v1563, 0
        %v1789 = vsel %vm1772, %v1612, 0
        %v1792 = vsel %vm1772, %v1661, 0
        %v1795 = vsel %vm1772, %v1710, 0
        %v1798 = vsel %vm1772, %v1759, 0
        %1800 = vmatprep.subr.bf16.mxu0 0
        %1801 = vmatpush1.bf16.msra.mxu0 0
        %1802 = vmatprep.subr.bf16.mxu0 0
        %1803 = vmatpush1.bf16.msra.mxu0 0
        %1804 = vmatprep.subr.bf16.mxu0 0
        %1805 = vmatpush1.bf16.msra.mxu0 0
        %1806 = vmatprep.subr.bf16.mxu0 0
        %1807 = vmatpush1.bf16.msra.mxu0 0
        %1808 = vmatprep.subr.bf16.mxu0 0
        %1809 = vmatpush1.bf16.msra.mxu0 0
        %1810 = vmatprep.subr.bf16.mxu0 0
        %1811 = vmatpush1.bf16.msra.mxu0 0
        %1812 = vmatprep.subr.bf16.mxu0 0
        %1813 = vmatpush1.bf16.msra.mxu0 %v1769
        %1814 = vmatprep.subr.bf16.mxu0 0
        %1815 = vmatpush1.bf16.msra.mxu0 %v1768
        %1816 = vmatprep.subr.bf16.mxu0 0
        %1817 = vmatpush2.bf16.msra.mxu0 0
        %1818 = vmatprep.subr.bf16.mxu0 0
        %1819 = vmatpush2.bf16.msra.mxu0 0
        %1820 = vmatprep.subr.bf16.mxu0 0
        %1821 = vmatpush2.bf16.msra.mxu0 0
        %1822 = vmatprep.subr.bf16.mxu0 0
        %1823 = vmatpush2.bf16.msra.mxu0 0
        %1824 = vmatprep.subr.bf16.mxu0 0
        %1825 = vmatpush2.bf16.msra.mxu0 0
        %1826 = vmatprep.subr.bf16.mxu0 0
        %1827 = vmatpush2.bf16.msra.mxu0 0
        %1828 = vmatprep.subr.bf16.mxu0 0
        %1829 = vmatpush2.bf16.msra.mxu0 0
        %1830 = vmatprep.subr.bf16.mxu0 0
        %1831 = vmatpush2.bf16.msra.mxu0 0
        %1832 = vmatprep.mubr.bf16.mxu0 0
        %1833 = vmatmul.mubr.bf16.gmra.mxu0 %v1774
        %v1834 = vpop.f32.mrf.mxu0
        %v1835 = vadd.f32 0.0, %v1834
        %v1836 = vpop.f32.mrf.mxu0
        %v1837 = vpop.f32.mrf.mxu0
        %v1838 = vadd.f32 0.0, %v1837
        %v1839 = vpop.f32.mrf.mxu0
        %1840 = vmatprep.mubr.bf16.mxu0 0
        %1841 = vmatmul.mubr.bf16.gmra.mxu0 %v1777
        %v1842 = vpop.f32.mrf.mxu0
        %v1843 = vadd.f32 0.0, %v1842
        %v1844 = vpop.f32.mrf.mxu0
        %v1845 = vpop.f32.mrf.mxu0
        %v1846 = vadd.f32 0.0, %v1845
        %v1847 = vpop.f32.mrf.mxu0
        %1848 = vmatprep.mubr.bf16.mxu0 0
        %1849 = vmatmul.mubr.bf16.gmra.mxu0 %v1780
        %v1850 = vpop.f32.mrf.mxu0
        %v1851 = vadd.f32 0.0, %v1850
        %v1852 = vpop.f32.mrf.mxu0
        %v1853 = vpop.f32.mrf.mxu0
        %v1854 = vadd.f32 0.0, %v1853
        %v1855 = vpop.f32.mrf.mxu0
        %1856 = vmatprep.mubr.bf16.mxu0 0
        %1857 = vmatmul.mubr.bf16.gmra.mxu0 %v1783
        %v1858 = vpop.f32.mrf.mxu0
        %v1859 = vadd.f32 0.0, %v1858
        %v1860 = vpop.f32.mrf.mxu0
        %v1861 = vpop.f32.mrf.mxu0
        %v1862 = vadd.f32 0.0, %v1861
        %v1863 = vpop.f32.mrf.mxu0
        %1864 = vmatprep.mubr.bf16.mxu0 0
        %1865 = vmatmul.mubr.bf16.gmra.mxu0 %v1786
        %v1866 = vpop.f32.mrf.mxu0
        %v1867 = vadd.f32 0.0, %v1866
        %v1868 = vpop.f32.mrf.mxu0
        %v1869 = vpop.f32.mrf.mxu0
        %v1870 = vadd.f32 0.0, %v1869
        %v1871 = vpop.f32.mrf.mxu0
        %1872 = vmatprep.mubr.bf16.mxu0 0
        %1873 = vmatmul.mubr.bf16.gmra.mxu0 %v1789
        %v1874 = vpop.f32.mrf.mxu0
        %v1875 = vadd.f32 0.0, %v1874
        %v1876 = vpop.f32.mrf.mxu0
        %v1877 = vpop.f32.mrf.mxu0
        %v1878 = vadd.f32 0.0, %v1877
        %v1879 = vpop.f32.mrf.mxu0
        %1880 = vmatprep.mubr.bf16.mxu0 0
        %1881 = vmatmul.mubr.bf16.gmra.mxu0 %v1792
        %v1882 = vpop.f32.mrf.mxu0
        %v1883 = vadd.f32 0.0, %v1882
        %v1884 = vpop.f32.mrf.mxu0
        %v1885 = vpop.f32.mrf.mxu0
        %v1886 = vadd.f32 0.0, %v1885
        %v1887 = vpop.f32.mrf.mxu0
        %1888 = vmatprep.mubr.bf16.mxu0 0
        %1889 = vmatmul.mubr.bf16.gmra.mxu0 %v1795
        %v1890 = vpop.f32.mrf.mxu0
        %v1891 = vadd.f32 0.0, %v1890
        %v1892 = vpop.f32.mrf.mxu0
        %v1893 = vpop.f32.mrf.mxu0
        %v1894 = vadd.f32 0.0, %v1893
        %v1895 = vpop.f32.mrf.mxu0
        %1896 = vmatprep.mubr.bf16.mxu0 0
        %1897 = vmatmul.mubr.bf16.gmra.mxu0 %v1798
        %v1898 = vpop.f32.mrf.mxu0
        %v1899 = vadd.f32 0.0, %v1898
        %v1900 = vpop.f32.mrf.mxu0
        %v1901 = vpop.f32.mrf.mxu0
        %v1902 = vadd.f32 0.0, %v1901
        %v1903 = vpop.f32.mrf.mxu0
        %1904 = vdwg.mxu0
        %v1923 = vcombine.high %v1835, %v1835
        %v1925 = vunpack.c.l.s4 1983009808
        %v1926 = vunpack.c.0.s8 %v1925
        %v1927 = vlaneseq
        %v1928 = vshrl.u32 %v1927, 7
        %v1929 = vsub.s32 %v1926, %v1928
        %v1930 = vrot.slane %v1835, %v1929
        %v1932 = vunpack.c.l.s4 1983009808
        %v1933 = vunpack.c.0.s8 %v1932
        %v1934 = vlaneseq
        %v1935 = vshrl.u32 %v1934, 7
        %v1936 = vsub.s32 %v1933, %v1935
        %v1937 = vrot.slane %v1923, %v1936
        %v1938 = vcombine.high %v1930, %v1930
        %v1939 = vcombine.high %v1937, %v1937
        %v1940 = vcombine.high %v1838, %v1838
        %v1942 = vunpack.c.l.s4 1983009808
        %v1943 = vunpack.c.0.s8 %v1942
        %v1944 = vlaneseq
        %v1945 = vshrl.u32 %v1944, 7
        %v1946 = vsub.s32 %v1943, %v1945
        %v1947 = vrot.slane %v1838, %v1946
        %v1949 = vunpack.c.l.s4 1983009808
        %v1950 = vunpack.c.0.s8 %v1949
        %v1951 = vlaneseq
        %v1952 = vshrl.u32 %v1951, 7
        %v1953 = vsub.s32 %v1950, %v1952
        %v1954 = vrot.slane %v1940, %v1953
        %v1955 = vcombine.high %v1947, %v1947
        %v1956 = vcombine.high %v1954, %v1954
        %v1957 = vcombine.high %v1843, %v1843
        %v1959 = vunpack.c.l.s4 1983009808
        %v1960 = vunpack.c.0.s8 %v1959
        %v1961 = vlaneseq
        %v1962 = vshrl.u32 %v1961, 7
        %v1963 = vsub.s32 %v1960, %v1962
        %v1964 = vrot.slane %v1843, %v1963
        %v1966 = vunpack.c.l.s4 1983009808
        %v1967 = vunpack.c.0.s8 %v1966
        %v1968 = vlaneseq
        %v1969 = vshrl.u32 %v1968, 7
        %v1970 = vsub.s32 %v1967, %v1969
        %v1971 = vrot.slane %v1957, %v1970
        %v1972 = vcombine.high %v1964, %v1964
        %v1973 = vcombine.high %v1971, %v1971
        %v1974 = vcombine.high %v1846, %v1846
        %v1976 = vunpack.c.l.s4 1983009808
        %v1977 = vunpack.c.0.s8 %v1976
        %v1978 = vlaneseq
        %v1979 = vshrl.u32 %v1978, 7
        %v1980 = vsub.s32 %v1977, %v1979
        %v1981 = vrot.slane %v1846, %v1980
        %v1983 = vunpack.c.l.s4 1983009808
        %v1984 = vunpack.c.0.s8 %v1983
        %v1985 = vlaneseq
        %v1986 = vshrl.u32 %v1985, 7
        %v1987 = vsub.s32 %v1984, %v1986
        %v1988 = vrot.slane %v1974, %v1987
        %v1989 = vcombine.high %v1981, %v1981
        %v1990 = vcombine.high %v1988, %v1988
        %v1991 = vcombine.high %v1851, %v1851
        %v1993 = vunpack.c.l.s4 1983009808
        %v1994 = vunpack.c.0.s8 %v1993
        %v1995 = vlaneseq
        %v1996 = vshrl.u32 %v1995, 7
        %v1997 = vsub.s32 %v1994, %v1996
        %v1998 = vrot.slane %v1851, %v1997
        %v2000 = vunpack.c.l.s4 1983009808
        %v2001 = vunpack.c.0.s8 %v2000
        %v2002 = vlaneseq
        %v2003 = vshrl.u32 %v2002, 7
        %v2004 = vsub.s32 %v2001, %v2003
        %v2005 = vrot.slane %v1991, %v2004
        %v2006 = vcombine.high %v1998, %v1998
        %v2007 = vcombine.high %v2005, %v2005
        %v2008 = vcombine.high %v1854, %v1854
        %v2010 = vunpack.c.l.s4 1983009808
        %v2011 = vunpack.c.0.s8 %v2010
        %v2012 = vlaneseq
        %v2013 = vshrl.u32 %v2012, 7
        %v2014 = vsub.s32 %v2011, %v2013
        %v2015 = vrot.slane %v1854, %v2014
        %v2017 = vunpack.c.l.s4 1983009808
        %v2018 = vunpack.c.0.s8 %v2017
        %v2019 = vlaneseq
        %v2020 = vshrl.u32 %v2019, 7
        %v2021 = vsub.s32 %v2018, %v2020
        %v2022 = vrot.slane %v2008, %v2021
        %v2023 = vcombine.high %v2015, %v2015
        %v2024 = vcombine.high %v2022, %v2022
        %v2025 = vcombine.high %v1859, %v1859
        %v2027 = vunpack.c.l.s4 1983009808
        %v2028 = vunpack.c.0.s8 %v2027
        %v2029 = vlaneseq
        %v2030 = vshrl.u32 %v2029, 7
        %v2031 = vsub.s32 %v2028, %v2030
        %v2032 = vrot.slane %v1859, %v2031
        %v2034 = vunpack.c.l.s4 1983009808
        %v2035 = vunpack.c.0.s8 %v2034
        %v2036 = vlaneseq
        %v2037 = vshrl.u32 %v2036, 7
        %v2038 = vsub.s32 %v2035, %v2037
        %v2039 = vrot.slane %v2025, %v2038
        %v2040 = vcombine.high %v2032, %v2032
        %v2041 = vcombine.high %v2039, %v2039
        %v2042 = vcombine.high %v1862, %v1862
        %v2044 = vunpack.c.l.s4 1983009808
        %v2045 = vunpack.c.0.s8 %v2044
        %v2046 = vlaneseq
        %v2047 = vshrl.u32 %v2046, 7
        %v2048 = vsub.s32 %v2045, %v2047
        %v2049 = vrot.slane %v1862, %v2048
        %v2051 = vunpack.c.l.s4 1983009808
        %v2052 = vunpack.c.0.s8 %v2051
        %v2053 = vlaneseq
        %v2054 = vshrl.u32 %v2053, 7
        %v2055 = vsub.s32 %v2052, %v2054
        %v2056 = vrot.slane %v2042, %v2055
        %v2057 = vcombine.high %v2049, %v2049
        %v2058 = vcombine.high %v2056, %v2056
        %v2059 = vcombine.high %v1867, %v1867
        %v2061 = vunpack.c.l.s4 1983009808
        %v2062 = vunpack.c.0.s8 %v2061
        %v2063 = vlaneseq
        %v2064 = vshrl.u32 %v2063, 7
        %v2065 = vsub.s32 %v2062, %v2064
        %v2066 = vrot.slane %v1867, %v2065
        %v2068 = vunpack.c.l.s4 1983009808
        %v2069 = vunpack.c.0.s8 %v2068
        %v2070 = vlaneseq
        %v2071 = vshrl.u32 %v2070, 7
        %v2072 = vsub.s32 %v2069, %v2071
        %v2073 = vrot.slane %v2059, %v2072
        %v2074 = vcombine.high %v2066, %v2066
        %v2075 = vcombine.high %v2073, %v2073
        %v2076 = vcombine.high %v1870, %v1870
        %v2078 = vunpack.c.l.s4 1983009808
        %v2079 = vunpack.c.0.s8 %v2078
        %v2080 = vlaneseq
        %v2081 = vshrl.u32 %v2080, 7
        %v2082 = vsub.s32 %v2079, %v2081
        %v2083 = vrot.slane %v1870, %v2082
        %v2085 = vunpack.c.l.s4 1983009808
        %v2086 = vunpack.c.0.s8 %v2085
        %v2087 = vlaneseq
        %v2088 = vshrl.u32 %v2087, 7
        %v2089 = vsub.s32 %v2086, %v2088
        %v2090 = vrot.slane %v2076, %v2089
        %v2091 = vcombine.high %v2083, %v2083
        %v2092 = vcombine.high %v2090, %v2090
        %v2093 = vcombine.high %v1875, %v1875
        %v2095 = vunpack.c.l.s4 1983009808
        %v2096 = vunpack.c.0.s8 %v2095
        %v2097 = vlaneseq
        %v2098 = vshrl.u32 %v2097, 7
        %v2099 = vsub.s32 %v2096, %v2098
        %v2100 = vrot.slane %v1875, %v2099
        %v2102 = vunpack.c.l.s4 1983009808
        %v2103 = vunpack.c.0.s8 %v2102
        %v2104 = vlaneseq
        %v2105 = vshrl.u32 %v2104, 7
        %v2106 = vsub.s32 %v2103, %v2105
        %v2107 = vrot.slane %v2093, %v2106
        %v2108 = vcombine.high %v2100, %v2100
        %v2109 = vcombine.high %v2107, %v2107
        %v2110 = vcombine.high %v1878, %v1878
        %v2112 = vunpack.c.l.s4 1983009808
        %v2113 = vunpack.c.0.s8 %v2112
        %v2114 = vlaneseq
        %v2115 = vshrl.u32 %v2114, 7
        %v2116 = vsub.s32 %v2113, %v2115
        %v2117 = vrot.slane %v1878, %v2116
        %v2119 = vunpack.c.l.s4 1983009808
        %v2120 = vunpack.c.0.s8 %v2119
        %v2121 = vlaneseq
        %v2122 = vshrl.u32 %v2121, 7
        %v2123 = vsub.s32 %v2120, %v2122
        %v2124 = vrot.slane %v2110, %v2123
        %v2125 = vcombine.high %v2117, %v2117
        %v2126 = vcombine.high %v2124, %v2124
        %v2127 = vcombine.high %v1883, %v1883
        %v2129 = vunpack.c.l.s4 1983009808
        %v2130 = vunpack.c.0.s8 %v2129
        %v2131 = vlaneseq
        %v2132 = vshrl.u32 %v2131, 7
        %v2133 = vsub.s32 %v2130, %v2132
        %v2134 = vrot.slane %v1883, %v2133
        %v2136 = vunpack.c.l.s4 1983009808
        %v2137 = vunpack.c.0.s8 %v2136
        %v2138 = vlaneseq
        %v2139 = vshrl.u32 %v2138, 7
        %v2140 = vsub.s32 %v2137, %v2139
        %v2141 = vrot.slane %v2127, %v2140
        %v2142 = vcombine.high %v2134, %v2134
        %v2143 = vcombine.high %v2141, %v2141
        %v2144 = vcombine.high %v1886, %v1886
        %v2146 = vunpack.c.l.s4 1983009808
        %v2147 = vunpack.c.0.s8 %v2146
        %v2148 = vlaneseq
        %v2149 = vshrl.u32 %v2148, 7
        %v2150 = vsub.s32 %v2147, %v2149
        %v2151 = vrot.slane %v1886, %v2150
        %v2153 = vunpack.c.l.s4 1983009808
        %v2154 = vunpack.c.0.s8 %v2153
        %v2155 = vlaneseq
        %v2156 = vshrl.u32 %v2155, 7
        %v2157 = vsub.s32 %v2154, %v2156
        %v2158 = vrot.slane %v2144, %v2157
        %v2159 = vcombine.high %v2151, %v2151
        %v2160 = vcombine.high %v2158, %v2158
        %v2161 = vcombine.high %v1891, %v1891
        %v2163 = vunpack.c.l.s4 1983009808
        %v2164 = vunpack.c.0.s8 %v2163
        %v2165 = vlaneseq
        %v2166 = vshrl.u32 %v2165, 7
        %v2167 = vsub.s32 %v2164, %v2166
        %v2168 = vrot.slane %v1891, %v2167
        %v2170 = vunpack.c.l.s4 1983009808
        %v2171 = vunpack.c.0.s8 %v2170
        %v2172 = vlaneseq
        %v2173 = vshrl.u32 %v2172, 7
        %v2174 = vsub.s32 %v2171, %v2173
        %v2175 = vrot.slane %v2161, %v2174
        %v2176 = vcombine.high %v2168, %v2168
        %v2177 = vcombine.high %v2175, %v2175
        %v2178 = vcombine.high %v1894, %v1894
        %v2180 = vunpack.c.l.s4 1983009808
        %v2181 = vunpack.c.0.s8 %v2180
        %v2182 = vlaneseq
        %v2183 = vshrl.u32 %v2182, 7
        %v2184 = vsub.s32 %v2181, %v2183
        %v2185 = vrot.slane %v1894, %v2184
        %v2187 = vunpack.c.l.s4 1983009808
        %v2188 = vunpack.c.0.s8 %v2187
        %v2189 = vlaneseq
        %v2190 = vshrl.u32 %v2189, 7
        %v2191 = vsub.s32 %v2188, %v2190
        %v2192 = vrot.slane %v2178, %v2191
        %v2193 = vcombine.high %v2185, %v2185
        %v2194 = vcombine.high %v2192, %v2192
        %v2195 = vcombine.high %v1899, %v1899
        %v2197 = vunpack.c.l.s4 1983009808
        %v2198 = vunpack.c.0.s8 %v2197
        %v2199 = vlaneseq
        %v2200 = vshrl.u32 %v2199, 7
        %v2201 = vsub.s32 %v2198, %v2200
        %v2202 = vrot.slane %v1899, %v2201
        %v2204 = vunpack.c.l.s4 1983009808
        %v2205 = vunpack.c.0.s8 %v2204
        %v2206 = vlaneseq
        %v2207 = vshrl.u32 %v2206, 7
        %v2208 = vsub.s32 %v2205, %v2207
        %v2209 = vrot.slane %v2195, %v2208
        %v2210 = vcombine.high %v2202, %v2202
        %v2211 = vcombine.high %v2209, %v2209
        %v2212 = vcombine.high %v1902, %v1902
        %v2214 = vunpack.c.l.s4 1983009808
        %v2215 = vunpack.c.0.s8 %v2214
        %v2216 = vlaneseq
        %v2217 = vshrl.u32 %v2216, 7
        %v2218 = vsub.s32 %v2215, %v2217
        %v2219 = vrot.slane %v1902, %v2218
        %v2221 = vunpack.c.l.s4 1983009808
        %v2222 = vunpack.c.0.s8 %v2221
        %v2223 = vlaneseq
        %v2224 = vshrl.u32 %v2223, 7
        %v2225 = vsub.s32 %v2222, %v2224
        %v2226 = vrot.slane %v2212, %v2225
        %v2227 = vcombine.high %v2219, %v2219
        %v2228 = vcombine.high %v2226, %v2226
        %v2293 = vadd.f32 %v1930, 0.0
        %v2294 = vadd.f32 %v1938, 0.0
        %v2295 = vadd.f32 %v1937, 0.0
        %v2296 = vadd.f32 %v1939, 0.0
        %v2297 = vadd.f32 %v1947, 0.0
        %v2298 = vadd.f32 %v1955, 0.0
        %v2299 = vadd.f32 %v1954, 0.0
        %v2300 = vadd.f32 %v1956, 0.0
        %v2301 = vadd.f32 %v1972, 0.0
        %v2302 = vadd.f32 %v1971, 0.0
        %v2303 = vadd.f32 %v1973, 0.0
        %v2304 = vadd.f32 %v1981, 0.0
        %v2305 = vadd.f32 %v1989, 0.0
        %v2306 = vadd.f32 %v1988, 0.0
        %v2307 = vadd.f32 %v1990, 0.0
        %v2308 = vadd.f32 %v1998, 0.0
        %v2309 = vadd.f32 %v2005, 0.0
        %v2310 = vadd.f32 %v2007, 0.0
        %v2311 = vadd.f32 %v2015, 0.0
        %v2312 = vadd.f32 %v2023, 0.0
        %v2313 = vadd.f32 %v2022, 0.0
        %v2314 = vadd.f32 %v2024, 0.0
        %v2315 = vadd.f32 %v2032, 0.0
        %v2316 = vadd.f32 %v2040, 0.0
        %v2317 = vadd.f32 %v2041, 0.0
        %v2318 = vadd.f32 %v2049, 0.0
        %v2319 = vadd.f32 %v2057, 0.0
        %v2320 = vadd.f32 %v2056, 0.0
        %v2321 = vadd.f32 %v2058, 0.0
        %v2322 = vadd.f32 %v2066, 0.0
        %v2323 = vadd.f32 %v2074, 0.0
        %v2324 = vadd.f32 %v2073, 0.0
        %v2325 = vadd.f32 %v2083, 0.0
        %v2326 = vadd.f32 %v2091, 0.0
        %v2327 = vadd.f32 %v2090, 0.0
        %v2328 = vadd.f32 %v2092, 0.0
        %v2329 = vadd.f32 %v2100, 0.0
        %v2330 = vadd.f32 %v2108, 0.0
        %v2331 = vadd.f32 %v2107, 0.0
        %v2332 = vadd.f32 %v2109, 0.0
        %v2333 = vadd.f32 %v2125, 0.0
        %v2334 = vadd.f32 %v2124, 0.0
        %v2335 = vadd.f32 %v2126, 0.0
        %v2336 = vadd.f32 %v2134, 0.0
        %v2337 = vadd.f32 %v2142, 0.0
        %v2338 = vadd.f32 %v2141, 0.0
        %v2339 = vadd.f32 %v2143, 0.0
        %v2340 = vadd.f32 %v2151, 0.0
        %v2341 = vadd.f32 %v2158, 0.0
        %v2342 = vadd.f32 %v2160, 0.0
        %v2343 = vadd.f32 %v2168, 0.0
        %v2344 = vadd.f32 %v2176, 0.0
        %v2345 = vadd.f32 %v2175, 0.0
        %v2346 = vadd.f32 %v2177, 0.0
        %v2347 = vadd.f32 %v2185, 0.0
        %v2348 = vadd.f32 %v2193, 0.0
        %v2349 = vadd.f32 %v2194, 0.0
        %v2350 = vadd.f32 %v2202, 0.0
        %v2351 = vadd.f32 %v2210, 0.0
        %v2352 = vadd.f32 %v2209, 0.0
        %v2353 = vadd.f32 %v2211, 0.0
        %v2354 = vadd.f32 %v2219, 0.0
        %v2355 = vadd.f32 %v2227, 0.0
        %v2356 = vadd.f32 %v2226, 0.0
        %vm2357 = vcmask 1040384
        %vm2358 = vcmask 1042434
        %vm2359 = vmor %vm2357, %vm2358
        %vm2360 = vcmask 1044484
        %vm2361 = vmor %vm2359, %vm2360
        %vm2362 = vcmask 1046534
        %vm2363 = vmor %vm2361, %vm2362
        %v2364 = vrot.slane %v1930, 7
        %v2365 = vrot.slane %v2364, 2
        %v2366 = vrot.slane %v1938, 7
        %v2367 = vsel %vm2363, %v2365, %v2366
        %v2368 = vrot.slane %v2366, 2
        %v2369 = vrot.slane %v1937, 7
        %v2370 = vsel %vm2363, %v2368, %v2369
        %v2371 = vrot.slane %v2369, 2
        %v2372 = vrot.slane %v1939, 7
        %v2373 = vsel %vm2363, %v2371, %v2372
        %v2374 = vrot.slane %v2372, 2
        %v2375 = vrot.slane %v1947, 7
        %v2376 = vsel %vm2363, %v2374, %v2375
        %v2377 = vrot.slane %v2375, 2
        %v2378 = vrot.slane %v1955, 7
        %v2379 = vsel %vm2363, %v2377, %v2378
        %v2380 = vrot.slane %v2378, 2
        %v2381 = vrot.slane %v1954, 7
        %v2382 = vsel %vm2363, %v2380, %v2381
        %v2383 = vrot.slane %v2381, 2
        %v2384 = vrot.slane %v1956, 7
        %v2385 = vsel %vm2363, %v2383, %v2384
        %v2386 = vrot.slane %v2384, 2
        %v2387 = vrot.slane %v1964, 7
        %v2388 = vsel %vm2363, %v2386, %v2387
        %v2389 = vrot.slane %v1972, 7
        %v2390 = vrot.slane %v2389, 2
        %v2391 = vrot.slane %v1971, 7
        %v2392 = vsel %vm2363, %v2390, %v2391
        %v2393 = vrot.slane %v2391, 2
        %v2394 = vrot.slane %v1973, 7
        %v2395 = vsel %vm2363, %v2393, %v2394
        %v2396 = vrot.slane %v2394, 2
        %v2397 = vrot.slane %v1981, 7
        %v2398 = vsel %vm2363, %v2396, %v2397
        %v2399 = vrot.slane %v2397, 2
        %v2400 = vrot.slane %v1989, 7
        %v2401 = vsel %vm2363, %v2399, %v2400
        %v2402 = vrot.slane %v2400, 2
        %v2403 = vrot.slane %v1988, 7
        %v2404 = vsel %vm2363, %v2402, %v2403
        %v2405 = vrot.slane %v2403, 2
        %v2406 = vrot.slane %v1990, 7
        %v2407 = vsel %vm2363, %v2405, %v2406
        %v2408 = vrot.slane %v2406, 2
        %v2409 = vrot.slane %v1998, 7
        %v2410 = vsel %vm2363, %v2408, %v2409
        %v2411 = vrot.slane %v2409, 2
        %v2412 = vrot.slane %v2006, 7
        %v2413 = vsel %vm2363, %v2411, %v2412
        %v2414 = vrot.slane %v2005, 7
        %v2415 = vrot.slane %v2414, 2
        %v2416 = vrot.slane %v2007, 7
        %v2417 = vsel %vm2363, %v2415, %v2416
        %v2418 = vrot.slane %v2416, 2
        %v2419 = vrot.slane %v2015, 7
        %v2420 = vsel %vm2363, %v2418, %v2419
        %v2421 = vrot.slane %v2419, 2
        %v2422 = vrot.slane %v2023, 7
        %v2423 = vsel %vm2363, %v2421, %v2422
        %v2424 = vrot.slane %v2422, 2
        %v2425 = vrot.slane %v2022, 7
        %v2426 = vsel %vm2363, %v2424, %v2425
        %v2427 = vrot.slane %v2425, 2
        %v2428 = vrot.slane %v2024, 7
        %v2429 = vsel %vm2363, %v2427, %v2428
        %v2430 = vrot.slane %v2428, 2
        %v2431 = vrot.slane %v2032, 7
        %v2432 = vsel %vm2363, %v2430, %v2431
        %v2433 = vrot.slane %v2431, 2
        %v2434 = vrot.slane %v2040, 7
        %v2435 = vsel %vm2363, %v2433, %v2434
        %v2436 = vrot.slane %v2434, 2
        %v2437 = vrot.slane %v2039, 7
        %v2438 = vsel %vm2363, %v2436, %v2437
        %v2439 = vrot.slane %v2041, 7
        %v2440 = vrot.slane %v2439, 2
        %v2441 = vrot.slane %v2049, 7
        %v2442 = vsel %vm2363, %v2440, %v2441
        %v2443 = vrot.slane %v2441, 2
        %v2444 = vrot.slane %v2057, 7
        %v2445 = vsel %vm2363, %v2443, %v2444
        %v2446 = vrot.slane %v2444, 2
        %v2447 = vrot.slane %v2056, 7
        %v2448 = vsel %vm2363, %v2446, %v2447
        %v2449 = vrot.slane %v2447, 2
        %v2450 = vrot.slane %v2058, 7
        %v2451 = vsel %vm2363, %v2449, %v2450
        %v2452 = vrot.slane %v2450, 2
        %v2453 = vrot.slane %v2066, 7
        %v2454 = vsel %vm2363, %v2452, %v2453
        %v2455 = vrot.slane %v2453, 2
        %v2456 = vrot.slane %v2074, 7
        %v2457 = vsel %vm2363, %v2455, %v2456
        %v2458 = vrot.slane %v2456, 2
        %v2459 = vrot.slane %v2073, 7
        %v2460 = vsel %vm2363, %v2458, %v2459
        %v2461 = vrot.slane %v2459, 2
        %v2462 = vrot.slane %v2075, 7
        %v2463 = vsel %vm2363, %v2461, %v2462
        %v2464 = vrot.slane %v2083, 7
        %v2465 = vrot.slane %v2464, 2
        %v2466 = vrot.slane %v2091, 7
        %v2467 = vsel %vm2363, %v2465, %v2466
        %v2468 = vrot.slane %v2466, 2
        %v2469 = vrot.slane %v2090, 7
        %v2470 = vsel %vm2363, %v2468, %v2469
        %v2471 = vrot.slane %v2469, 2
        %v2472 = vrot.slane %v2092, 7
        %v2473 = vsel %vm2363, %v2471, %v2472
        %v2474 = vrot.slane %v2472, 2
        %v2475 = vrot.slane %v2100, 7
        %v2476 = vsel %vm2363, %v2474, %v2475
        %v2477 = vrot.slane %v2475, 2
        %v2478 = vrot.slane %v2108, 7
        %v2479 = vsel %vm2363, %v2477, %v2478
        %v2480 = vrot.slane %v2478, 2
        %v2481 = vrot.slane %v2107, 7
        %v2482 = vsel %vm2363, %v2480, %v2481
        %v2483 = vrot.slane %v2481, 2
        %v2484 = vrot.slane %v2109, 7
        %v2485 = vsel %vm2363, %v2483, %v2484
        %v2486 = vrot.slane %v2484, 2
        %v2487 = vrot.slane %v2117, 7
        %v2488 = vsel %vm2363, %v2486, %v2487
        %v2489 = vrot.slane %v2125, 7
        %v2490 = vrot.slane %v2489, 2
        %v2491 = vrot.slane %v2124, 7
        %v2492 = vsel %vm2363, %v2490, %v2491
        %v2493 = vrot.slane %v2491, 2
        %v2494 = vrot.slane %v2126, 7
        %v2495 = vsel %vm2363, %v2493, %v2494
        %v2496 = vrot.slane %v2494, 2
        %v2497 = vrot.slane %v2134, 7
        %v2498 = vsel %vm2363, %v2496, %v2497
        %v2499 = vrot.slane %v2497, 2
        %v2500 = vrot.slane %v2142, 7
        %v2501 = vsel %vm2363, %v2499, %v2500
        %v2502 = vrot.slane %v2500, 2
        %v2503 = vrot.slane %v2141, 7
        %v2504 = vsel %vm2363, %v2502, %v2503
        %v2505 = vrot.slane %v2503, 2
        %v2506 = vrot.slane %v2143, 7
        %v2507 = vsel %vm2363, %v2505, %v2506
        %v2508 = vrot.slane %v2506, 2
        %v2509 = vrot.slane %v2151, 7
        %v2510 = vsel %vm2363, %v2508, %v2509
        %v2511 = vrot.slane %v2509, 2
        %v2512 = vrot.slane %v2159, 7
        %v2513 = vsel %vm2363, %v2511, %v2512
        %v2514 = vrot.slane %v2158, 7
        %v2515 = vrot.slane %v2514, 2
        %v2516 = vrot.slane %v2160, 7
        %v2517 = vsel %vm2363, %v2515, %v2516
        %v2518 = vrot.slane %v2516, 2
        %v2519 = vrot.slane %v2168, 7
        %v2520 = vsel %vm2363, %v2518, %v2519
        %v2521 = vrot.slane %v2519, 2
        %v2522 = vrot.slane %v2176, 7
        %v2523 = vsel %vm2363, %v2521, %v2522
        %v2524 = vrot.slane %v2522, 2
        %v2525 = vrot.slane %v2175, 7
        %v2526 = vsel %vm2363, %v2524, %v2525
        %v2527 = vrot.slane %v2525, 2
        %v2528 = vrot.slane %v2177, 7
        %v2529 = vsel %vm2363, %v2527, %v2528
        %v2530 = vrot.slane %v2528, 2
        %v2531 = vrot.slane %v2185, 7
        %v2532 = vsel %vm2363, %v2530, %v2531
        %v2533 = vrot.slane %v2531, 2
        %v2534 = vrot.slane %v2193, 7
        %v2535 = vsel %vm2363, %v2533, %v2534
        %v2536 = vrot.slane %v2534, 2
        %v2537 = vrot.slane %v2192, 7
        %v2538 = vsel %vm2363, %v2536, %v2537
        %v2539 = vrot.slane %v2194, 7
        %v2540 = vrot.slane %v2539, 2
        %v2541 = vrot.slane %v2202, 7
        %v2542 = vsel %vm2363, %v2540, %v2541
        %v2543 = vrot.slane %v2541, 2
        %v2544 = vrot.slane %v2210, 7
        %v2545 = vsel %vm2363, %v2543, %v2544
        %v2546 = vrot.slane %v2544, 2
        %v2547 = vrot.slane %v2209, 7
        %v2548 = vsel %vm2363, %v2546, %v2547
        %v2549 = vrot.slane %v2547, 2
        %v2550 = vrot.slane %v2211, 7
        %v2551 = vsel %vm2363, %v2549, %v2550
        %v2552 = vrot.slane %v2550, 2
        %v2553 = vrot.slane %v2219, 7
        %v2554 = vsel %vm2363, %v2552, %v2553
        %v2555 = vrot.slane %v2553, 2
        %v2556 = vrot.slane %v2227, 7
        %v2557 = vsel %vm2363, %v2555, %v2556
        %v2558 = vrot.slane %v2556, 2
        %v2559 = vrot.slane %v2226, 7
        %v2560 = vsel %vm2363, %v2558, %v2559
        %v2561 = vrot.slane %v2559, 2
        %v2562 = vrot.slane %v2228, 7
        %v2563 = vsel %vm2363, %v2561, %v2562
        %2564 = vrot.lane.b32.xlu0 %v2367, 96
        %v2565 = vpop.permute.xlu0 %2564
        %2566 = vrot.lane.b32.xlu0 %v2370, 96
        %v2567 = vpop.permute.xlu0 %2566
        %2568 = vrot.lane.b32.xlu0 %v2373, 96
        %v2569 = vpop.permute.xlu0 %2568
        %2570 = vrot.lane.b32.xlu0 %v2376, 96
        %v2571 = vpop.permute.xlu0 %2570
        %2572 = vrot.lane.b32.xlu0 %v2379, 96
        %v2573 = vpop.permute.xlu0 %2572
        %2574 = vrot.lane.b32.xlu0 %v2382, 96
        %v2575 = vpop.permute.xlu0 %2574
        %2576 = vrot.lane.b32.xlu0 %v2385, 96
        %v2577 = vpop.permute.xlu0 %2576
        %2578 = vrot.lane.b32.xlu0 %v2388, 96
        %v2579 = vpop.permute.xlu0 %2578
        %2580 = vrot.lane.b32.xlu0 %v2392, 96
        %v2581 = vpop.permute.xlu0 %2580
        %2582 = vrot.lane.b32.xlu0 %v2395, 96
        %v2583 = vpop.permute.xlu0 %2582
        %2584 = vrot.lane.b32.xlu0 %v2398, 96
        %v2585 = vpop.permute.xlu0 %2584
        %2586 = vrot.lane.b32.xlu0 %v2401, 96
        %v2587 = vpop.permute.xlu0 %2586
        %2588 = vrot.lane.b32.xlu0 %v2404, 96
        %v2589 = vpop.permute.xlu0 %2588
        %2590 = vrot.lane.b32.xlu0 %v2407, 96
        %v2591 = vpop.permute.xlu0 %2590
        %2592 = vrot.lane.b32.xlu0 %v2410, 96
        %v2593 = vpop.permute.xlu0 %2592
        %2594 = vrot.lane.b32.xlu0 %v2413, 96
        %v2595 = vpop.permute.xlu0 %2594
        %2596 = vrot.lane.b32.xlu0 %v2417, 96
        %v2597 = vpop.permute.xlu0 %2596
        %2598 = vrot.lane.b32.xlu0 %v2420, 96
        %v2599 = vpop.permute.xlu0 %2598
        %2600 = vrot.lane.b32.xlu0 %v2423, 96
        %v2601 = vpop.permute.xlu0 %2600
        %2602 = vrot.lane.b32.xlu0 %v2426, 96
        %v2603 = vpop.permute.xlu0 %2602
        %2604 = vrot.lane.b32.xlu0 %v2429, 96
        %v2605 = vpop.permute.xlu0 %2604
        %2606 = vrot.lane.b32.xlu0 %v2432, 96
        %v2607 = vpop.permute.xlu0 %2606
        %2608 = vrot.lane.b32.xlu0 %v2435, 96
        %v2609 = vpop.permute.xlu0 %2608
        %2610 = vrot.lane.b32.xlu0 %v2438, 96
        %v2611 = vpop.permute.xlu0 %2610
        %2612 = vrot.lane.b32.xlu0 %v2442, 96
        %v2613 = vpop.permute.xlu0 %2612
        %2614 = vrot.lane.b32.xlu0 %v2445, 96
        %v2615 = vpop.permute.xlu0 %2614
        %2616 = vrot.lane.b32.xlu0 %v2448, 96
        %v2617 = vpop.permute.xlu0 %2616
        %2618 = vrot.lane.b32.xlu0 %v2451, 96
        %v2619 = vpop.permute.xlu0 %2618
        %2620 = vrot.lane.b32.xlu0 %v2454, 96
        %v2621 = vpop.permute.xlu0 %2620
        %2622 = vrot.lane.b32.xlu0 %v2457, 96
        %v2623 = vpop.permute.xlu0 %2622
        %2624 = vrot.lane.b32.xlu0 %v2460, 96
        %v2625 = vpop.permute.xlu0 %2624
        %2626 = vrot.lane.b32.xlu0 %v2463, 96
        %v2627 = vpop.permute.xlu0 %2626
        %2628 = vrot.lane.b32.xlu0 %v2467, 96
        %v2629 = vpop.permute.xlu0 %2628
        %2630 = vrot.lane.b32.xlu0 %v2470, 96
        %v2631 = vpop.permute.xlu0 %2630
        %2632 = vrot.lane.b32.xlu0 %v2473, 96
        %v2633 = vpop.permute.xlu0 %2632
        %2634 = vrot.lane.b32.xlu0 %v2476, 96
        %v2635 = vpop.permute.xlu0 %2634
        %2636 = vrot.lane.b32.xlu0 %v2479, 96
        %v2637 = vpop.permute.xlu0 %2636
        %2638 = vrot.lane.b32.xlu0 %v2482, 96
        %v2639 = vpop.permute.xlu0 %2638
        %2640 = vrot.lane.b32.xlu0 %v2485, 96
        %v2641 = vpop.permute.xlu0 %2640
        %2642 = vrot.lane.b32.xlu0 %v2488, 96
        %v2643 = vpop.permute.xlu0 %2642
        %2644 = vrot.lane.b32.xlu0 %v2492, 96
        %v2645 = vpop.permute.xlu0 %2644
        %2646 = vrot.lane.b32.xlu0 %v2495, 96
        %v2647 = vpop.permute.xlu0 %2646
        %2648 = vrot.lane.b32.xlu0 %v2498, 96
        %v2649 = vpop.permute.xlu0 %2648
        %2650 = vrot.lane.b32.xlu0 %v2501, 96
        %v2651 = vpop.permute.xlu0 %2650
        %2652 = vrot.lane.b32.xlu0 %v2504, 96
        %v2653 = vpop.permute.xlu0 %2652
        %2654 = vrot.lane.b32.xlu0 %v2507, 96
        %v2655 = vpop.permute.xlu0 %2654
        %2656 = vrot.lane.b32.xlu0 %v2510, 96
        %v2657 = vpop.permute.xlu0 %2656
        %2658 = vrot.lane.b32.xlu0 %v2513, 96
        %v2659 = vpop.permute.xlu0 %2658
        %2660 = vrot.lane.b32.xlu0 %v2517, 96
        %v2661 = vpop.permute.xlu0 %2660
        %2662 = vrot.lane.b32.xlu0 %v2520, 96
        %v2663 = vpop.permute.xlu0 %2662
        %2664 = vrot.lane.b32.xlu0 %v2523, 96
        %v2665 = vpop.permute.xlu0 %2664
        %2666 = vrot.lane.b32.xlu0 %v2526, 96
        %v2667 = vpop.permute.xlu0 %2666
        %2668 = vrot.lane.b32.xlu0 %v2529, 96
        %v2669 = vpop.permute.xlu0 %2668
        %2670 = vrot.lane.b32.xlu0 %v2532, 96
        %v2671 = vpop.permute.xlu0 %2670
        %2672 = vrot.lane.b32.xlu0 %v2535, 96
        %v2673 = vpop.permute.xlu0 %2672
        %2674 = vrot.lane.b32.xlu0 %v2538, 96
        %v2675 = vpop.permute.xlu0 %2674
        %2676 = vrot.lane.b32.xlu0 %v2542, 96
        %v2677 = vpop.permute.xlu0 %2676
        %2678 = vrot.lane.b32.xlu0 %v2545, 96
        %v2679 = vpop.permute.xlu0 %2678
        %2680 = vrot.lane.b32.xlu0 %v2548, 96
        %v2681 = vpop.permute.xlu0 %2680
        %2682 = vrot.lane.b32.xlu0 %v2551, 96
        %v2683 = vpop.permute.xlu0 %2682
        %2684 = vrot.lane.b32.xlu0 %v2554, 96
        %v2685 = vpop.permute.xlu0 %2684
        %2686 = vrot.lane.b32.xlu0 %v2557, 96
        %v2687 = vpop.permute.xlu0 %2686
        %2688 = vrot.lane.b32.xlu0 %v2560, 96
        %v2689 = vpop.permute.xlu0 %2688
        %2690 = vrot.lane.b32.xlu0 %v2563, 96
        %v2691 = vpop.permute.xlu0 %2690
        %v2756 = vadd.f32 %v2293, %v2565
        %v2757 = vadd.f32 %v2294, %v2567
        %v2758 = vadd.f32 %v2295, %v2569
        %v2759 = vadd.f32 %v2296, %v2571
        %v2760 = vadd.f32 %v2297, %v2573
        %v2761 = vadd.f32 %v2298, %v2575
        %v2762 = vadd.f32 %v2299, %v2577
        %v2763 = vadd.f32 %v2300, %v2579
        %v2764 = vadd.f32 %v2301, %v2581
        %v2765 = vadd.f32 %v2302, %v2583
        %v2766 = vadd.f32 %v2303, %v2585
        %v2767 = vadd.f32 %v2304, %v2587
        %v2768 = vadd.f32 %v2305, %v2589
        %v2769 = vadd.f32 %v2306, %v2591
        %v2770 = vadd.f32 %v2307, %v2593
        %v2771 = vadd.f32 %v2308, %v2595
        %v2772 = vadd.f32 %v2309, %v2597
        %v2773 = vadd.f32 %v2310, %v2599
        %v2774 = vadd.f32 %v2311, %v2601
        %v2775 = vadd.f32 %v2312, %v2603
        %v2776 = vadd.f32 %v2313, %v2605
        %v2777 = vadd.f32 %v2314, %v2607
        %v2778 = vadd.f32 %v2315, %v2609
        %v2779 = vadd.f32 %v2316, %v2611
        %v2780 = vadd.f32 %v2317, %v2613
        %v2781 = vadd.f32 %v2318, %v2615
        %v2782 = vadd.f32 %v2319, %v2617
        %v2783 = vadd.f32 %v2320, %v2619
        %v2784 = vadd.f32 %v2321, %v2621
        %v2785 = vadd.f32 %v2322, %v2623
        %v2786 = vadd.f32 %v2323, %v2625
        %v2787 = vadd.f32 %v2324, %v2627
        %v2788 = vadd.f32 %v2325, %v2629
        %v2789 = vadd.f32 %v2326, %v2631
        %v2790 = vadd.f32 %v2327, %v2633
        %v2791 = vadd.f32 %v2328, %v2635
        %v2792 = vadd.f32 %v2329, %v2637
        %v2793 = vadd.f32 %v2330, %v2639
        %v2794 = vadd.f32 %v2331, %v2641
        %v2795 = vadd.f32 %v2332, %v2643
        %v2796 = vadd.f32 %v2333, %v2645
        %v2797 = vadd.f32 %v2334, %v2647
        %v2798 = vadd.f32 %v2335, %v2649
        %v2799 = vadd.f32 %v2336, %v2651
        %v2800 = vadd.f32 %v2337, %v2653
        %v2801 = vadd.f32 %v2338, %v2655
        %v2802 = vadd.f32 %v2339, %v2657
        %v2803 = vadd.f32 %v2340, %v2659
        %v2804 = vadd.f32 %v2341, %v2661
        %v2805 = vadd.f32 %v2342, %v2663
        %v2806 = vadd.f32 %v2343, %v2665
        %v2807 = vadd.f32 %v2344, %v2667
        %v2808 = vadd.f32 %v2345, %v2669
        %v2809 = vadd.f32 %v2346, %v2671
        %v2810 = vadd.f32 %v2347, %v2673
        %v2811 = vadd.f32 %v2348, %v2675
        %v2812 = vadd.f32 %v2349, %v2677
        %v2813 = vadd.f32 %v2350, %v2679
        %v2814 = vadd.f32 %v2351, %v2681
        %v2815 = vadd.f32 %v2352, %v2683
        %v2816 = vadd.f32 %v2353, %v2685
        %v2817 = vadd.f32 %v2354, %v2687
        %v2818 = vadd.f32 %v2355, %v2689
        %v2819 = vadd.f32 %v2356, %v2691
        %2820 = vrot.lane.b32.xlu0 %v1938, 64
        %v2821 = vpop.permute.xlu0 %2820
        %2822 = vrot.lane.b32.xlu0 %v1937, 64
        %v2823 = vpop.permute.xlu0 %2822
        %2824 = vrot.lane.b32.xlu0 %v1939, 64
        %v2825 = vpop.permute.xlu0 %2824
        %2826 = vrot.lane.b32.xlu0 %v1947, 64
        %v2827 = vpop.permute.xlu0 %2826
        %2828 = vrot.lane.b32.xlu0 %v1955, 64
        %v2829 = vpop.permute.xlu0 %2828
        %2830 = vrot.lane.b32.xlu0 %v1954, 64
        %v2831 = vpop.permute.xlu0 %2830
        %2832 = vrot.lane.b32.xlu0 %v1956, 64
        %v2833 = vpop.permute.xlu0 %2832
        %2834 = vrot.lane.b32.xlu0 %v1964, 64
        %v2835 = vpop.permute.xlu0 %2834
        %2836 = vrot.lane.b32.xlu0 %v1971, 64
        %v2837 = vpop.permute.xlu0 %2836
        %2838 = vrot.lane.b32.xlu0 %v1973, 64
        %v2839 = vpop.permute.xlu0 %2838
        %2840 = vrot.lane.b32.xlu0 %v1981, 64
        %v2841 = vpop.permute.xlu0 %2840
        %2842 = vrot.lane.b32.xlu0 %v1989, 64
        %v2843 = vpop.permute.xlu0 %2842
        %2844 = vrot.lane.b32.xlu0 %v1988, 64
        %v2845 = vpop.permute.xlu0 %2844
        %2846 = vrot.lane.b32.xlu0 %v1990, 64
        %v2847 = vpop.permute.xlu0 %2846
        %2848 = vrot.lane.b32.xlu0 %v1998, 64
        %v2849 = vpop.permute.xlu0 %2848
        %2850 = vrot.lane.b32.xlu0 %v2006, 64
        %v2851 = vpop.permute.xlu0 %2850
        %2852 = vrot.lane.b32.xlu0 %v2007, 64
        %v2853 = vpop.permute.xlu0 %2852
        %2854 = vrot.lane.b32.xlu0 %v2015, 64
        %v2855 = vpop.permute.xlu0 %2854
        %2856 = vrot.lane.b32.xlu0 %v2023, 64
        %v2857 = vpop.permute.xlu0 %2856
        %2858 = vrot.lane.b32.xlu0 %v2022, 64
        %v2859 = vpop.permute.xlu0 %2858
        %2860 = vrot.lane.b32.xlu0 %v2024, 64
        %v2861 = vpop.permute.xlu0 %2860
        %2862 = vrot.lane.b32.xlu0 %v2032, 64
        %v2863 = vpop.permute.xlu0 %2862
        %2864 = vrot.lane.b32.xlu0 %v2040, 64
        %v2865 = vpop.permute.xlu0 %2864
        %2866 = vrot.lane.b32.xlu0 %v2039, 64
        %v2867 = vpop.permute.xlu0 %2866
        %2868 = vrot.lane.b32.xlu0 %v2049, 64
        %v2869 = vpop.permute.xlu0 %2868
        %2870 = vrot.lane.b32.xlu0 %v2057, 64
        %v2871 = vpop.permute.xlu0 %2870
        %2872 = vrot.lane.b32.xlu0 %v2056, 64
        %v2873 = vpop.permute.xlu0 %2872
        %2874 = vrot.lane.b32.xlu0 %v2058, 64
        %v2875 = vpop.permute.xlu0 %2874
        %2876 = vrot.lane.b32.xlu0 %v2066, 64
        %v2877 = vpop.permute.xlu0 %2876
        %2878 = vrot.lane.b32.xlu0 %v2074, 64
        %v2879 = vpop.permute.xlu0 %2878
        %2880 = vrot.lane.b32.xlu0 %v2073, 64
        %v2881 = vpop.permute.xlu0 %2880
        %2882 = vrot.lane.b32.xlu0 %v2075, 64
        %v2883 = vpop.permute.xlu0 %2882
        %2884 = vrot.lane.b32.xlu0 %v2091, 64
        %v2885 = vpop.permute.xlu0 %2884
        %2886 = vrot.lane.b32.xlu0 %v2090, 64
        %v2887 = vpop.permute.xlu0 %2886
        %2888 = vrot.lane.b32.xlu0 %v2092, 64
        %v2889 = vpop.permute.xlu0 %2888
        %2890 = vrot.lane.b32.xlu0 %v2100, 64
        %v2891 = vpop.permute.xlu0 %2890
        %2892 = vrot.lane.b32.xlu0 %v2108, 64
        %v2893 = vpop.permute.xlu0 %2892
        %2894 = vrot.lane.b32.xlu0 %v2107, 64
        %v2895 = vpop.permute.xlu0 %2894
        %2896 = vrot.lane.b32.xlu0 %v2109, 64
        %v2897 = vpop.permute.xlu0 %2896
        %2898 = vrot.lane.b32.xlu0 %v2117, 64
        %v2899 = vpop.permute.xlu0 %2898
        %2900 = vrot.lane.b32.xlu0 %v2124, 64
        %v2901 = vpop.permute.xlu0 %2900
        %2902 = vrot.lane.b32.xlu0 %v2126, 64
        %v2903 = vpop.permute.xlu0 %2902
        %2904 = vrot.lane.b32.xlu0 %v2134, 64
        %v2905 = vpop.permute.xlu0 %2904
        %2906 = vrot.lane.b32.xlu0 %v2142, 64
        %v2907 = vpop.permute.xlu0 %2906
        %2908 = vrot.lane.b32.xlu0 %v2141, 64
        %v2909 = vpop.permute.xlu0 %2908
        %2910 = vrot.lane.b32.xlu0 %v2143, 64
        %v2911 = vpop.permute.xlu0 %2910
        %2912 = vrot.lane.b32.xlu0 %v2151, 64
        %v2913 = vpop.permute.xlu0 %2912
        %2914 = vrot.lane.b32.xlu0 %v2159, 64
        %v2915 = vpop.permute.xlu0 %2914
        %2916 = vrot.lane.b32.xlu0 %v2160, 64
        %v2917 = vpop.permute.xlu0 %2916
        %2918 = vrot.lane.b32.xlu0 %v2168, 64
        %v2919 = vpop.permute.xlu0 %2918
        %2920 = vrot.lane.b32.xlu0 %v2176, 64
        %v2921 = vpop.permute.xlu0 %2920
        %2922 = vrot.lane.b32.xlu0 %v2175, 64
        %v2923 = vpop.permute.xlu0 %2922
        %2924 = vrot.lane.b32.xlu0 %v2177, 64
        %v2925 = vpop.permute.xlu0 %2924
        %2926 = vrot.lane.b32.xlu0 %v2185, 64
        %v2927 = vpop.permute.xlu0 %2926
        %2928 = vrot.lane.b32.xlu0 %v2193, 64
        %v2929 = vpop.permute.xlu0 %2928
        %2930 = vrot.lane.b32.xlu0 %v2192, 64
        %v2931 = vpop.permute.xlu0 %2930
        %2932 = vrot.lane.b32.xlu0 %v2202, 64
        %v2933 = vpop.permute.xlu0 %2932
        %2934 = vrot.lane.b32.xlu0 %v2210, 64
        %v2935 = vpop.permute.xlu0 %2934
        %2936 = vrot.lane.b32.xlu0 %v2209, 64
        %v2937 = vpop.permute.xlu0 %2936
        %2938 = vrot.lane.b32.xlu0 %v2211, 64
        %v2939 = vpop.permute.xlu0 %2938
        %2940 = vrot.lane.b32.xlu0 %v2219, 64
        %v2941 = vpop.permute.xlu0 %2940
        %2942 = vrot.lane.b32.xlu0 %v2227, 64
        %v2943 = vpop.permute.xlu0 %2942
        %2944 = vrot.lane.b32.xlu0 %v2226, 64
        %v2945 = vpop.permute.xlu0 %2944
        %2946 = vrot.lane.b32.xlu0 %v2228, 64
        %v2947 = vpop.permute.xlu0 %2946
        %v3012 = vadd.f32 %v2756, %v2821
        %v3013 = vadd.f32 %v2757, %v2823
        %v3014 = vadd.f32 %v2758, %v2825
        %v3015 = vadd.f32 %v2759, %v2827
        %v3016 = vadd.f32 %v2760, %v2829
        %v3017 = vadd.f32 %v2761, %v2831
        %v3018 = vadd.f32 %v2762, %v2833
        %v3019 = vadd.f32 %v2763, %v2835
        %v3020 = vadd.f32 %v2764, %v2837
        %v3021 = vadd.f32 %v2765, %v2839
        %v3022 = vadd.f32 %v2766, %v2841
        %v3023 = vadd.f32 %v2767, %v2843
        %v3024 = vadd.f32 %v2768, %v2845
        %v3025 = vadd.f32 %v2769, %v2847
        %v3026 = vadd.f32 %v2770, %v2849
        %v3027 = vadd.f32 %v2771, %v2851
        %v3028 = vadd.f32 %v2772, %v2853
        %v3029 = vadd.f32 %v2773, %v2855
        %v3030 = vadd.f32 %v2774, %v2857
        %v3031 = vadd.f32 %v2775, %v2859
        %v3032 = vadd.f32 %v2776, %v2861
        %v3033 = vadd.f32 %v2777, %v2863
        %v3034 = vadd.f32 %v2778, %v2865
        %v3035 = vadd.f32 %v2779, %v2867
        %v3036 = vadd.f32 %v2780, %v2869
        %v3037 = vadd.f32 %v2781, %v2871
        %v3038 = vadd.f32 %v2782, %v2873
        %v3039 = vadd.f32 %v2783, %v2875
        %v3040 = vadd.f32 %v2784, %v2877
        %v3041 = vadd.f32 %v2785, %v2879
        %v3042 = vadd.f32 %v2786, %v2881
        %v3043 = vadd.f32 %v2787, %v2883
        %v3044 = vadd.f32 %v2788, %v2885
        %v3045 = vadd.f32 %v2789, %v2887
        %v3046 = vadd.f32 %v2790, %v2889
        %v3047 = vadd.f32 %v2791, %v2891
        %v3048 = vadd.f32 %v2792, %v2893
        %v3049 = vadd.f32 %v2793, %v2895
        %v3050 = vadd.f32 %v2794, %v2897
        %v3051 = vadd.f32 %v2795, %v2899
        %v3052 = vadd.f32 %v2796, %v2901
        %v3053 = vadd.f32 %v2797, %v2903
        %v3054 = vadd.f32 %v2798, %v2905
        %v3055 = vadd.f32 %v2799, %v2907
        %v3056 = vadd.f32 %v2800, %v2909
        %v3057 = vadd.f32 %v2801, %v2911
        %v3058 = vadd.f32 %v2802, %v2913
        %v3059 = vadd.f32 %v2803, %v2915
        %v3060 = vadd.f32 %v2804, %v2917
        %v3061 = vadd.f32 %v2805, %v2919
        %v3062 = vadd.f32 %v2806, %v2921
        %v3063 = vadd.f32 %v2807, %v2923
        %v3064 = vadd.f32 %v2808, %v2925
        %v3065 = vadd.f32 %v2809, %v2927
        %v3066 = vadd.f32 %v2810, %v2929
        %v3067 = vadd.f32 %v2811, %v2931
        %v3068 = vadd.f32 %v2812, %v2933
        %v3069 = vadd.f32 %v2813, %v2935
        %v3070 = vadd.f32 %v2814, %v2937
        %v3071 = vadd.f32 %v2815, %v2939
        %v3072 = vadd.f32 %v2816, %v2941
        %v3073 = vadd.f32 %v2817, %v2943
        %v3074 = vadd.f32 %v2818, %v2945
        %v3075 = vadd.f32 %v2819, %v2947
        %v3076 = vld [vmem:[%s640] sm:$0xf]
        %v3077 = vld [vmem:[%s640 + $0x4] sm:$0xf]
        %v3078 = vld [vmem:[%s640 + $0x8] sm:$0x1]
        %v3079 = vld [vmem:[%s640 + $0xc] sm:$0xf]
        %v3080 = vld [vmem:[%s640 + $0x10] sm:$0xf]
        %v3081 = vld [vmem:[%s640 + $0x14] sm:$0x1]
        %v3082 = vld [vmem:[%s640 + $0x18] sm:$0xf]
        %v3083 = vld [vmem:[%s640 + $0x1c] sm:$0xf]
        %v3084 = vld [vmem:[%s640 + $0x20] sm:$0x1]
        %v3085 = vld [vmem:[%s640 + $0x24] sm:$0xf]
        %v3086 = vld [vmem:[%s640 + $0x28] sm:$0xf]
        %v3087 = vld [vmem:[%s640 + $0x2c] sm:$0x1]
        %v3088 = vld [vmem:[%s640 + $0x30] sm:$0xf]
        %v3089 = vld [vmem:[%s640 + $0x34] sm:$0xf]
        %v3090 = vld [vmem:[%s640 + $0x38] sm:$0x1]
        %v3091 = vld [vmem:[%s640 + $0x3c] sm:$0xf]
        %v3092 = vld [vmem:[%s640 + $0x40] sm:$0xf]
        %v3093 = vld [vmem:[%s640 + $0x44] sm:$0x1]
        %v3094 = vld [vmem:[%s640 + $0x48] sm:$0xf]
        %v3095 = vld [vmem:[%s640 + $0x4c] sm:$0xf]
        %v3096 = vld [vmem:[%s640 + $0x50] sm:$0x1]
        %v3097 = vld [vmem:[%s640 + $0x54] sm:$0xf]
        %v3098 = vld [vmem:[%s640 + $0x58] sm:$0xf]
        %v3099 = vld [vmem:[%s640 + $0x5c] sm:$0x1]
        %v3125 = vunpack.c.l.s4 1966171168
        %v3126 = vunpack.c.0.s8 %v3125
        %v3127 = vlaneseq
        %v3128 = vshrl.u32 %v3127, 7
        %v3129 = vsub.s32 %v3126, %v3128
        %v3130 = vrot.slane %v3076, %v3129
        %v3131 = vcombine.high %v3130, %v3130
        %v3133 = vunpack.c.l.s4 1966171168
        %v3134 = vunpack.c.0.s8 %v3133
        %v3135 = vlaneseq
        %v3136 = vshrl.u32 %v3135, 7
        %v3137 = vsub.s32 %v3134, %v3136
        %v3138 = vrot.slane %v3130, %v3137
        %v3140 = vunpack.c.l.s4 1966171168
        %v3141 = vunpack.c.0.s8 %v3140
        %v3142 = vlaneseq
        %v3143 = vshrl.u32 %v3142, 7
        %v3144 = vsub.s32 %v3141, %v3143
        %v3145 = vrot.slane %v3131, %v3144
        %v3146 = vcombine.high %v3138, %v3138
        %v3147 = vcombine.high %v3145, %v3145
        %v3149 = vunpack.c.l.s4 1966171168
        %v3150 = vunpack.c.0.s8 %v3149
        %v3151 = vlaneseq
        %v3152 = vshrl.u32 %v3151, 7
        %v3153 = vsub.s32 %v3150, %v3152
        %v3154 = vrot.slane %v3077, %v3153
        %v3155 = vcombine.high %v3154, %v3154
        %v3157 = vunpack.c.l.s4 1966171168
        %v3158 = vunpack.c.0.s8 %v3157
        %v3159 = vlaneseq
        %v3160 = vshrl.u32 %v3159, 7
        %v3161 = vsub.s32 %v3158, %v3160
        %v3162 = vrot.slane %v3154, %v3161
        %v3164 = vunpack.c.l.s4 1966171168
        %v3165 = vunpack.c.0.s8 %v3164
        %v3166 = vlaneseq
        %v3167 = vshrl.u32 %v3166, 7
        %v3168 = vsub.s32 %v3165, %v3167
        %v3169 = vrot.slane %v3155, %v3168
        %v3170 = vcombine.high %v3162, %v3162
        %v3171 = vcombine.high %v3169, %v3169
        %v3173 = vunpack.c.l.s4 1966171168
        %v3174 = vunpack.c.0.s8 %v3173
        %v3175 = vlaneseq
        %v3176 = vshrl.u32 %v3175, 7
        %v3177 = vsub.s32 %v3174, %v3176
        %v3178 = vrot.slane %v3078, %v3177
        %v3180 = vunpack.c.l.s4 1966171168
        %v3181 = vunpack.c.0.s8 %v3180
        %v3182 = vlaneseq
        %v3183 = vshrl.u32 %v3182, 7
        %v3184 = vsub.s32 %v3181, %v3183
        %v3185 = vrot.slane %v3178, %v3184
        %v3187 = vunpack.c.l.s4 1966171168
        %v3188 = vunpack.c.0.s8 %v3187
        %v3189 = vlaneseq
        %v3190 = vshrl.u32 %v3189, 7
        %v3191 = vsub.s32 %v3188, %v3190
        %v3192 = vrot.slane %v3079, %v3191
        %v3193 = vcombine.high %v3192, %v3192
        %v3195 = vunpack.c.l.s4 1966171168
        %v3196 = vunpack.c.0.s8 %v3195
        %v3197 = vlaneseq
        %v3198 = vshrl.u32 %v3197, 7
        %v3199 = vsub.s32 %v3196, %v3198
        %v3200 = vrot.slane %v3192, %v3199
        %v3202 = vunpack.c.l.s4 1966171168
        %v3203 = vunpack.c.0.s8 %v3202
        %v3204 = vlaneseq
        %v3205 = vshrl.u32 %v3204, 7
        %v3206 = vsub.s32 %v3203, %v3205
        %v3207 = vrot.slane %v3193, %v3206
        %v3208 = vcombine.high %v3200, %v3200
        %v3209 = vcombine.high %v3207, %v3207
        %v3211 = vunpack.c.l.s4 1966171168
        %v3212 = vunpack.c.0.s8 %v3211
        %v3213 = vlaneseq
        %v3214 = vshrl.u32 %v3213, 7
        %v3215 = vsub.s32 %v3212, %v3214
        %v3216 = vrot.slane %v3080, %v3215
        %v3217 = vcombine.high %v3216, %v3216
        %v3219 = vunpack.c.l.s4 1966171168
        %v3220 = vunpack.c.0.s8 %v3219
        %v3221 = vlaneseq
        %v3222 = vshrl.u32 %v3221, 7
        %v3223 = vsub.s32 %v3220, %v3222
        %v3224 = vrot.slane %v3216, %v3223
        %v3226 = vunpack.c.l.s4 1966171168
        %v3227 = vunpack.c.0.s8 %v3226
        %v3228 = vlaneseq
        %v3229 = vshrl.u32 %v3228, 7
        %v3230 = vsub.s32 %v3227, %v3229
        %v3231 = vrot.slane %v3217, %v3230
        %v3232 = vcombine.high %v3224, %v3224
        %v3233 = vcombine.high %v3231, %v3231
        %v3235 = vunpack.c.l.s4 1966171168
        %v3236 = vunpack.c.0.s8 %v3235
        %v3237 = vlaneseq
        %v3238 = vshrl.u32 %v3237, 7
        %v3239 = vsub.s32 %v3236, %v3238
        %v3240 = vrot.slane %v3081, %v3239
        %v3242 = vunpack.c.l.s4 1966171168
        %v3243 = vunpack.c.0.s8 %v3242
        %v3244 = vlaneseq
        %v3245 = vshrl.u32 %v3244, 7
        %v3246 = vsub.s32 %v3243, %v3245
        %v3247 = vrot.slane %v3240, %v3246
        %v3249 = vunpack.c.l.s4 1966171168
        %v3250 = vunpack.c.0.s8 %v3249
        %v3251 = vlaneseq
        %v3252 = vshrl.u32 %v3251, 7
        %v3253 = vsub.s32 %v3250, %v3252
        %v3254 = vrot.slane %v3082, %v3253
        %v3255 = vcombine.high %v3254, %v3254
        %v3257 = vunpack.c.l.s4 1966171168
        %v3258 = vunpack.c.0.s8 %v3257
        %v3259 = vlaneseq
        %v3260 = vshrl.u32 %v3259, 7
        %v3261 = vsub.s32 %v3258, %v3260
        %v3262 = vrot.slane %v3254, %v3261
        %v3264 = vunpack.c.l.s4 1966171168
        %v3265 = vunpack.c.0.s8 %v3264
        %v3266 = vlaneseq
        %v3267 = vshrl.u32 %v3266, 7
        %v3268 = vsub.s32 %v3265, %v3267
        %v3269 = vrot.slane %v3255, %v3268
        %v3270 = vcombine.high %v3262, %v3262
        %v3271 = vcombine.high %v3269, %v3269
        %v3273 = vunpack.c.l.s4 1966171168
        %v3274 = vunpack.c.0.s8 %v3273
        %v3275 = vlaneseq
        %v3276 = vshrl.u32 %v3275, 7
        %v3277 = vsub.s32 %v3274, %v3276
        %v3278 = vrot.slane %v3083, %v3277
        %v3279 = vcombine.high %v3278, %v3278
        %v3281 = vunpack.c.l.s4 1966171168
        %v3282 = vunpack.c.0.s8 %v3281
        %v3283 = vlaneseq
        %v3284 = vshrl.u32 %v3283, 7
        %v3285 = vsub.s32 %v3282, %v3284
        %v3286 = vrot.slane %v3278, %v3285
        %v3288 = vunpack.c.l.s4 1966171168
        %v3289 = vunpack.c.0.s8 %v3288
        %v3290 = vlaneseq
        %v3291 = vshrl.u32 %v3290, 7
        %v3292 = vsub.s32 %v3289, %v3291
        %v3293 = vrot.slane %v3279, %v3292
        %v3294 = vcombine.high %v3286, %v3286
        %v3295 = vcombine.high %v3293, %v3293
        %v3297 = vunpack.c.l.s4 1966171168
        %v3298 = vunpack.c.0.s8 %v3297
        %v3299 = vlaneseq
        %v3300 = vshrl.u32 %v3299, 7
        %v3301 = vsub.s32 %v3298, %v3300
        %v3302 = vrot.slane %v3084, %v3301
        %v3304 = vunpack.c.l.s4 1966171168
        %v3305 = vunpack.c.0.s8 %v3304
        %v3306 = vlaneseq
        %v3307 = vshrl.u32 %v3306, 7
        %v3308 = vsub.s32 %v3305, %v3307
        %v3309 = vrot.slane %v3302, %v3308
        %v3311 = vunpack.c.l.s4 1966171168
        %v3312 = vunpack.c.0.s8 %v3311
        %v3313 = vlaneseq
        %v3314 = vshrl.u32 %v3313, 7
        %v3315 = vsub.s32 %v3312, %v3314
        %v3316 = vrot.slane %v3085, %v3315
        %v3317 = vcombine.high %v3316, %v3316
        %v3319 = vunpack.c.l.s4 1966171168
        %v3320 = vunpack.c.0.s8 %v3319
        %v3321 = vlaneseq
        %v3322 = vshrl.u32 %v3321, 7
        %v3323 = vsub.s32 %v3320, %v3322
        %v3324 = vrot.slane %v3316, %v3323
        %v3326 = vunpack.c.l.s4 1966171168
        %v3327 = vunpack.c.0.s8 %v3326
        %v3328 = vlaneseq
        %v3329 = vshrl.u32 %v3328, 7
        %v3330 = vsub.s32 %v3327, %v3329
        %v3331 = vrot.slane %v3317, %v3330
        %v3332 = vcombine.high %v3324, %v3324
        %v3333 = vcombine.high %v3331, %v3331
        %v3335 = vunpack.c.l.s4 1966171168
        %v3336 = vunpack.c.0.s8 %v3335
        %v3337 = vlaneseq
        %v3338 = vshrl.u32 %v3337, 7
        %v3339 = vsub.s32 %v3336, %v3338
        %v3340 = vrot.slane %v3086, %v3339
        %v3341 = vcombine.high %v3340, %v3340
        %v3343 = vunpack.c.l.s4 1966171168
        %v3344 = vunpack.c.0.s8 %v3343
        %v3345 = vlaneseq
        %v3346 = vshrl.u32 %v3345, 7
        %v3347 = vsub.s32 %v3344, %v3346
        %v3348 = vrot.slane %v3340, %v3347
        %v3350 = vunpack.c.l.s4 1966171168
        %v3351 = vunpack.c.0.s8 %v3350
        %v3352 = vlaneseq
        %v3353 = vshrl.u32 %v3352, 7
        %v3354 = vsub.s32 %v3351, %v3353
        %v3355 = vrot.slane %v3341, %v3354
        %v3356 = vcombine.high %v3348, %v3348
        %v3357 = vcombine.high %v3355, %v3355
        %v3359 = vunpack.c.l.s4 1966171168
        %v3360 = vunpack.c.0.s8 %v3359
        %v3361 = vlaneseq
        %v3362 = vshrl.u32 %v3361, 7
        %v3363 = vsub.s32 %v3360, %v3362
        %v3364 = vrot.slane %v3087, %v3363
        %v3366 = vunpack.c.l.s4 1966171168
        %v3367 = vunpack.c.0.s8 %v3366
        %v3368 = vlaneseq
        %v3369 = vshrl.u32 %v3368, 7
        %v3370 = vsub.s32 %v3367, %v3369
        %v3371 = vrot.slane %v3364, %v3370
        %v3373 = vunpack.c.l.s4 1966171168
        %v3374 = vunpack.c.0.s8 %v3373
        %v3375 = vlaneseq
        %v3376 = vshrl.u32 %v3375, 7
        %v3377 = vsub.s32 %v3374, %v3376
        %v3378 = vrot.slane %v3088, %v3377
        %v3379 = vcombine.high %v3378, %v3378
        %v3381 = vunpack.c.l.s4 1966171168
        %v3382 = vunpack.c.0.s8 %v3381
        %v3383 = vlaneseq
        %v3384 = vshrl.u32 %v3383, 7
        %v3385 = vsub.s32 %v3382, %v3384
        %v3386 = vrot.slane %v3378, %v3385
        %v3388 = vunpack.c.l.s4 1966171168
        %v3389 = vunpack.c.0.s8 %v3388
        %v3390 = vlaneseq
        %v3391 = vshrl.u32 %v3390, 7
        %v3392 = vsub.s32 %v3389, %v3391
        %v3393 = vrot.slane %v3379, %v3392
        %v3394 = vcombine.high %v3386, %v3386
        %v3395 = vcombine.high %v3393, %v3393
        %v3397 = vunpack.c.l.s4 1966171168
        %v3398 = vunpack.c.0.s8 %v3397
        %v3399 = vlaneseq
        %v3400 = vshrl.u32 %v3399, 7
        %v3401 = vsub.s32 %v3398, %v3400
        %v3402 = vrot.slane %v3089, %v3401
        %v3403 = vcombine.high %v3402, %v3402
        %v3405 = vunpack.c.l.s4 1966171168
        %v3406 = vunpack.c.0.s8 %v3405
        %v3407 = vlaneseq
        %v3408 = vshrl.u32 %v3407, 7
        %v3409 = vsub.s32 %v3406, %v3408
        %v3410 = vrot.slane %v3402, %v3409
        %v3412 = vunpack.c.l.s4 1966171168
        %v3413 = vunpack.c.0.s8 %v3412
        %v3414 = vlaneseq
        %v3415 = vshrl.u32 %v3414, 7
        %v3416 = vsub.s32 %v3413, %v3415
        %v3417 = vrot.slane %v3403, %v3416
        %v3418 = vcombine.high %v3410, %v3410
        %v3419 = vcombine.high %v3417, %v3417
        %v3421 = vunpack.c.l.s4 1966171168
        %v3422 = vunpack.c.0.s8 %v3421
        %v3423 = vlaneseq
        %v3424 = vshrl.u32 %v3423, 7
        %v3425 = vsub.s32 %v3422, %v3424
        %v3426 = vrot.slane %v3090, %v3425
        %v3428 = vunpack.c.l.s4 1966171168
        %v3429 = vunpack.c.0.s8 %v3428
        %v3430 = vlaneseq
        %v3431 = vshrl.u32 %v3430, 7
        %v3432 = vsub.s32 %v3429, %v3431
        %v3433 = vrot.slane %v3426, %v3432
        %v3435 = vunpack.c.l.s4 1966171168
        %v3436 = vunpack.c.0.s8 %v3435
        %v3437 = vlaneseq
        %v3438 = vshrl.u32 %v3437, 7
        %v3439 = vsub.s32 %v3436, %v3438
        %v3440 = vrot.slane %v3091, %v3439
        %v3441 = vcombine.high %v3440, %v3440
        %v3443 = vunpack.c.l.s4 1966171168
        %v3444 = vunpack.c.0.s8 %v3443
        %v3445 = vlaneseq
        %v3446 = vshrl.u32 %v3445, 7
        %v3447 = vsub.s32 %v3444, %v3446
        %v3448 = vrot.slane %v3440, %v3447
        %v3450 = vunpack.c.l.s4 1966171168
        %v3451 = vunpack.c.0.s8 %v3450
        %v3452 = vlaneseq
        %v3453 = vshrl.u32 %v3452, 7
        %v3454 = vsub.s32 %v3451, %v3453
        %v3455 = vrot.slane %v3441, %v3454
        %v3456 = vcombine.high %v3448, %v3448
        %v3457 = vcombine.high %v3455, %v3455
        %v3459 = vunpack.c.l.s4 1966171168
        %v3460 = vunpack.c.0.s8 %v3459
        %v3461 = vlaneseq
        %v3462 = vshrl.u32 %v3461, 7
        %v3463 = vsub.s32 %v3460, %v3462
        %v3464 = vrot.slane %v3092, %v3463
        %v3465 = vcombine.high %v3464, %v3464
        %v3467 = vunpack.c.l.s4 1966171168
        %v3468 = vunpack.c.0.s8 %v3467
        %v3469 = vlaneseq
        %v3470 = vshrl.u32 %v3469, 7
        %v3471 = vsub.s32 %v3468, %v3470
        %v3472 = vrot.slane %v3464, %v3471
        %v3474 = vunpack.c.l.s4 1966171168
        %v3475 = vunpack.c.0.s8 %v3474
        %v3476 = vlaneseq
        %v3477 = vshrl.u32 %v3476, 7
        %v3478 = vsub.s32 %v3475, %v3477
        %v3479 = vrot.slane %v3465, %v3478
        %v3480 = vcombine.high %v3472, %v3472
        %v3481 = vcombine.high %v3479, %v3479
        %v3483 = vunpack.c.l.s4 1966171168
        %v3484 = vunpack.c.0.s8 %v3483
        %v3485 = vlaneseq
        %v3486 = vshrl.u32 %v3485, 7
        %v3487 = vsub.s32 %v3484, %v3486
        %v3488 = vrot.slane %v3093, %v3487
        %v3490 = vunpack.c.l.s4 1966171168
        %v3491 = vunpack.c.0.s8 %v3490
        %v3492 = vlaneseq
        %v3493 = vshrl.u32 %v3492, 7
        %v3494 = vsub.s32 %v3491, %v3493
        %v3495 = vrot.slane %v3488, %v3494
        %v3497 = vunpack.c.l.s4 1966171168
        %v3498 = vunpack.c.0.s8 %v3497
        %v3499 = vlaneseq
        %v3500 = vshrl.u32 %v3499, 7
        %v3501 = vsub.s32 %v3498, %v3500
        %v3502 = vrot.slane %v3094, %v3501
        %v3503 = vcombine.high %v3502, %v3502
        %v3505 = vunpack.c.l.s4 1966171168
        %v3506 = vunpack.c.0.s8 %v3505
        %v3507 = vlaneseq
        %v3508 = vshrl.u32 %v3507, 7
        %v3509 = vsub.s32 %v3506, %v3508
        %v3510 = vrot.slane %v3502, %v3509
        %v3512 = vunpack.c.l.s4 1966171168
        %v3513 = vunpack.c.0.s8 %v3512
        %v3514 = vlaneseq
        %v3515 = vshrl.u32 %v3514, 7
        %v3516 = vsub.s32 %v3513, %v3515
        %v3517 = vrot.slane %v3503, %v3516
        %v3518 = vcombine.high %v3510, %v3510
        %v3519 = vcombine.high %v3517, %v3517
        %v3521 = vunpack.c.l.s4 1966171168
        %v3522 = vunpack.c.0.s8 %v3521
        %v3523 = vlaneseq
        %v3524 = vshrl.u32 %v3523, 7
        %v3525 = vsub.s32 %v3522, %v3524
        %v3526 = vrot.slane %v3095, %v3525
        %v3527 = vcombine.high %v3526, %v3526
        %v3529 = vunpack.c.l.s4 1966171168
        %v3530 = vunpack.c.0.s8 %v3529
        %v3531 = vlaneseq
        %v3532 = vshrl.u32 %v3531, 7
        %v3533 = vsub.s32 %v3530, %v3532
        %v3534 = vrot.slane %v3526, %v3533
        %v3536 = vunpack.c.l.s4 1966171168
        %v3537 = vunpack.c.0.s8 %v3536
        %v3538 = vlaneseq
        %v3539 = vshrl.u32 %v3538, 7
        %v3540 = vsub.s32 %v3537, %v3539
        %v3541 = vrot.slane %v3527, %v3540
        %v3542 = vcombine.high %v3534, %v3534
        %v3543 = vcombine.high %v3541, %v3541
        %v3545 = vunpack.c.l.s4 1966171168
        %v3546 = vunpack.c.0.s8 %v3545
        %v3547 = vlaneseq
        %v3548 = vshrl.u32 %v3547, 7
        %v3549 = vsub.s32 %v3546, %v3548
        %v3550 = vrot.slane %v3096, %v3549
        %v3552 = vunpack.c.l.s4 1966171168
        %v3553 = vunpack.c.0.s8 %v3552
        %v3554 = vlaneseq
        %v3555 = vshrl.u32 %v3554, 7
        %v3556 = vsub.s32 %v3553, %v3555
        %v3557 = vrot.slane %v3550, %v3556
        %v3559 = vunpack.c.l.s4 1966171168
        %v3560 = vunpack.c.0.s8 %v3559
        %v3561 = vlaneseq
        %v3562 = vshrl.u32 %v3561, 7
        %v3563 = vsub.s32 %v3560, %v3562
        %v3564 = vrot.slane %v3097, %v3563
        %v3565 = vcombine.high %v3564, %v3564
        %v3567 = vunpack.c.l.s4 1966171168
        %v3568 = vunpack.c.0.s8 %v3567
        %v3569 = vlaneseq
        %v3570 = vshrl.u32 %v3569, 7
        %v3571 = vsub.s32 %v3568, %v3570
        %v3572 = vrot.slane %v3564, %v3571
        %v3574 = vunpack.c.l.s4 1966171168
        %v3575 = vunpack.c.0.s8 %v3574
        %v3576 = vlaneseq
        %v3577 = vshrl.u32 %v3576, 7
        %v3578 = vsub.s32 %v3575, %v3577
        %v3579 = vrot.slane %v3565, %v3578
        %v3580 = vcombine.high %v3572, %v3572
        %v3581 = vcombine.high %v3579, %v3579
        %v3583 = vunpack.c.l.s4 1966171168
        %v3584 = vunpack.c.0.s8 %v3583
        %v3585 = vlaneseq
        %v3586 = vshrl.u32 %v3585, 7
        %v3587 = vsub.s32 %v3584, %v3586
        %v3588 = vrot.slane %v3098, %v3587
        %v3589 = vcombine.high %v3588, %v3588
        %v3591 = vunpack.c.l.s4 1966171168
        %v3592 = vunpack.c.0.s8 %v3591
        %v3593 = vlaneseq
        %v3594 = vshrl.u32 %v3593, 7
        %v3595 = vsub.s32 %v3592, %v3594
        %v3596 = vrot.slane %v3588, %v3595
        %v3598 = vunpack.c.l.s4 1966171168
        %v3599 = vunpack.c.0.s8 %v3598
        %v3600 = vlaneseq
        %v3601 = vshrl.u32 %v3600, 7
        %v3602 = vsub.s32 %v3599, %v3601
        %v3603 = vrot.slane %v3589, %v3602
        %v3604 = vcombine.high %v3596, %v3596
        %v3605 = vcombine.high %v3603, %v3603
        %v3607 = vunpack.c.l.s4 1966171168
        %v3608 = vunpack.c.0.s8 %v3607
        %v3609 = vlaneseq
        %v3610 = vshrl.u32 %v3609, 7
        %v3611 = vsub.s32 %v3608, %v3610
        %v3612 = vrot.slane %v3099, %v3611
        %v3614 = vunpack.c.l.s4 1966171168
        %v3615 = vunpack.c.0.s8 %v3614
        %v3616 = vlaneseq
        %v3617 = vshrl.u32 %v3616, 7
        %v3618 = vsub.s32 %v3615, %v3617
        %v3619 = vrot.slane %v3612, %v3618
        %s3620 = scalar_lea.vmem [#allocation9], 16
        %v3621 = vld [vmem:[%s3620] sm:$0xf]
        %v3622 = vld [vmem:[%s3620 + $0x4] sm:$0xf]
        %v3623 = vld [vmem:[%s3620 + $0x8] sm:$0xf]
        %v3624 = vld [vmem:[%s3620 + $0xc] sm:$0xf]
        %v3625 = vcombine.low %v3138, %v3145
        %v3626 = vcombine.low %v3146, %v3147
        %v3627 = vcombine.low %v3162, %v3169
        %v3628 = vcombine.low %v3170, %v3171
        %v3630 = vunpack.c.l.s4 1966171168
        %v3631 = vunpack.c.0.s8 %v3630
        %v3632 = vlaneseq
        %v3633 = vshrl.u32 %v3632, 7
        %v3634 = vsub.s32 %v3631, %v3633
        %v3635 = vrot.slane %v3625, %v3634
        %v3637 = vunpack.c.l.s4 1966171168
        %v3638 = vunpack.c.0.s8 %v3637
        %v3639 = vlaneseq
        %v3640 = vshrl.u32 %v3639, 7
        %v3641 = vsub.s32 %v3638, %v3640
        %v3642 = vrot.slane %v3626, %v3641
        %v3644 = vunpack.c.l.s4 1966171168
        %v3645 = vunpack.c.0.s8 %v3644
        %v3646 = vlaneseq
        %v3647 = vshrl.u32 %v3646, 7
        %v3648 = vsub.s32 %v3645, %v3647
        %v3649 = vrot.slane %v3627, %v3648
        %v3651 = vunpack.c.l.s4 1966171168
        %v3652 = vunpack.c.0.s8 %v3651
        %v3653 = vlaneseq
        %v3654 = vshrl.u32 %v3653, 7
        %v3655 = vsub.s32 %v3652, %v3654
        %v3656 = vrot.slane %v3628, %v3655
        %v3657 = vcombine.low %v3635, %v3642
        %v3658 = vcombine.low %v3649, %v3656
        %v3660 = vunpack.c.l.s4 1966171168
        %v3661 = vunpack.c.0.s8 %v3660
        %v3662 = vlaneseq
        %v3663 = vshrl.u32 %v3662, 7
        %v3664 = vsub.s32 %v3661, %v3663
        %v3665 = vrot.slane %v3657, %v3664
        %v3667 = vunpack.c.l.s4 1966171168
        %v3668 = vunpack.c.0.s8 %v3667
        %v3669 = vlaneseq
        %v3670 = vshrl.u32 %v3669, 7
        %v3671 = vsub.s32 %v3668, %v3670
        %v3672 = vrot.slane %v3658, %v3671
        %v3673 = vcombine.low %v3665, %v3672
        %v3674 = vcombine.low %v3185, %v3200
        %v3675 = vcombine.low %v3207, %v3208
        %v3676 = vcombine.low %v3209, %v3224
        %v3677 = vcombine.low %v3231, %v3232
        %v3679 = vunpack.c.l.s4 1966171168
        %v3680 = vunpack.c.0.s8 %v3679
        %v3681 = vlaneseq
        %v3682 = vshrl.u32 %v3681, 7
        %v3683 = vsub.s32 %v3680, %v3682
        %v3684 = vrot.slane %v3674, %v3683
        %v3686 = vunpack.c.l.s4 1966171168
        %v3687 = vunpack.c.0.s8 %v3686
        %v3688 = vlaneseq
        %v3689 = vshrl.u32 %v3688, 7
        %v3690 = vsub.s32 %v3687, %v3689
        %v3691 = vrot.slane %v3675, %v3690
        %v3693 = vunpack.c.l.s4 1966171168
        %v3694 = vunpack.c.0.s8 %v3693
        %v3695 = vlaneseq
        %v3696 = vshrl.u32 %v3695, 7
        %v3697 = vsub.s32 %v3694, %v3696
        %v3698 = vrot.slane %v3676, %v3697
        %v3700 = vunpack.c.l.s4 1966171168
        %v3701 = vunpack.c.0.s8 %v3700
        %v3702 = vlaneseq
        %v3703 = vshrl.u32 %v3702, 7
        %v3704 = vsub.s32 %v3701, %v3703
        %v3705 = vrot.slane %v3677, %v3704
        %v3706 = vcombine.low %v3684, %v3691
        %v3707 = vcombine.low %v3698, %v3705
        %v3709 = vunpack.c.l.s4 1966171168
        %v3710 = vunpack.c.0.s8 %v3709
        %v3711 = vlaneseq
        %v3712 = vshrl.u32 %v3711, 7
        %v3713 = vsub.s32 %v3710, %v3712
        %v3714 = vrot.slane %v3706, %v3713
        %v3716 = vunpack.c.l.s4 1966171168
        %v3717 = vunpack.c.0.s8 %v3716
        %v3718 = vlaneseq
        %v3719 = vshrl.u32 %v3718, 7
        %v3720 = vsub.s32 %v3717, %v3719
        %v3721 = vrot.slane %v3707, %v3720
        %v3722 = vcombine.low %v3714, %v3721
        %v3723 = vcombine.low %v3233, %v3247
        %v3724 = vcombine.low %v3262, %v3269
        %v3725 = vcombine.low %v3270, %v3271
        %v3726 = vcombine.low %v3286, %v3293
        %v3728 = vunpack.c.l.s4 1966171168
        %v3729 = vunpack.c.0.s8 %v3728
        %v3730 = vlaneseq
        %v3731 = vshrl.u32 %v3730, 7
        %v3732 = vsub.s32 %v3729, %v3731
        %v3733 = vrot.slane %v3723, %v3732
        %v3735 = vunpack.c.l.s4 1966171168
        %v3736 = vunpack.c.0.s8 %v3735
        %v3737 = vlaneseq
        %v3738 = vshrl.u32 %v3737, 7
        %v3739 = vsub.s32 %v3736, %v3738
        %v3740 = vrot.slane %v3724, %v3739
        %v3742 = vunpack.c.l.s4 1966171168
        %v3743 = vunpack.c.0.s8 %v3742
        %v3744 = vlaneseq
        %v3745 = vshrl.u32 %v3744, 7
        %v3746 = vsub.s32 %v3743, %v3745
        %v3747 = vrot.slane %v3725, %v3746
        %v3749 = vunpack.c.l.s4 1966171168
        %v3750 = vunpack.c.0.s8 %v3749
        %v3751 = vlaneseq
        %v3752 = vshrl.u32 %v3751, 7
        %v3753 = vsub.s32 %v3750, %v3752
        %v3754 = vrot.slane %v3726, %v3753
        %v3755 = vcombine.low %v3733, %v3740
        %v3756 = vcombine.low %v3747, %v3754
        %v3758 = vunpack.c.l.s4 1966171168
        %v3759 = vunpack.c.0.s8 %v3758
        %v3760 = vlaneseq
        %v3761 = vshrl.u32 %v3760, 7
        %v3762 = vsub.s32 %v3759, %v3761
        %v3763 = vrot.slane %v3755, %v3762
        %v3765 = vunpack.c.l.s4 1966171168
        %v3766 = vunpack.c.0.s8 %v3765
        %v3767 = vlaneseq
        %v3768 = vshrl.u32 %v3767, 7
        %v3769 = vsub.s32 %v3766, %v3768
        %v3770 = vrot.slane %v3756, %v3769
        %v3771 = vcombine.low %v3763, %v3770
        %v3772 = vcombine.low %v3294, %v3295
        %v3773 = vcombine.low %v3309, %v3324
        %v3774 = vcombine.low %v3331, %v3332
        %v3775 = vcombine.low %v3333, %v3348
        %v3777 = vunpack.c.l.s4 1966171168
        %v3778 = vunpack.c.0.s8 %v3777
        %v3779 = vlaneseq
        %v3780 = vshrl.u32 %v3779, 7
        %v3781 = vsub.s32 %v3778, %v3780
        %v3782 = vrot.slane %v3772, %v3781
        %v3784 = vunpack.c.l.s4 1966171168
        %v3785 = vunpack.c.0.s8 %v3784
        %v3786 = vlaneseq
        %v3787 = vshrl.u32 %v3786, 7
        %v3788 = vsub.s32 %v3785, %v3787
        %v3789 = vrot.slane %v3773, %v3788
        %v3791 = vunpack.c.l.s4 1966171168
        %v3792 = vunpack.c.0.s8 %v3791
        %v3793 = vlaneseq
        %v3794 = vshrl.u32 %v3793, 7
        %v3795 = vsub.s32 %v3792, %v3794
        %v3796 = vrot.slane %v3774, %v3795
        %v3798 = vunpack.c.l.s4 1966171168
        %v3799 = vunpack.c.0.s8 %v3798
        %v3800 = vlaneseq
        %v3801 = vshrl.u32 %v3800, 7
        %v3802 = vsub.s32 %v3799, %v3801
        %v3803 = vrot.slane %v3775, %v3802
        %v3804 = vcombine.low %v3782, %v3789
        %v3805 = vcombine.low %v3796, %v3803
        %v3807 = vunpack.c.l.s4 1966171168
        %v3808 = vunpack.c.0.s8 %v3807
        %v3809 = vlaneseq
        %v3810 = vshrl.u32 %v3809, 7
        %v3811 = vsub.s32 %v3808, %v3810
        %v3812 = vrot.slane %v3804, %v3811
        %v3814 = vunpack.c.l.s4 1966171168
        %v3815 = vunpack.c.0.s8 %v3814
        %v3816 = vlaneseq
        %v3817 = vshrl.u32 %v3816, 7
        %v3818 = vsub.s32 %v3815, %v3817
        %v3819 = vrot.slane %v3805, %v3818
        %v3820 = vcombine.low %v3812, %v3819
        %v3821 = vcombine.low %v3355, %v3356
        %v3822 = vcombine.low %v3357, %v3371
        %v3823 = vcombine.low %v3386, %v3393
        %v3824 = vcombine.low %v3394, %v3395
        %v3826 = vunpack.c.l.s4 1966171168
        %v3827 = vunpack.c.0.s8 %v3826
        %v3828 = vlaneseq
        %v3829 = vshrl.u32 %v3828, 7
        %v3830 = vsub.s32 %v3827, %v3829
        %v3831 = vrot.slane %v3821, %v3830
        %v3833 = vunpack.c.l.s4 1966171168
        %v3834 = vunpack.c.0.s8 %v3833
        %v3835 = vlaneseq
        %v3836 = vshrl.u32 %v3835, 7
        %v3837 = vsub.s32 %v3834, %v3836
        %v3838 = vrot.slane %v3822, %v3837
        %v3840 = vunpack.c.l.s4 1966171168
        %v3841 = vunpack.c.0.s8 %v3840
        %v3842 = vlaneseq
        %v3843 = vshrl.u32 %v3842, 7
        %v3844 = vsub.s32 %v3841, %v3843
        %v3845 = vrot.slane %v3823, %v3844
        %v3847 = vunpack.c.l.s4 1966171168
        %v3848 = vunpack.c.0.s8 %v3847
        %v3849 = vlaneseq
        %v3850 = vshrl.u32 %v3849, 7
        %v3851 = vsub.s32 %v3848, %v3850
        %v3852 = vrot.slane %v3824, %v3851
        %v3853 = vcombine.low %v3831, %v3838
        %v3854 = vcombine.low %v3845, %v3852
        %v3856 = vunpack.c.l.s4 1966171168
        %v3857 = vunpack.c.0.s8 %v3856
        %v3858 = vlaneseq
        %v3859 = vshrl.u32 %v3858, 7
        %v3860 = vsub.s32 %v3857, %v3859
        %v3861 = vrot.slane %v3853, %v3860
        %v3863 = vunpack.c.l.s4 1966171168
        %v3864 = vunpack.c.0.s8 %v3863
        %v3865 = vlaneseq
        %v3866 = vshrl.u32 %v3865, 7
        %v3867 = vsub.s32 %v3864, %v3866
        %v3868 = vrot.slane %v3854, %v3867
        %v3869 = vcombine.low %v3861, %v3868
        %v3870 = vcombine.low %v3410, %v3417
        %v3871 = vcombine.low %v3418, %v3419
        %v3872 = vcombine.low %v3433, %v3448
        %v3873 = vcombine.low %v3455, %v3456
        %v3875 = vunpack.c.l.s4 1966171168
        %v3876 = vunpack.c.0.s8 %v3875
        %v3877 = vlaneseq
        %v3878 = vshrl.u32 %v3877, 7
        %v3879 = vsub.s32 %v3876, %v3878
        %v3880 = vrot.slane %v3870, %v3879
        %v3882 = vunpack.c.l.s4 1966171168
        %v3883 = vunpack.c.0.s8 %v3882
        %v3884 = vlaneseq
        %v3885 = vshrl.u32 %v3884, 7
        %v3886 = vsub.s32 %v3883, %v3885
        %v3887 = vrot.slane %v3871, %v3886
        %v3889 = vunpack.c.l.s4 1966171168
        %v3890 = vunpack.c.0.s8 %v3889
        %v3891 = vlaneseq
        %v3892 = vshrl.u32 %v3891, 7
        %v3893 = vsub.s32 %v3890, %v3892
        %v3894 = vrot.slane %v3872, %v3893
        %v3896 = vunpack.c.l.s4 1966171168
        %v3897 = vunpack.c.0.s8 %v3896
        %v3898 = vlaneseq
        %v3899 = vshrl.u32 %v3898, 7
        %v3900 = vsub.s32 %v3897, %v3899
        %v3901 = vrot.slane %v3873, %v3900
        %v3902 = vcombine.low %v3880, %v3887
        %v3903 = vcombine.low %v3894, %v3901
        %v3905 = vunpack.c.l.s4 1966171168
        %v3906 = vunpack.c.0.s8 %v3905
        %v3907 = vlaneseq
        %v3908 = vshrl.u32 %v3907, 7
        %v3909 = vsub.s32 %v3906, %v3908
        %v3910 = vrot.slane %v3902, %v3909
        %v3912 = vunpack.c.l.s4 1966171168
        %v3913 = vunpack.c.0.s8 %v3912
        %v3914 = vlaneseq
        %v3915 = vshrl.u32 %v3914, 7
        %v3916 = vsub.s32 %v3913, %v3915
        %v3917 = vrot.slane %v3903, %v3916
        %v3918 = vcombine.low %v3910, %v3917
        %v3919 = vcombine.low %v3457, %v3472
        %v3920 = vcombine.low %v3479, %v3480
        %v3921 = vcombine.low %v3481, %v3495
        %v3922 = vcombine.low %v3510, %v3517
        %v3924 = vunpack.c.l.s4 1966171168
        %v3925 = vunpack.c.0.s8 %v3924
        %v3926 = vlaneseq
        %v3927 = vshrl.u32 %v3926, 7
        %v3928 = vsub.s32 %v3925, %v3927
        %v3929 = vrot.slane %v3919, %v3928
        %v3931 = vunpack.c.l.s4 1966171168
        %v3932 = vunpack.c.0.s8 %v3931
        %v3933 = vlaneseq
        %v3934 = vshrl.u32 %v3933, 7
        %v3935 = vsub.s32 %v3932, %v3934
        %v3936 = vrot.slane %v3920, %v3935
        %v3938 = vunpack.c.l.s4 1966171168
        %v3939 = vunpack.c.0.s8 %v3938
        %v3940 = vlaneseq
        %v3941 = vshrl.u32 %v3940, 7
        %v3942 = vsub.s32 %v3939, %v3941
        %v3943 = vrot.slane %v3921, %v3942
        %v3945 = vunpack.c.l.s4 1966171168
        %v3946 = vunpack.c.0.s8 %v3945
        %v3947 = vlaneseq
        %v3948 = vshrl.u32 %v3947, 7
        %v3949 = vsub.s32 %v3946, %v3948
        %v3950 = vrot.slane %v3922, %v3949
        %v3951 = vcombine.low %v3929, %v3936
        %v3952 = vcombine.low %v3943, %v3950
        %v3954 = vunpack.c.l.s4 1966171168
        %v3955 = vunpack.c.0.s8 %v3954
        %v3956 = vlaneseq
        %v3957 = vshrl.u32 %v3956, 7
        %v3958 = vsub.s32 %v3955, %v3957
        %v3959 = vrot.slane %v3951, %v3958
        %v3961 = vunpack.c.l.s4 1966171168
        %v3962 = vunpack.c.0.s8 %v3961
        %v3963 = vlaneseq
        %v3964 = vshrl.u32 %v3963, 7
        %v3965 = vsub.s32 %v3962, %v3964
        %v3966 = vrot.slane %v3952, %v3965
        %v3967 = vcombine.low %v3959, %v3966
        %v3968 = vcombine.low %v3518, %v3519
        %v3969 = vcombine.low %v3534, %v3541
        %v3970 = vcombine.low %v3542, %v3543
        %v3971 = vcombine.low %v3557, %v3572
        %v3973 = vunpack.c.l.s4 1966171168
        %v3974 = vunpack.c.0.s8 %v3973
        %v3975 = vlaneseq
        %v3976 = vshrl.u32 %v3975, 7
        %v3977 = vsub.s32 %v3974, %v3976
        %v3978 = vrot.slane %v3968, %v3977
        %v3980 = vunpack.c.l.s4 1966171168
        %v3981 = vunpack.c.0.s8 %v3980
        %v3982 = vlaneseq
        %v3983 = vshrl.u32 %v3982, 7
        %v3984 = vsub.s32 %v3981, %v3983
        %v3985 = vrot.slane %v3969, %v3984
        %v3987 = vunpack.c.l.s4 1966171168
        %v3988 = vunpack.c.0.s8 %v3987
        %v3989 = vlaneseq
        %v3990 = vshrl.u32 %v3989, 7
        %v3991 = vsub.s32 %v3988, %v3990
        %v3992 = vrot.slane %v3970, %v3991
        %v3994 = vunpack.c.l.s4 1966171168
        %v3995 = vunpack.c.0.s8 %v3994
        %v3996 = vlaneseq
        %v3997 = vshrl.u32 %v3996, 7
        %v3998 = vsub.s32 %v3995, %v3997
        %v3999 = vrot.slane %v3971, %v3998
        %v4000 = vcombine.low %v3978, %v3985
        %v4001 = vcombine.low %v3992, %v3999
        %v4003 = vunpack.c.l.s4 1966171168
        %v4004 = vunpack.c.0.s8 %v4003
        %v4005 = vlaneseq
        %v4006 = vshrl.u32 %v4005, 7
        %v4007 = vsub.s32 %v4004, %v4006
        %v4008 = vrot.slane %v4000, %v4007
        %v4010 = vunpack.c.l.s4 1966171168
        %v4011 = vunpack.c.0.s8 %v4010
        %v4012 = vlaneseq
        %v4013 = vshrl.u32 %v4012, 7
        %v4014 = vsub.s32 %v4011, %v4013
        %v4015 = vrot.slane %v4001, %v4014
        %v4016 = vcombine.low %v4008, %v4015
        %v4017 = vcombine.low %v3579, %v3580
        %v4018 = vcombine.low %v3581, %v3596
        %v4019 = vcombine.low %v3603, %v3604
        %v4020 = vcombine.low %v3605, %v3619
        %v4022 = vunpack.c.l.s4 1966171168
        %v4023 = vunpack.c.0.s8 %v4022
        %v4024 = vlaneseq
        %v4025 = vshrl.u32 %v4024, 7
        %v4026 = vsub.s32 %v4023, %v4025
        %v4027 = vrot.slane %v4017, %v4026
        %v4029 = vunpack.c.l.s4 1966171168
        %v4030 = vunpack.c.0.s8 %v4029
        %v4031 = vlaneseq
        %v4032 = vshrl.u32 %v4031, 7
        %v4033 = vsub.s32 %v4030, %v4032
        %v4034 = vrot.slane %v4018, %v4033
        %v4036 = vunpack.c.l.s4 1966171168
        %v4037 = vunpack.c.0.s8 %v4036
        %v4038 = vlaneseq
        %v4039 = vshrl.u32 %v4038, 7
        %v4040 = vsub.s32 %v4037, %v4039
        %v4041 = vrot.slane %v4019, %v4040
        %v4043 = vunpack.c.l.s4 1966171168
        %v4044 = vunpack.c.0.s8 %v4043
        %v4045 = vlaneseq
        %v4046 = vshrl.u32 %v4045, 7
        %v4047 = vsub.s32 %v4044, %v4046
        %v4048 = vrot.slane %v4020, %v4047
        %v4049 = vcombine.low %v4027, %v4034
        %v4050 = vcombine.low %v4041, %v4048
        %v4052 = vunpack.c.l.s4 1966171168
        %v4053 = vunpack.c.0.s8 %v4052
        %v4054 = vlaneseq
        %v4055 = vshrl.u32 %v4054, 7
        %v4056 = vsub.s32 %v4053, %v4055
        %v4057 = vrot.slane %v4049, %v4056
        %v4059 = vunpack.c.l.s4 1966171168
        %v4060 = vunpack.c.0.s8 %v4059
        %v4061 = vlaneseq
        %v4062 = vshrl.u32 %v4061, 7
        %v4063 = vsub.s32 %v4060, %v4062
        %v4064 = vrot.slane %v4050, %v4063
        %v4065 = vcombine.low %v4057, %v4064
        %v4070 = vunpack.c.l.b16 %v3621
        %v4071 = vunpack.c.l.b16 %v3622
        %v4072 = vunpack.c.l.b16 %v3623
        %v4073 = vunpack.c.l.b16 %v3624
        %v4074 = vpack.c.b16 %v4071, %v4070
        %v4075 = vpack.c.b16 %v4073, %v4072
        %v4079 = vsel %vm1772, %v3673, 0
        %v4082 = vsel %vm1772, %v3722, 0
        %v4085 = vsel %vm1772, %v3771, 0
        %v4088 = vsel %vm1772, %v3820, 0
        %v4091 = vsel %vm1772, %v3869, 0
        %v4094 = vsel %vm1772, %v3918, 0
        %v4097 = vsel %vm1772, %v3967, 0
        %v4100 = vsel %vm1772, %v4016, 0
        %v4103 = vsel %vm1772, %v4065, 0
        %4105 = vmatprep.subr.bf16.mxu0 0
        %4106 = vmatpush1.bf16.msra.mxu0 0
        %4107 = vmatprep.subr.bf16.mxu0 0
        %4108 = vmatpush1.bf16.msra.mxu0 0
        %4109 = vmatprep.subr.bf16.mxu0 0
        %4110 = vmatpush1.bf16.msra.mxu0 0
        %4111 = vmatprep.subr.bf16.mxu0 0
        %4112 = vmatpush1.bf16.msra.mxu0 0
        %4113 = vmatprep.subr.bf16.mxu0 0
        %4114 = vmatpush1.bf16.msra.mxu0 0
        %4115 = vmatprep.subr.bf16.mxu0 0
        %4116 = vmatpush1.bf16.msra.mxu0 0
        %4117 = vmatprep.subr.bf16.mxu0 0
        %4118 = vmatpush1.bf16.msra.mxu0 %v4075
        %4119 = vmatprep.subr.bf16.mxu0 0
        %4120 = vmatpush1.bf16.msra.mxu0 %v4074
        %4121 = vmatprep.subr.bf16.mxu0 0
        %4122 = vmatpush2.bf16.msra.mxu0 0
        %4123 = vmatprep.subr.bf16.mxu0 0
        %4124 = vmatpush2.bf16.msra.mxu0 0
        %4125 = vmatprep.subr.bf16.mxu0 0
        %4126 = vmatpush2.bf16.msra.mxu0 0
        %4127 = vmatprep.subr.bf16.mxu0 0
        %4128 = vmatpush2.bf16.msra.mxu0 0
        %4129 = vmatprep.subr.bf16.mxu0 0
        %4130 = vmatpush2.bf16.msra.mxu0 0
        %4131 = vmatprep.subr.bf16.mxu0 0
        %4132 = vmatpush2.bf16.msra.mxu0 0
        %4133 = vmatprep.subr.bf16.mxu0 0
        %4134 = vmatpush2.bf16.msra.mxu0 0
        %4135 = vmatprep.subr.bf16.mxu0 0
        %4136 = vmatpush2.bf16.msra.mxu0 0
        %4137 = vmatprep.mubr.bf16.mxu0 0
        %4138 = vmatmul.mubr.bf16.gmra.mxu0 %v4079
        %v4139 = vpop.f32.mrf.mxu0
        %v4140 = vadd.f32 0.0, %v4139
        %v4141 = vpop.f32.mrf.mxu0
        %v4142 = vpop.f32.mrf.mxu0
        %v4143 = vadd.f32 0.0, %v4142
        %v4144 = vpop.f32.mrf.mxu0
        %4145 = vmatprep.mubr.bf16.mxu0 0
        %4146 = vmatmul.mubr.bf16.gmra.mxu0 %v4082
        %v4147 = vpop.f32.mrf.mxu0
        %v4148 = vadd.f32 0.0, %v4147
        %v4149 = vpop.f32.mrf.mxu0
        %v4150 = vpop.f32.mrf.mxu0
        %v4151 = vadd.f32 0.0, %v4150
        %v4152 = vpop.f32.mrf.mxu0
        %4153 = vmatprep.mubr.bf16.mxu0 0
        %4154 = vmatmul.mubr.bf16.gmra.mxu0 %v4085
        %v4155 = vpop.f32.mrf.mxu0
        %v4156 = vadd.f32 0.0, %v4155
        %v4157 = vpop.f32.mrf.mxu0
        %v4158 = vpop.f32.mrf.mxu0
        %v4159 = vadd.f32 0.0, %v4158
        %v4160 = vpop.f32.mrf.mxu0
        %4161 = vmatprep.mubr.bf16.mxu0 0
        %4162 = vmatmul.mubr.bf16.gmra.mxu0 %v4088
        %v4163 = vpop.f32.mrf.mxu0
        %v4164 = vadd.f32 0.0, %v4163
        %v4165 = vpop.f32.mrf.mxu0
        %v4166 = vpop.f32.mrf.mxu0
        %v4167 = vadd.f32 0.0, %v4166
        %v4168 = vpop.f32.mrf.mxu0
        %4169 = vmatprep.mubr.bf16.mxu0 0
        %4170 = vmatmul.mubr.bf16.gmra.mxu0 %v4091
        %v4171 = vpop.f32.mrf.mxu0
        %v4172 = vadd.f32 0.0, %v4171
        %v4173 = vpop.f32.mrf.mxu0
        %v4174 = vpop.f32.mrf.mxu0
        %v4175 = vadd.f32 0.0, %v4174
        %v4176 = vpop.f32.mrf.mxu0
        %4177 = vmatprep.mubr.bf16.mxu0 0
        %4178 = vmatmul.mubr.bf16.gmra.mxu0 %v4094
        %v4179 = vpop.f32.mrf.mxu0
        %v4180 = vadd.f32 0.0, %v4179
        %v4181 = vpop.f32.mrf.mxu0
        %v4182 = vpop.f32.mrf.mxu0
        %v4183 = vadd.f32 0.0, %v4182
        %v4184 = vpop.f32.mrf.mxu0
        %4185 = vmatprep.mubr.bf16.mxu0 0
        %4186 = vmatmul.mubr.bf16.gmra.mxu0 %v4097
        %v4187 = vpop.f32.mrf.mxu0
        %v4188 = vadd.f32 0.0, %v4187
        %v4189 = vpop.f32.mrf.mxu0
        %v4190 = vpop.f32.mrf.mxu0
        %v4191 = vadd.f32 0.0, %v4190
        %v4192 = vpop.f32.mrf.mxu0
        %4193 = vmatprep.mubr.bf16.mxu0 0
        %4194 = vmatmul.mubr.bf16.gmra.mxu0 %v4100
        %v4195 = vpop.f32.mrf.mxu0
        %v4196 = vadd.f32 0.0, %v4195
        %v4197 = vpop.f32.mrf.mxu0
        %v4198 = vpop.f32.mrf.mxu0
        %v4199 = vadd.f32 0.0, %v4198
        %v4200 = vpop.f32.mrf.mxu0
        %4201 = vmatprep.mubr.bf16.mxu0 0
        %4202 = vmatmul.mubr.bf16.gmra.mxu0 %v4103
        %v4203 = vpop.f32.mrf.mxu0
        %v4204 = vadd.f32 0.0, %v4203
        %v4205 = vpop.f32.mrf.mxu0
        %v4206 = vpop.f32.mrf.mxu0
        %v4207 = vadd.f32 0.0, %v4206
        %v4208 = vpop.f32.mrf.mxu0
        %4209 = vdwg.mxu0
        %v4228 = vcombine.high %v4140, %v4140
        %v4230 = vunpack.c.l.s4 1983009808
        %v4231 = vunpack.c.0.s8 %v4230
        %v4232 = vlaneseq
        %v4233 = vshrl.u32 %v4232, 7
        %v4234 = vsub.s32 %v4231, %v4233
        %v4235 = vrot.slane %v4140, %v4234
        %v4237 = vunpack.c.l.s4 1983009808
        %v4238 = vunpack.c.0.s8 %v4237
        %v4239 = vlaneseq
        %v4240 = vshrl.u32 %v4239, 7
        %v4241 = vsub.s32 %v4238, %v4240
        %v4242 = vrot.slane %v4228, %v4241
        %v4243 = vcombine.high %v4235, %v4235
        %v4244 = vcombine.high %v4242, %v4242
        %v4245 = vcombine.high %v4143, %v4143
        %v4247 = vunpack.c.l.s4 1983009808
        %v4248 = vunpack.c.0.s8 %v4247
        %v4249 = vlaneseq
        %v4250 = vshrl.u32 %v4249, 7
        %v4251 = vsub.s32 %v4248, %v4250
        %v4252 = vrot.slane %v4143, %v4251
        %v4254 = vunpack.c.l.s4 1983009808
        %v4255 = vunpack.c.0.s8 %v4254
        %v4256 = vlaneseq
        %v4257 = vshrl.u32 %v4256, 7
        %v4258 = vsub.s32 %v4255, %v4257
        %v4259 = vrot.slane %v4245, %v4258
        %v4260 = vcombine.high %v4252, %v4252
        %v4261 = vcombine.high %v4259, %v4259
        %v4262 = vcombine.high %v4148, %v4148
        %v4264 = vunpack.c.l.s4 1983009808
        %v4265 = vunpack.c.0.s8 %v4264
        %v4266 = vlaneseq
        %v4267 = vshrl.u32 %v4266, 7
        %v4268 = vsub.s32 %v4265, %v4267
        %v4269 = vrot.slane %v4148, %v4268
        %v4271 = vunpack.c.l.s4 1983009808
        %v4272 = vunpack.c.0.s8 %v4271
        %v4273 = vlaneseq
        %v4274 = vshrl.u32 %v4273, 7
        %v4275 = vsub.s32 %v4272, %v4274
        %v4276 = vrot.slane %v4262, %v4275
        %v4277 = vcombine.high %v4269, %v4269
        %v4278 = vcombine.high %v4276, %v4276
        %v4279 = vcombine.high %v4151, %v4151
        %v4281 = vunpack.c.l.s4 1983009808
        %v4282 = vunpack.c.0.s8 %v4281
        %v4283 = vlaneseq
        %v4284 = vshrl.u32 %v4283, 7
        %v4285 = vsub.s32 %v4282, %v4284
        %v4286 = vrot.slane %v4151, %v4285
        %v4288 = vunpack.c.l.s4 1983009808
        %v4289 = vunpack.c.0.s8 %v4288
        %v4290 = vlaneseq
        %v4291 = vshrl.u32 %v4290, 7
        %v4292 = vsub.s32 %v4289, %v4291
        %v4293 = vrot.slane %v4279, %v4292
        %v4294 = vcombine.high %v4286, %v4286
        %v4295 = vcombine.high %v4293, %v4293
        %v4296 = vcombine.high %v4156, %v4156
        %v4298 = vunpack.c.l.s4 1983009808
        %v4299 = vunpack.c.0.s8 %v4298
        %v4300 = vlaneseq
        %v4301 = vshrl.u32 %v4300, 7
        %v4302 = vsub.s32 %v4299, %v4301
        %v4303 = vrot.slane %v4156, %v4302
        %v4305 = vunpack.c.l.s4 1983009808
        %v4306 = vunpack.c.0.s8 %v4305
        %v4307 = vlaneseq
        %v4308 = vshrl.u32 %v4307, 7
        %v4309 = vsub.s32 %v4306, %v4308
        %v4310 = vrot.slane %v4296, %v4309
        %v4311 = vcombine.high %v4303, %v4303
        %v4312 = vcombine.high %v4310, %v4310
        %v4313 = vcombine.high %v4159, %v4159
        %v4315 = vunpack.c.l.s4 1983009808
        %v4316 = vunpack.c.0.s8 %v4315
        %v4317 = vlaneseq
        %v4318 = vshrl.u32 %v4317, 7
        %v4319 = vsub.s32 %v4316, %v4318
        %v4320 = vrot.slane %v4159, %v4319
        %v4322 = vunpack.c.l.s4 1983009808
        %v4323 = vunpack.c.0.s8 %v4322
        %v4324 = vlaneseq
        %v4325 = vshrl.u32 %v4324, 7
        %v4326 = vsub.s32 %v4323, %v4325
        %v4327 = vrot.slane %v4313, %v4326
        %v4328 = vcombine.high %v4320, %v4320
        %v4329 = vcombine.high %v4327, %v4327
        %v4330 = vcombine.high %v4164, %v4164
        %v4332 = vunpack.c.l.s4 1983009808
        %v4333 = vunpack.c.0.s8 %v4332
        %v4334 = vlaneseq
        %v4335 = vshrl.u32 %v4334, 7
        %v4336 = vsub.s32 %v4333, %v4335
        %v4337 = vrot.slane %v4164, %v4336
        %v4339 = vunpack.c.l.s4 1983009808
        %v4340 = vunpack.c.0.s8 %v4339
        %v4341 = vlaneseq
        %v4342 = vshrl.u32 %v4341, 7
        %v4343 = vsub.s32 %v4340, %v4342
        %v4344 = vrot.slane %v4330, %v4343
        %v4345 = vcombine.high %v4337, %v4337
        %v4346 = vcombine.high %v4344, %v4344
        %v4347 = vcombine.high %v4167, %v4167
        %v4349 = vunpack.c.l.s4 1983009808
        %v4350 = vunpack.c.0.s8 %v4349
        %v4351 = vlaneseq
        %v4352 = vshrl.u32 %v4351, 7
        %v4353 = vsub.s32 %v4350, %v4352
        %v4354 = vrot.slane %v4167, %v4353
        %v4356 = vunpack.c.l.s4 1983009808
        %v4357 = vunpack.c.0.s8 %v4356
        %v4358 = vlaneseq
        %v4359 = vshrl.u32 %v4358, 7
        %v4360 = vsub.s32 %v4357, %v4359
        %v4361 = vrot.slane %v4347, %v4360
        %v4362 = vcombine.high %v4354, %v4354
        %v4363 = vcombine.high %v4361, %v4361
        %v4364 = vcombine.high %v4172, %v4172
        %v4366 = vunpack.c.l.s4 1983009808
        %v4367 = vunpack.c.0.s8 %v4366
        %v4368 = vlaneseq
        %v4369 = vshrl.u32 %v4368, 7
        %v4370 = vsub.s32 %v4367, %v4369
        %v4371 = vrot.slane %v4172, %v4370
        %v4373 = vunpack.c.l.s4 1983009808
        %v4374 = vunpack.c.0.s8 %v4373
        %v4375 = vlaneseq
        %v4376 = vshrl.u32 %v4375, 7
        %v4377 = vsub.s32 %v4374, %v4376
        %v4378 = vrot.slane %v4364, %v4377
        %v4379 = vcombine.high %v4371, %v4371
        %v4380 = vcombine.high %v4378, %v4378
        %v4381 = vcombine.high %v4175, %v4175
        %v4383 = vunpack.c.l.s4 1983009808
        %v4384 = vunpack.c.0.s8 %v4383
        %v4385 = vlaneseq
        %v4386 = vshrl.u32 %v4385, 7
        %v4387 = vsub.s32 %v4384, %v4386
        %v4388 = vrot.slane %v4175, %v4387
        %v4390 = vunpack.c.l.s4 1983009808
        %v4391 = vunpack.c.0.s8 %v4390
        %v4392 = vlaneseq
        %v4393 = vshrl.u32 %v4392, 7
        %v4394 = vsub.s32 %v4391, %v4393
        %v4395 = vrot.slane %v4381, %v4394
        %v4396 = vcombine.high %v4388, %v4388
        %v4397 = vcombine.high %v4395, %v4395
        %v4398 = vcombine.high %v4180, %v4180
        %v4400 = vunpack.c.l.s4 1983009808
        %v4401 = vunpack.c.0.s8 %v4400
        %v4402 = vlaneseq
        %v4403 = vshrl.u32 %v4402, 7
        %v4404 = vsub.s32 %v4401, %v4403
        %v4405 = vrot.slane %v4180, %v4404
        %v4407 = vunpack.c.l.s4 1983009808
        %v4408 = vunpack.c.0.s8 %v4407
        %v4409 = vlaneseq
        %v4410 = vshrl.u32 %v4409, 7
        %v4411 = vsub.s32 %v4408, %v4410
        %v4412 = vrot.slane %v4398, %v4411
        %v4413 = vcombine.high %v4405, %v4405
        %v4414 = vcombine.high %v4412, %v4412
        %v4415 = vcombine.high %v4183, %v4183
        %v4417 = vunpack.c.l.s4 1983009808
        %v4418 = vunpack.c.0.s8 %v4417
        %v4419 = vlaneseq
        %v4420 = vshrl.u32 %v4419, 7
        %v4421 = vsub.s32 %v4418, %v4420
        %v4422 = vrot.slane %v4183, %v4421
        %v4424 = vunpack.c.l.s4 1983009808
        %v4425 = vunpack.c.0.s8 %v4424
        %v4426 = vlaneseq
        %v4427 = vshrl.u32 %v4426, 7
        %v4428 = vsub.s32 %v4425, %v4427
        %v4429 = vrot.slane %v4415, %v4428
        %v4430 = vcombine.high %v4422, %v4422
        %v4431 = vcombine.high %v4429, %v4429
        %v4432 = vcombine.high %v4188, %v4188
        %v4434 = vunpack.c.l.s4 1983009808
        %v4435 = vunpack.c.0.s8 %v4434
        %v4436 = vlaneseq
        %v4437 = vshrl.u32 %v4436, 7
        %v4438 = vsub.s32 %v4435, %v4437
        %v4439 = vrot.slane %v4188, %v4438
        %v4441 = vunpack.c.l.s4 1983009808
        %v4442 = vunpack.c.0.s8 %v4441
        %v4443 = vlaneseq
        %v4444 = vshrl.u32 %v4443, 7
        %v4445 = vsub.s32 %v4442, %v4444
        %v4446 = vrot.slane %v4432, %v4445
        %v4447 = vcombine.high %v4439, %v4439
        %v4448 = vcombine.high %v4446, %v4446
        %v4449 = vcombine.high %v4191, %v4191
        %v4451 = vunpack.c.l.s4 1983009808
        %v4452 = vunpack.c.0.s8 %v4451
        %v4453 = vlaneseq
        %v4454 = vshrl.u32 %v4453, 7
        %v4455 = vsub.s32 %v4452, %v4454
        %v4456 = vrot.slane %v4191, %v4455
        %v4458 = vunpack.c.l.s4 1983009808
        %v4459 = vunpack.c.0.s8 %v4458
        %v4460 = vlaneseq
        %v4461 = vshrl.u32 %v4460, 7
        %v4462 = vsub.s32 %v4459, %v4461
        %v4463 = vrot.slane %v4449, %v4462
        %v4464 = vcombine.high %v4456, %v4456
        %v4465 = vcombine.high %v4463, %v4463
        %v4466 = vcombine.high %v4196, %v4196
        %v4468 = vunpack.c.l.s4 1983009808
        %v4469 = vunpack.c.0.s8 %v4468
        %v4470 = vlaneseq
        %v4471 = vshrl.u32 %v4470, 7
        %v4472 = vsub.s32 %v4469, %v4471
        %v4473 = vrot.slane %v4196, %v4472
        %v4475 = vunpack.c.l.s4 1983009808
        %v4476 = vunpack.c.0.s8 %v4475
        %v4477 = vlaneseq
        %v4478 = vshrl.u32 %v4477, 7
        %v4479 = vsub.s32 %v4476, %v4478
        %v4480 = vrot.slane %v4466, %v4479
        %v4481 = vcombine.high %v4473, %v4473
        %v4482 = vcombine.high %v4480, %v4480
        %v4483 = vcombine.high %v4199, %v4199
        %v4485 = vunpack.c.l.s4 1983009808
        %v4486 = vunpack.c.0.s8 %v4485
        %v4487 = vlaneseq
        %v4488 = vshrl.u32 %v4487, 7
        %v4489 = vsub.s32 %v4486, %v4488
        %v4490 = vrot.slane %v4199, %v4489
        %v4492 = vunpack.c.l.s4 1983009808
        %v4493 = vunpack.c.0.s8 %v4492
        %v4494 = vlaneseq
        %v4495 = vshrl.u32 %v4494, 7
        %v4496 = vsub.s32 %v4493, %v4495
        %v4497 = vrot.slane %v4483, %v4496
        %v4498 = vcombine.high %v4490, %v4490
        %v4499 = vcombine.high %v4497, %v4497
        %v4500 = vcombine.high %v4204, %v4204
        %v4502 = vunpack.c.l.s4 1983009808
        %v4503 = vunpack.c.0.s8 %v4502
        %v4504 = vlaneseq
        %v4505 = vshrl.u32 %v4504, 7
        %v4506 = vsub.s32 %v4503, %v4505
        %v4507 = vrot.slane %v4204, %v4506
        %v4509 = vunpack.c.l.s4 1983009808
        %v4510 = vunpack.c.0.s8 %v4509
        %v4511 = vlaneseq
        %v4512 = vshrl.u32 %v4511, 7
        %v4513 = vsub.s32 %v4510, %v4512
        %v4514 = vrot.slane %v4500, %v4513
        %v4515 = vcombine.high %v4507, %v4507
        %v4516 = vcombine.high %v4514, %v4514
        %v4517 = vcombine.high %v4207, %v4207
        %v4519 = vunpack.c.l.s4 1983009808
        %v4520 = vunpack.c.0.s8 %v4519
        %v4521 = vlaneseq
        %v4522 = vshrl.u32 %v4521, 7
        %v4523 = vsub.s32 %v4520, %v4522
        %v4524 = vrot.slane %v4207, %v4523
        %v4526 = vunpack.c.l.s4 1983009808
        %v4527 = vunpack.c.0.s8 %v4526
        %v4528 = vlaneseq
        %v4529 = vshrl.u32 %v4528, 7
        %v4530 = vsub.s32 %v4527, %v4529
        %v4531 = vrot.slane %v4517, %v4530
        %v4532 = vcombine.high %v4524, %v4524
        %v4533 = vcombine.high %v4531, %v4531
        %v4598 = vadd.f32 %v3012, %v4235
        %v4599 = vadd.f32 %v3013, %v4243
        %v4600 = vadd.f32 %v3014, %v4242
        %v4601 = vadd.f32 %v3015, %v4244
        %v4602 = vadd.f32 %v3016, %v4252
        %v4603 = vadd.f32 %v3017, %v4260
        %v4604 = vadd.f32 %v3018, %v4259
        %v4605 = vadd.f32 %v3019, %v4261
        %v4606 = vadd.f32 %v3020, %v4277
        %v4607 = vadd.f32 %v3021, %v4276
        %v4608 = vadd.f32 %v3022, %v4278
        %v4609 = vadd.f32 %v3023, %v4286
        %v4610 = vadd.f32 %v3024, %v4294
        %v4611 = vadd.f32 %v3025, %v4293
        %v4612 = vadd.f32 %v3026, %v4295
        %v4613 = vadd.f32 %v3027, %v4303
        %v4614 = vadd.f32 %v3028, %v4310
        %v4615 = vadd.f32 %v3029, %v4312
        %v4616 = vadd.f32 %v3030, %v4320
        %v4617 = vadd.f32 %v3031, %v4328
        %v4618 = vadd.f32 %v3032, %v4327
        %v4619 = vadd.f32 %v3033, %v4329
        %v4620 = vadd.f32 %v3034, %v4337
        %v4621 = vadd.f32 %v3035, %v4345
        %v4622 = vadd.f32 %v3036, %v4346
        %v4623 = vadd.f32 %v3037, %v4354
        %v4624 = vadd.f32 %v3038, %v4362
        %v4625 = vadd.f32 %v3039, %v4361
        %v4626 = vadd.f32 %v3040, %v4363
        %v4627 = vadd.f32 %v3041, %v4371
        %v4628 = vadd.f32 %v3042, %v4379
        %v4629 = vadd.f32 %v3043, %v4378
        %v4630 = vadd.f32 %v3044, %v4388
        %v4631 = vadd.f32 %v3045, %v4396
        %v4632 = vadd.f32 %v3046, %v4395
        %v4633 = vadd.f32 %v3047, %v4397
        %v4634 = vadd.f32 %v3048, %v4405
        %v4635 = vadd.f32 %v3049, %v4413
        %v4636 = vadd.f32 %v3050, %v4412
        %v4637 = vadd.f32 %v3051, %v4414
        %v4638 = vadd.f32 %v3052, %v4430
        %v4639 = vadd.f32 %v3053, %v4429
        %v4640 = vadd.f32 %v3054, %v4431
        %v4641 = vadd.f32 %v3055, %v4439
        %v4642 = vadd.f32 %v3056, %v4447
        %v4643 = vadd.f32 %v3057, %v4446
        %v4644 = vadd.f32 %v3058, %v4448
        %v4645 = vadd.f32 %v3059, %v4456
        %v4646 = vadd.f32 %v3060, %v4463
        %v4647 = vadd.f32 %v3061, %v4465
        %v4648 = vadd.f32 %v3062, %v4473
        %v4649 = vadd.f32 %v3063, %v4481
        %v4650 = vadd.f32 %v3064, %v4480
        %v4651 = vadd.f32 %v3065, %v4482
        %v4652 = vadd.f32 %v3066, %v4490
        %v4653 = vadd.f32 %v3067, %v4498
        %v4654 = vadd.f32 %v3068, %v4499
        %v4655 = vadd.f32 %v3069, %v4507
        %v4656 = vadd.f32 %v3070, %v4515
        %v4657 = vadd.f32 %v3071, %v4514
        %v4658 = vadd.f32 %v3072, %v4516
        %v4659 = vadd.f32 %v3073, %v4524
        %v4660 = vadd.f32 %v3074, %v4532
        %v4661 = vadd.f32 %v3075, %v4531
        %v4662 = vrot.slane %v4235, 7
        %v4663 = vrot.slane %v4662, 2
        %v4664 = vrot.slane %v4243, 7
        %v4665 = vsel %vm2363, %v4663, %v4664
        %v4666 = vrot.slane %v4664, 2
        %v4667 = vrot.slane %v4242, 7
        %v4668 = vsel %vm2363, %v4666, %v4667
        %v4669 = vrot.slane %v4667, 2
        %v4670 = vrot.slane %v4244, 7
        %v4671 = vsel %vm2363, %v4669, %v4670
        %v4672 = vrot.slane %v4670, 2
        %v4673 = vrot.slane %v4252, 7
        %v4674 = vsel %vm2363, %v4672, %v4673
        %v4675 = vrot.slane %v4673, 2
        %v4676 = vrot.slane %v4260, 7
        %v4677 = vsel %vm2363, %v4675, %v4676
        %v4678 = vrot.slane %v4676, 2
        %v4679 = vrot.slane %v4259, 7
        %v4680 = vsel %vm2363, %v4678, %v4679
        %v4681 = vrot.slane %v4679, 2
        %v4682 = vrot.slane %v4261, 7
        %v4683 = vsel %vm2363, %v4681, %v4682
        %v4684 = vrot.slane %v4682, 2
        %v4685 = vrot.slane %v4269, 7
        %v4686 = vsel %vm2363, %v4684, %v4685
        %v4687 = vrot.slane %v4277, 7
        %v4688 = vrot.slane %v4687, 2
        %v4689 = vrot.slane %v4276, 7
        %v4690 = vsel %vm2363, %v4688, %v4689
        %v4691 = vrot.slane %v4689, 2
        %v4692 = vrot.slane %v4278, 7
        %v4693 = vsel %vm2363, %v4691, %v4692
        %v4694 = vrot.slane %v4692, 2
        %v4695 = vrot.slane %v4286, 7
        %v4696 = vsel %vm2363, %v4694, %v4695
        %v4697 = vrot.slane %v4695, 2
        %v4698 = vrot.slane %v4294, 7
        %v4699 = vsel %vm2363, %v4697, %v4698
        %v4700 = vrot.slane %v4698, 2
        %v4701 = vrot.slane %v4293, 7
        %v4702 = vsel %vm2363, %v4700, %v4701
        %v4703 = vrot.slane %v4701, 2
        %v4704 = vrot.slane %v4295, 7
        %v4705 = vsel %vm2363, %v4703, %v4704
        %v4706 = vrot.slane %v4704, 2
        %v4707 = vrot.slane %v4303, 7
        %v4708 = vsel %vm2363, %v4706, %v4707
        %v4709 = vrot.slane %v4707, 2
        %v4710 = vrot.slane %v4311, 7
        %v4711 = vsel %vm2363, %v4709, %v4710
        %v4712 = vrot.slane %v4310, 7
        %v4713 = vrot.slane %v4712, 2
        %v4714 = vrot.slane %v4312, 7
        %v4715 = vsel %vm2363, %v4713, %v4714
        %v4716 = vrot.slane %v4714, 2
        %v4717 = vrot.slane %v4320, 7
        %v4718 = vsel %vm2363, %v4716, %v4717
        %v4719 = vrot.slane %v4717, 2
        %v4720 = vrot.slane %v4328, 7
        %v4721 = vsel %vm2363, %v4719, %v4720
        %v4722 = vrot.slane %v4720, 2
        %v4723 = vrot.slane %v4327, 7
        %v4724 = vsel %vm2363, %v4722, %v4723
        %v4725 = vrot.slane %v4723, 2
        %v4726 = vrot.slane %v4329, 7
        %v4727 = vsel %vm2363, %v4725, %v4726
        %v4728 = vrot.slane %v4726, 2
        %v4729 = vrot.slane %v4337, 7
        %v4730 = vsel %vm2363, %v4728, %v4729
        %v4731 = vrot.slane %v4729, 2
        %v4732 = vrot.slane %v4345, 7
        %v4733 = vsel %vm2363, %v4731, %v4732
        %v4734 = vrot.slane %v4732, 2
        %v4735 = vrot.slane %v4344, 7
        %v4736 = vsel %vm2363, %v4734, %v4735
        %v4737 = vrot.slane %v4346, 7
        %v4738 = vrot.slane %v4737, 2
        %v4739 = vrot.slane %v4354, 7
        %v4740 = vsel %vm2363, %v4738, %v4739
        %v4741 = vrot.slane %v4739, 2
        %v4742 = vrot.slane %v4362, 7
        %v4743 = vsel %vm2363, %v4741, %v4742
        %v4744 = vrot.slane %v4742, 2
        %v4745 = vrot.slane %v4361, 7
        %v4746 = vsel %vm2363, %v4744, %v4745
        %v4747 = vrot.slane %v4745, 2
        %v4748 = vrot.slane %v4363, 7
        %v4749 = vsel %vm2363, %v4747, %v4748
        %v4750 = vrot.slane %v4748, 2
        %v4751 = vrot.slane %v4371, 7
        %v4752 = vsel %vm2363, %v4750, %v4751
        %v4753 = vrot.slane %v4751, 2
        %v4754 = vrot.slane %v4379, 7
        %v4755 = vsel %vm2363, %v4753, %v4754
        %v4756 = vrot.slane %v4754, 2
        %v4757 = vrot.slane %v4378, 7
        %v4758 = vsel %vm2363, %v4756, %v4757
        %v4759 = vrot.slane %v4757, 2
        %v4760 = vrot.slane %v4380, 7
        %v4761 = vsel %vm2363, %v4759, %v4760
        %v4762 = vrot.slane %v4388, 7
        %v4763 = vrot.slane %v4762, 2
        %v4764 = vrot.slane %v4396, 7
        %v4765 = vsel %vm2363, %v4763, %v4764
        %v4766 = vrot.slane %v4764, 2
        %v4767 = vrot.slane %v4395, 7
        %v4768 = vsel %vm2363, %v4766, %v4767
        %v4769 = vrot.slane %v4767, 2
        %v4770 = vrot.slane %v4397, 7
        %v4771 = vsel %vm2363, %v4769, %v4770
        %v4772 = vrot.slane %v4770, 2
        %v4773 = vrot.slane %v4405, 7
        %v4774 = vsel %vm2363, %v4772, %v4773
        %v4775 = vrot.slane %v4773, 2
        %v4776 = vrot.slane %v4413, 7
        %v4777 = vsel %vm2363, %v4775, %v4776
        %v4778 = vrot.slane %v4776, 2
        %v4779 = vrot.slane %v4412, 7
        %v4780 = vsel %vm2363, %v4778, %v4779
        %v4781 = vrot.slane %v4779, 2
        %v4782 = vrot.slane %v4414, 7
        %v4783 = vsel %vm2363, %v4781, %v4782
        %v4784 = vrot.slane %v4782, 2
        %v4785 = vrot.slane %v4422, 7
        %v4786 = vsel %vm2363, %v4784, %v4785
        %v4787 = vrot.slane %v4430, 7
        %v4788 = vrot.slane %v4787, 2
        %v4789 = vrot.slane %v4429, 7
        %v4790 = vsel %vm2363, %v4788, %v4789
        %v4791 = vrot.slane %v4789, 2
        %v4792 = vrot.slane %v4431, 7
        %v4793 = vsel %vm2363, %v4791, %v4792
        %v4794 = vrot.slane %v4792, 2
        %v4795 = vrot.slane %v4439, 7
        %v4796 = vsel %vm2363, %v4794, %v4795
        %v4797 = vrot.slane %v4795, 2
        %v4798 = vrot.slane %v4447, 7
        %v4799 = vsel %vm2363, %v4797, %v4798
        %v4800 = vrot.slane %v4798, 2
        %v4801 = vrot.slane %v4446, 7
        %v4802 = vsel %vm2363, %v4800, %v4801
        %v4803 = vrot.slane %v4801, 2
        %v4804 = vrot.slane %v4448, 7
        %v4805 = vsel %vm2363, %v4803, %v4804
        %v4806 = vrot.slane %v4804, 2
        %v4807 = vrot.slane %v4456, 7
        %v4808 = vsel %vm2363, %v4806, %v4807
        %v4809 = vrot.slane %v4807, 2
        %v4810 = vrot.slane %v4464, 7
        %v4811 = vsel %vm2363, %v4809, %v4810
        %v4812 = vrot.slane %v4463, 7
        %v4813 = vrot.slane %v4812, 2
        %v4814 = vrot.slane %v4465, 7
        %v4815 = vsel %vm2363, %v4813, %v4814
        %v4816 = vrot.slane %v4814, 2
        %v4817 = vrot.slane %v4473, 7
        %v4818 = vsel %vm2363, %v4816, %v4817
        %v4819 = vrot.slane %v4817, 2
        %v4820 = vrot.slane %v4481, 7
        %v4821 = vsel %vm2363, %v4819, %v4820
        %v4822 = vrot.slane %v4820, 2
        %v4823 = vrot.slane %v4480, 7
        %v4824 = vsel %vm2363, %v4822, %v4823
        %v4825 = vrot.slane %v4823, 2
        %v4826 = vrot.slane %v4482, 7
        %v4827 = vsel %vm2363, %v4825, %v4826
        %v4828 = vrot.slane %v4826, 2
        %v4829 = vrot.slane %v4490, 7
        %v4830 = vsel %vm2363, %v4828, %v4829
        %v4831 = vrot.slane %v4829, 2
        %v4832 = vrot.slane %v4498, 7
        %v4833 = vsel %vm2363, %v4831, %v4832
        %v4834 = vrot.slane %v4832, 2
        %v4835 = vrot.slane %v4497, 7
        %v4836 = vsel %vm2363, %v4834, %v4835
        %v4837 = vrot.slane %v4499, 7
        %v4838 = vrot.slane %v4837, 2
        %v4839 = vrot.slane %v4507, 7
        %v4840 = vsel %vm2363, %v4838, %v4839
        %v4841 = vrot.slane %v4839, 2
        %v4842 = vrot.slane %v4515, 7
        %v4843 = vsel %vm2363, %v4841, %v4842
        %v4844 = vrot.slane %v4842, 2
        %v4845 = vrot.slane %v4514, 7
        %v4846 = vsel %vm2363, %v4844, %v4845
        %v4847 = vrot.slane %v4845, 2
        %v4848 = vrot.slane %v4516, 7
        %v4849 = vsel %vm2363, %v4847, %v4848
        %v4850 = vrot.slane %v4848, 2
        %v4851 = vrot.slane %v4524, 7
        %v4852 = vsel %vm2363, %v4850, %v4851
        %v4853 = vrot.slane %v4851, 2
        %v4854 = vrot.slane %v4532, 7
        %v4855 = vsel %vm2363, %v4853, %v4854
        %v4856 = vrot.slane %v4854, 2
        %v4857 = vrot.slane %v4531, 7
        %v4858 = vsel %vm2363, %v4856, %v4857
        %v4859 = vrot.slane %v4857, 2
        %v4860 = vrot.slane %v4533, 7
        %v4861 = vsel %vm2363, %v4859, %v4860
        %4862 = vrot.lane.b32.xlu0 %v4665, 96
        %v4863 = vpop.permute.xlu0 %4862
        %4864 = vrot.lane.b32.xlu0 %v4668, 96
        %v4865 = vpop.permute.xlu0 %4864
        %4866 = vrot.lane.b32.xlu0 %v4671, 96
        %v4867 = vpop.permute.xlu0 %4866
        %4868 = vrot.lane.b32.xlu0 %v4674, 96
        %v4869 = vpop.permute.xlu0 %4868
        %4870 = vrot.lane.b32.xlu0 %v4677, 96
        %v4871 = vpop.permute.xlu0 %4870
        %4872 = vrot.lane.b32.xlu0 %v4680, 96
        %v4873 = vpop.permute.xlu0 %4872
        %4874 = vrot.lane.b32.xlu0 %v4683, 96
        %v4875 = vpop.permute.xlu0 %4874
        %4876 = vrot.lane.b32.xlu0 %v4686, 96
        %v4877 = vpop.permute.xlu0 %4876
        %4878 = vrot.lane.b32.xlu0 %v4690, 96
        %v4879 = vpop.permute.xlu0 %4878
        %4880 = vrot.lane.b32.xlu0 %v4693, 96
        %v4881 = vpop.permute.xlu0 %4880
        %4882 = vrot.lane.b32.xlu0 %v4696, 96
        %v4883 = vpop.permute.xlu0 %4882
        %4884 = vrot.lane.b32.xlu0 %v4699, 96
        %v4885 = vpop.permute.xlu0 %4884
        %4886 = vrot.lane.b32.xlu0 %v4702, 96
        %v4887 = vpop.permute.xlu0 %4886
        %4888 = vrot.lane.b32.xlu0 %v4705, 96
        %v4889 = vpop.permute.xlu0 %4888
        %4890 = vrot.lane.b32.xlu0 %v4708, 96
        %v4891 = vpop.permute.xlu0 %4890
        %4892 = vrot.lane.b32.xlu0 %v4711, 96
        %v4893 = vpop.permute.xlu0 %4892
        %4894 = vrot.lane.b32.xlu0 %v4715, 96
        %v4895 = vpop.permute.xlu0 %4894
        %4896 = vrot.lane.b32.xlu0 %v4718, 96
        %v4897 = vpop.permute.xlu0 %4896
        %4898 = vrot.lane.b32.xlu0 %v4721, 96
        %v4899 = vpop.permute.xlu0 %4898
        %4900 = vrot.lane.b32.xlu0 %v4724, 96
        %v4901 = vpop.permute.xlu0 %4900
        %4902 = vrot.lane.b32.xlu0 %v4727, 96
        %v4903 = vpop.permute.xlu0 %4902
        %4904 = vrot.lane.b32.xlu0 %v4730, 96
        %v4905 = vpop.permute.xlu0 %4904
        %4906 = vrot.lane.b32.xlu0 %v4733, 96
        %v4907 = vpop.permute.xlu0 %4906
        %4908 = vrot.lane.b32.xlu0 %v4736, 96
        %v4909 = vpop.permute.xlu0 %4908
        %4910 = vrot.lane.b32.xlu0 %v4740, 96
        %v4911 = vpop.permute.xlu0 %4910
        %4912 = vrot.lane.b32.xlu0 %v4743, 96
        %v4913 = vpop.permute.xlu0 %4912
        %4914 = vrot.lane.b32.xlu0 %v4746, 96
        %v4915 = vpop.permute.xlu0 %4914
        %4916 = vrot.lane.b32.xlu0 %v4749, 96
        %v4917 = vpop.permute.xlu0 %4916
        %4918 = vrot.lane.b32.xlu0 %v4752, 96
        %v4919 = vpop.permute.xlu0 %4918
        %4920 = vrot.lane.b32.xlu0 %v4755, 96
        %v4921 = vpop.permute.xlu0 %4920
        %4922 = vrot.lane.b32.xlu0 %v4758, 96
        %v4923 = vpop.permute.xlu0 %4922
        %4924 = vrot.lane.b32.xlu0 %v4761, 96
        %v4925 = vpop.permute.xlu0 %4924
        %4926 = vrot.lane.b32.xlu0 %v4765, 96
        %v4927 = vpop.permute.xlu0 %4926
        %4928 = vrot.lane.b32.xlu0 %v4768, 96
        %v4929 = vpop.permute.xlu0 %4928
        %4930 = vrot.lane.b32.xlu0 %v4771, 96
        %v4931 = vpop.permute.xlu0 %4930
        %4932 = vrot.lane.b32.xlu0 %v4774, 96
        %v4933 = vpop.permute.xlu0 %4932
        %4934 = vrot.lane.b32.xlu0 %v4777, 96
        %v4935 = vpop.permute.xlu0 %4934
        %4936 = vrot.lane.b32.xlu0 %v4780, 96
        %v4937 = vpop.permute.xlu0 %4936
        %4938 = vrot.lane.b32.xlu0 %v4783, 96
        %v4939 = vpop.permute.xlu0 %4938
        %4940 = vrot.lane.b32.xlu0 %v4786, 96
        %v4941 = vpop.permute.xlu0 %4940
        %4942 = vrot.lane.b32.xlu0 %v4790, 96
        %v4943 = vpop.permute.xlu0 %4942
        %4944 = vrot.lane.b32.xlu0 %v4793, 96
        %v4945 = vpop.permute.xlu0 %4944
        %4946 = vrot.lane.b32.xlu0 %v4796, 96
        %v4947 = vpop.permute.xlu0 %4946
        %4948 = vrot.lane.b32.xlu0 %v4799, 96
        %v4949 = vpop.permute.xlu0 %4948
        %4950 = vrot.lane.b32.xlu0 %v4802, 96
        %v4951 = vpop.permute.xlu0 %4950
        %4952 = vrot.lane.b32.xlu0 %v4805, 96
        %v4953 = vpop.permute.xlu0 %4952
        %4954 = vrot.lane.b32.xlu0 %v4808, 96
        %v4955 = vpop.permute.xlu0 %4954
        %4956 = vrot.lane.b32.xlu0 %v4811, 96
        %v4957 = vpop.permute.xlu0 %4956
        %4958 = vrot.lane.b32.xlu0 %v4815, 96
        %v4959 = vpop.permute.xlu0 %4958
        %4960 = vrot.lane.b32.xlu0 %v4818, 96
        %v4961 = vpop.permute.xlu0 %4960
        %4962 = vrot.lane.b32.xlu0 %v4821, 96
        %v4963 = vpop.permute.xlu0 %4962
        %4964 = vrot.lane.b32.xlu0 %v4824, 96
        %v4965 = vpop.permute.xlu0 %4964
        %4966 = vrot.lane.b32.xlu0 %v4827, 96
        %v4967 = vpop.permute.xlu0 %4966
        %4968 = vrot.lane.b32.xlu0 %v4830, 96
        %v4969 = vpop.permute.xlu0 %4968
        %4970 = vrot.lane.b32.xlu0 %v4833, 96
        %v4971 = vpop.permute.xlu0 %4970
        %4972 = vrot.lane.b32.xlu0 %v4836, 96
        %v4973 = vpop.permute.xlu0 %4972
        %4974 = vrot.lane.b32.xlu0 %v4840, 96
        %v4975 = vpop.permute.xlu0 %4974
        %4976 = vrot.lane.b32.xlu0 %v4843, 96
        %v4977 = vpop.permute.xlu0 %4976
        %4978 = vrot.lane.b32.xlu0 %v4846, 96
        %v4979 = vpop.permute.xlu0 %4978
        %4980 = vrot.lane.b32.xlu0 %v4849, 96
        %v4981 = vpop.permute.xlu0 %4980
        %4982 = vrot.lane.b32.xlu0 %v4852, 96
        %v4983 = vpop.permute.xlu0 %4982
        %4984 = vrot.lane.b32.xlu0 %v4855, 96
        %v4985 = vpop.permute.xlu0 %4984
        %4986 = vrot.lane.b32.xlu0 %v4858, 96
        %v4987 = vpop.permute.xlu0 %4986
        %4988 = vrot.lane.b32.xlu0 %v4861, 96
        %v4989 = vpop.permute.xlu0 %4988
        %v5054 = vadd.f32 %v4598, %v4863
        %v5055 = vadd.f32 %v4599, %v4865
        %v5056 = vadd.f32 %v4600, %v4867
        %v5057 = vadd.f32 %v4601, %v4869
        %v5058 = vadd.f32 %v4602, %v4871
        %v5059 = vadd.f32 %v4603, %v4873
        %v5060 = vadd.f32 %v4604, %v4875
        %v5061 = vadd.f32 %v4605, %v4877
        %v5062 = vadd.f32 %v4606, %v4879
        %v5063 = vadd.f32 %v4607, %v4881
        %v5064 = vadd.f32 %v4608, %v4883
        %v5065 = vadd.f32 %v4609, %v4885
        %v5066 = vadd.f32 %v4610, %v4887
        %v5067 = vadd.f32 %v4611, %v4889
        %v5068 = vadd.f32 %v4612, %v4891
        %v5069 = vadd.f32 %v4613, %v4893
        %v5070 = vadd.f32 %v4614, %v4895
        %v5071 = vadd.f32 %v4615, %v4897
        %v5072 = vadd.f32 %v4616, %v4899
        %v5073 = vadd.f32 %v4617, %v4901
        %v5074 = vadd.f32 %v4618, %v4903
        %v5075 = vadd.f32 %v4619, %v4905
        %v5076 = vadd.f32 %v4620, %v4907
        %v5077 = vadd.f32 %v4621, %v4909
        %v5078 = vadd.f32 %v4622, %v4911
        %v5079 = vadd.f32 %v4623, %v4913
        %v5080 = vadd.f32 %v4624, %v4915
        %v5081 = vadd.f32 %v4625, %v4917
        %v5082 = vadd.f32 %v4626, %v4919
        %v5083 = vadd.f32 %v4627, %v4921
        %v5084 = vadd.f32 %v4628, %v4923
        %v5085 = vadd.f32 %v4629, %v4925
        %v5086 = vadd.f32 %v4630, %v4927
        %v5087 = vadd.f32 %v4631, %v4929
        %v5088 = vadd.f32 %v4632, %v4931
        %v5089 = vadd.f32 %v4633, %v4933
        %v5090 = vadd.f32 %v4634, %v4935
        %v5091 = vadd.f32 %v4635, %v4937
        %v5092 = vadd.f32 %v4636, %v4939
        %v5093 = vadd.f32 %v4637, %v4941
        %v5094 = vadd.f32 %v4638, %v4943
        %v5095 = vadd.f32 %v4639, %v4945
        %v5096 = vadd.f32 %v4640, %v4947
        %v5097 = vadd.f32 %v4641, %v4949
        %v5098 = vadd.f32 %v4642, %v4951
        %v5099 = vadd.f32 %v4643, %v4953
        %v5100 = vadd.f32 %v4644, %v4955
        %v5101 = vadd.f32 %v4645, %v4957
        %v5102 = vadd.f32 %v4646, %v4959
        %v5103 = vadd.f32 %v4647, %v4961
        %v5104 = vadd.f32 %v4648, %v4963
        %v5105 = vadd.f32 %v4649, %v4965
        %v5106 = vadd.f32 %v4650, %v4967
        %v5107 = vadd.f32 %v4651, %v4969
        %v5108 = vadd.f32 %v4652, %v4971
        %v5109 = vadd.f32 %v4653, %v4973
        %v5110 = vadd.f32 %v4654, %v4975
        %v5111 = vadd.f32 %v4655, %v4977
        %v5112 = vadd.f32 %v4656, %v4979
        %v5113 = vadd.f32 %v4657, %v4981
        %v5114 = vadd.f32 %v4658, %v4983
        %v5115 = vadd.f32 %v4659, %v4985
        %v5116 = vadd.f32 %v4660, %v4987
        %v5117 = vadd.f32 %v4661, %v4989
        %5118 = vrot.lane.b32.xlu0 %v4243, 64
        %v5119 = vpop.permute.xlu0 %5118
        %5120 = vrot.lane.b32.xlu0 %v4242, 64
        %v5121 = vpop.permute.xlu0 %5120
        %5122 = vrot.lane.b32.xlu0 %v4244, 64
        %v5123 = vpop.permute.xlu0 %5122
        %5124 = vrot.lane.b32.xlu0 %v4252, 64
        %v5125 = vpop.permute.xlu0 %5124
        %5126 = vrot.lane.b32.xlu0 %v4260, 64
        %v5127 = vpop.permute.xlu0 %5126
        %5128 = vrot.lane.b32.xlu0 %v4259, 64
        %v5129 = vpop.permute.xlu0 %5128
        %5130 = vrot.lane.b32.xlu0 %v4261, 64
        %v5131 = vpop.permute.xlu0 %5130
        %5132 = vrot.lane.b32.xlu0 %v4269, 64
        %v5133 = vpop.permute.xlu0 %5132
        %5134 = vrot.lane.b32.xlu0 %v4276, 64
        %v5135 = vpop.permute.xlu0 %5134
        %5136 = vrot.lane.b32.xlu0 %v4278, 64
        %v5137 = vpop.permute.xlu0 %5136
        %5138 = vrot.lane.b32.xlu0 %v4286, 64
        %v5139 = vpop.permute.xlu0 %5138
        %5140 = vrot.lane.b32.xlu0 %v4294, 64
        %v5141 = vpop.permute.xlu0 %5140
        %5142 = vrot.lane.b32.xlu0 %v4293, 64
        %v5143 = vpop.permute.xlu0 %5142
        %5144 = vrot.lane.b32.xlu0 %v4295, 64
        %v5145 = vpop.permute.xlu0 %5144
        %5146 = vrot.lane.b32.xlu0 %v4303, 64
        %v5147 = vpop.permute.xlu0 %5146
        %5148 = vrot.lane.b32.xlu0 %v4311, 64
        %v5149 = vpop.permute.xlu0 %5148
        %5150 = vrot.lane.b32.xlu0 %v4312, 64
        %v5151 = vpop.permute.xlu0 %5150
        %5152 = vrot.lane.b32.xlu0 %v4320, 64
        %v5153 = vpop.permute.xlu0 %5152
        %5154 = vrot.lane.b32.xlu0 %v4328, 64
        %v5155 = vpop.permute.xlu0 %5154
        %5156 = vrot.lane.b32.xlu0 %v4327, 64
        %v5157 = vpop.permute.xlu0 %5156
        %5158 = vrot.lane.b32.xlu0 %v4329, 64
        %v5159 = vpop.permute.xlu0 %5158
        %5160 = vrot.lane.b32.xlu0 %v4337, 64
        %v5161 = vpop.permute.xlu0 %5160
        %5162 = vrot.lane.b32.xlu0 %v4345, 64
        %v5163 = vpop.permute.xlu0 %5162
        %5164 = vrot.lane.b32.xlu0 %v4344, 64
        %v5165 = vpop.permute.xlu0 %5164
        %5166 = vrot.lane.b32.xlu0 %v4354, 64
        %v5167 = vpop.permute.xlu0 %5166
        %5168 = vrot.lane.b32.xlu0 %v4362, 64
        %v5169 = vpop.permute.xlu0 %5168
        %5170 = vrot.lane.b32.xlu0 %v4361, 64
        %v5171 = vpop.permute.xlu0 %5170
        %5172 = vrot.lane.b32.xlu0 %v4363, 64
        %v5173 = vpop.permute.xlu0 %5172
        %5174 = vrot.lane.b32.xlu0 %v4371, 64
        %v5175 = vpop.permute.xlu0 %5174
        %5176 = vrot.lane.b32.xlu0 %v4379, 64
        %v5177 = vpop.permute.xlu0 %5176
        %5178 = vrot.lane.b32.xlu0 %v4378, 64
        %v5179 = vpop.permute.xlu0 %5178
        %5180 = vrot.lane.b32.xlu0 %v4380, 64
        %v5181 = vpop.permute.xlu0 %5180
        %5182 = vrot.lane.b32.xlu0 %v4396, 64
        %v5183 = vpop.permute.xlu0 %5182
        %5184 = vrot.lane.b32.xlu0 %v4395, 64
        %v5185 = vpop.permute.xlu0 %5184
        %5186 = vrot.lane.b32.xlu0 %v4397, 64
        %v5187 = vpop.permute.xlu0 %5186
        %5188 = vrot.lane.b32.xlu0 %v4405, 64
        %v5189 = vpop.permute.xlu0 %5188
        %5190 = vrot.lane.b32.xlu0 %v4413, 64
        %v5191 = vpop.permute.xlu0 %5190
        %5192 = vrot.lane.b32.xlu0 %v4412, 64
        %v5193 = vpop.permute.xlu0 %5192
        %5194 = vrot.lane.b32.xlu0 %v4414, 64
        %v5195 = vpop.permute.xlu0 %5194
        %5196 = vrot.lane.b32.xlu0 %v4422, 64
        %v5197 = vpop.permute.xlu0 %5196
        %5198 = vrot.lane.b32.xlu0 %v4429, 64
        %v5199 = vpop.permute.xlu0 %5198
        %5200 = vrot.lane.b32.xlu0 %v4431, 64
        %v5201 = vpop.permute.xlu0 %5200
        %5202 = vrot.lane.b32.xlu0 %v4439, 64
        %v5203 = vpop.permute.xlu0 %5202
        %5204 = vrot.lane.b32.xlu0 %v4447, 64
        %v5205 = vpop.permute.xlu0 %5204
        %5206 = vrot.lane.b32.xlu0 %v4446, 64
        %v5207 = vpop.permute.xlu0 %5206
        %5208 = vrot.lane.b32.xlu0 %v4448, 64
        %v5209 = vpop.permute.xlu0 %5208
        %5210 = vrot.lane.b32.xlu0 %v4456, 64
        %v5211 = vpop.permute.xlu0 %5210
        %5212 = vrot.lane.b32.xlu0 %v4464, 64
        %v5213 = vpop.permute.xlu0 %5212
        %5214 = vrot.lane.b32.xlu0 %v4465, 64
        %v5215 = vpop.permute.xlu0 %5214
        %5216 = vrot.lane.b32.xlu0 %v4473, 64
        %v5217 = vpop.permute.xlu0 %5216
        %5218 = vrot.lane.b32.xlu0 %v4481, 64
        %v5219 = vpop.permute.xlu0 %5218
        %5220 = vrot.lane.b32.xlu0 %v4480, 64
        %v5221 = vpop.permute.xlu0 %5220
        %5222 = vrot.lane.b32.xlu0 %v4482, 64
        %v5223 = vpop.permute.xlu0 %5222
        %5224 = vrot.lane.b32.xlu0 %v4490, 64
        %v5225 = vpop.permute.xlu0 %5224
        %5226 = vrot.lane.b32.xlu0 %v4498, 64
        %v5227 = vpop.permute.xlu0 %5226
        %5228 = vrot.lane.b32.xlu0 %v4497, 64
        %v5229 = vpop.permute.xlu0 %5228
        %5230 = vrot.lane.b32.xlu0 %v4507, 64
        %v5231 = vpop.permute.xlu0 %5230
        %5232 = vrot.lane.b32.xlu0 %v4515, 64
        %v5233 = vpop.permute.xlu0 %5232
        %5234 = vrot.lane.b32.xlu0 %v4514, 64
        %v5235 = vpop.permute.xlu0 %5234
        %5236 = vrot.lane.b32.xlu0 %v4516, 64
        %v5237 = vpop.permute.xlu0 %5236
        %5238 = vrot.lane.b32.xlu0 %v4524, 64
        %v5239 = vpop.permute.xlu0 %5238
        %5240 = vrot.lane.b32.xlu0 %v4532, 64
        %v5241 = vpop.permute.xlu0 %5240
        %5242 = vrot.lane.b32.xlu0 %v4531, 64
        %v5243 = vpop.permute.xlu0 %5242
        %5244 = vrot.lane.b32.xlu0 %v4533, 64
        %v5245 = vpop.permute.xlu0 %5244
        %v5310 = vadd.f32 %v5054, %v5119
        %v5311 = vadd.f32 %v5055, %v5121
        %v5312 = vadd.f32 %v5056, %v5123
        %v5313 = vadd.f32 %v5057, %v5125
        %v5314 = vadd.f32 %v5058, %v5127
        %v5315 = vadd.f32 %v5059, %v5129
        %v5316 = vadd.f32 %v5060, %v5131
        %v5317 = vadd.f32 %v5061, %v5133
        %v5318 = vadd.f32 %v5062, %v5135
        %v5319 = vadd.f32 %v5063, %v5137
        %v5320 = vadd.f32 %v5064, %v5139
        %v5321 = vadd.f32 %v5065, %v5141
        %v5322 = vadd.f32 %v5066, %v5143
        %v5323 = vadd.f32 %v5067, %v5145
        %v5324 = vadd.f32 %v5068, %v5147
        %v5325 = vadd.f32 %v5069, %v5149
        %v5326 = vadd.f32 %v5070, %v5151
        %v5327 = vadd.f32 %v5071, %v5153
        %v5328 = vadd.f32 %v5072, %v5155
        %v5329 = vadd.f32 %v5073, %v5157
        %v5330 = vadd.f32 %v5074, %v5159
        %v5331 = vadd.f32 %v5075, %v5161
        %v5332 = vadd.f32 %v5076, %v5163
        %v5333 = vadd.f32 %v5077, %v5165
        %v5334 = vadd.f32 %v5078, %v5167
        %v5335 = vadd.f32 %v5079, %v5169
        %v5336 = vadd.f32 %v5080, %v5171
        %v5337 = vadd.f32 %v5081, %v5173
        %v5338 = vadd.f32 %v5082, %v5175
        %v5339 = vadd.f32 %v5083, %v5177
        %v5340 = vadd.f32 %v5084, %v5179
        %v5341 = vadd.f32 %v5085, %v5181
        %v5342 = vadd.f32 %v5086, %v5183
        %v5343 = vadd.f32 %v5087, %v5185
        %v5344 = vadd.f32 %v5088, %v5187
        %v5345 = vadd.f32 %v5089, %v5189
        %v5346 = vadd.f32 %v5090, %v5191
        %v5347 = vadd.f32 %v5091, %v5193
        %v5348 = vadd.f32 %v5092, %v5195
        %v5349 = vadd.f32 %v5093, %v5197
        %v5350 = vadd.f32 %v5094, %v5199
        %v5351 = vadd.f32 %v5095, %v5201
        %v5352 = vadd.f32 %v5096, %v5203
        %v5353 = vadd.f32 %v5097, %v5205
        %v5354 = vadd.f32 %v5098, %v5207
        %v5355 = vadd.f32 %v5099, %v5209
        %v5356 = vadd.f32 %v5100, %v5211
        %v5357 = vadd.f32 %v5101, %v5213
        %v5358 = vadd.f32 %v5102, %v5215
        %v5359 = vadd.f32 %v5103, %v5217
        %v5360 = vadd.f32 %v5104, %v5219
        %v5361 = vadd.f32 %v5105, %v5221
        %v5362 = vadd.f32 %v5106, %v5223
        %v5363 = vadd.f32 %v5107, %v5225
        %v5364 = vadd.f32 %v5108, %v5227
        %v5365 = vadd.f32 %v5109, %v5229
        %v5366 = vadd.f32 %v5110, %v5231
        %v5367 = vadd.f32 %v5111, %v5233
        %v5368 = vadd.f32 %v5112, %v5235
        %v5369 = vadd.f32 %v5113, %v5237
        %v5370 = vadd.f32 %v5114, %v5239
        %v5371 = vadd.f32 %v5115, %v5241
        %v5372 = vadd.f32 %v5116, %v5243
        %v5373 = vadd.f32 %v5117, %v5245
        %s5374 = scalar_lea.vmem [#allocation2], 24
        %v5375 = vld [vmem:[%s5374] sm:$0xf]
        %v5376 = vld [vmem:[%s5374 + $0x4] sm:$0xf]
        %v5377 = vld [vmem:[%s5374 + $0x8] sm:$0x1]
        %v5378 = vld [vmem:[%s5374 + $0xc] sm:$0xf]
        %v5379 = vld [vmem:[%s5374 + $0x10] sm:$0xf]
        %v5380 = vld [vmem:[%s5374 + $0x14] sm:$0x1]
        %v5381 = vld [vmem:[%s5374 + $0x18] sm:$0xf]
        %v5382 = vld [vmem:[%s5374 + $0x1c] sm:$0xf]
        %v5383 = vld [vmem:[%s5374 + $0x20] sm:$0x1]
        %v5384 = vld [vmem:[%s5374 + $0x24] sm:$0xf]
        %v5385 = vld [vmem:[%s5374 + $0x28] sm:$0xf]
        %v5386 = vld [vmem:[%s5374 + $0x2c] sm:$0x1]
        %v5387 = vld [vmem:[%s5374 + $0x30] sm:$0xf]
        %v5388 = vld [vmem:[%s5374 + $0x34] sm:$0xf]
        %v5389 = vld [vmem:[%s5374 + $0x38] sm:$0x1]
        %v5390 = vld [vmem:[%s5374 + $0x3c] sm:$0xf]
        %v5391 = vld [vmem:[%s5374 + $0x40] sm:$0xf]
        %v5392 = vld [vmem:[%s5374 + $0x44] sm:$0x1]
        %v5393 = vld [vmem:[%s5374 + $0x48] sm:$0xf]
        %v5394 = vld [vmem:[%s5374 + $0x4c] sm:$0xf]
        %v5395 = vld [vmem:[%s5374 + $0x50] sm:$0x1]
        %v5396 = vld [vmem:[%s5374 + $0x54] sm:$0xf]
        %v5397 = vld [vmem:[%s5374 + $0x58] sm:$0xf]
        %v5398 = vld [vmem:[%s5374 + $0x5c] sm:$0x1]
        %v5424 = vunpack.c.l.s4 1966171168
        %v5425 = vunpack.c.0.s8 %v5424
        %v5426 = vlaneseq
        %v5427 = vshrl.u32 %v5426, 7
        %v5428 = vsub.s32 %v5425, %v5427
        %v5429 = vrot.slane %v5375, %v5428
        %v5430 = vcombine.high %v5429, %v5429
        %v5432 = vunpack.c.l.s4 1966171168
        %v5433 = vunpack.c.0.s8 %v5432
        %v5434 = vlaneseq
        %v5435 = vshrl.u32 %v5434, 7
        %v5436 = vsub.s32 %v5433, %v5435
        %v5437 = vrot.slane %v5429, %v5436
        %v5439 = vunpack.c.l.s4 1966171168
        %v5440 = vunpack.c.0.s8 %v5439
        %v5441 = vlaneseq
        %v5442 = vshrl.u32 %v5441, 7
        %v5443 = vsub.s32 %v5440, %v5442
        %v5444 = vrot.slane %v5430, %v5443
        %v5445 = vcombine.high %v5437, %v5437
        %v5446 = vcombine.high %v5444, %v5444
        %v5448 = vunpack.c.l.s4 1966171168
        %v5449 = vunpack.c.0.s8 %v5448
        %v5450 = vlaneseq
        %v5451 = vshrl.u32 %v5450, 7
        %v5452 = vsub.s32 %v5449, %v5451
        %v5453 = vrot.slane %v5376, %v5452
        %v5454 = vcombine.high %v5453, %v5453
        %v5456 = vunpack.c.l.s4 1966171168
        %v5457 = vunpack.c.0.s8 %v5456
        %v5458 = vlaneseq
        %v5459 = vshrl.u32 %v5458, 7
        %v5460 = vsub.s32 %v5457, %v5459
        %v5461 = vrot.slane %v5453, %v5460
        %v5463 = vunpack.c.l.s4 1966171168
        %v5464 = vunpack.c.0.s8 %v5463
        %v5465 = vlaneseq
        %v5466 = vshrl.u32 %v5465, 7
        %v5467 = vsub.s32 %v5464, %v5466
        %v5468 = vrot.slane %v5454, %v5467
        %v5469 = vcombine.high %v5461, %v5461
        %v5470 = vcombine.high %v5468, %v5468
        %v5472 = vunpack.c.l.s4 1966171168
        %v5473 = vunpack.c.0.s8 %v5472
        %v5474 = vlaneseq
        %v5475 = vshrl.u32 %v5474, 7
        %v5476 = vsub.s32 %v5473, %v5475
        %v5477 = vrot.slane %v5377, %v5476
        %v5479 = vunpack.c.l.s4 1966171168
        %v5480 = vunpack.c.0.s8 %v5479
        %v5481 = vlaneseq
        %v5482 = vshrl.u32 %v5481, 7
        %v5483 = vsub.s32 %v5480, %v5482
        %v5484 = vrot.slane %v5477, %v5483
        %v5486 = vunpack.c.l.s4 1966171168
        %v5487 = vunpack.c.0.s8 %v5486
        %v5488 = vlaneseq
        %v5489 = vshrl.u32 %v5488, 7
        %v5490 = vsub.s32 %v5487, %v5489
        %v5491 = vrot.slane %v5378, %v5490
        %v5492 = vcombine.high %v5491, %v5491
        %v5494 = vunpack.c.l.s4 1966171168
        %v5495 = vunpack.c.0.s8 %v5494
        %v5496 = vlaneseq
        %v5497 = vshrl.u32 %v5496, 7
        %v5498 = vsub.s32 %v5495, %v5497
        %v5499 = vrot.slane %v5491, %v5498
        %v5501 = vunpack.c.l.s4 1966171168
        %v5502 = vunpack.c.0.s8 %v5501
        %v5503 = vlaneseq
        %v5504 = vshrl.u32 %v5503, 7
        %v5505 = vsub.s32 %v5502, %v5504
        %v5506 = vrot.slane %v5492, %v5505
        %v5507 = vcombine.high %v5499, %v5499
        %v5508 = vcombine.high %v5506, %v5506
        %v5510 = vunpack.c.l.s4 1966171168
        %v5511 = vunpack.c.0.s8 %v5510
        %v5512 = vlaneseq
        %v5513 = vshrl.u32 %v5512, 7
        %v5514 = vsub.s32 %v5511, %v5513
        %v5515 = vrot.slane %v5379, %v5514
        %v5516 = vcombine.high %v5515, %v5515
        %v5518 = vunpack.c.l.s4 1966171168
        %v5519 = vunpack.c.0.s8 %v5518
        %v5520 = vlaneseq
        %v5521 = vshrl.u32 %v5520, 7
        %v5522 = vsub.s32 %v5519, %v5521
        %v5523 = vrot.slane %v5515, %v5522
        %v5525 = vunpack.c.l.s4 1966171168
        %v5526 = vunpack.c.0.s8 %v5525
        %v5527 = vlaneseq
        %v5528 = vshrl.u32 %v5527, 7
        %v5529 = vsub.s32 %v5526, %v5528
        %v5530 = vrot.slane %v5516, %v5529
        %v5531 = vcombine.high %v5523, %v5523
        %v5532 = vcombine.high %v5530, %v5530
        %v5534 = vunpack.c.l.s4 1966171168
        %v5535 = vunpack.c.0.s8 %v5534
        %v5536 = vlaneseq
        %v5537 = vshrl.u32 %v5536, 7
        %v5538 = vsub.s32 %v5535, %v5537
        %v5539 = vrot.slane %v5380, %v5538
        %v5541 = vunpack.c.l.s4 1966171168
        %v5542 = vunpack.c.0.s8 %v5541
        %v5543 = vlaneseq
        %v5544 = vshrl.u32 %v5543, 7
        %v5545 = vsub.s32 %v5542, %v5544
        %v5546 = vrot.slane %v5539, %v5545
        %v5548 = vunpack.c.l.s4 1966171168
        %v5549 = vunpack.c.0.s8 %v5548
        %v5550 = vlaneseq
        %v5551 = vshrl.u32 %v5550, 7
        %v5552 = vsub.s32 %v5549, %v5551
        %v5553 = vrot.slane %v5381, %v5552
        %v5554 = vcombine.high %v5553, %v5553
        %v5556 = vunpack.c.l.s4 1966171168
        %v5557 = vunpack.c.0.s8 %v5556
        %v5558 = vlaneseq
        %v5559 = vshrl.u32 %v5558, 7
        %v5560 = vsub.s32 %v5557, %v5559
        %v5561 = vrot.slane %v5553, %v5560
        %v5563 = vunpack.c.l.s4 1966171168
        %v5564 = vunpack.c.0.s8 %v5563
        %v5565 = vlaneseq
        %v5566 = vshrl.u32 %v5565, 7
        %v5567 = vsub.s32 %v5564, %v5566
        %v5568 = vrot.slane %v5554, %v5567
        %v5569 = vcombine.high %v5561, %v5561
        %v5570 = vcombine.high %v5568, %v5568
        %v5572 = vunpack.c.l.s4 1966171168
        %v5573 = vunpack.c.0.s8 %v5572
        %v5574 = vlaneseq
        %v5575 = vshrl.u32 %v5574, 7
        %v5576 = vsub.s32 %v5573, %v5575
        %v5577 = vrot.slane %v5382, %v5576
        %v5578 = vcombine.high %v5577, %v5577
        %v5580 = vunpack.c.l.s4 1966171168
        %v5581 = vunpack.c.0.s8 %v5580
        %v5582 = vlaneseq
        %v5583 = vshrl.u32 %v5582, 7
        %v5584 = vsub.s32 %v5581, %v5583
        %v5585 = vrot.slane %v5577, %v5584
        %v5587 = vunpack.c.l.s4 1966171168
        %v5588 = vunpack.c.0.s8 %v5587
        %v5589 = vlaneseq
        %v5590 = vshrl.u32 %v5589, 7
        %v5591 = vsub.s32 %v5588, %v5590
        %v5592 = vrot.slane %v5578, %v5591
        %v5593 = vcombine.high %v5585, %v5585
        %v5594 = vcombine.high %v5592, %v5592
        %v5596 = vunpack.c.l.s4 1966171168
        %v5597 = vunpack.c.0.s8 %v5596
        %v5598 = vlaneseq
        %v5599 = vshrl.u32 %v5598, 7
        %v5600 = vsub.s32 %v5597, %v5599
        %v5601 = vrot.slane %v5383, %v5600
        %v5603 = vunpack.c.l.s4 1966171168
        %v5604 = vunpack.c.0.s8 %v5603
        %v5605 = vlaneseq
        %v5606 = vshrl.u32 %v5605, 7
        %v5607 = vsub.s32 %v5604, %v5606
        %v5608 = vrot.slane %v5601, %v5607
        %v5610 = vunpack.c.l.s4 1966171168
        %v5611 = vunpack.c.0.s8 %v5610
        %v5612 = vlaneseq
        %v5613 = vshrl.u32 %v5612, 7
        %v5614 = vsub.s32 %v5611, %v5613
        %v5615 = vrot.slane %v5384, %v5614
        %v5616 = vcombine.high %v5615, %v5615
        %v5618 = vunpack.c.l.s4 1966171168
        %v5619 = vunpack.c.0.s8 %v5618
        %v5620 = vlaneseq
        %v5621 = vshrl.u32 %v5620, 7
        %v5622 = vsub.s32 %v5619, %v5621
        %v5623 = vrot.slane %v5615, %v5622
        %v5625 = vunpack.c.l.s4 1966171168
        %v5626 = vunpack.c.0.s8 %v5625
        %v5627 = vlaneseq
        %v5628 = vshrl.u32 %v5627, 7
        %v5629 = vsub.s32 %v5626, %v5628
        %v5630 = vrot.slane %v5616, %v5629
        %v5631 = vcombine.high %v5623, %v5623
        %v5632 = vcombine.high %v5630, %v5630
        %v5634 = vunpack.c.l.s4 1966171168
        %v5635 = vunpack.c.0.s8 %v5634
        %v5636 = vlaneseq
        %v5637 = vshrl.u32 %v5636, 7
        %v5638 = vsub.s32 %v5635, %v5637
        %v5639 = vrot.slane %v5385, %v5638
        %v5640 = vcombine.high %v5639, %v5639
        %v5642 = vunpack.c.l.s4 1966171168
        %v5643 = vunpack.c.0.s8 %v5642
        %v5644 = vlaneseq
        %v5645 = vshrl.u32 %v5644, 7
        %v5646 = vsub.s32 %v5643, %v5645
        %v5647 = vrot.slane %v5639, %v5646
        %v5649 = vunpack.c.l.s4 1966171168
        %v5650 = vunpack.c.0.s8 %v5649
        %v5651 = vlaneseq
        %v5652 = vshrl.u32 %v5651, 7
        %v5653 = vsub.s32 %v5650, %v5652
        %v5654 = vrot.slane %v5640, %v5653
        %v5655 = vcombine.high %v5647, %v5647
        %v5656 = vcombine.high %v5654, %v5654
        %v5658 = vunpack.c.l.s4 1966171168
        %v5659 = vunpack.c.0.s8 %v5658
        %v5660 = vlaneseq
        %v5661 = vshrl.u32 %v5660, 7
        %v5662 = vsub.s32 %v5659, %v5661
        %v5663 = vrot.slane %v5386, %v5662
        %v5665 = vunpack.c.l.s4 1966171168
        %v5666 = vunpack.c.0.s8 %v5665
        %v5667 = vlaneseq
        %v5668 = vshrl.u32 %v5667, 7
        %v5669 = vsub.s32 %v5666, %v5668
        %v5670 = vrot.slane %v5663, %v5669
        %v5672 = vunpack.c.l.s4 1966171168
        %v5673 = vunpack.c.0.s8 %v5672
        %v5674 = vlaneseq
        %v5675 = vshrl.u32 %v5674, 7
        %v5676 = vsub.s32 %v5673, %v5675
        %v5677 = vrot.slane %v5387, %v5676
        %v5678 = vcombine.high %v5677, %v5677
        %v5680 = vunpack.c.l.s4 1966171168
        %v5681 = vunpack.c.0.s8 %v5680
        %v5682 = vlaneseq
        %v5683 = vshrl.u32 %v5682, 7
        %v5684 = vsub.s32 %v5681, %v5683
        %v5685 = vrot.slane %v5677, %v5684
        %v5687 = vunpack.c.l.s4 1966171168
        %v5688 = vunpack.c.0.s8 %v5687
        %v5689 = vlaneseq
        %v5690 = vshrl.u32 %v5689, 7
        %v5691 = vsub.s32 %v5688, %v5690
        %v5692 = vrot.slane %v5678, %v5691
        %v5693 = vcombine.high %v5685, %v5685
        %v5694 = vcombine.high %v5692, %v5692
        %v5696 = vunpack.c.l.s4 1966171168
        %v5697 = vunpack.c.0.s8 %v5696
        %v5698 = vlaneseq
        %v5699 = vshrl.u32 %v5698, 7
        %v5700 = vsub.s32 %v5697, %v5699
        %v5701 = vrot.slane %v5388, %v5700
        %v5702 = vcombine.high %v5701, %v5701
        %v5704 = vunpack.c.l.s4 1966171168
        %v5705 = vunpack.c.0.s8 %v5704
        %v5706 = vlaneseq
        %v5707 = vshrl.u32 %v5706, 7
        %v5708 = vsub.s32 %v5705, %v5707
        %v5709 = vrot.slane %v5701, %v5708
        %v5711 = vunpack.c.l.s4 1966171168
        %v5712 = vunpack.c.0.s8 %v5711
        %v5713 = vlaneseq
        %v5714 = vshrl.u32 %v5713, 7
        %v5715 = vsub.s32 %v5712, %v5714
        %v5716 = vrot.slane %v5702, %v5715
        %v5717 = vcombine.high %v5709, %v5709
        %v5718 = vcombine.high %v5716, %v5716
        %v5720 = vunpack.c.l.s4 1966171168
        %v5721 = vunpack.c.0.s8 %v5720
        %v5722 = vlaneseq
        %v5723 = vshrl.u32 %v5722, 7
        %v5724 = vsub.s32 %v5721, %v5723
        %v5725 = vrot.slane %v5389, %v5724
        %v5727 = vunpack.c.l.s4 1966171168
        %v5728 = vunpack.c.0.s8 %v5727
        %v5729 = vlaneseq
        %v5730 = vshrl.u32 %v5729, 7
        %v5731 = vsub.s32 %v5728, %v5730
        %v5732 = vrot.slane %v5725, %v5731
        %v5734 = vunpack.c.l.s4 1966171168
        %v5735 = vunpack.c.0.s8 %v5734
        %v5736 = vlaneseq
        %v5737 = vshrl.u32 %v5736, 7
        %v5738 = vsub.s32 %v5735, %v5737
        %v5739 = vrot.slane %v5390, %v5738
        %v5740 = vcombine.high %v5739, %v5739
        %v5742 = vunpack.c.l.s4 1966171168
        %v5743 = vunpack.c.0.s8 %v5742
        %v5744 = vlaneseq
        %v5745 = vshrl.u32 %v5744, 7
        %v5746 = vsub.s32 %v5743, %v5745
        %v5747 = vrot.slane %v5739, %v5746
        %v5749 = vunpack.c.l.s4 1966171168
        %v5750 = vunpack.c.0.s8 %v5749
        %v5751 = vlaneseq
        %v5752 = vshrl.u32 %v5751, 7
        %v5753 = vsub.s32 %v5750, %v5752
        %v5754 = vrot.slane %v5740, %v5753
        %v5755 = vcombine.high %v5747, %v5747
        %v5756 = vcombine.high %v5754, %v5754
        %v5758 = vunpack.c.l.s4 1966171168
        %v5759 = vunpack.c.0.s8 %v5758
        %v5760 = vlaneseq
        %v5761 = vshrl.u32 %v5760, 7
        %v5762 = vsub.s32 %v5759, %v5761
        %v5763 = vrot.slane %v5391, %v5762
        %v5764 = vcombine.high %v5763, %v5763
        %v5766 = vunpack.c.l.s4 1966171168
        %v5767 = vunpack.c.0.s8 %v5766
        %v5768 = vlaneseq
        %v5769 = vshrl.u32 %v5768, 7
        %v5770 = vsub.s32 %v5767, %v5769
        %v5771 = vrot.slane %v5763, %v5770
        %v5773 = vunpack.c.l.s4 1966171168
        %v5774 = vunpack.c.0.s8 %v5773
        %v5775 = vlaneseq
        %v5776 = vshrl.u32 %v5775, 7
        %v5777 = vsub.s32 %v5774, %v5776
        %v5778 = vrot.slane %v5764, %v5777
        %v5779 = vcombine.high %v5771, %v5771
        %v5780 = vcombine.high %v5778, %v5778
        %v5782 = vunpack.c.l.s4 1966171168
        %v5783 = vunpack.c.0.s8 %v5782
        %v5784 = vlaneseq
        %v5785 = vshrl.u32 %v5784, 7
        %v5786 = vsub.s32 %v5783, %v5785
        %v5787 = vrot.slane %v5392, %v5786
        %v5789 = vunpack.c.l.s4 1966171168
        %v5790 = vunpack.c.0.s8 %v5789
        %v5791 = vlaneseq
        %v5792 = vshrl.u32 %v5791, 7
        %v5793 = vsub.s32 %v5790, %v5792
        %v5794 = vrot.slane %v5787, %v5793
        %v5796 = vunpack.c.l.s4 1966171168
        %v5797 = vunpack.c.0.s8 %v5796
        %v5798 = vlaneseq
        %v5799 = vshrl.u32 %v5798, 7
        %v5800 = vsub.s32 %v5797, %v5799
        %v5801 = vrot.slane %v5393, %v5800
        %v5802 = vcombine.high %v5801, %v5801
        %v5804 = vunpack.c.l.s4 1966171168
        %v5805 = vunpack.c.0.s8 %v5804
        %v5806 = vlaneseq
        %v5807 = vshrl.u32 %v5806, 7
        %v5808 = vsub.s32 %v5805, %v5807
        %v5809 = vrot.slane %v5801, %v5808
        %v5811 = vunpack.c.l.s4 1966171168
        %v5812 = vunpack.c.0.s8 %v5811
        %v5813 = vlaneseq
        %v5814 = vshrl.u32 %v5813, 7
        %v5815 = vsub.s32 %v5812, %v5814
        %v5816 = vrot.slane %v5802, %v5815
        %v5817 = vcombine.high %v5809, %v5809
        %v5818 = vcombine.high %v5816, %v5816
        %v5820 = vunpack.c.l.s4 1966171168
        %v5821 = vunpack.c.0.s8 %v5820
        %v5822 = vlaneseq
        %v5823 = vshrl.u32 %v5822, 7
        %v5824 = vsub.s32 %v5821, %v5823
        %v5825 = vrot.slane %v5394, %v5824
        %v5826 = vcombine.high %v5825, %v5825
        %v5828 = vunpack.c.l.s4 1966171168
        %v5829 = vunpack.c.0.s8 %v5828
        %v5830 = vlaneseq
        %v5831 = vshrl.u32 %v5830, 7
        %v5832 = vsub.s32 %v5829, %v5831
        %v5833 = vrot.slane %v5825, %v5832
        %v5835 = vunpack.c.l.s4 1966171168
        %v5836 = vunpack.c.0.s8 %v5835
        %v5837 = vlaneseq
        %v5838 = vshrl.u32 %v5837, 7
        %v5839 = vsub.s32 %v5836, %v5838
        %v5840 = vrot.slane %v5826, %v5839
        %v5841 = vcombine.high %v5833, %v5833
        %v5842 = vcombine.high %v5840, %v5840
        %v5844 = vunpack.c.l.s4 1966171168
        %v5845 = vunpack.c.0.s8 %v5844
        %v5846 = vlaneseq
        %v5847 = vshrl.u32 %v5846, 7
        %v5848 = vsub.s32 %v5845, %v5847
        %v5849 = vrot.slane %v5395, %v5848
        %v5851 = vunpack.c.l.s4 1966171168
        %v5852 = vunpack.c.0.s8 %v5851
        %v5853 = vlaneseq
        %v5854 = vshrl.u32 %v5853, 7
        %v5855 = vsub.s32 %v5852, %v5854
        %v5856 = vrot.slane %v5849, %v5855
        %v5858 = vunpack.c.l.s4 1966171168
        %v5859 = vunpack.c.0.s8 %v5858
        %v5860 = vlaneseq
        %v5861 = vshrl.u32 %v5860, 7
        %v5862 = vsub.s32 %v5859, %v5861
        %v5863 = vrot.slane %v5396, %v5862
        %v5864 = vcombine.high %v5863, %v5863
        %v5866 = vunpack.c.l.s4 1966171168
        %v5867 = vunpack.c.0.s8 %v5866
        %v5868 = vlaneseq
        %v5869 = vshrl.u32 %v5868, 7
        %v5870 = vsub.s32 %v5867, %v5869
        %v5871 = vrot.slane %v5863, %v5870
        %v5873 = vunpack.c.l.s4 1966171168
        %v5874 = vunpack.c.0.s8 %v5873
        %v5875 = vlaneseq
        %v5876 = vshrl.u32 %v5875, 7
        %v5877 = vsub.s32 %v5874, %v5876
        %v5878 = vrot.slane %v5864, %v5877
        %v5879 = vcombine.high %v5871, %v5871
        %v5880 = vcombine.high %v5878, %v5878
        %v5882 = vunpack.c.l.s4 1966171168
        %v5883 = vunpack.c.0.s8 %v5882
        %v5884 = vlaneseq
        %v5885 = vshrl.u32 %v5884, 7
        %v5886 = vsub.s32 %v5883, %v5885
        %v5887 = vrot.slane %v5397, %v5886
        %v5888 = vcombine.high %v5887, %v5887
        %v5890 = vunpack.c.l.s4 1966171168
        %v5891 = vunpack.c.0.s8 %v5890
        %v5892 = vlaneseq
        %v5893 = vshrl.u32 %v5892, 7
        %v5894 = vsub.s32 %v5891, %v5893
        %v5895 = vrot.slane %v5887, %v5894
        %v5897 = vunpack.c.l.s4 1966171168
        %v5898 = vunpack.c.0.s8 %v5897
        %v5899 = vlaneseq
        %v5900 = vshrl.u32 %v5899, 7
        %v5901 = vsub.s32 %v5898, %v5900
        %v5902 = vrot.slane %v5888, %v5901
        %v5903 = vcombine.high %v5895, %v5895
        %v5904 = vcombine.high %v5902, %v5902
        %v5906 = vunpack.c.l.s4 1966171168
        %v5907 = vunpack.c.0.s8 %v5906
        %v5908 = vlaneseq
        %v5909 = vshrl.u32 %v5908, 7
        %v5910 = vsub.s32 %v5907, %v5909
        %v5911 = vrot.slane %v5398, %v5910
        %v5913 = vunpack.c.l.s4 1966171168
        %v5914 = vunpack.c.0.s8 %v5913
        %v5915 = vlaneseq
        %v5916 = vshrl.u32 %v5915, 7
        %v5917 = vsub.s32 %v5914, %v5916
        %v5918 = vrot.slane %v5911, %v5917
        %s5919 = scalar_lea.vmem [#allocation9], 32
        %v5920 = vld [vmem:[%s5919] sm:$0xf]
        %v5921 = vld [vmem:[%s5919 + $0x4] sm:$0xf]
        %v5922 = vld [vmem:[%s5919 + $0x8] sm:$0xf]
        %v5923 = vld [vmem:[%s5919 + $0xc] sm:$0xf]
        %v5924 = vcombine.low %v5437, %v5444
        %v5925 = vcombine.low %v5445, %v5446
        %v5926 = vcombine.low %v5461, %v5468
        %v5927 = vcombine.low %v5469, %v5470
        %v5929 = vunpack.c.l.s4 1966171168
        %v5930 = vunpack.c.0.s8 %v5929
        %v5931 = vlaneseq
        %v5932 = vshrl.u32 %v5931, 7
        %v5933 = vsub.s32 %v5930, %v5932
        %v5934 = vrot.slane %v5924, %v5933
        %v5936 = vunpack.c.l.s4 1966171168
        %v5937 = vunpack.c.0.s8 %v5936
        %v5938 = vlaneseq
        %v5939 = vshrl.u32 %v5938, 7
        %v5940 = vsub.s32 %v5937, %v5939
        %v5941 = vrot.slane %v5925, %v5940
        %v5943 = vunpack.c.l.s4 1966171168
        %v5944 = vunpack.c.0.s8 %v5943
        %v5945 = vlaneseq
        %v5946 = vshrl.u32 %v5945, 7
        %v5947 = vsub.s32 %v5944, %v5946
        %v5948 = vrot.slane %v5926, %v5947
        %v5950 = vunpack.c.l.s4 1966171168
        %v5951 = vunpack.c.0.s8 %v5950
        %v5952 = vlaneseq
        %v5953 = vshrl.u32 %v5952, 7
        %v5954 = vsub.s32 %v5951, %v5953
        %v5955 = vrot.slane %v5927, %v5954
        %v5956 = vcombine.low %v5934, %v5941
        %v5957 = vcombine.low %v5948, %v5955
        %v5959 = vunpack.c.l.s4 1966171168
        %v5960 = vunpack.c.0.s8 %v5959
        %v5961 = vlaneseq
        %v5962 = vshrl.u32 %v5961, 7
        %v5963 = vsub.s32 %v5960, %v5962
        %v5964 = vrot.slane %v5956, %v5963
        %v5966 = vunpack.c.l.s4 1966171168
        %v5967 = vunpack.c.0.s8 %v5966
        %v5968 = vlaneseq
        %v5969 = vshrl.u32 %v5968, 7
        %v5970 = vsub.s32 %v5967, %v5969
        %v5971 = vrot.slane %v5957, %v5970
        %v5972 = vcombine.low %v5964, %v5971
        %v5973 = vcombine.low %v5484, %v5499
        %v5974 = vcombine.low %v5506, %v5507
        %v5975 = vcombine.low %v5508, %v5523
        %v5976 = vcombine.low %v5530, %v5531
        %v5978 = vunpack.c.l.s4 1966171168
        %v5979 = vunpack.c.0.s8 %v5978
        %v5980 = vlaneseq
        %v5981 = vshrl.u32 %v5980, 7
        %v5982 = vsub.s32 %v5979, %v5981
        %v5983 = vrot.slane %v5973, %v5982
        %v5985 = vunpack.c.l.s4 1966171168
        %v5986 = vunpack.c.0.s8 %v5985
        %v5987 = vlaneseq
        %v5988 = vshrl.u32 %v5987, 7
        %v5989 = vsub.s32 %v5986, %v5988
        %v5990 = vrot.slane %v5974, %v5989
        %v5992 = vunpack.c.l.s4 1966171168
        %v5993 = vunpack.c.0.s8 %v5992
        %v5994 = vlaneseq
        %v5995 = vshrl.u32 %v5994, 7
        %v5996 = vsub.s32 %v5993, %v5995
        %v5997 = vrot.slane %v5975, %v5996
        %v5999 = vunpack.c.l.s4 1966171168
        %v6000 = vunpack.c.0.s8 %v5999
        %v6001 = vlaneseq
        %v6002 = vshrl.u32 %v6001, 7
        %v6003 = vsub.s32 %v6000, %v6002
        %v6004 = vrot.slane %v5976, %v6003
        %v6005 = vcombine.low %v5983, %v5990
        %v6006 = vcombine.low %v5997, %v6004
        %v6008 = vunpack.c.l.s4 1966171168
        %v6009 = vunpack.c.0.s8 %v6008
        %v6010 = vlaneseq
        %v6011 = vshrl.u32 %v6010, 7
        %v6012 = vsub.s32 %v6009, %v6011
        %v6013 = vrot.slane %v6005, %v6012
        %v6015 = vunpack.c.l.s4 1966171168
        %v6016 = vunpack.c.0.s8 %v6015
        %v6017 = vlaneseq
        %v6018 = vshrl.u32 %v6017, 7
        %v6019 = vsub.s32 %v6016, %v6018
        %v6020 = vrot.slane %v6006, %v6019
        %v6021 = vcombine.low %v6013, %v6020
        %v6022 = vcombine.low %v5532, %v5546
        %v6023 = vcombine.low %v5561, %v5568
        %v6024 = vcombine.low %v5569, %v5570
        %v6025 = vcombine.low %v5585, %v5592
        %v6027 = vunpack.c.l.s4 1966171168
        %v6028 = vunpack.c.0.s8 %v6027
        %v6029 = vlaneseq
        %v6030 = vshrl.u32 %v6029, 7
        %v6031 = vsub.s32 %v6028, %v6030
        %v6032 = vrot.slane %v6022, %v6031
        %v6034 = vunpack.c.l.s4 1966171168
        %v6035 = vunpack.c.0.s8 %v6034
        %v6036 = vlaneseq
        %v6037 = vshrl.u32 %v6036, 7
        %v6038 = vsub.s32 %v6035, %v6037
        %v6039 = vrot.slane %v6023, %v6038
        %v6041 = vunpack.c.l.s4 1966171168
        %v6042 = vunpack.c.0.s8 %v6041
        %v6043 = vlaneseq
        %v6044 = vshrl.u32 %v6043, 7
        %v6045 = vsub.s32 %v6042, %v6044
        %v6046 = vrot.slane %v6024, %v6045
        %v6048 = vunpack.c.l.s4 1966171168
        %v6049 = vunpack.c.0.s8 %v6048
        %v6050 = vlaneseq
        %v6051 = vshrl.u32 %v6050, 7
        %v6052 = vsub.s32 %v6049, %v6051
        %v6053 = vrot.slane %v6025, %v6052
        %v6054 = vcombine.low %v6032, %v6039
        %v6055 = vcombine.low %v6046, %v6053
        %v6057 = vunpack.c.l.s4 1966171168
        %v6058 = vunpack.c.0.s8 %v6057
        %v6059 = vlaneseq
        %v6060 = vshrl.u32 %v6059, 7
        %v6061 = vsub.s32 %v6058, %v6060
        %v6062 = vrot.slane %v6054, %v6061
        %v6064 = vunpack.c.l.s4 1966171168
        %v6065 = vunpack.c.0.s8 %v6064
        %v6066 = vlaneseq
        %v6067 = vshrl.u32 %v6066, 7
        %v6068 = vsub.s32 %v6065, %v6067
        %v6069 = vrot.slane %v6055, %v6068
        %v6070 = vcombine.low %v6062, %v6069
        %v6071 = vcombine.low %v5593, %v5594
        %v6072 = vcombine.low %v5608, %v5623
        %v6073 = vcombine.low %v5630, %v5631
        %v6074 = vcombine.low %v5632, %v5647
        %v6076 = vunpack.c.l.s4 1966171168
        %v6077 = vunpack.c.0.s8 %v6076
        %v6078 = vlaneseq
        %v6079 = vshrl.u32 %v6078, 7
        %v6080 = vsub.s32 %v6077, %v6079
        %v6081 = vrot.slane %v6071, %v6080
        %v6083 = vunpack.c.l.s4 1966171168
        %v6084 = vunpack.c.0.s8 %v6083
        %v6085 = vlaneseq
        %v6086 = vshrl.u32 %v6085, 7
        %v6087 = vsub.s32 %v6084, %v6086
        %v6088 = vrot.slane %v6072, %v6087
        %v6090 = vunpack.c.l.s4 1966171168
        %v6091 = vunpack.c.0.s8 %v6090
        %v6092 = vlaneseq
        %v6093 = vshrl.u32 %v6092, 7
        %v6094 = vsub.s32 %v6091, %v6093
        %v6095 = vrot.slane %v6073, %v6094
        %v6097 = vunpack.c.l.s4 1966171168
        %v6098 = vunpack.c.0.s8 %v6097
        %v6099 = vlaneseq
        %v6100 = vshrl.u32 %v6099, 7
        %v6101 = vsub.s32 %v6098, %v6100
        %v6102 = vrot.slane %v6074, %v6101
        %v6103 = vcombine.low %v6081, %v6088
        %v6104 = vcombine.low %v6095, %v6102
        %v6106 = vunpack.c.l.s4 1966171168
        %v6107 = vunpack.c.0.s8 %v6106
        %v6108 = vlaneseq
        %v6109 = vshrl.u32 %v6108, 7
        %v6110 = vsub.s32 %v6107, %v6109
        %v6111 = vrot.slane %v6103, %v6110
        %v6113 = vunpack.c.l.s4 1966171168
        %v6114 = vunpack.c.0.s8 %v6113
        %v6115 = vlaneseq
        %v6116 = vshrl.u32 %v6115, 7
        %v6117 = vsub.s32 %v6114, %v6116
        %v6118 = vrot.slane %v6104, %v6117
        %v6119 = vcombine.low %v6111, %v6118
        %v6120 = vcombine.low %v5654, %v5655
        %v6121 = vcombine.low %v5656, %v5670
        %v6122 = vcombine.low %v5685, %v5692
        %v6123 = vcombine.low %v5693, %v5694
        %v6125 = vunpack.c.l.s4 1966171168
        %v6126 = vunpack.c.0.s8 %v6125
        %v6127 = vlaneseq
        %v6128 = vshrl.u32 %v6127, 7
        %v6129 = vsub.s32 %v6126, %v6128
        %v6130 = vrot.slane %v6120, %v6129
        %v6132 = vunpack.c.l.s4 1966171168
        %v6133 = vunpack.c.0.s8 %v6132
        %v6134 = vlaneseq
        %v6135 = vshrl.u32 %v6134, 7
        %v6136 = vsub.s32 %v6133, %v6135
        %v6137 = vrot.slane %v6121, %v6136
        %v6139 = vunpack.c.l.s4 1966171168
        %v6140 = vunpack.c.0.s8 %v6139
        %v6141 = vlaneseq
        %v6142 = vshrl.u32 %v6141, 7
        %v6143 = vsub.s32 %v6140, %v6142
        %v6144 = vrot.slane %v6122, %v6143
        %v6146 = vunpack.c.l.s4 1966171168
        %v6147 = vunpack.c.0.s8 %v6146
        %v6148 = vlaneseq
        %v6149 = vshrl.u32 %v6148, 7
        %v6150 = vsub.s32 %v6147, %v6149
        %v6151 = vrot.slane %v6123, %v6150
        %v6152 = vcombine.low %v6130, %v6137
        %v6153 = vcombine.low %v6144, %v6151
        %v6155 = vunpack.c.l.s4 1966171168
        %v6156 = vunpack.c.0.s8 %v6155
        %v6157 = vlaneseq
        %v6158 = vshrl.u32 %v6157, 7
        %v6159 = vsub.s32 %v6156, %v6158
        %v6160 = vrot.slane %v6152, %v6159
        %v6162 = vunpack.c.l.s4 1966171168
        %v6163 = vunpack.c.0.s8 %v6162
        %v6164 = vlaneseq
        %v6165 = vshrl.u32 %v6164, 7
        %v6166 = vsub.s32 %v6163, %v6165
        %v6167 = vrot.slane %v6153, %v6166
        %v6168 = vcombine.low %v6160, %v6167
        %v6169 = vcombine.low %v5709, %v5716
        %v6170 = vcombine.low %v5717, %v5718
        %v6171 = vcombine.low %v5732, %v5747
        %v6172 = vcombine.low %v5754, %v5755
        %v6174 = vunpack.c.l.s4 1966171168
        %v6175 = vunpack.c.0.s8 %v6174
        %v6176 = vlaneseq
        %v6177 = vshrl.u32 %v6176, 7
        %v6178 = vsub.s32 %v6175, %v6177
        %v6179 = vrot.slane %v6169, %v6178
        %v6181 = vunpack.c.l.s4 1966171168
        %v6182 = vunpack.c.0.s8 %v6181
        %v6183 = vlaneseq
        %v6184 = vshrl.u32 %v6183, 7
        %v6185 = vsub.s32 %v6182, %v6184
        %v6186 = vrot.slane %v6170, %v6185
        %v6188 = vunpack.c.l.s4 1966171168
        %v6189 = vunpack.c.0.s8 %v6188
        %v6190 = vlaneseq
        %v6191 = vshrl.u32 %v6190, 7
        %v6192 = vsub.s32 %v6189, %v6191
        %v6193 = vrot.slane %v6171, %v6192
        %v6195 = vunpack.c.l.s4 1966171168
        %v6196 = vunpack.c.0.s8 %v6195
        %v6197 = vlaneseq
        %v6198 = vshrl.u32 %v6197, 7
        %v6199 = vsub.s32 %v6196, %v6198
        %v6200 = vrot.slane %v6172, %v6199
        %v6201 = vcombine.low %v6179, %v6186
        %v6202 = vcombine.low %v6193, %v6200
        %v6204 = vunpack.c.l.s4 1966171168
        %v6205 = vunpack.c.0.s8 %v6204
        %v6206 = vlaneseq
        %v6207 = vshrl.u32 %v6206, 7
        %v6208 = vsub.s32 %v6205, %v6207
        %v6209 = vrot.slane %v6201, %v6208
        %v6211 = vunpack.c.l.s4 1966171168
        %v6212 = vunpack.c.0.s8 %v6211
        %v6213 = vlaneseq
        %v6214 = vshrl.u32 %v6213, 7
        %v6215 = vsub.s32 %v6212, %v6214
        %v6216 = vrot.slane %v6202, %v6215
        %v6217 = vcombine.low %v6209, %v6216
        %v6218 = vcombine.low %v5756, %v5771
        %v6219 = vcombine.low %v5778, %v5779
        %v6220 = vcombine.low %v5780, %v5794
        %v6221 = vcombine.low %v5809, %v5816
        %v6223 = vunpack.c.l.s4 1966171168
        %v6224 = vunpack.c.0.s8 %v6223
        %v6225 = vlaneseq
        %v6226 = vshrl.u32 %v6225, 7
        %v6227 = vsub.s32 %v6224, %v6226
        %v6228 = vrot.slane %v6218, %v6227
        %v6230 = vunpack.c.l.s4 1966171168
        %v6231 = vunpack.c.0.s8 %v6230
        %v6232 = vlaneseq
        %v6233 = vshrl.u32 %v6232, 7
        %v6234 = vsub.s32 %v6231, %v6233
        %v6235 = vrot.slane %v6219, %v6234
        %v6237 = vunpack.c.l.s4 1966171168
        %v6238 = vunpack.c.0.s8 %v6237
        %v6239 = vlaneseq
        %v6240 = vshrl.u32 %v6239, 7
        %v6241 = vsub.s32 %v6238, %v6240
        %v6242 = vrot.slane %v6220, %v6241
        %v6244 = vunpack.c.l.s4 1966171168
        %v6245 = vunpack.c.0.s8 %v6244
        %v6246 = vlaneseq
        %v6247 = vshrl.u32 %v6246, 7
        %v6248 = vsub.s32 %v6245, %v6247
        %v6249 = vrot.slane %v6221, %v6248
        %v6250 = vcombine.low %v6228, %v6235
        %v6251 = vcombine.low %v6242, %v6249
        %v6253 = vunpack.c.l.s4 1966171168
        %v6254 = vunpack.c.0.s8 %v6253
        %v6255 = vlaneseq
        %v6256 = vshrl.u32 %v6255, 7
        %v6257 = vsub.s32 %v6254, %v6256
        %v6258 = vrot.slane %v6250, %v6257
        %v6260 = vunpack.c.l.s4 1966171168
        %v6261 = vunpack.c.0.s8 %v6260
        %v6262 = vlaneseq
        %v6263 = vshrl.u32 %v6262, 7
        %v6264 = vsub.s32 %v6261, %v6263
        %v6265 = vrot.slane %v6251, %v6264
        %v6266 = vcombine.low %v6258, %v6265
        %v6267 = vcombine.low %v5817, %v5818
        %v6268 = vcombine.low %v5833, %v5840
        %v6269 = vcombine.low %v5841, %v5842
        %v6270 = vcombine.low %v5856, %v5871
        %v6272 = vunpack.c.l.s4 1966171168
        %v6273 = vunpack.c.0.s8 %v6272
        %v6274 = vlaneseq
        %v6275 = vshrl.u32 %v6274, 7
        %v6276 = vsub.s32 %v6273, %v6275
        %v6277 = vrot.slane %v6267, %v6276
        %v6279 = vunpack.c.l.s4 1966171168
        %v6280 = vunpack.c.0.s8 %v6279
        %v6281 = vlaneseq
        %v6282 = vshrl.u32 %v6281, 7
        %v6283 = vsub.s32 %v6280, %v6282
        %v6284 = vrot.slane %v6268, %v6283
        %v6286 = vunpack.c.l.s4 1966171168
        %v6287 = vunpack.c.0.s8 %v6286
        %v6288 = vlaneseq
        %v6289 = vshrl.u32 %v6288, 7
        %v6290 = vsub.s32 %v6287, %v6289
        %v6291 = vrot.slane %v6269, %v6290
        %v6293 = vunpack.c.l.s4 1966171168
        %v6294 = vunpack.c.0.s8 %v6293
        %v6295 = vlaneseq
        %v6296 = vshrl.u32 %v6295, 7
        %v6297 = vsub.s32 %v6294, %v6296
        %v6298 = vrot.slane %v6270, %v6297
        %v6299 = vcombine.low %v6277, %v6284
        %v6300 = vcombine.low %v6291, %v6298
        %v6302 = vunpack.c.l.s4 1966171168
        %v6303 = vunpack.c.0.s8 %v6302
        %v6304 = vlaneseq
        %v6305 = vshrl.u32 %v6304, 7
        %v6306 = vsub.s32 %v6303, %v6305
        %v6307 = vrot.slane %v6299, %v6306
        %v6309 = vunpack.c.l.s4 1966171168
        %v6310 = vunpack.c.0.s8 %v6309
        %v6311 = vlaneseq
        %v6312 = vshrl.u32 %v6311, 7
        %v6313 = vsub.s32 %v6310, %v6312
        %v6314 = vrot.slane %v6300, %v6313
        %v6315 = vcombine.low %v6307, %v6314
        %v6316 = vcombine.low %v5878, %v5879
        %v6317 = vcombine.low %v5880, %v5895
        %v6318 = vcombine.low %v5902, %v5903
        %v6319 = vcombine.low %v5904, %v5918
        %v6321 = vunpack.c.l.s4 1966171168
        %v6322 = vunpack.c.0.s8 %v6321
        %v6323 = vlaneseq
        %v6324 = vshrl.u32 %v6323, 7
        %v6325 = vsub.s32 %v6322, %v6324
        %v6326 = vrot.slane %v6316, %v6325
        %v6328 = vunpack.c.l.s4 1966171168
        %v6329 = vunpack.c.0.s8 %v6328
        %v6330 = vlaneseq
        %v6331 = vshrl.u32 %v6330, 7
        %v6332 = vsub.s32 %v6329, %v6331
        %v6333 = vrot.slane %v6317, %v6332
        %v6335 = vunpack.c.l.s4 1966171168
        %v6336 = vunpack.c.0.s8 %v6335
        %v6337 = vlaneseq
        %v6338 = vshrl.u32 %v6337, 7
        %v6339 = vsub.s32 %v6336, %v6338
        %v6340 = vrot.slane %v6318, %v6339
        %v6342 = vunpack.c.l.s4 1966171168
        %v6343 = vunpack.c.0.s8 %v6342
        %v6344 = vlaneseq
        %v6345 = vshrl.u32 %v6344, 7
        %v6346 = vsub.s32 %v6343, %v6345
        %v6347 = vrot.slane %v6319, %v6346
        %v6348 = vcombine.low %v6326, %v6333
        %v6349 = vcombine.low %v6340, %v6347
        %v6351 = vunpack.c.l.s4 1966171168
        %v6352 = vunpack.c.0.s8 %v6351
        %v6353 = vlaneseq
        %v6354 = vshrl.u32 %v6353, 7
        %v6355 = vsub.s32 %v6352, %v6354
        %v6356 = vrot.slane %v6348, %v6355
        %v6358 = vunpack.c.l.s4 1966171168
        %v6359 = vunpack.c.0.s8 %v6358
        %v6360 = vlaneseq
        %v6361 = vshrl.u32 %v6360, 7
        %v6362 = vsub.s32 %v6359, %v6361
        %v6363 = vrot.slane %v6349, %v6362
        %v6364 = vcombine.low %v6356, %v6363
        %v6369 = vunpack.c.l.b16 %v5920
        %v6370 = vunpack.c.l.b16 %v5921
        %v6371 = vunpack.c.l.b16 %v5922
        %v6372 = vunpack.c.l.b16 %v5923
        %v6373 = vpack.c.b16 %v6370, %v6369
        %v6374 = vpack.c.b16 %v6372, %v6371
        %v6378 = vsel %vm1772, %v5972, 0
        %v6381 = vsel %vm1772, %v6021, 0
        %v6384 = vsel %vm1772, %v6070, 0
        %v6387 = vsel %vm1772, %v6119, 0
        %v6390 = vsel %vm1772, %v6168, 0
        %v6393 = vsel %vm1772, %v6217, 0
        %v6396 = vsel %vm1772, %v6266, 0
        %v6399 = vsel %vm1772, %v6315, 0
        %v6402 = vsel %vm1772, %v6364, 0
        %6404 = vmatprep.subr.bf16.mxu0 0
        %6405 = vmatpush1.bf16.msra.mxu0 0
        %6406 = vmatprep.subr.bf16.mxu0 0
        %6407 = vmatpush1.bf16.msra.mxu0 0
        %6408 = vmatprep.subr.bf16.mxu0 0
        %6409 = vmatpush1.bf16.msra.mxu0 0
        %6410 = vmatprep.subr.bf16.mxu0 0
        %6411 = vmatpush1.bf16.msra.mxu0 0
        %6412 = vmatprep.subr.bf16.mxu0 0
        %6413 = vmatpush1.bf16.msra.mxu0 0
        %6414 = vmatprep.subr.bf16.mxu0 0
        %6415 = vmatpush1.bf16.msra.mxu0 0
        %6416 = vmatprep.subr.bf16.mxu0 0
        %6417 = vmatpush1.bf16.msra.mxu0 %v6374
        %6418 = vmatprep.subr.bf16.mxu0 0
        %6419 = vmatpush1.bf16.msra.mxu0 %v6373
        %6420 = vmatprep.subr.bf16.mxu0 0
        %6421 = vmatpush2.bf16.msra.mxu0 0
        %6422 = vmatprep.subr.bf16.mxu0 0
        %6423 = vmatpush2.bf16.msra.mxu0 0
        %6424 = vmatprep.subr.bf16.mxu0 0
        %6425 = vmatpush2.bf16.msra.mxu0 0
        %6426 = vmatprep.subr.bf16.mxu0 0
        %6427 = vmatpush2.bf16.msra.mxu0 0
        %6428 = vmatprep.subr.bf16.mxu0 0
        %6429 = vmatpush2.bf16.msra.mxu0 0
        %6430 = vmatprep.subr.bf16.mxu0 0
        %6431 = vmatpush2.bf16.msra.mxu0 0
        %6432 = vmatprep.subr.bf16.mxu0 0
        %6433 = vmatpush2.bf16.msra.mxu0 0
        %6434 = vmatprep.subr.bf16.mxu0 0
        %6435 = vmatpush2.bf16.msra.mxu0 0
        %6436 = vmatprep.mubr.bf16.mxu0 0
        %6437 = vmatmul.mubr.bf16.gmra.mxu0 %v6378
        %v6438 = vpop.f32.mrf.mxu0
        %v6439 = vadd.f32 0.0, %v6438
        %v6440 = vpop.f32.mrf.mxu0
        %v6441 = vpop.f32.mrf.mxu0
        %v6442 = vadd.f32 0.0, %v6441
        %v6443 = vpop.f32.mrf.mxu0
        %6444 = vmatprep.mubr.bf16.mxu0 0
        %6445 = vmatmul.mubr.bf16.gmra.mxu0 %v6381
        %v6446 = vpop.f32.mrf.mxu0
        %v6447 = vadd.f32 0.0, %v6446
        %v6448 = vpop.f32.mrf.mxu0
        %v6449 = vpop.f32.mrf.mxu0
        %v6450 = vadd.f32 0.0, %v6449
        %v6451 = vpop.f32.mrf.mxu0
        %6452 = vmatprep.mubr.bf16.mxu0 0
        %6453 = vmatmul.mubr.bf16.gmra.mxu0 %v6384
        %v6454 = vpop.f32.mrf.mxu0
        %v6455 = vadd.f32 0.0, %v6454
        %v6456 = vpop.f32.mrf.mxu0
        %v6457 = vpop.f32.mrf.mxu0
        %v6458 = vadd.f32 0.0, %v6457
        %v6459 = vpop.f32.mrf.mxu0
        %6460 = vmatprep.mubr.bf16.mxu0 0
        %6461 = vmatmul.mubr.bf16.gmra.mxu0 %v6387
        %v6462 = vpop.f32.mrf.mxu0
        %v6463 = vadd.f32 0.0, %v6462
        %v6464 = vpop.f32.mrf.mxu0
        %v6465 = vpop.f32.mrf.mxu0
        %v6466 = vadd.f32 0.0, %v6465
        %v6467 = vpop.f32.mrf.mxu0
        %6468 = vmatprep.mubr.bf16.mxu0 0
        %6469 = vmatmul.mubr.bf16.gmra.mxu0 %v6390
        %v6470 = vpop.f32.mrf.mxu0
        %v6471 = vadd.f32 0.0, %v6470
        %v6472 = vpop.f32.mrf.mxu0
        %v6473 = vpop.f32.mrf.mxu0
        %v6474 = vadd.f32 0.0, %v6473
        %v6475 = vpop.f32.mrf.mxu0
        %6476 = vmatprep.mubr.bf16.mxu0 0
        %6477 = vmatmul.mubr.bf16.gmra.mxu0 %v6393
        %v6478 = vpop.f32.mrf.mxu0
        %v6479 = vadd.f32 0.0, %v6478
        %v6480 = vpop.f32.mrf.mxu0
        %v6481 = vpop.f32.mrf.mxu0
        %v6482 = vadd.f32 0.0, %v6481
        %v6483 = vpop.f32.mrf.mxu0
        %6484 = vmatprep.mubr.bf16.mxu0 0
        %6485 = vmatmul.mubr.bf16.gmra.mxu0 %v6396
        %v6486 = vpop.f32.mrf.mxu0
        %v6487 = vadd.f32 0.0, %v6486
        %v6488 = vpop.f32.mrf.mxu0
        %v6489 = vpop.f32.mrf.mxu0
        %v6490 = vadd.f32 0.0, %v6489
        %v6491 = vpop.f32.mrf.mxu0
        %6492 = vmatprep.mubr.bf16.mxu0 0
        %6493 = vmatmul.mubr.bf16.gmra.mxu0 %v6399
        %v6494 = vpop.f32.mrf.mxu0
        %v6495 = vadd.f32 0.0, %v6494
        %v6496 = vpop.f32.mrf.mxu0
        %v6497 = vpop.f32.mrf.mxu0
        %v6498 = vadd.f32 0.0, %v6497
        %v6499 = vpop.f32.mrf.mxu0
        %6500 = vmatprep.mubr.bf16.mxu0 0
        %6501 = vmatmul.mubr.bf16.gmra.mxu0 %v6402
        %v6502 = vpop.f32.mrf.mxu0
        %v6503 = vadd.f32 0.0, %v6502
        %v6504 = vpop.f32.mrf.mxu0
        %v6505 = vpop.f32.mrf.mxu0
        %v6506 = vadd.f32 0.0, %v6505
        %v6507 = vpop.f32.mrf.mxu0
        %6508 = vdwg.mxu0
        %v6527 = vcombine.high %v6439, %v6439
        %v6529 = vunpack.c.l.s4 1983009808
        %v6530 = vunpack.c.0.s8 %v6529
        %v6531 = vlaneseq
        %v6532 = vshrl.u32 %v6531, 7
        %v6533 = vsub.s32 %v6530, %v6532
        %v6534 = vrot.slane %v6439, %v6533
        %v6536 = vunpack.c.l.s4 1983009808
        %v6537 = vunpack.c.0.s8 %v6536
        %v6538 = vlaneseq
        %v6539 = vshrl.u32 %v6538, 7
        %v6540 = vsub.s32 %v6537, %v6539
        %v6541 = vrot.slane %v6527, %v6540
        %v6542 = vcombine.high %v6534, %v6534
        %v6543 = vcombine.high %v6541, %v6541
        %v6544 = vcombine.high %v6442, %v6442
        %v6546 = vunpack.c.l.s4 1983009808
        %v6547 = vunpack.c.0.s8 %v6546
        %v6548 = vlaneseq
        %v6549 = vshrl.u32 %v6548, 7
        %v6550 = vsub.s32 %v6547, %v6549
        %v6551 = vrot.slane %v6442, %v6550
        %v6553 = vunpack.c.l.s4 1983009808
        %v6554 = vunpack.c.0.s8 %v6553
        %v6555 = vlaneseq
        %v6556 = vshrl.u32 %v6555, 7
        %v6557 = vsub.s32 %v6554, %v6556
        %v6558 = vrot.slane %v6544, %v6557
        %v6559 = vcombine.high %v6551, %v6551
        %v6560 = vcombine.high %v6558, %v6558
        %v6561 = vcombine.high %v6447, %v6447
        %v6563 = vunpack.c.l.s4 1983009808
        %v6564 = vunpack.c.0.s8 %v6563
        %v6565 = vlaneseq
        %v6566 = vshrl.u32 %v6565, 7
        %v6567 = vsub.s32 %v6564, %v6566
        %v6568 = vrot.slane %v6447, %v6567
        %v6570 = vunpack.c.l.s4 1983009808
        %v6571 = vunpack.c.0.s8 %v6570
        %v6572 = vlaneseq
        %v6573 = vshrl.u32 %v6572, 7
        %v6574 = vsub.s32 %v6571, %v6573
        %v6575 = vrot.slane %v6561, %v6574
        %v6576 = vcombine.high %v6568, %v6568
        %v6577 = vcombine.high %v6575, %v6575
        %v6578 = vcombine.high %v6450, %v6450
        %v6580 = vunpack.c.l.s4 1983009808
        %v6581 = vunpack.c.0.s8 %v6580
        %v6582 = vlaneseq
        %v6583 = vshrl.u32 %v6582, 7
        %v6584 = vsub.s32 %v6581, %v6583
        %v6585 = vrot.slane %v6450, %v6584
        %v6587 = vunpack.c.l.s4 1983009808
        %v6588 = vunpack.c.0.s8 %v6587
        %v6589 = vlaneseq
        %v6590 = vshrl.u32 %v6589, 7
        %v6591 = vsub.s32 %v6588, %v6590
        %v6592 = vrot.slane %v6578, %v6591
        %v6593 = vcombine.high %v6585, %v6585
        %v6594 = vcombine.high %v6592, %v6592
        %v6595 = vcombine.high %v6455, %v6455
        %v6597 = vunpack.c.l.s4 1983009808
        %v6598 = vunpack.c.0.s8 %v6597
        %v6599 = vlaneseq
        %v6600 = vshrl.u32 %v6599, 7
        %v6601 = vsub.s32 %v6598, %v6600
        %v6602 = vrot.slane %v6455, %v6601
        %v6604 = vunpack.c.l.s4 1983009808
        %v6605 = vunpack.c.0.s8 %v6604
        %v6606 = vlaneseq
        %v6607 = vshrl.u32 %v6606, 7
        %v6608 = vsub.s32 %v6605, %v6607
        %v6609 = vrot.slane %v6595, %v6608
        %v6610 = vcombine.high %v6602, %v6602
        %v6611 = vcombine.high %v6609, %v6609
        %v6612 = vcombine.high %v6458, %v6458
        %v6614 = vunpack.c.l.s4 1983009808
        %v6615 = vunpack.c.0.s8 %v6614
        %v6616 = vlaneseq
        %v6617 = vshrl.u32 %v6616, 7
        %v6618 = vsub.s32 %v6615, %v6617
        %v6619 = vrot.slane %v6458, %v6618
        %v6621 = vunpack.c.l.s4 1983009808
        %v6622 = vunpack.c.0.s8 %v6621
        %v6623 = vlaneseq
        %v6624 = vshrl.u32 %v6623, 7
        %v6625 = vsub.s32 %v6622, %v6624
        %v6626 = vrot.slane %v6612, %v6625
        %v6627 = vcombine.high %v6619, %v6619
        %v6628 = vcombine.high %v6626, %v6626
        %v6629 = vcombine.high %v6463, %v6463
        %v6631 = vunpack.c.l.s4 1983009808
        %v6632 = vunpack.c.0.s8 %v6631
        %v6633 = vlaneseq
        %v6634 = vshrl.u32 %v6633, 7
        %v6635 = vsub.s32 %v6632, %v6634
        %v6636 = vrot.slane %v6463, %v6635
        %v6638 = vunpack.c.l.s4 1983009808
        %v6639 = vunpack.c.0.s8 %v6638
        %v6640 = vlaneseq
        %v6641 = vshrl.u32 %v6640, 7
        %v6642 = vsub.s32 %v6639, %v6641
        %v6643 = vrot.slane %v6629, %v6642
        %v6644 = vcombine.high %v6636, %v6636
        %v6645 = vcombine.high %v6643, %v6643
        %v6646 = vcombine.high %v6466, %v6466
        %v6648 = vunpack.c.l.s4 1983009808
        %v6649 = vunpack.c.0.s8 %v6648
        %v6650 = vlaneseq
        %v6651 = vshrl.u32 %v6650, 7
        %v6652 = vsub.s32 %v6649, %v6651
        %v6653 = vrot.slane %v6466, %v6652
        %v6655 = vunpack.c.l.s4 1983009808
        %v6656 = vunpack.c.0.s8 %v6655
        %v6657 = vlaneseq
        %v6658 = vshrl.u32 %v6657, 7
        %v6659 = vsub.s32 %v6656, %v6658
        %v6660 = vrot.slane %v6646, %v6659
        %v6661 = vcombine.high %v6653, %v6653
        %v6662 = vcombine.high %v6660, %v6660
        %v6663 = vcombine.high %v6471, %v6471
        %v6665 = vunpack.c.l.s4 1983009808
        %v6666 = vunpack.c.0.s8 %v6665
        %v6667 = vlaneseq
        %v6668 = vshrl.u32 %v6667, 7
        %v6669 = vsub.s32 %v6666, %v6668
        %v6670 = vrot.slane %v6471, %v6669
        %v6672 = vunpack.c.l.s4 1983009808
        %v6673 = vunpack.c.0.s8 %v6672
        %v6674 = vlaneseq
        %v6675 = vshrl.u32 %v6674, 7
        %v6676 = vsub.s32 %v6673, %v6675
        %v6677 = vrot.slane %v6663, %v6676
        %v6678 = vcombine.high %v6670, %v6670
        %v6679 = vcombine.high %v6677, %v6677
        %v6680 = vcombine.high %v6474, %v6474
        %v6682 = vunpack.c.l.s4 1983009808
        %v6683 = vunpack.c.0.s8 %v6682
        %v6684 = vlaneseq
        %v6685 = vshrl.u32 %v6684, 7
        %v6686 = vsub.s32 %v6683, %v6685
        %v6687 = vrot.slane %v6474, %v6686
        %v6689 = vunpack.c.l.s4 1983009808
        %v6690 = vunpack.c.0.s8 %v6689
        %v6691 = vlaneseq
        %v6692 = vshrl.u32 %v6691, 7
        %v6693 = vsub.s32 %v6690, %v6692
        %v6694 = vrot.slane %v6680, %v6693
        %v6695 = vcombine.high %v6687, %v6687
        %v6696 = vcombine.high %v6694, %v6694
        %v6697 = vcombine.high %v6479, %v6479
        %v6699 = vunpack.c.l.s4 1983009808
        %v6700 = vunpack.c.0.s8 %v6699
        %v6701 = vlaneseq
        %v6702 = vshrl.u32 %v6701, 7
        %v6703 = vsub.s32 %v6700, %v6702
        %v6704 = vrot.slane %v6479, %v6703
        %v6706 = vunpack.c.l.s4 1983009808
        %v6707 = vunpack.c.0.s8 %v6706
        %v6708 = vlaneseq
        %v6709 = vshrl.u32 %v6708, 7
        %v6710 = vsub.s32 %v6707, %v6709
        %v6711 = vrot.slane %v6697, %v6710
        %v6712 = vcombine.high %v6704, %v6704
        %v6713 = vcombine.high %v6711, %v6711
        %v6714 = vcombine.high %v6482, %v6482
        %v6716 = vunpack.c.l.s4 1983009808
        %v6717 = vunpack.c.0.s8 %v6716
        %v6718 = vlaneseq
        %v6719 = vshrl.u32 %v6718, 7
        %v6720 = vsub.s32 %v6717, %v6719
        %v6721 = vrot.slane %v6482, %v6720
        %v6723 = vunpack.c.l.s4 1983009808
        %v6724 = vunpack.c.0.s8 %v6723
        %v6725 = vlaneseq
        %v6726 = vshrl.u32 %v6725, 7
        %v6727 = vsub.s32 %v6724, %v6726
        %v6728 = vrot.slane %v6714, %v6727
        %v6729 = vcombine.high %v6721, %v6721
        %v6730 = vcombine.high %v6728, %v6728
        %v6731 = vcombine.high %v6487, %v6487
        %v6733 = vunpack.c.l.s4 1983009808
        %v6734 = vunpack.c.0.s8 %v6733
        %v6735 = vlaneseq
        %v6736 = vshrl.u32 %v6735, 7
        %v6737 = vsub.s32 %v6734, %v6736
        %v6738 = vrot.slane %v6487, %v6737
        %v6740 = vunpack.c.l.s4 1983009808
        %v6741 = vunpack.c.0.s8 %v6740
        %v6742 = vlaneseq
        %v6743 = vshrl.u32 %v6742, 7
        %v6744 = vsub.s32 %v6741, %v6743
        %v6745 = vrot.slane %v6731, %v6744
        %v6746 = vcombine.high %v6738, %v6738
        %v6747 = vcombine.high %v6745, %v6745
        %v6748 = vcombine.high %v6490, %v6490
        %v6750 = vunpack.c.l.s4 1983009808
        %v6751 = vunpack.c.0.s8 %v6750
        %v6752 = vlaneseq
        %v6753 = vshrl.u32 %v6752, 7
        %v6754 = vsub.s32 %v6751, %v6753
        %v6755 = vrot.slane %v6490, %v6754
        %v6757 = vunpack.c.l.s4 1983009808
        %v6758 = vunpack.c.0.s8 %v6757
        %v6759 = vlaneseq
        %v6760 = vshrl.u32 %v6759, 7
        %v6761 = vsub.s32 %v6758, %v6760
        %v6762 = vrot.slane %v6748, %v6761
        %v6763 = vcombine.high %v6755, %v6755
        %v6764 = vcombine.high %v6762, %v6762
        %v6765 = vcombine.high %v6495, %v6495
        %v6767 = vunpack.c.l.s4 1983009808
        %v6768 = vunpack.c.0.s8 %v6767
        %v6769 = vlaneseq
        %v6770 = vshrl.u32 %v6769, 7
        %v6771 = vsub.s32 %v6768, %v6770
        %v6772 = vrot.slane %v6495, %v6771
        %v6774 = vunpack.c.l.s4 1983009808
        %v6775 = vunpack.c.0.s8 %v6774
        %v6776 = vlaneseq
        %v6777 = vshrl.u32 %v6776, 7
        %v6778 = vsub.s32 %v6775, %v6777
        %v6779 = vrot.slane %v6765, %v6778
        %v6780 = vcombine.high %v6772, %v6772
        %v6781 = vcombine.high %v6779, %v6779
        %v6782 = vcombine.high %v6498, %v6498
        %v6784 = vunpack.c.l.s4 1983009808
        %v6785 = vunpack.c.0.s8 %v6784
        %v6786 = vlaneseq
        %v6787 = vshrl.u32 %v6786, 7
        %v6788 = vsub.s32 %v6785, %v6787
        %v6789 = vrot.slane %v6498, %v6788
        %v6791 = vunpack.c.l.s4 1983009808
        %v6792 = vunpack.c.0.s8 %v6791
        %v6793 = vlaneseq
        %v6794 = vshrl.u32 %v6793, 7
        %v6795 = vsub.s32 %v6792, %v6794
        %v6796 = vrot.slane %v6782, %v6795
        %v6797 = vcombine.high %v6789, %v6789
        %v6798 = vcombine.high %v6796, %v6796
        %v6799 = vcombine.high %v6503, %v6503
        %v6801 = vunpack.c.l.s4 1983009808
        %v6802 = vunpack.c.0.s8 %v6801
        %v6803 = vlaneseq
        %v6804 = vshrl.u32 %v6803, 7
        %v6805 = vsub.s32 %v6802, %v6804
        %v6806 = vrot.slane %v6503, %v6805
        %v6808 = vunpack.c.l.s4 1983009808
        %v6809 = vunpack.c.0.s8 %v6808
        %v6810 = vlaneseq
        %v6811 = vshrl.u32 %v6810, 7
        %v6812 = vsub.s32 %v6809, %v6811
        %v6813 = vrot.slane %v6799, %v6812
        %v6814 = vcombine.high %v6806, %v6806
        %v6815 = vcombine.high %v6813, %v6813
        %v6816 = vcombine.high %v6506, %v6506
        %v6818 = vunpack.c.l.s4 1983009808
        %v6819 = vunpack.c.0.s8 %v6818
        %v6820 = vlaneseq
        %v6821 = vshrl.u32 %v6820, 7
        %v6822 = vsub.s32 %v6819, %v6821
        %v6823 = vrot.slane %v6506, %v6822
        %v6825 = vunpack.c.l.s4 1983009808
        %v6826 = vunpack.c.0.s8 %v6825
        %v6827 = vlaneseq
        %v6828 = vshrl.u32 %v6827, 7
        %v6829 = vsub.s32 %v6826, %v6828
        %v6830 = vrot.slane %v6816, %v6829
        %v6831 = vcombine.high %v6823, %v6823
        %v6832 = vcombine.high %v6830, %v6830
        %v6897 = vadd.f32 %v5310, %v6534
        %v6898 = vadd.f32 %v5311, %v6542
        %v6899 = vadd.f32 %v5312, %v6541
        %v6900 = vadd.f32 %v5313, %v6543
        %v6901 = vadd.f32 %v5314, %v6551
        %v6902 = vadd.f32 %v5315, %v6559
        %v6903 = vadd.f32 %v5316, %v6558
        %v6904 = vadd.f32 %v5317, %v6560
        %v6905 = vadd.f32 %v5318, %v6576
        %v6906 = vadd.f32 %v5319, %v6575
        %v6907 = vadd.f32 %v5320, %v6577
        %v6908 = vadd.f32 %v5321, %v6585
        %v6909 = vadd.f32 %v5322, %v6593
        %v6910 = vadd.f32 %v5323, %v6592
        %v6911 = vadd.f32 %v5324, %v6594
        %v6912 = vadd.f32 %v5325, %v6602
        %v6913 = vadd.f32 %v5326, %v6609
        %v6914 = vadd.f32 %v5327, %v6611
        %v6915 = vadd.f32 %v5328, %v6619
        %v6916 = vadd.f32 %v5329, %v6627
        %v6917 = vadd.f32 %v5330, %v6626
        %v6918 = vadd.f32 %v5331, %v6628
        %v6919 = vadd.f32 %v5332, %v6636
        %v6920 = vadd.f32 %v5333, %v6644
        %v6921 = vadd.f32 %v5334, %v6645
        %v6922 = vadd.f32 %v5335, %v6653
        %v6923 = vadd.f32 %v5336, %v6661
        %v6924 = vadd.f32 %v5337, %v6660
        %v6925 = vadd.f32 %v5338, %v6662
        %v6926 = vadd.f32 %v5339, %v6670
        %v6927 = vadd.f32 %v5340, %v6678
        %v6928 = vadd.f32 %v5341, %v6677
        %v6929 = vadd.f32 %v5342, %v6687
        %v6930 = vadd.f32 %v5343, %v6695
        %v6931 = vadd.f32 %v5344, %v6694
        %v6932 = vadd.f32 %v5345, %v6696
        %v6933 = vadd.f32 %v5346, %v6704
        %v6934 = vadd.f32 %v5347, %v6712
        %v6935 = vadd.f32 %v5348, %v6711
        %v6936 = vadd.f32 %v5349, %v6713
        %v6937 = vadd.f32 %v5350, %v6729
        %v6938 = vadd.f32 %v5351, %v6728
        %v6939 = vadd.f32 %v5352, %v6730
        %v6940 = vadd.f32 %v5353, %v6738
        %v6941 = vadd.f32 %v5354, %v6746
        %v6942 = vadd.f32 %v5355, %v6745
        %v6943 = vadd.f32 %v5356, %v6747
        %v6944 = vadd.f32 %v5357, %v6755
        %v6945 = vadd.f32 %v5358, %v6762
        %v6946 = vadd.f32 %v5359, %v6764
        %v6947 = vadd.f32 %v5360, %v6772
        %v6948 = vadd.f32 %v5361, %v6780
        %v6949 = vadd.f32 %v5362, %v6779
        %v6950 = vadd.f32 %v5363, %v6781
        %v6951 = vadd.f32 %v5364, %v6789
        %v6952 = vadd.f32 %v5365, %v6797
        %v6953 = vadd.f32 %v5366, %v6798
        %v6954 = vadd.f32 %v5367, %v6806
        %v6955 = vadd.f32 %v5368, %v6814
        %v6956 = vadd.f32 %v5369, %v6813
        %v6957 = vadd.f32 %v5370, %v6815
        %v6958 = vadd.f32 %v5371, %v6823
        %v6959 = vadd.f32 %v5372, %v6831
        %v6960 = vadd.f32 %v5373, %v6830
        %v6961 = vrot.slane %v6534, 7
        %v6962 = vrot.slane %v6961, 2
        %v6963 = vrot.slane %v6542, 7
        %v6964 = vsel %vm2363, %v6962, %v6963
        %v6965 = vrot.slane %v6963, 2
        %v6966 = vrot.slane %v6541, 7
        %v6967 = vsel %vm2363, %v6965, %v6966
        %v6968 = vrot.slane %v6966, 2
        %v6969 = vrot.slane %v6543, 7
        %v6970 = vsel %vm2363, %v6968, %v6969
        %v6971 = vrot.slane %v6969, 2
        %v6972 = vrot.slane %v6551, 7
        %v6973 = vsel %vm2363, %v6971, %v6972
        %v6974 = vrot.slane %v6972, 2
        %v6975 = vrot.slane %v6559, 7
        %v6976 = vsel %vm2363, %v6974, %v6975
        %v6977 = vrot.slane %v6975, 2
        %v6978 = vrot.slane %v6558, 7
        %v6979 = vsel %vm2363, %v6977, %v6978
        %v6980 = vrot.slane %v6978, 2
        %v6981 = vrot.slane %v6560, 7
        %v6982 = vsel %vm2363, %v6980, %v6981
        %v6983 = vrot.slane %v6981, 2
        %v6984 = vrot.slane %v6568, 7
        %v6985 = vsel %vm2363, %v6983, %v6984
        %v6986 = vrot.slane %v6576, 7
        %v6987 = vrot.slane %v6986, 2
        %v6988 = vrot.slane %v6575, 7
        %v6989 = vsel %vm2363, %v6987, %v6988
        %v6990 = vrot.slane %v6988, 2
        %v6991 = vrot.slane %v6577, 7
        %v6992 = vsel %vm2363, %v6990, %v6991
        %v6993 = vrot.slane %v6991, 2
        %v6994 = vrot.slane %v6585, 7
        %v6995 = vsel %vm2363, %v6993, %v6994
        %v6996 = vrot.slane %v6994, 2
        %v6997 = vrot.slane %v6593, 7
        %v6998 = vsel %vm2363, %v6996, %v6997
        %v6999 = vrot.slane %v6997, 2
        %v7000 = vrot.slane %v6592, 7
        %v7001 = vsel %vm2363, %v6999, %v7000
        %v7002 = vrot.slane %v7000, 2
        %v7003 = vrot.slane %v6594, 7
        %v7004 = vsel %vm2363, %v7002, %v7003
        %v7005 = vrot.slane %v7003, 2
        %v7006 = vrot.slane %v6602, 7
        %v7007 = vsel %vm2363, %v7005, %v7006
        %v7008 = vrot.slane %v7006, 2
        %v7009 = vrot.slane %v6610, 7
        %v7010 = vsel %vm2363, %v7008, %v7009
        %v7011 = vrot.slane %v6609, 7
        %v7012 = vrot.slane %v7011, 2
        %v7013 = vrot.slane %v6611, 7
        %v7014 = vsel %vm2363, %v7012, %v7013
        %v7015 = vrot.slane %v7013, 2
        %v7016 = vrot.slane %v6619, 7
        %v7017 = vsel %vm2363, %v7015, %v7016
        %v7018 = vrot.slane %v7016, 2
        %v7019 = vrot.slane %v6627, 7
        %v7020 = vsel %vm2363, %v7018, %v7019
        %v7021 = vrot.slane %v7019, 2
        %v7022 = vrot.slane %v6626, 7
        %v7023 = vsel %vm2363, %v7021, %v7022
        %v7024 = vrot.slane %v7022, 2
        %v7025 = vrot.slane %v6628, 7
        %v7026 = vsel %vm2363, %v7024, %v7025
        %v7027 = vrot.slane %v7025, 2
        %v7028 = vrot.slane %v6636, 7
        %v7029 = vsel %vm2363, %v7027, %v7028
        %v7030 = vrot.slane %v7028, 2
        %v7031 = vrot.slane %v6644, 7
        %v7032 = vsel %vm2363, %v7030, %v7031
        %v7033 = vrot.slane %v7031, 2
        %v7034 = vrot.slane %v6643, 7
        %v7035 = vsel %vm2363, %v7033, %v7034
        %v7036 = vrot.slane %v6645, 7
        %v7037 = vrot.slane %v7036, 2
        %v7038 = vrot.slane %v6653, 7
        %v7039 = vsel %vm2363, %v7037, %v7038
        %v7040 = vrot.slane %v7038, 2
        %v7041 = vrot.slane %v6661, 7
        %v7042 = vsel %vm2363, %v7040, %v7041
        %v7043 = vrot.slane %v7041, 2
        %v7044 = vrot.slane %v6660, 7
        %v7045 = vsel %vm2363, %v7043, %v7044
        %v7046 = vrot.slane %v7044, 2
        %v7047 = vrot.slane %v6662, 7
        %v7048 = vsel %vm2363, %v7046, %v7047
        %v7049 = vrot.slane %v7047, 2
        %v7050 = vrot.slane %v6670, 7
        %v7051 = vsel %vm2363, %v7049, %v7050
        %v7052 = vrot.slane %v7050, 2
        %v7053 = vrot.slane %v6678, 7
        %v7054 = vsel %vm2363, %v7052, %v7053
        %v7055 = vrot.slane %v7053, 2
        %v7056 = vrot.slane %v6677, 7
        %v7057 = vsel %vm2363, %v7055, %v7056
        %v7058 = vrot.slane %v7056, 2
        %v7059 = vrot.slane %v6679, 7
        %v7060 = vsel %vm2363, %v7058, %v7059
        %v7061 = vrot.slane %v6687, 7
        %v7062 = vrot.slane %v7061, 2
        %v7063 = vrot.slane %v6695, 7
        %v7064 = vsel %vm2363, %v7062, %v7063
        %v7065 = vrot.slane %v7063, 2
        %v7066 = vrot.slane %v6694, 7
        %v7067 = vsel %vm2363, %v7065, %v7066
        %v7068 = vrot.slane %v7066, 2
        %v7069 = vrot.slane %v6696, 7
        %v7070 = vsel %vm2363, %v7068, %v7069
        %v7071 = vrot.slane %v7069, 2
        %v7072 = vrot.slane %v6704, 7
        %v7073 = vsel %vm2363, %v7071, %v7072
        %v7074 = vrot.slane %v7072, 2
        %v7075 = vrot.slane %v6712, 7
        %v7076 = vsel %vm2363, %v7074, %v7075
        %v7077 = vrot.slane %v7075, 2
        %v7078 = vrot.slane %v6711, 7
        %v7079 = vsel %vm2363, %v7077, %v7078
        %v7080 = vrot.slane %v7078, 2
        %v7081 = vrot.slane %v6713, 7
        %v7082 = vsel %vm2363, %v7080, %v7081
        %v7083 = vrot.slane %v7081, 2
        %v7084 = vrot.slane %v6721, 7
        %v7085 = vsel %vm2363, %v7083, %v7084
        %v7086 = vrot.slane %v6729, 7
        %v7087 = vrot.slane %v7086, 2
        %v7088 = vrot.slane %v6728, 7
        %v7089 = vsel %vm2363, %v7087, %v7088
        %v7090 = vrot.slane %v7088, 2
        %v7091 = vrot.slane %v6730, 7
        %v7092 = vsel %vm2363, %v7090, %v7091
        %v7093 = vrot.slane %v7091, 2
        %v7094 = vrot.slane %v6738, 7
        %v7095 = vsel %vm2363, %v7093, %v7094
        %v7096 = vrot.slane %v7094, 2
        %v7097 = vrot.slane %v6746, 7
        %v7098 = vsel %vm2363, %v7096, %v7097
        %v7099 = vrot.slane %v7097, 2
        %v7100 = vrot.slane %v6745, 7
        %v7101 = vsel %vm2363, %v7099, %v7100
        %v7102 = vrot.slane %v7100, 2
        %v7103 = vrot.slane %v6747, 7
        %v7104 = vsel %vm2363, %v7102, %v7103
        %v7105 = vrot.slane %v7103, 2
        %v7106 = vrot.slane %v6755, 7
        %v7107 = vsel %vm2363, %v7105, %v7106
        %v7108 = vrot.slane %v7106, 2
        %v7109 = vrot.slane %v6763, 7
        %v7110 = vsel %vm2363, %v7108, %v7109
        %v7111 = vrot.slane %v6762, 7
        %v7112 = vrot.slane %v7111, 2
        %v7113 = vrot.slane %v6764, 7
        %v7114 = vsel %vm2363, %v7112, %v7113
        %v7115 = vrot.slane %v7113, 2
        %v7116 = vrot.slane %v6772, 7
        %v7117 = vsel %vm2363, %v7115, %v7116
        %v7118 = vrot.slane %v7116, 2
        %v7119 = vrot.slane %v6780, 7
        %v7120 = vsel %vm2363, %v7118, %v7119
        %v7121 = vrot.slane %v7119, 2
        %v7122 = vrot.slane %v6779, 7
        %v7123 = vsel %vm2363, %v7121, %v7122
        %v7124 = vrot.slane %v7122, 2
        %v7125 = vrot.slane %v6781, 7
        %v7126 = vsel %vm2363, %v7124, %v7125
        %v7127 = vrot.slane %v7125, 2
        %v7128 = vrot.slane %v6789, 7
        %v7129 = vsel %vm2363, %v7127, %v7128
        %v7130 = vrot.slane %v7128, 2
        %v7131 = vrot.slane %v6797, 7
        %v7132 = vsel %vm2363, %v7130, %v7131
        %v7133 = vrot.slane %v7131, 2
        %v7134 = vrot.slane %v6796, 7
        %v7135 = vsel %vm2363, %v7133, %v7134
        %v7136 = vrot.slane %v6798, 7
        %v7137 = vrot.slane %v7136, 2
        %v7138 = vrot.slane %v6806, 7
        %v7139 = vsel %vm2363, %v7137, %v7138
        %v7140 = vrot.slane %v7138, 2
        %v7141 = vrot.slane %v6814, 7
        %v7142 = vsel %vm2363, %v7140, %v7141
        %v7143 = vrot.slane %v7141, 2
        %v7144 = vrot.slane %v6813, 7
        %v7145 = vsel %vm2363, %v7143, %v7144
        %v7146 = vrot.slane %v7144, 2
        %v7147 = vrot.slane %v6815, 7
        %v7148 = vsel %vm2363, %v7146, %v7147
        %v7149 = vrot.slane %v7147, 2
        %v7150 = vrot.slane %v6823, 7
        %v7151 = vsel %vm2363, %v7149, %v7150
        %v7152 = vrot.slane %v7150, 2
        %v7153 = vrot.slane %v6831, 7
        %v7154 = vsel %vm2363, %v7152, %v7153
        %v7155 = vrot.slane %v7153, 2
        %v7156 = vrot.slane %v6830, 7
        %v7157 = vsel %vm2363, %v7155, %v7156
        %v7158 = vrot.slane %v7156, 2
        %v7159 = vrot.slane %v6832, 7
        %v7160 = vsel %vm2363, %v7158, %v7159
        %7161 = vrot.lane.b32.xlu0 %v6964, 96
        %v7162 = vpop.permute.xlu0 %7161
        %7163 = vrot.lane.b32.xlu0 %v6967, 96
        %v7164 = vpop.permute.xlu0 %7163
        %7165 = vrot.lane.b32.xlu0 %v6970, 96
        %v7166 = vpop.permute.xlu0 %7165
        %7167 = vrot.lane.b32.xlu0 %v6973, 96
        %v7168 = vpop.permute.xlu0 %7167
        %7169 = vrot.lane.b32.xlu0 %v6976, 96
        %v7170 = vpop.permute.xlu0 %7169
        %7171 = vrot.lane.b32.xlu0 %v6979, 96
        %v7172 = vpop.permute.xlu0 %7171
        %7173 = vrot.lane.b32.xlu0 %v6982, 96
        %v7174 = vpop.permute.xlu0 %7173
        %7175 = vrot.lane.b32.xlu0 %v6985, 96
        %v7176 = vpop.permute.xlu0 %7175
        %7177 = vrot.lane.b32.xlu0 %v6989, 96
        %v7178 = vpop.permute.xlu0 %7177
        %7179 = vrot.lane.b32.xlu0 %v6992, 96
        %v7180 = vpop.permute.xlu0 %7179
        %7181 = vrot.lane.b32.xlu0 %v6995, 96
        %v7182 = vpop.permute.xlu0 %7181
        %7183 = vrot.lane.b32.xlu0 %v6998, 96
        %v7184 = vpop.permute.xlu0 %7183
        %7185 = vrot.lane.b32.xlu0 %v7001, 96
        %v7186 = vpop.permute.xlu0 %7185
        %7187 = vrot.lane.b32.xlu0 %v7004, 96
        %v7188 = vpop.permute.xlu0 %7187
        %7189 = vrot.lane.b32.xlu0 %v7007, 96
        %v7190 = vpop.permute.xlu0 %7189
        %7191 = vrot.lane.b32.xlu0 %v7010, 96
        %v7192 = vpop.permute.xlu0 %7191
        %7193 = vrot.lane.b32.xlu0 %v7014, 96
        %v7194 = vpop.permute.xlu0 %7193
        %7195 = vrot.lane.b32.xlu0 %v7017, 96
        %v7196 = vpop.permute.xlu0 %7195
        %7197 = vrot.lane.b32.xlu0 %v7020, 96
        %v7198 = vpop.permute.xlu0 %7197
        %7199 = vrot.lane.b32.xlu0 %v7023, 96
        %v7200 = vpop.permute.xlu0 %7199
        %7201 = vrot.lane.b32.xlu0 %v7026, 96
        %v7202 = vpop.permute.xlu0 %7201
        %7203 = vrot.lane.b32.xlu0 %v7029, 96
        %v7204 = vpop.permute.xlu0 %7203
        %7205 = vrot.lane.b32.xlu0 %v7032, 96
        %v7206 = vpop.permute.xlu0 %7205
        %7207 = vrot.lane.b32.xlu0 %v7035, 96
        %v7208 = vpop.permute.xlu0 %7207
        %7209 = vrot.lane.b32.xlu0 %v7039, 96
        %v7210 = vpop.permute.xlu0 %7209
        %7211 = vrot.lane.b32.xlu0 %v7042, 96
        %v7212 = vpop.permute.xlu0 %7211
        %7213 = vrot.lane.b32.xlu0 %v7045, 96
        %v7214 = vpop.permute.xlu0 %7213
        %7215 = vrot.lane.b32.xlu0 %v7048, 96
        %v7216 = vpop.permute.xlu0 %7215
        %7217 = vrot.lane.b32.xlu0 %v7051, 96
        %v7218 = vpop.permute.xlu0 %7217
        %7219 = vrot.lane.b32.xlu0 %v7054, 96
        %v7220 = vpop.permute.xlu0 %7219
        %7221 = vrot.lane.b32.xlu0 %v7057, 96
        %v7222 = vpop.permute.xlu0 %7221
        %7223 = vrot.lane.b32.xlu0 %v7060, 96
        %v7224 = vpop.permute.xlu0 %7223
        %7225 = vrot.lane.b32.xlu0 %v7064, 96
        %v7226 = vpop.permute.xlu0 %7225
        %7227 = vrot.lane.b32.xlu0 %v7067, 96
        %v7228 = vpop.permute.xlu0 %7227
        %7229 = vrot.lane.b32.xlu0 %v7070, 96
        %v7230 = vpop.permute.xlu0 %7229
        %7231 = vrot.lane.b32.xlu0 %v7073, 96
        %v7232 = vpop.permute.xlu0 %7231
        %7233 = vrot.lane.b32.xlu0 %v7076, 96
        %v7234 = vpop.permute.xlu0 %7233
        %7235 = vrot.lane.b32.xlu0 %v7079, 96
        %v7236 = vpop.permute.xlu0 %7235
        %7237 = vrot.lane.b32.xlu0 %v7082, 96
        %v7238 = vpop.permute.xlu0 %7237
        %7239 = vrot.lane.b32.xlu0 %v7085, 96
        %v7240 = vpop.permute.xlu0 %7239
        %7241 = vrot.lane.b32.xlu0 %v7089, 96
        %v7242 = vpop.permute.xlu0 %7241
        %7243 = vrot.lane.b32.xlu0 %v7092, 96
        %v7244 = vpop.permute.xlu0 %7243
        %7245 = vrot.lane.b32.xlu0 %v7095, 96
        %v7246 = vpop.permute.xlu0 %7245
        %7247 = vrot.lane.b32.xlu0 %v7098, 96
        %v7248 = vpop.permute.xlu0 %7247
        %7249 = vrot.lane.b32.xlu0 %v7101, 96
        %v7250 = vpop.permute.xlu0 %7249
        %7251 = vrot.lane.b32.xlu0 %v7104, 96
        %v7252 = vpop.permute.xlu0 %7251
        %7253 = vrot.lane.b32.xlu0 %v7107, 96
        %v7254 = vpop.permute.xlu0 %7253
        %7255 = vrot.lane.b32.xlu0 %v7110, 96
        %v7256 = vpop.permute.xlu0 %7255
        %7257 = vrot.lane.b32.xlu0 %v7114, 96
        %v7258 = vpop.permute.xlu0 %7257
        %7259 = vrot.lane.b32.xlu0 %v7117, 96
        %v7260 = vpop.permute.xlu0 %7259
        %7261 = vrot.lane.b32.xlu0 %v7120, 96
        %v7262 = vpop.permute.xlu0 %7261
        %7263 = vrot.lane.b32.xlu0 %v7123, 96
        %v7264 = vpop.permute.xlu0 %7263
        %7265 = vrot.lane.b32.xlu0 %v7126, 96
        %v7266 = vpop.permute.xlu0 %7265
        %7267 = vrot.lane.b32.xlu0 %v7129, 96
        %v7268 = vpop.permute.xlu0 %7267
        %7269 = vrot.lane.b32.xlu0 %v7132, 96
        %v7270 = vpop.permute.xlu0 %7269
        %7271 = vrot.lane.b32.xlu0 %v7135, 96
        %v7272 = vpop.permute.xlu0 %7271
        %7273 = vrot.lane.b32.xlu0 %v7139, 96
        %v7274 = vpop.permute.xlu0 %7273
        %7275 = vrot.lane.b32.xlu0 %v7142, 96
        %v7276 = vpop.permute.xlu0 %7275
        %7277 = vrot.lane.b32.xlu0 %v7145, 96
        %v7278 = vpop.permute.xlu0 %7277
        %7279 = vrot.lane.b32.xlu0 %v7148, 96
        %v7280 = vpop.permute.xlu0 %7279
        %7281 = vrot.lane.b32.xlu0 %v7151, 96
        %v7282 = vpop.permute.xlu0 %7281
        %7283 = vrot.lane.b32.xlu0 %v7154, 96
        %v7284 = vpop.permute.xlu0 %7283
        %7285 = vrot.lane.b32.xlu0 %v7157, 96
        %v7286 = vpop.permute.xlu0 %7285
        %7287 = vrot.lane.b32.xlu0 %v7160, 96
        %v7288 = vpop.permute.xlu0 %7287
        %v7353 = vadd.f32 %v6897, %v7162
        %v7354 = vadd.f32 %v6898, %v7164
        %v7355 = vadd.f32 %v6899, %v7166
        %v7356 = vadd.f32 %v6900, %v7168
        %v7357 = vadd.f32 %v6901, %v7170
        %v7358 = vadd.f32 %v6902, %v7172
        %v7359 = vadd.f32 %v6903, %v7174
        %v7360 = vadd.f32 %v6904, %v7176
        %v7361 = vadd.f32 %v6905, %v7178
        %v7362 = vadd.f32 %v6906, %v7180
        %v7363 = vadd.f32 %v6907, %v7182
        %v7364 = vadd.f32 %v6908, %v7184
        %v7365 = vadd.f32 %v6909, %v7186
        %v7366 = vadd.f32 %v6910, %v7188
        %v7367 = vadd.f32 %v6911, %v7190
        %v7368 = vadd.f32 %v6912, %v7192
        %v7369 = vadd.f32 %v6913, %v7194
        %v7370 = vadd.f32 %v6914, %v7196
        %v7371 = vadd.f32 %v6915, %v7198
        %v7372 = vadd.f32 %v6916, %v7200
        %v7373 = vadd.f32 %v6917, %v7202
        %v7374 = vadd.f32 %v6918, %v7204
        %v7375 = vadd.f32 %v6919, %v7206
        %v7376 = vadd.f32 %v6920, %v7208
        %v7377 = vadd.f32 %v6921, %v7210
        %v7378 = vadd.f32 %v6922, %v7212
        %v7379 = vadd.f32 %v6923, %v7214
        %v7380 = vadd.f32 %v6924, %v7216
        %v7381 = vadd.f32 %v6925, %v7218
        %v7382 = vadd.f32 %v6926, %v7220
        %v7383 = vadd.f32 %v6927, %v7222
        %v7384 = vadd.f32 %v6928, %v7224
        %v7385 = vadd.f32 %v6929, %v7226
        %v7386 = vadd.f32 %v6930, %v7228
        %v7387 = vadd.f32 %v6931, %v7230
        %v7388 = vadd.f32 %v6932, %v7232
        %v7389 = vadd.f32 %v6933, %v7234
        %v7390 = vadd.f32 %v6934, %v7236
        %v7391 = vadd.f32 %v6935, %v7238
        %v7392 = vadd.f32 %v6936, %v7240
        %v7393 = vadd.f32 %v6937, %v7242
        %v7394 = vadd.f32 %v6938, %v7244
        %v7395 = vadd.f32 %v6939, %v7246
        %v7396 = vadd.f32 %v6940, %v7248
        %v7397 = vadd.f32 %v6941, %v7250
        %v7398 = vadd.f32 %v6942, %v7252
        %v7399 = vadd.f32 %v6943, %v7254
        %v7400 = vadd.f32 %v6944, %v7256
        %v7401 = vadd.f32 %v6945, %v7258
        %v7402 = vadd.f32 %v6946, %v7260
        %v7403 = vadd.f32 %v6947, %v7262
        %v7404 = vadd.f32 %v6948, %v7264
        %v7405 = vadd.f32 %v6949, %v7266
        %v7406 = vadd.f32 %v6950, %v7268
        %v7407 = vadd.f32 %v6951, %v7270
        %v7408 = vadd.f32 %v6952, %v7272
        %v7409 = vadd.f32 %v6953, %v7274
        %v7410 = vadd.f32 %v6954, %v7276
        %v7411 = vadd.f32 %v6955, %v7278
        %v7412 = vadd.f32 %v6956, %v7280
        %v7413 = vadd.f32 %v6957, %v7282
        %v7414 = vadd.f32 %v6958, %v7284
        %v7415 = vadd.f32 %v6959, %v7286
        %v7416 = vadd.f32 %v6960, %v7288
        %7417 = vrot.lane.b32.xlu0 %v6542, 64
        %v7418 = vpop.permute.xlu0 %7417
        %7419 = vrot.lane.b32.xlu0 %v6541, 64
        %v7420 = vpop.permute.xlu0 %7419
        %7421 = vrot.lane.b32.xlu0 %v6543, 64
        %v7422 = vpop.permute.xlu0 %7421
        %7423 = vrot.lane.b32.xlu0 %v6551, 64
        %v7424 = vpop.permute.xlu0 %7423
        %7425 = vrot.lane.b32.xlu0 %v6559, 64
        %v7426 = vpop.permute.xlu0 %7425
        %7427 = vrot.lane.b32.xlu0 %v6558, 64
        %v7428 = vpop.permute.xlu0 %7427
        %7429 = vrot.lane.b32.xlu0 %v6560, 64
        %v7430 = vpop.permute.xlu0 %7429
        %7431 = vrot.lane.b32.xlu0 %v6568, 64
        %v7432 = vpop.permute.xlu0 %7431
        %7433 = vrot.lane.b32.xlu0 %v6575, 64
        %v7434 = vpop.permute.xlu0 %7433
        %7435 = vrot.lane.b32.xlu0 %v6577, 64
        %v7436 = vpop.permute.xlu0 %7435
        %7437 = vrot.lane.b32.xlu0 %v6585, 64
        %v7438 = vpop.permute.xlu0 %7437
        %7439 = vrot.lane.b32.xlu0 %v6593, 64
        %v7440 = vpop.permute.xlu0 %7439
        %7441 = vrot.lane.b32.xlu0 %v6592, 64
        %v7442 = vpop.permute.xlu0 %7441
        %7443 = vrot.lane.b32.xlu0 %v6594, 64
        %v7444 = vpop.permute.xlu0 %7443
        %7445 = vrot.lane.b32.xlu0 %v6602, 64
        %v7446 = vpop.permute.xlu0 %7445
        %7447 = vrot.lane.b32.xlu0 %v6610, 64
        %v7448 = vpop.permute.xlu0 %7447
        %7449 = vrot.lane.b32.xlu0 %v6611, 64
        %v7450 = vpop.permute.xlu0 %7449
        %7451 = vrot.lane.b32.xlu0 %v6619, 64
        %v7452 = vpop.permute.xlu0 %7451
        %7453 = vrot.lane.b32.xlu0 %v6627, 64
        %v7454 = vpop.permute.xlu0 %7453
        %7455 = vrot.lane.b32.xlu0 %v6626, 64
        %v7456 = vpop.permute.xlu0 %7455
        %7457 = vrot.lane.b32.xlu0 %v6628, 64
        %v7458 = vpop.permute.xlu0 %7457
        %7459 = vrot.lane.b32.xlu0 %v6636, 64
        %v7460 = vpop.permute.xlu0 %7459
        %7461 = vrot.lane.b32.xlu0 %v6644, 64
        %v7462 = vpop.permute.xlu0 %7461
        %7463 = vrot.lane.b32.xlu0 %v6643, 64
        %v7464 = vpop.permute.xlu0 %7463
        %7465 = vrot.lane.b32.xlu0 %v6653, 64
        %v7466 = vpop.permute.xlu0 %7465
        %7467 = vrot.lane.b32.xlu0 %v6661, 64
        %v7468 = vpop.permute.xlu0 %7467
        %7469 = vrot.lane.b32.xlu0 %v6660, 64
        %v7470 = vpop.permute.xlu0 %7469
        %7471 = vrot.lane.b32.xlu0 %v6662, 64
        %v7472 = vpop.permute.xlu0 %7471
        %7473 = vrot.lane.b32.xlu0 %v6670, 64
        %v7474 = vpop.permute.xlu0 %7473
        %7475 = vrot.lane.b32.xlu0 %v6678, 64
        %v7476 = vpop.permute.xlu0 %7475
        %7477 = vrot.lane.b32.xlu0 %v6677, 64
        %v7478 = vpop.permute.xlu0 %7477
        %7479 = vrot.lane.b32.xlu0 %v6679, 64
        %v7480 = vpop.permute.xlu0 %7479
        %7481 = vrot.lane.b32.xlu0 %v6695, 64
        %v7482 = vpop.permute.xlu0 %7481
        %7483 = vrot.lane.b32.xlu0 %v6694, 64
        %v7484 = vpop.permute.xlu0 %7483
        %7485 = vrot.lane.b32.xlu0 %v6696, 64
        %v7486 = vpop.permute.xlu0 %7485
        %7487 = vrot.lane.b32.xlu0 %v6704, 64
        %v7488 = vpop.permute.xlu0 %7487
        %7489 = vrot.lane.b32.xlu0 %v6712, 64
        %v7490 = vpop.permute.xlu0 %7489
        %7491 = vrot.lane.b32.xlu0 %v6711, 64
        %v7492 = vpop.permute.xlu0 %7491
        %7493 = vrot.lane.b32.xlu0 %v6713, 64
        %v7494 = vpop.permute.xlu0 %7493
        %7495 = vrot.lane.b32.xlu0 %v6721, 64
        %v7496 = vpop.permute.xlu0 %7495
        %7497 = vrot.lane.b32.xlu0 %v6728, 64
        %v7498 = vpop.permute.xlu0 %7497
        %7499 = vrot.lane.b32.xlu0 %v6730, 64
        %v7500 = vpop.permute.xlu0 %7499
        %7501 = vrot.lane.b32.xlu0 %v6738, 64
        %v7502 = vpop.permute.xlu0 %7501
        %7503 = vrot.lane.b32.xlu0 %v6746, 64
        %v7504 = vpop.permute.xlu0 %7503
        %7505 = vrot.lane.b32.xlu0 %v6745, 64
        %v7506 = vpop.permute.xlu0 %7505
        %7507 = vrot.lane.b32.xlu0 %v6747, 64
        %v7508 = vpop.permute.xlu0 %7507
        %7509 = vrot.lane.b32.xlu0 %v6755, 64
        %v7510 = vpop.permute.xlu0 %7509
        %7511 = vrot.lane.b32.xlu0 %v6763, 64
        %v7512 = vpop.permute.xlu0 %7511
        %7513 = vrot.lane.b32.xlu0 %v6764, 64
        %v7514 = vpop.permute.xlu0 %7513
        %7515 = vrot.lane.b32.xlu0 %v6772, 64
        %v7516 = vpop.permute.xlu0 %7515
        %7517 = vrot.lane.b32.xlu0 %v6780, 64
        %v7518 = vpop.permute.xlu0 %7517
        %7519 = vrot.lane.b32.xlu0 %v6779, 64
        %v7520 = vpop.permute.xlu0 %7519
        %7521 = vrot.lane.b32.xlu0 %v6781, 64
        %v7522 = vpop.permute.xlu0 %7521
        %7523 = vrot.lane.b32.xlu0 %v6789, 64
        %v7524 = vpop.permute.xlu0 %7523
        %7525 = vrot.lane.b32.xlu0 %v6797, 64
        %v7526 = vpop.permute.xlu0 %7525
        %7527 = vrot.lane.b32.xlu0 %v6796, 64
        %v7528 = vpop.permute.xlu0 %7527
        %7529 = vrot.lane.b32.xlu0 %v6806, 64
        %v7530 = vpop.permute.xlu0 %7529
        %7531 = vrot.lane.b32.xlu0 %v6814, 64
        %v7532 = vpop.permute.xlu0 %7531
        %7533 = vrot.lane.b32.xlu0 %v6813, 64
        %v7534 = vpop.permute.xlu0 %7533
        %7535 = vrot.lane.b32.xlu0 %v6815, 64
        %v7536 = vpop.permute.xlu0 %7535
        %7537 = vrot.lane.b32.xlu0 %v6823, 64
        %v7538 = vpop.permute.xlu0 %7537
        %7539 = vrot.lane.b32.xlu0 %v6831, 64
        %v7540 = vpop.permute.xlu0 %7539
        %7541 = vrot.lane.b32.xlu0 %v6830, 64
        %v7542 = vpop.permute.xlu0 %7541
        %7543 = vrot.lane.b32.xlu0 %v6832, 64
        %v7544 = vpop.permute.xlu0 %7543
        %v7609 = vadd.f32 %v7353, %v7418
        %v7610 = vadd.f32 %v7354, %v7420
        %v7611 = vadd.f32 %v7355, %v7422
        %v7612 = vadd.f32 %v7356, %v7424
        %v7613 = vadd.f32 %v7357, %v7426
        %v7614 = vadd.f32 %v7358, %v7428
        %v7615 = vadd.f32 %v7359, %v7430
        %v7616 = vadd.f32 %v7360, %v7432
        %v7617 = vadd.f32 %v7361, %v7434
        %v7618 = vadd.f32 %v7362, %v7436
        %v7619 = vadd.f32 %v7363, %v7438
        %v7620 = vadd.f32 %v7364, %v7440
        %v7621 = vadd.f32 %v7365, %v7442
        %v7622 = vadd.f32 %v7366, %v7444
        %v7623 = vadd.f32 %v7367, %v7446
        %v7624 = vadd.f32 %v7368, %v7448
        %v7625 = vadd.f32 %v7369, %v7450
        %v7626 = vadd.f32 %v7370, %v7452
        %v7627 = vadd.f32 %v7371, %v7454
        %v7628 = vadd.f32 %v7372, %v7456
        %v7629 = vadd.f32 %v7373, %v7458
        %v7630 = vadd.f32 %v7374, %v7460
        %v7631 = vadd.f32 %v7375, %v7462
        %v7632 = vadd.f32 %v7376, %v7464
        %v7633 = vadd.f32 %v7377, %v7466
        %v7634 = vadd.f32 %v7378, %v7468
        %v7635 = vadd.f32 %v7379, %v7470
        %v7636 = vadd.f32 %v7380, %v7472
        %v7637 = vadd.f32 %v7381, %v7474
        %v7638 = vadd.f32 %v7382, %v7476
        %v7639 = vadd.f32 %v7383, %v7478
        %v7640 = vadd.f32 %v7384, %v7480
        %v7641 = vadd.f32 %v7385, %v7482
        %v7642 = vadd.f32 %v7386, %v7484
        %v7643 = vadd.f32 %v7387, %v7486
        %v7644 = vadd.f32 %v7388, %v7488
        %v7645 = vadd.f32 %v7389, %v7490
        %v7646 = vadd.f32 %v7390, %v7492
        %v7647 = vadd.f32 %v7391, %v7494
        %v7648 = vadd.f32 %v7392, %v7496
        %v7649 = vadd.f32 %v7393, %v7498
        %v7650 = vadd.f32 %v7394, %v7500
        %v7651 = vadd.f32 %v7395, %v7502
        %v7652 = vadd.f32 %v7396, %v7504
        %v7653 = vadd.f32 %v7397, %v7506
        %v7654 = vadd.f32 %v7398, %v7508
        %v7655 = vadd.f32 %v7399, %v7510
        %v7656 = vadd.f32 %v7400, %v7512
        %v7657 = vadd.f32 %v7401, %v7514
        %v7658 = vadd.f32 %v7402, %v7516
        %v7659 = vadd.f32 %v7403, %v7518
        %v7660 = vadd.f32 %v7404, %v7520
        %v7661 = vadd.f32 %v7405, %v7522
        %v7662 = vadd.f32 %v7406, %v7524
        %v7663 = vadd.f32 %v7407, %v7526
        %v7664 = vadd.f32 %v7408, %v7528
        %v7665 = vadd.f32 %v7409, %v7530
        %v7666 = vadd.f32 %v7410, %v7532
        %v7667 = vadd.f32 %v7411, %v7534
        %v7668 = vadd.f32 %v7412, %v7536
        %v7669 = vadd.f32 %v7413, %v7538
        %v7670 = vadd.f32 %v7414, %v7540
        %v7671 = vadd.f32 %v7415, %v7542
        %v7672 = vadd.f32 %v7416, %v7544
        %v7673 = vld [vmem:[%s4] sm:$0x1]
        %v7675 = vlaneseq
        %v7676 = vshrl.u32 %v7675, 7
        %v7677 = vsub.s32 0, %v7676
        %v7678 = vrot.slane %v7673, %v7677
        %v7679 = vcombine.high %v7678, %v7678
        %v7681 = vunpack.c.l.s4 1983009808
        %v7682 = vunpack.c.0.s8 %v7681
        %v7683 = vlaneseq
        %v7684 = vshrl.u32 %v7683, 7
        %v7685 = vsub.s32 %v7682, %v7684
        %v7686 = vrot.slane %v7678, %v7685
        %v7688 = vunpack.c.l.s4 1983009808
        %v7689 = vunpack.c.0.s8 %v7688
        %v7690 = vlaneseq
        %v7691 = vshrl.u32 %v7690, 7
        %v7692 = vsub.s32 %v7689, %v7691
        %v7693 = vrot.slane %v7679, %v7692
        %v7694 = vcombine.high %v7686, %v7686
        %v7695 = vcombine.high %v7693, %v7693
        %v7700 = vadd.f32 %v7609, %v7686
        %v7701 = vadd.f32 %v7610, %v7694
        %v7702 = vadd.f32 %v7611, %v7693
        %v7703 = vadd.f32 %v7612, %v7695
        %v7704 = vadd.f32 %v7613, %v7686
        %v7705 = vadd.f32 %v7614, %v7694
        %v7706 = vadd.f32 %v7615, %v7693
        %v7707 = vadd.f32 %v7616, %v7695
        %v7708 = vadd.f32 %v7617, %v7686
        %v7709 = vadd.f32 %v7618, %v7694
        %v7710 = vadd.f32 %v7619, %v7693
        %v7711 = vadd.f32 %v7620, %v7695
        %v7712 = vadd.f32 %v7621, %v7686
        %v7713 = vadd.f32 %v7622, %v7694
        %v7714 = vadd.f32 %v7623, %v7693
        %v7715 = vadd.f32 %v7624, %v7695
        %v7716 = vadd.f32 %v7625, %v7686
        %v7717 = vadd.f32 %v7626, %v7694
        %v7718 = vadd.f32 %v7627, %v7693
        %v7719 = vadd.f32 %v7628, %v7695
        %v7720 = vadd.f32 %v7629, %v7686
        %v7721 = vadd.f32 %v7630, %v7694
        %v7722 = vadd.f32 %v7631, %v7693
        %v7723 = vadd.f32 %v7632, %v7695
        %v7724 = vadd.f32 %v7633, %v7686
        %v7725 = vadd.f32 %v7634, %v7694
        %v7726 = vadd.f32 %v7635, %v7693
        %v7727 = vadd.f32 %v7636, %v7695
        %v7728 = vadd.f32 %v7637, %v7686
        %v7729 = vadd.f32 %v7638, %v7694
        %v7730 = vadd.f32 %v7639, %v7693
        %v7731 = vadd.f32 %v7640, %v7695
        %v7732 = vadd.f32 %v7641, %v7686
        %v7733 = vadd.f32 %v7642, %v7694
        %v7734 = vadd.f32 %v7643, %v7693
        %v7735 = vadd.f32 %v7644, %v7695
        %v7736 = vadd.f32 %v7645, %v7686
        %v7737 = vadd.f32 %v7646, %v7694
        %v7738 = vadd.f32 %v7647, %v7693
        %v7739 = vadd.f32 %v7648, %v7695
        %v7740 = vadd.f32 %v7649, %v7686
        %v7741 = vadd.f32 %v7650, %v7694
        %v7742 = vadd.f32 %v7651, %v7693
        %v7743 = vadd.f32 %v7652, %v7695
        %v7744 = vadd.f32 %v7653, %v7686
        %v7745 = vadd.f32 %v7654, %v7694
        %v7746 = vadd.f32 %v7655, %v7693
        %v7747 = vadd.f32 %v7656, %v7695
        %v7748 = vadd.f32 %v7657, %v7686
        %v7749 = vadd.f32 %v7658, %v7694
        %v7750 = vadd.f32 %v7659, %v7693
        %v7751 = vadd.f32 %v7660, %v7695
        %v7752 = vadd.f32 %v7661, %v7686
        %v7753 = vadd.f32 %v7662, %v7694
        %v7754 = vadd.f32 %v7663, %v7693
        %v7755 = vadd.f32 %v7664, %v7695
        %v7756 = vadd.f32 %v7665, %v7686
        %v7757 = vadd.f32 %v7666, %v7694
        %v7758 = vadd.f32 %v7667, %v7693
        %v7759 = vadd.f32 %v7668, %v7695
        %v7760 = vadd.f32 %v7669, %v7686
        %v7761 = vadd.f32 %v7670, %v7694
        %v7762 = vadd.f32 %v7671, %v7693
        %v7763 = vadd.f32 %v7672, %v7695
        %vm7764 = vcmp.gt.f32.partialorder %v7700, 0.0
        %vm7765 = vcmp.gt.f32.partialorder %v7701, 0.0
        %vm7766 = vcmp.gt.f32.partialorder %v7702, 0.0
        %vm7767 = vcmp.gt.f32.partialorder %v7703, 0.0
        %vm7768 = vcmp.gt.f32.partialorder %v7704, 0.0
        %vm7769 = vcmp.gt.f32.partialorder %v7705, 0.0
        %vm7770 = vcmp.gt.f32.partialorder %v7706, 0.0
        %vm7771 = vcmp.gt.f32.partialorder %v7707, 0.0
        %vm7772 = vcmp.gt.f32.partialorder %v7708, 0.0
        %vm7773 = vcmp.gt.f32.partialorder %v7709, 0.0
        %vm7774 = vcmp.gt.f32.partialorder %v7710, 0.0
        %vm7775 = vcmp.gt.f32.partialorder %v7711, 0.0
        %vm7776 = vcmp.gt.f32.partialorder %v7712, 0.0
        %vm7777 = vcmp.gt.f32.partialorder %v7713, 0.0
        %vm7778 = vcmp.gt.f32.partialorder %v7714, 0.0
        %vm7779 = vcmp.gt.f32.partialorder %v7715, 0.0
        %vm7780 = vcmp.gt.f32.partialorder %v7716, 0.0
        %vm7781 = vcmp.gt.f32.partialorder %v7717, 0.0
        %vm7782 = vcmp.gt.f32.partialorder %v7718, 0.0
        %vm7783 = vcmp.gt.f32.partialorder %v7719, 0.0
        %vm7784 = vcmp.gt.f32.partialorder %v7720, 0.0
        %vm7785 = vcmp.gt.f32.partialorder %v7721, 0.0
        %vm7786 = vcmp.gt.f32.partialorder %v7722, 0.0
        %vm7787 = vcmp.gt.f32.partialorder %v7723, 0.0
        %vm7788 = vcmp.gt.f32.partialorder %v7724, 0.0
        %vm7789 = vcmp.gt.f32.partialorder %v7725, 0.0
        %vm7790 = vcmp.gt.f32.partialorder %v7726, 0.0
        %vm7791 = vcmp.gt.f32.partialorder %v7727, 0.0
        %vm7792 = vcmp.gt.f32.partialorder %v7728, 0.0
        %vm7793 = vcmp.gt.f32.partialorder %v7729, 0.0
        %vm7794 = vcmp.gt.f32.partialorder %v7730, 0.0
        %vm7795 = vcmp.gt.f32.partialorder %v7731, 0.0
        %vm7796 = vcmp.gt.f32.partialorder %v7732, 0.0
        %vm7797 = vcmp.gt.f32.partialorder %v7733, 0.0
        %vm7798 = vcmp.gt.f32.partialorder %v7734, 0.0
        %vm7799 = vcmp.gt.f32.partialorder %v7735, 0.0
        %vm7800 = vcmp.gt.f32.partialorder %v7736, 0.0
        %vm7801 = vcmp.gt.f32.partialorder %v7737, 0.0
        %vm7802 = vcmp.gt.f32.partialorder %v7738, 0.0
        %vm7803 = vcmp.gt.f32.partialorder %v7739, 0.0
        %vm7804 = vcmp.gt.f32.partialorder %v7740, 0.0
        %vm7805 = vcmp.gt.f32.partialorder %v7741, 0.0
        %vm7806 = vcmp.gt.f32.partialorder %v7742, 0.0
        %vm7807 = vcmp.gt.f32.partialorder %v7743, 0.0
        %vm7808 = vcmp.gt.f32.partialorder %v7744, 0.0
        %vm7809 = vcmp.gt.f32.partialorder %v7745, 0.0
        %vm7810 = vcmp.gt.f32.partialorder %v7746, 0.0
        %vm7811 = vcmp.gt.f32.partialorder %v7747, 0.0
        %vm7812 = vcmp.gt.f32.partialorder %v7748, 0.0
        %vm7813 = vcmp.gt.f32.partialorder %v7749, 0.0
        %vm7814 = vcmp.gt.f32.partialorder %v7750, 0.0
        %vm7815 = vcmp.gt.f32.partialorder %v7751, 0.0
        %vm7816 = vcmp.gt.f32.partialorder %v7752, 0.0
        %vm7817 = vcmp.gt.f32.partialorder %v7753, 0.0
        %vm7818 = vcmp.gt.f32.partialorder %v7754, 0.0
        %vm7819 = vcmp.gt.f32.partialorder %v7755, 0.0
        %vm7820 = vcmp.gt.f32.partialorder %v7756, 0.0
        %vm7821 = vcmp.gt.f32.partialorder %v7757, 0.0
        %vm7822 = vcmp.gt.f32.partialorder %v7758, 0.0
        %vm7823 = vcmp.gt.f32.partialorder %v7759, 0.0
        %vm7824 = vcmp.gt.f32.partialorder %v7760, 0.0
        %vm7825 = vcmp.gt.f32.partialorder %v7761, 0.0
        %vm7826 = vcmp.gt.f32.partialorder %v7762, 0.0
        %vm7827 = vcmp.gt.f32.partialorder %v7763, 0.0
        %v7828 = vmul.f32 %v7700, 0.2
        %v7829 = vmul.f32 %v7701, 0.2
        %v7830 = vmul.f32 %v7702, 0.2
        %v7831 = vmul.f32 %v7703, 0.2
        %v7832 = vmul.f32 %v7704, 0.2
        %v7833 = vmul.f32 %v7705, 0.2
        %v7834 = vmul.f32 %v7706, 0.2
        %v7835 = vmul.f32 %v7707, 0.2
        %v7836 = vmul.f32 %v7708, 0.2
        %v7837 = vmul.f32 %v7709, 0.2
        %v7838 = vmul.f32 %v7710, 0.2
        %v7839 = vmul.f32 %v7711, 0.2
        %v7840 = vmul.f32 %v7712, 0.2
        %v7841 = vmul.f32 %v7713, 0.2
        %v7842 = vmul.f32 %v7714, 0.2
        %v7843 = vmul.f32 %v7715, 0.2
        %v7844 = vmul.f32 %v7716, 0.2
        %v7845 = vmul.f32 %v7717, 0.2
        %v7846 = vmul.f32 %v7718, 0.2
        %v7847 = vmul.f32 %v7719, 0.2
        %v7848 = vmul.f32 %v7720, 0.2
        %v7849 = vmul.f32 %v7721, 0.2
        %v7850 = vmul.f32 %v7722, 0.2
        %v7851 = vmul.f32 %v7723, 0.2
        %v7852 = vmul.f32 %v7724, 0.2
        %v7853 = vmul.f32 %v7725, 0.2
        %v7854 = vmul.f32 %v7726, 0.2
        %v7855 = vmul.f32 %v7727, 0.2
        %v7856 = vmul.f32 %v7728, 0.2
        %v7857 = vmul.f32 %v7729, 0.2
        %v7858 = vmul.f32 %v7730, 0.2
        %v7859 = vmul.f32 %v7731, 0.2
        %v7860 = vmul.f32 %v7732, 0.2
        %v7861 = vmul.f32 %v7733, 0.2
        %v7862 = vmul.f32 %v7734, 0.2
        %v7863 = vmul.f32 %v7735, 0.2
        %v7864 = vmul.f32 %v7736, 0.2
        %v7865 = vmul.f32 %v7737, 0.2
        %v7866 = vmul.f32 %v7738, 0.2
        %v7867 = vmul.f32 %v7739, 0.2
        %v7868 = vmul.f32 %v7740, 0.2
        %v7869 = vmul.f32 %v7741, 0.2
        %v7870 = vmul.f32 %v7742, 0.2
        %v7871 = vmul.f32 %v7743, 0.2
        %v7872 = vmul.f32 %v7744, 0.2
        %v7873 = vmul.f32 %v7745, 0.2
        %v7874 = vmul.f32 %v7746, 0.2
        %v7875 = vmul.f32 %v7747, 0.2
        %v7876 = vmul.f32 %v7748, 0.2
        %v7877 = vmul.f32 %v7749, 0.2
        %v7878 = vmul.f32 %v7750, 0.2
        %v7879 = vmul.f32 %v7751, 0.2
        %v7880 = vmul.f32 %v7752, 0.2
        %v7881 = vmul.f32 %v7753, 0.2
        %v7882 = vmul.f32 %v7754, 0.2
        %v7883 = vmul.f32 %v7755, 0.2
        %v7884 = vmul.f32 %v7756, 0.2
        %v7885 = vmul.f32 %v7757, 0.2
        %v7886 = vmul.f32 %v7758, 0.2
        %v7887 = vmul.f32 %v7759, 0.2
        %v7888 = vmul.f32 %v7760, 0.2
        %v7889 = vmul.f32 %v7761, 0.2
        %v7890 = vmul.f32 %v7762, 0.2
        %v7891 = vmul.f32 %v7763, 0.2
        %v7892 = vsel %vm7764, %v7700, %v7828
        %v7893 = vsel %vm7765, %v7701, %v7829
        %v7894 = vsel %vm7766, %v7702, %v7830
        %v7895 = vsel %vm7767, %v7703, %v7831
        %v7896 = vsel %vm7768, %v7704, %v7832
        %v7897 = vsel %vm7769, %v7705, %v7833
        %v7898 = vsel %vm7770, %v7706, %v7834
        %v7899 = vsel %vm7771, %v7707, %v7835
        %v7900 = vsel %vm7772, %v7708, %v7836
        %v7901 = vsel %vm7773, %v7709, %v7837
        %v7902 = vsel %vm7774, %v7710, %v7838
        %v7903 = vsel %vm7775, %v7711, %v7839
        %v7904 = vsel %vm7776, %v7712, %v7840
        %v7905 = vsel %vm7777, %v7713, %v7841
        %v7906 = vsel %vm7778, %v7714, %v7842
        %v7907 = vsel %vm7779, %v7715, %v7843
        %v7908 = vsel %vm7780, %v7716, %v7844
        %v7909 = vsel %vm7781, %v7717, %v7845
        %v7910 = vsel %vm7782, %v7718, %v7846
        %v7911 = vsel %vm7783, %v7719, %v7847
        %v7912 = vsel %vm7784, %v7720, %v7848
        %v7913 = vsel %vm7785, %v7721, %v7849
        %v7914 = vsel %vm7786, %v7722, %v7850
        %v7915 = vsel %vm7787, %v7723, %v7851
        %v7916 = vsel %vm7788, %v7724, %v7852
        %v7917 = vsel %vm7789, %v7725, %v7853
        %v7918 = vsel %vm7790, %v7726, %v7854
        %v7919 = vsel %vm7791, %v7727, %v7855
        %v7920 = vsel %vm7792, %v7728, %v7856
        %v7921 = vsel %vm7793, %v7729, %v7857
        %v7922 = vsel %vm7794, %v7730, %v7858
        %v7923 = vsel %vm7795, %v7731, %v7859
        %v7924 = vsel %vm7796, %v7732, %v7860
        %v7925 = vsel %vm7797, %v7733, %v7861
        %v7926 = vsel %vm7798, %v7734, %v7862
        %v7927 = vsel %vm7799, %v7735, %v7863
        %v7928 = vsel %vm7800, %v7736, %v7864
        %v7929 = vsel %vm7801, %v7737, %v7865
        %v7930 = vsel %vm7802, %v7738, %v7866
        %v7931 = vsel %vm7803, %v7739, %v7867
        %v7932 = vsel %vm7804, %v7740, %v7868
        %v7933 = vsel %vm7805, %v7741, %v7869
        %v7934 = vsel %vm7806, %v7742, %v7870
        %v7935 = vsel %vm7807, %v7743, %v7871
        %v7936 = vsel %vm7808, %v7744, %v7872
        %v7937 = vsel %vm7809, %v7745, %v7873
        %v7938 = vsel %vm7810, %v7746, %v7874
        %v7939 = vsel %vm7811, %v7747, %v7875
        %v7940 = vsel %vm7812, %v7748, %v7876
        %v7941 = vsel %vm7813, %v7749, %v7877
        %v7942 = vsel %vm7814, %v7750, %v7878
        %v7943 = vsel %vm7815, %v7751, %v7879
        %v7944 = vsel %vm7816, %v7752, %v7880
        %v7945 = vsel %vm7817, %v7753, %v7881
        %v7946 = vsel %vm7818, %v7754, %v7882
        %v7947 = vsel %vm7819, %v7755, %v7883
        %v7948 = vsel %vm7820, %v7756, %v7884
        %v7949 = vsel %vm7821, %v7757, %v7885
        %v7950 = vsel %vm7822, %v7758, %v7886
        %v7951 = vsel %vm7823, %v7759, %v7887
        %v7952 = vsel %vm7824, %v7760, %v7888
        %v7953 = vsel %vm7825, %v7761, %v7889
        %v7954 = vsel %vm7826, %v7762, %v7890
        %v7955 = vsel %vm7827, %v7763, %v7891
        %v8020 = vcombine.low %v7892, %v7893
        %v8021 = vcombine.low %v7894, %v7895
        %v8023 = vunpack.c.l.s4 1983009808
        %v8024 = vunpack.c.0.s8 %v8023
        %v8025 = vlaneseq
        %v8026 = vshrl.u32 %v8025, 7
        %v8027 = vsub.s32 %v8024, %v8026
        %v8028 = vrot.slane %v8020, %v8027
        %v8030 = vunpack.c.l.s4 1983009808
        %v8031 = vunpack.c.0.s8 %v8030
        %v8032 = vlaneseq
        %v8033 = vshrl.u32 %v8032, 7
        %v8034 = vsub.s32 %v8031, %v8033
        %v8035 = vrot.slane %v8021, %v8034
        %v8036 = vcombine.low %v8028, %v8035
        %v8037 = vcombine.low %v7896, %v7897
        %v8038 = vcombine.low %v7898, %v7899
        %v8040 = vunpack.c.l.s4 1983009808
        %v8041 = vunpack.c.0.s8 %v8040
        %v8042 = vlaneseq
        %v8043 = vshrl.u32 %v8042, 7
        %v8044 = vsub.s32 %v8041, %v8043
        %v8045 = vrot.slane %v8037, %v8044
        %v8047 = vunpack.c.l.s4 1983009808
        %v8048 = vunpack.c.0.s8 %v8047
        %v8049 = vlaneseq
        %v8050 = vshrl.u32 %v8049, 7
        %v8051 = vsub.s32 %v8048, %v8050
        %v8052 = vrot.slane %v8038, %v8051
        %v8053 = vcombine.low %v8045, %v8052
        %v8054 = vcombine.low %v7900, %v7901
        %v8055 = vcombine.low %v7902, %v7903
        %v8057 = vunpack.c.l.s4 1983009808
        %v8058 = vunpack.c.0.s8 %v8057
        %v8059 = vlaneseq
        %v8060 = vshrl.u32 %v8059, 7
        %v8061 = vsub.s32 %v8058, %v8060
        %v8062 = vrot.slane %v8054, %v8061
        %v8064 = vunpack.c.l.s4 1983009808
        %v8065 = vunpack.c.0.s8 %v8064
        %v8066 = vlaneseq
        %v8067 = vshrl.u32 %v8066, 7
        %v8068 = vsub.s32 %v8065, %v8067
        %v8069 = vrot.slane %v8055, %v8068
        %v8070 = vcombine.low %v8062, %v8069
        %v8071 = vcombine.low %v7904, %v7905
        %v8072 = vcombine.low %v7906, %v7907
        %v8074 = vunpack.c.l.s4 1983009808
        %v8075 = vunpack.c.0.s8 %v8074
        %v8076 = vlaneseq
        %v8077 = vshrl.u32 %v8076, 7
        %v8078 = vsub.s32 %v8075, %v8077
        %v8079 = vrot.slane %v8071, %v8078
        %v8081 = vunpack.c.l.s4 1983009808
        %v8082 = vunpack.c.0.s8 %v8081
        %v8083 = vlaneseq
        %v8084 = vshrl.u32 %v8083, 7
        %v8085 = vsub.s32 %v8082, %v8084
        %v8086 = vrot.slane %v8072, %v8085
        %v8087 = vcombine.low %v8079, %v8086
        %v8088 = vcombine.low %v7908, %v7909
        %v8089 = vcombine.low %v7910, %v7911
        %v8091 = vunpack.c.l.s4 1983009808
        %v8092 = vunpack.c.0.s8 %v8091
        %v8093 = vlaneseq
        %v8094 = vshrl.u32 %v8093, 7
        %v8095 = vsub.s32 %v8092, %v8094
        %v8096 = vrot.slane %v8088, %v8095
        %v8098 = vunpack.c.l.s4 1983009808
        %v8099 = vunpack.c.0.s8 %v8098
        %v8100 = vlaneseq
        %v8101 = vshrl.u32 %v8100, 7
        %v8102 = vsub.s32 %v8099, %v8101
        %v8103 = vrot.slane %v8089, %v8102
        %v8104 = vcombine.low %v8096, %v8103
        %v8105 = vcombine.low %v7912, %v7913
        %v8106 = vcombine.low %v7914, %v7915
        %v8108 = vunpack.c.l.s4 1983009808
        %v8109 = vunpack.c.0.s8 %v8108
        %v8110 = vlaneseq
        %v8111 = vshrl.u32 %v8110, 7
        %v8112 = vsub.s32 %v8109, %v8111
        %v8113 = vrot.slane %v8105, %v8112
        %v8115 = vunpack.c.l.s4 1983009808
        %v8116 = vunpack.c.0.s8 %v8115
        %v8117 = vlaneseq
        %v8118 = vshrl.u32 %v8117, 7
        %v8119 = vsub.s32 %v8116, %v8118
        %v8120 = vrot.slane %v8106, %v8119
        %v8121 = vcombine.low %v8113, %v8120
        %v8122 = vcombine.low %v7916, %v7917
        %v8123 = vcombine.low %v7918, %v7919
        %v8125 = vunpack.c.l.s4 1983009808
        %v8126 = vunpack.c.0.s8 %v8125
        %v8127 = vlaneseq
        %v8128 = vshrl.u32 %v8127, 7
        %v8129 = vsub.s32 %v8126, %v8128
        %v8130 = vrot.slane %v8122, %v8129
        %v8132 = vunpack.c.l.s4 1983009808
        %v8133 = vunpack.c.0.s8 %v8132
        %v8134 = vlaneseq
        %v8135 = vshrl.u32 %v8134, 7
        %v8136 = vsub.s32 %v8133, %v8135
        %v8137 = vrot.slane %v8123, %v8136
        %v8138 = vcombine.low %v8130, %v8137
        %v8139 = vcombine.low %v7920, %v7921
        %v8140 = vcombine.low %v7922, %v7923
        %v8142 = vunpack.c.l.s4 1983009808
        %v8143 = vunpack.c.0.s8 %v8142
        %v8144 = vlaneseq
        %v8145 = vshrl.u32 %v8144, 7
        %v8146 = vsub.s32 %v8143, %v8145
        %v8147 = vrot.slane %v8139, %v8146
        %v8149 = vunpack.c.l.s4 1983009808
        %v8150 = vunpack.c.0.s8 %v8149
        %v8151 = vlaneseq
        %v8152 = vshrl.u32 %v8151, 7
        %v8153 = vsub.s32 %v8150, %v8152
        %v8154 = vrot.slane %v8140, %v8153
        %v8155 = vcombine.low %v8147, %v8154
        %v8156 = vcombine.low %v7924, %v7925
        %v8157 = vcombine.low %v7926, %v7927
        %v8159 = vunpack.c.l.s4 1983009808
        %v8160 = vunpack.c.0.s8 %v8159
        %v8161 = vlaneseq
        %v8162 = vshrl.u32 %v8161, 7
        %v8163 = vsub.s32 %v8160, %v8162
        %v8164 = vrot.slane %v8156, %v8163
        %v8166 = vunpack.c.l.s4 1983009808
        %v8167 = vunpack.c.0.s8 %v8166
        %v8168 = vlaneseq
        %v8169 = vshrl.u32 %v8168, 7
        %v8170 = vsub.s32 %v8167, %v8169
        %v8171 = vrot.slane %v8157, %v8170
        %v8172 = vcombine.low %v8164, %v8171
        %v8173 = vcombine.low %v7928, %v7929
        %v8174 = vcombine.low %v7930, %v7931
        %v8176 = vunpack.c.l.s4 1983009808
        %v8177 = vunpack.c.0.s8 %v8176
        %v8178 = vlaneseq
        %v8179 = vshrl.u32 %v8178, 7
        %v8180 = vsub.s32 %v8177, %v8179
        %v8181 = vrot.slane %v8173, %v8180
        %v8183 = vunpack.c.l.s4 1983009808
        %v8184 = vunpack.c.0.s8 %v8183
        %v8185 = vlaneseq
        %v8186 = vshrl.u32 %v8185, 7
        %v8187 = vsub.s32 %v8184, %v8186
        %v8188 = vrot.slane %v8174, %v8187
        %v8189 = vcombine.low %v8181, %v8188
        %v8190 = vcombine.low %v7932, %v7933
        %v8191 = vcombine.low %v7934, %v7935
        %v8193 = vunpack.c.l.s4 1983009808
        %v8194 = vunpack.c.0.s8 %v8193
        %v8195 = vlaneseq
        %v8196 = vshrl.u32 %v8195, 7
        %v8197 = vsub.s32 %v8194, %v8196
        %v8198 = vrot.slane %v8190, %v8197
        %v8200 = vunpack.c.l.s4 1983009808
        %v8201 = vunpack.c.0.s8 %v8200
        %v8202 = vlaneseq
        %v8203 = vshrl.u32 %v8202, 7
        %v8204 = vsub.s32 %v8201, %v8203
        %v8205 = vrot.slane %v8191, %v8204
        %v8206 = vcombine.low %v8198, %v8205
        %v8207 = vcombine.low %v7936, %v7937
        %v8208 = vcombine.low %v7938, %v7939
        %v8210 = vunpack.c.l.s4 1983009808
        %v8211 = vunpack.c.0.s8 %v8210
        %v8212 = vlaneseq
        %v8213 = vshrl.u32 %v8212, 7
        %v8214 = vsub.s32 %v8211, %v8213
        %v8215 = vrot.slane %v8207, %v8214
        %v8217 = vunpack.c.l.s4 1983009808
        %v8218 = vunpack.c.0.s8 %v8217
        %v8219 = vlaneseq
        %v8220 = vshrl.u32 %v8219, 7
        %v8221 = vsub.s32 %v8218, %v8220
        %v8222 = vrot.slane %v8208, %v8221
        %v8223 = vcombine.low %v8215, %v8222
        %v8224 = vcombine.low %v7940, %v7941
        %v8225 = vcombine.low %v7942, %v7943
        %v8227 = vunpack.c.l.s4 1983009808
        %v8228 = vunpack.c.0.s8 %v8227
        %v8229 = vlaneseq
        %v8230 = vshrl.u32 %v8229, 7
        %v8231 = vsub.s32 %v8228, %v8230
        %v8232 = vrot.slane %v8224, %v8231
        %v8234 = vunpack.c.l.s4 1983009808
        %v8235 = vunpack.c.0.s8 %v8234
        %v8236 = vlaneseq
        %v8237 = vshrl.u32 %v8236, 7
        %v8238 = vsub.s32 %v8235, %v8237
        %v8239 = vrot.slane %v8225, %v8238
        %v8240 = vcombine.low %v8232, %v8239
        %v8241 = vcombine.low %v7944, %v7945
        %v8242 = vcombine.low %v7946, %v7947
        %v8244 = vunpack.c.l.s4 1983009808
        %v8245 = vunpack.c.0.s8 %v8244
        %v8246 = vlaneseq
        %v8247 = vshrl.u32 %v8246, 7
        %v8248 = vsub.s32 %v8245, %v8247
        %v8249 = vrot.slane %v8241, %v8248
        %v8251 = vunpack.c.l.s4 1983009808
        %v8252 = vunpack.c.0.s8 %v8251
        %v8253 = vlaneseq
        %v8254 = vshrl.u32 %v8253, 7
        %v8255 = vsub.s32 %v8252, %v8254
        %v8256 = vrot.slane %v8242, %v8255
        %v8257 = vcombine.low %v8249, %v8256
        %v8258 = vcombine.low %v7948, %v7949
        %v8259 = vcombine.low %v7950, %v7951
        %v8261 = vunpack.c.l.s4 1983009808
        %v8262 = vunpack.c.0.s8 %v8261
        %v8263 = vlaneseq
        %v8264 = vshrl.u32 %v8263, 7
        %v8265 = vsub.s32 %v8262, %v8264
        %v8266 = vrot.slane %v8258, %v8265
        %v8268 = vunpack.c.l.s4 1983009808
        %v8269 = vunpack.c.0.s8 %v8268
        %v8270 = vlaneseq
        %v8271 = vshrl.u32 %v8270, 7
        %v8272 = vsub.s32 %v8269, %v8271
        %v8273 = vrot.slane %v8259, %v8272
        %v8274 = vcombine.low %v8266, %v8273
        %v8275 = vcombine.low %v7952, %v7953
        %v8276 = vcombine.low %v7954, %v7955
        %v8278 = vunpack.c.l.s4 1983009808
        %v8279 = vunpack.c.0.s8 %v8278
        %v8280 = vlaneseq
        %v8281 = vshrl.u32 %v8280, 7
        %v8282 = vsub.s32 %v8279, %v8281
        %v8283 = vrot.slane %v8275, %v8282
        %v8285 = vunpack.c.l.s4 1983009808
        %v8286 = vunpack.c.0.s8 %v8285
        %v8287 = vlaneseq
        %v8288 = vshrl.u32 %v8287, 7
        %v8289 = vsub.s32 %v8286, %v8288
        %v8290 = vrot.slane %v8276, %v8289
        %v8291 = vcombine.low %v8283, %v8290
        %v8308 = vpack.c.bf16 %v8053, %v8036
        %v8309 = vpack.c.bf16 %v8087, %v8070
        %v8310 = vpack.c.bf16 %v8121, %v8104
        %v8311 = vpack.c.bf16 %v8155, %v8138
        %v8312 = vpack.c.bf16 %v8189, %v8172
        %v8313 = vpack.c.bf16 %v8223, %v8206
        %v8314 = vpack.c.bf16 %v8257, %v8240
        %v8315 = vpack.c.bf16 %v8291, %v8274
        %v8324 = vunpack.c.l.b16 %v8308
        %v8325 = vunpack.c.h.b16 %v8308
        %v8326 = vunpack.c.l.b16 %v8309
        %v8327 = vunpack.c.h.b16 %v8309
        %v8328 = vunpack.c.l.b16 %v8310
        %v8329 = vunpack.c.h.b16 %v8310
        %v8330 = vunpack.c.l.b16 %v8311
        %v8331 = vunpack.c.h.b16 %v8311
        %v8332 = vunpack.c.l.b16 %v8312
        %v8333 = vunpack.c.h.b16 %v8312
        %v8334 = vunpack.c.l.b16 %v8313
        %v8335 = vunpack.c.h.b16 %v8313
        %v8336 = vunpack.c.l.b16 %v8314
        %v8337 = vunpack.c.h.b16 %v8314
        %v8338 = vunpack.c.l.b16 %v8315
        %v8339 = vunpack.c.h.b16 %v8315
        %v8340 = vpack.c.b16 %v8324, %v8324
        %v8341 = vpack.c.b16 %v8325, %v8325
        %v8342 = vpack.c.b16 %v8326, %v8326
        %v8343 = vpack.c.b16 %v8327, %v8327
        %v8344 = vpack.c.b16 %v8328, %v8328
        %v8345 = vpack.c.b16 %v8329, %v8329
        %v8346 = vpack.c.b16 %v8330, %v8330
        %v8347 = vpack.c.b16 %v8331, %v8331
        %v8348 = vpack.c.b16 %v8332, %v8332
        %v8349 = vpack.c.b16 %v8333, %v8333
        %v8350 = vpack.c.b16 %v8334, %v8334
        %v8351 = vpack.c.b16 %v8335, %v8335
        %v8352 = vpack.c.b16 %v8336, %v8336
        %v8353 = vpack.c.b16 %v8337, %v8337
        %v8354 = vpack.c.b16 %v8338, %v8338
        %v8355 = vpack.c.b16 %v8339, %v8339
        %8372 = vst.msk [vmem:[%s385] sm:$0xf] %vm646, %v8340
        %8373 = vst.msk [vmem:[%s385 + $0x4] sm:$0xf] %vm646, %v8341
        %8374 = vst.msk [vmem:[%s385 + $0x8] sm:$0xf] %vm646, %v8342
        %8375 = vst.msk [vmem:[%s385 + $0xc] sm:$0xf] %vm646, %v8343
        %8376 = vst.msk [vmem:[%s385 + $0x10] sm:$0xf] %vm646, %v8344
        %8377 = vst.msk [vmem:[%s385 + $0x14] sm:$0xf] %vm646, %v8345
        %8378 = vst.msk [vmem:[%s385 + $0x18] sm:$0xf] %vm646, %v8346
        %8379 = vst.msk [vmem:[%s385 + $0x1c] sm:$0xf] %vm646, %v8347
        %8380 = vst.msk [vmem:[%s385 + $0x20] sm:$0xf] %vm646, %v8348
        %8381 = vst.msk [vmem:[%s385 + $0x24] sm:$0xf] %vm646, %v8349
        %8382 = vst.msk [vmem:[%s385 + $0x28] sm:$0xf] %vm646, %v8350
        %8383 = vst.msk [vmem:[%s385 + $0x2c] sm:$0xf] %vm646, %v8351
        %8384 = vst.msk [vmem:[%s385 + $0x30] sm:$0xf] %vm646, %v8352
        %8385 = vst.msk [vmem:[%s385 + $0x34] sm:$0xf] %vm646, %v8353
        %8386 = vst.msk [vmem:[%s385 + $0x38] sm:$0xf] %vm646, %v8354
        %8387 = vst.msk [vmem:[%s385 + $0x3c] sm:$0xf] %vm646, %v8355
        %s8388 = sand.u32 %s190, 1
        %s8389 = scalar_lea.sflag [#allocation5], %s8388
        %s8390 = sand.u32 %s190, 1
        %s8391 = smul.addr %s8390, 64
        %s8392 = scalar_lea.vmem [#allocation11], %s8391
        // Predicated region
        $region57: #{tpu_custom_call.1} parent=39 // pred_check
          %p8393 = pneg %p200
        $region58: #{tpu_custom_call.1} parent=39 // pred_check_branch
          %8395 = sbr.rel (%p8393) target = $region60
        $region59: #{tpu_custom_call.1} parent=39 // pred_region
          %s8396 = smul.u32 8, %s31
          %s8398 = ssub.s32 1024, 1024
          %8399 = vsyncadd %s8389, %s8398
          %s8400 = smul.addr %s8396, 2
          %s8401 = smul.addr %s30, 32
          %s8402 = sadd.s32 %s8400, %s8401
          %s8403 = smul.addr %s8402, 64
          %s8404 = scalar_lea.hbm %s5, %s8403
          %s8405 = sshll.u32 %s8392, 4
          %s8406 = int_to_ptr.vmem [resolvable:$true] %s8405
          %8411 = dma.vmem_to_hbm [thread:$0]  %s8406, 1024, %s8404, %s8389, 64, 64, 4
        $region60: #{tpu_custom_call.1} parent=39 // pred_fallthru
          _
      $region40: #{tpu_custom_call.1} parent=5 // pred_fallthru
        _
      %p8412 = scmp.le.s32.totalorder 2, %s21
      // Predicated region
      $region61: #{tpu_custom_call.1} parent=5 // pred_check
        %p8413 = pneg %p8412
      $region62: #{tpu_custom_call.1} parent=5 // pred_check_branch
        %8415 = sbr.rel (%p8413) target = $region64
      $region63: #{tpu_custom_call.1} parent=5 // pred_region
        %s8416 = ssub.s32 %s21, 2
        // Predicated region
        $region65: #{tpu_custom_call.1} parent=63 // pred_check
          %p8417 = pneg %p206
        $region66: #{tpu_custom_call.1} parent=63 // pred_check_branch
          %8419 = sbr.rel (%p8417) target = $region68
        $region67: #{tpu_custom_call.1} parent=63 // pred_region
          %s8420 = sand.u32 %s191, 1
          %s8421 = scalar_lea.sflag [#allocation5], %s8420
          %s8422 = sand.u32 %s191, 1
          %s8423 = smul.addr %s8422, 64
          %s8424 = scalar_lea.vmem [#allocation11], %s8423
          %8425 = dma.done %s8421, 1024
        $region68: #{tpu_custom_call.1} parent=63 // pred_fallthru
          _
      $region64: #{tpu_custom_call.1} parent=5 // pred_fallthru
        _
    $region6: #{tpu_custom_call.1} parent=1 // loop_footer
      %s25 = sadd.s32 1, %s21
    $region7: #{tpu_custom_call.1} parent=1 // loop_footer_branch
      %20 = sbr.rel target = $region3
    $region8: #{tpu_custom_call.1} parent=1 // loop_exit
      _
    %8426 = vsyncpa [#allocation4], 1
    %s8427 = scalar_lea.sflag [#allocation4], 1
    %8428 = vsyncpa %s8427, 1
    %8429 = vsyncpa [#allocation7], 1
    %s8430 = scalar_lea.sflag [#allocation7], 1
    %8431 = vsyncpa %s8430, 1
    %8432 = vsyncpa [#allocation10], 1
    %8433 = vsyncpa [#allocation5], 1
    %s8434 = scalar_lea.sflag [#allocation5], 1
    %8435 = vsyncpa %s8434, 1

</llo_original>
